<compile_context>
chip_gen: v7x
topology: tpu7x:2x2x1
jax: 0.10.0
libtpu: 0.0.40
codegen_flags: <defaults>
</compile_context>

<pallas_src>
import math

import jax
import jax.numpy as jnp
from jax.experimental import pallas as pl
from jax.experimental.pallas import tpu as pltpu


# ----------------------------------------------------------------------------
# Config (deterministic synthetic sizes; shapes implied by the meta-arch)
# ----------------------------------------------------------------------------
BACKBONE_C = 32            # logical backbone channels
C_PAD = 128                # lane-dense padded channel width (exact-zero padding)
IMG_K = 32                 # image im2col contraction: 3*3*3 = 27, zero-padded to 32
NUM_ANCHORS = 3
NUM_CLASSES = 5
BOX_HIDDEN = 64
HID_PAD = 128              # lane-dense padded box-head hidden width
HEAD_PAD = 128             # lane-dense padded head-output width
POOL = 4
TOPK_PROPOSALS = 8
ANCHOR_SIZES = (4.0, 8.0, 16.0)
BBOX_XFORM_CLIP = math.log(1000.0 / 16.0)
VMEM_LIMIT_BYTES = 48 * 1024 * 1024      # explicit, fits v7x (64 MiB) with headroom


# ----------------------------------------------------------------------------
# Pallas kernels
# ----------------------------------------------------------------------------
def _backbone_rpn_kernel(imgcol_ref, wbb_ref, bbb_ref, wc_ref, bc_ref, wh_ref, bh_ref,
                         featp_ref, rpn_ref, col_ref, acc_ref):
    # imgcol_ref: (1, H*W, IMG_K) f32  im2col'd, mean-subtracted image (1/std folded in w)
    # wbb_ref   : (IMG_K, C_PAD) f32   bbb_ref: (1, C_PAD) f32
    # wc_ref    : (3, 3*C_PAD, C_PAD) bf16 (per-dy im2col blocks)   bc_ref: (1, C_PAD) f32
    # wh_ref    : (C_PAD, HEAD_PAD) bf16                            bh_ref: (1, HEAD_PAD) f32
    # featp_ref : (1, H+2, W+4, C_PAD) bf16 OUTPUT — zero halo + backbone features
    #             (interior stored at W-offset 2 so packed-bf16 stores stay word-aligned)
    # rpn_ref   : (1, H*W, HEAD_PAD) bf16 OUTPUT — objectness || deltas, lane-padded
    # col_ref   : (H*W, 3*C_PAD) bf16 scratch   acc_ref: (H*W, C_PAD) f32 scratch
    hp = featp_ref.shape[1]
    wpad = featp_ref.shape[2]
    cp = featp_ref.shape[3]
    h, w = hp - 2, wpad - 4
    hw = h * w

    # ---- backbone: 3x3 conv as a single im2col matmul (K = 27 padded to 32) ----
    feat = jnp.dot(imgcol_ref[0], wbb_ref[...], preferred_element_type=jnp.float32)
    feat = jnp.maximum(feat + bbb_ref[...], 0.0).astype(jnp.bfloat16)      # (hw, cp)

    # Padded feature output doubles as the RPN conv halo buffer (no wrapper pad, no HBM
    # round-trip between backbone and RPN).  Border stays exactly zero.
    featp_ref[...] = jnp.zeros_like(featp_ref)
    featp_ref[0, 1:1 + h, 2:2 + w, :] = feat.reshape(h, w, cp)

    # ---- RPN 3x3 conv: 3-tap im2col (K = 3*C_PAD per dot), f32 VMEM accumulator ----
    # Feature pixel (fy, fx) lives at featp[fy+1, fx+2]; tap (dy, dx) window is
    # rows [dy, dy+h), cols [dx+1, dx+1+w)  (out-of-range taps hit the zero halo).
    for dy in range(3):
        for dx in range(3):
            col_ref[:, dx * cp:(dx + 1) * cp] = (
                featp_ref[0, dy:dy + h, dx + 1:dx + 1 + w, :].reshape(hw, cp))
        part = jnp.dot(col_ref[...], wc_ref[dy], preferred_element_type=jnp.float32)
        if dy == 0:
            acc_ref[...] = part
        else:
            acc_ref[...] = acc_ref[...] + part

    conv = jnp.maximum(acc_ref[...] + bc_ref[...], 0.0).astype(jnp.bfloat16)

    # ---- RPN 1x1 heads (objectness || deltas), lane-dense padded output slab ----
    head = jnp.dot(conv, wh_ref[...], preferred_element_type=jnp.float32) + bh_ref[...]
    rpn_ref[...] = head.reshape(1, hw, rpn_ref.shape[2]).astype(rpn_ref.dtype)


def backbone_rpn_fused(img_col, wbb, bbb, wc, bc, wh, bh, h, w):
    """Fused backbone conv + RPN conv + RPN heads.  Grid over the batch (parallel)."""
    n = img_col.shape[0]
    hw = h * w
    hp, wpad = h + 2, w + 4
    cp = C_PAD
    # TODO(synk): at production resolutions, H-row-tile this kernel with an overlapping
    # halo index_map (whole-image blocks only fit VMEM at toy sizes, esp. on v7x).
    return pl.pallas_call(
        _backbone_rpn_kernel,
        grid=(n,),
        in_specs=[
            pl.BlockSpec((1, hw, IMG_K), lambda i: (i, 0, 0)),
            pl.BlockSpec((IMG_K, cp), lambda i: (0, 0)),
            pl.BlockSpec((1, cp), lambda i: (0, 0)),
            pl.BlockSpec((3, 3 * cp, cp), lambda i: (0, 0, 0)),
            pl.BlockSpec((1, cp), lambda i: (0, 0)),
            pl.BlockSpec((cp, HEAD_PAD), lambda i: (0, 0)),
            pl.BlockSpec((1, HEAD_PAD), lambda i: (0, 0)),
        ],
        out_specs=[
            pl.BlockSpec((1, hp, wpad, cp), lambda i: (i, 0, 0, 0)),
            pl.BlockSpec((1, hw, HEAD_PAD), lambda i: (i, 0, 0)),
        ],
        out_shape=(
            jax.ShapeDtypeStruct((n, hp, wpad, cp), jnp.bfloat16),
            jax.ShapeDtypeStruct((n, hw, HEAD_PAD), jnp.bfloat16),
        ),
        scratch_shapes=[
            pltpu.VMEM((hw, 3 * cp), jnp.bfloat16),
            pltpu.VMEM((hw, cp), jnp.float32),
        ],
        compiler_params=pltpu.CompilerParams(
            dimension_semantics=("parallel",),
            vmem_limit_bytes=VMEM_LIMIT_BYTES),
    )(img_col, wbb, bbb, wc, bc, wh, bh)


def _box_head_kernel(x_ref, w1_ref, b1_ref, w2_ref, b2_ref, wp_ref, bp_ref, o_ref):
    # Fused box head: fc1 -> ReLU -> fc2 -> ReLU -> (cls || bbox) predictor.
    # Intermediates never leave VMEM; bias/ReLU stay f32 (no bf16 VPU on v5e).
    h1 = jnp.dot(x_ref[...], w1_ref[...], preferred_element_type=jnp.float32)
    h1 = jnp.maximum(h1 + b1_ref[...], 0.0).astype(jnp.bfloat16)
    h2 = jnp.dot(h1, w2_ref[...], preferred_element_type=jnp.float32)
    h2 = jnp.maximum(h2 + b2_ref[...], 0.0).astype(jnp.bfloat16)
    o_ref[...] = jnp.dot(h2, wp_ref[...],
                         preferred_element_type=jnp.float32) + bp_ref[...]


def box_head_fused(pooled, w1, b1, w2, b2, wpred, bpred):
    m, kin = pooled.shape
    hid = w1.shape[1]
    nout = wpred.shape[1]
    # Row tile over ROIs: aim for >= 2 grid steps (v7x has 2 TensorCores), multiple of 8.
    tm = min(256, max(8, ((-(-m // 2)) + 7) // 8 * 8))
    grid_m = -(-m // tm)
    m_pad = grid_m * tm
    if m_pad != m:
        pooled = jnp.pad(pooled, ((0, m_pad - m), (0, 0)))
    out = pl.pallas_call(
        _box_head_kernel,
        grid=(grid_m,),
        in_specs=[
            pl.BlockSpec((tm, kin), lambda i: (i, 0)),
            pl.BlockSpec((kin, hid), lambda i: (0, 0)),
            pl.BlockSpec((1, hid), lambda i: (0, 0)),
            pl.BlockSpec((hid, hid), lambda i: (0, 0)),
            pl.BlockSpec((1, hid), lambda i: (0, 0)),
            pl.BlockSpec((hid, nout), lambda i: (0, 0)),
            pl.BlockSpec((1, nout), lambda i: (0, 0)),
        ],
        out_specs=pl.BlockSpec((tm, nout), lambda i: (i, 0)),
        out_shape=jax.ShapeDtypeStruct((m_pad, nout), jnp.float32),
        compiler_params=pltpu.CompilerParams(
            dimension_semantics=("parallel",),
            vmem_limit_bytes=VMEM_LIMIT_BYTES),
    )(pooled, w1, b1, w2, b2, wpred, bpred)
    return out[:m]


# ----------------------------------------------------------------------------
# Plain-JAX glue (anchors, box transforms, ROI sampling)
# ----------------------------------------------------------------------------
def make_anchors(h, w, sizes):
    # TODO(synk): single aspect ratio per size; detectron2's default generator emits
    # size x aspect-ratio anchors (config-dependent).
    ys, xs = jnp.meshgrid(jnp.arange(h, dtype=jnp.float32) + 0.5,
                          jnp.arange(w, dtype=jnp.float32) + 0.5,
                          indexing="ij")
    ctrs = jnp.stack([xs, ys], axis=-1)                      # (H, W, 2) as (cx, cy)
    per_size = []
    for s in sizes:
        half = s / 2.0
        per_size.append(jnp.concatenate([ctrs - half, ctrs + half], axis=-1))
    anchors = jnp.stack(per_size, axis=2)                    # (H, W, A, 4)
    return anchors.reshape(h * w * len(sizes), 4)


def apply_deltas(boxes, deltas, weights=(1.0, 1.0, 1.0, 1.0)):
    wx, wy, ww, wh_ = weights
    w = boxes[:, 2] - boxes[:, 0]
    h = boxes[:, 3] - boxes[:, 1]
    cx = boxes[:, 0] + 0.5 * w
    cy = boxes[:, 1] + 0.5 * h
    dx = deltas[:, 0] / wx
    dy = deltas[:, 1] / wy
    dw = jnp.minimum(deltas[:, 2] / ww, BBOX_XFORM_CLIP)     # detectron2 scale_clamp
    dh = jnp.minimum(deltas[:, 3] / wh_, BBOX_XFORM_CLIP)
    pcx = dx * w + cx
    pcy = dy * h + cy
    pw = jnp.exp(dw) * w
    ph = jnp.exp(dh) * h
    return jnp.stack([pcx - 0.5 * pw, pcy - 0.5 * ph,
                      pcx + 0.5 * pw, pcy + 0.5 * ph], axis=-1)


def clip_boxes(boxes, h, w):
    x1 = jnp.clip(boxes[:, 0], 0.0, float(w))
    y1 = jnp.clip(boxes[:, 1], 0.0, float(h))
    x2 = jnp.clip(boxes[:, 2], 0.0, float(w))
    y2 = jnp.clip(boxes[:, 3], 0.0, float(h))
    return jnp.stack([x1, y1, x2, y2], axis=-1)


def roi_pool_nearest_padded(featp, boxes, pooled, h, w):
    # featp: (H+2, W+4, C) backbone features with a zero halo; feature pixel (fy, fx)
    # lives at featp[fy + 1, fx + 2].  Only the logical C=32 channels are gathered.
    # TODO(synk): ROIAlign's bilinear sampling has no clean Pallas equivalent here;
    # approximated with nearest-neighbor sampling of one point per output cell.
    x1, y1, x2, y2 = boxes[:, 0], boxes[:, 1], boxes[:, 2], boxes[:, 3]
    bw = jnp.maximum(x2 - x1, 1.0)
    bh = jnp.maximum(y2 - y1, 1.0)
    frac = (jnp.arange(pooled, dtype=jnp.float32) + 0.5) / pooled
    sy = y1[:, None] + frac[None, :] * bh[:, None]            # (K, P)
    sx = x1[:, None] + frac[None, :] * bw[:, None]            # (K, P)
    iy = jnp.clip(jnp.floor(sy), 0, h - 1).astype(jnp.int32) + 1
    ix = jnp.clip(jnp.floor(sx), 0, w - 1).astype(jnp.int32) + 2
    gathered = featp[iy[:, :, None], ix[:, None, :], :]       # (K, P, P, C)
    return gathered.reshape(boxes.shape[0], -1)


# ----------------------------------------------------------------------------
# Parameters (logical 32-channel weights; padding/folding done at call time)
# ----------------------------------------------------------------------------
def init_params(key):
    ks = jax.random.split(key, 8)
    f32 = jnp.float32
    p = {
        "backbone_w": 0.05 * jax.random.normal(ks[0], (3, 3, 3, BACKBONE_C), f32),
        "backbone_b": jnp.zeros((BACKBONE_C,), f32),
        "rpn_conv_w": 0.05 * jax.random.normal(ks[1], (3, 3, BACKBONE_C, BACKBONE_C), f32),
        "rpn_conv_b": jnp.zeros((BACKBONE_C,), f32),
        "rpn_obj_w": 0.05 * jax.random.normal(ks[2], (BACKBONE_C, NUM_ANCHORS), f32),
        "rpn_obj_b": jnp.zeros((NUM_ANCHORS,), f32),
        "rpn_delta_w": 0.05 * jax.random.normal(ks[3], (BACKBONE_C, 4 * NUM_ANCHORS), f32),
        "rpn_delta_b": jnp.zeros((4 * NUM_ANCHORS,), f32),
        "box_fc1_w": 0.05 * jax.random.normal(ks[4], (POOL * POOL * BACKBONE_C, BOX_HIDDEN), f32),
        "box_fc1_b": jnp.zeros((BOX_HIDDEN,), f32),
        "box_fc2_w": 0.05 * jax.random.normal(ks[5], (BOX_HIDDEN, BOX_HIDDEN), f32),
        "box_fc2_b": jnp.zeros((BOX_HIDDEN,), f32),
        "cls_w": 0.05 * jax.random.normal(ks[6], (BOX_HIDDEN, NUM_CLASSES + 1), f32),
        "cls_b": jnp.zeros((NUM_CLASSES + 1,), f32),
        "bbox_w": 0.05 * jax.random.normal(ks[7], (BOX_HIDDEN, NUM_CLASSES * 4), f32),
        "bbox_b": jnp.zeros((NUM_CLASSES * 4,), f32),
        # detectron2 default BGR pixel mean / std (registered buffers in the module)
        "pixel_mean": jnp.array([103.53, 116.28, 123.675], f32),
        "pixel_std": jnp.array([57.375, 57.12, 58.395], f32),
    }
    return p


def prepare_inference_params(p):
    """Fold 1/std into the backbone conv, re-lay-out conv weights as im2col matrices,
    concat the 1x1 heads, zero-pad channel dims to lane-dense widths (exact padding),
    cast the big MXU operands to bf16."""
    bf16 = jnp.bfloat16
    C, CP = BACKBONE_C, C_PAD
    std = p["pixel_std"]

    # Backbone conv as one im2col matrix: (3,3,3,C) -> (27,C), fold 1/std, pad K->32, C->128.
    w_bb = p["backbone_w"] / std[None, None, :, None]                   # (3,3,3,C)
    w_bb = w_bb.reshape(9 * 3, C)
    w_bb = jnp.pad(w_bb, ((0, IMG_K - 9 * 3), (0, CP - C)))             # (32, 128) f32
    b_bb = jnp.pad(p["backbone_b"], (0, CP - C)).reshape(1, CP)

    # RPN conv as three per-dy im2col blocks: (3, 3*CP, CP) bf16.
    wc = jnp.pad(p["rpn_conv_w"], ((0, 0), (0, 0), (0, CP - C), (0, CP - C)))
    wc = wc.reshape(3, 3 * CP, CP).astype(bf16)
    bc = jnp.pad(p["rpn_conv_b"], (0, CP - C)).reshape(1, CP)

    # RPN objectness + delta heads concatenated into one lane-padded matrix.
    n_head = NUM_ANCHORS + 4 * NUM_ANCHORS
    wh = jnp.concatenate([p["rpn_obj_w"], p["rpn_delta_w"]], axis=1)    # (C, 15)
    wh = jnp.pad(wh, ((0, CP - C), (0, HEAD_PAD - n_head))).astype(bf16)
    bh = jnp.concatenate([p["rpn_obj_b"], p["rpn_delta_b"]])
    bh = jnp.pad(bh, (0, HEAD_PAD - n_head)).reshape(1, HEAD_PAD)

    # Box head: NO channel padding on the fc1 contraction (pooled K = P*P*32 = 512).
    w_fc1 = jnp.pad(p["box_fc1_w"], ((0, 0), (0, HID_PAD - BOX_HIDDEN))).astype(bf16)
    b_fc1 = jnp.pad(p["box_fc1_b"], (0, HID_PAD - BOX_HIDDEN)).reshape(1, HID_PAD)
    w_fc2 = jnp.pad(p["box_fc2_w"],
                    ((0, HID_PAD - BOX_HIDDEN), (0, HID_PAD - BOX_HIDDEN))).astype(bf16)
    b_fc2 = jnp.pad(p["box_fc2_b"], (0, HID_PAD - BOX_HIDDEN)).reshape(1, HID_PAD)

    n_pred = (NUM_CLASSES + 1) + NUM_CLASSES * 4
    w_pred = jnp.concatenate([p["cls_w"], p["bbox_w"]], axis=1)         # (64, 26)
    w_pred = jnp.pad(w_pred, ((0, HID_PAD - BOX_HIDDEN), (0, HEAD_PAD - n_pred))).astype(bf16)
    b_pred = jnp.concatenate([p["cls_b"], p["bbox_b"]])
    b_pred = jnp.pad(b_pred, (0, HEAD_PAD - n_pred)).reshape(1, HEAD_PAD)

    return {
        "w_bb": w_bb, "b_bb": b_bb,
        "rpn_conv_w": wc, "rpn_conv_b": bc,
        "rpn_head_w": wh, "rpn_head_b": bh,
        "box_fc1_w": w_fc1, "box_fc1_b": b_fc1,
        "box_fc2_w": w_fc2, "box_fc2_b": b_fc2,
        "box_pred_w": w_pred, "box_pred_b": b_pred,
    }


# ----------------------------------------------------------------------------
# GeneralizedRCNN.forward (eval mode -> inference path)
# ----------------------------------------------------------------------------
def generalized_rcnn_inference(params, images_nchw):
    prep = prepare_inference_params(params)

    # preprocess_image: NCHW -> NHWC; 1/pixel_std folded into the backbone conv weights,
    # mean subtraction is one fused XLA op. "ImageList.from_tensors" padding is a no-op
    # here (shared shapes, size_divisibility satisfied).
    x = jnp.transpose(images_nchw, (0, 2, 3, 1)).astype(jnp.float32)
    n, h, w, _ = x.shape
    x = x - params["pixel_mean"].reshape(1, 1, 1, -1)
    xp = jnp.pad(x, ((0, 0), (1, 1), (1, 1), (0, 0)))

    # Wrapper-side im2col of the 3-channel image (K = 27, zero-padded to 32).
    cols = [xp[:, dy:dy + h, dx:dx + w, :] for dy in range(3) for dx in range(3)]
    img_col = jnp.concatenate(cols, axis=-1).reshape(n, h * w, 9 * 3)
    img_col = jnp.pad(img_col, ((0, 0), (0, 0), (0, IMG_K - 9 * 3)))

    # backbone + proposal_generator heads: ONE fused pallas_call per batch element.
    featp, rpn_out = backbone_rpn_fused(
        img_col, prep["w_bb"], prep["b_bb"],
        prep["rpn_conv_w"], prep["rpn_conv_b"],
        prep["rpn_head_w"], prep["rpn_head_b"], h, w)           # (N,H+2,W+4,CP), (N,H*W,128)

    rpn_f32 = rpn_out.astype(jnp.float32)
    obj = jax.nn.sigmoid(rpn_f32[:, :, :NUM_ANCHORS]).reshape(n, h * w * NUM_ANCHORS)
    deltas = rpn_f32[:, :, NUM_ANCHORS:NUM_ANCHORS + 4 * NUM_ANCHORS]
    deltas = deltas.reshape(n, h * w * NUM_ANCHORS, 4)
    anchors = make_anchors(h, w, ANCHOR_SIZES)                  # (HWA, 4)

    proposals = []
    for i in range(n):
        boxes_i = clip_boxes(apply_deltas(anchors, deltas[i]), h, w)
        # TODO(synk): NMS has no clean Pallas equivalent; proposals are plain top-k by objectness.
        _, idx = jax.lax.top_k(obj[i], TOPK_PROPOSALS)
        proposals.append(boxes_i[idx])
    proposals = jnp.stack(proposals, axis=0)                    # (N, K, 4)

    # roi_heads: gather only the 32 logical channels (padded channels are exactly zero).
    feat_logical = featp[:, :, :, :BACKBONE_C]                  # (N, H+2, W+4, 32) bf16
    pooled = []
    for i in range(n):
        pooled.append(roi_pool_nearest_padded(feat_logical[i], proposals[i], POOL, h, w))
    pooled = jnp.concatenate(pooled, axis=0).astype(jnp.bfloat16)   # (N*K, P*P*32)

    head_out = box_head_fused(pooled,
                              prep["box_fc1_w"], prep["box_fc1_b"],
                              prep["box_fc2_w"], prep["box_fc2_b"],
                              prep["box_pred_w"], prep["box_pred_b"])   # (N*K, 128)
    cls_scores = head_out[:, :NUM_CLASSES + 1]
    box_deltas = head_out[:, NUM_CLASSES + 1:NUM_CLASSES + 1 + NUM_CLASSES * 4]

    probs = jax.nn.softmax(cls_scores, axis=-1)
    fg_probs = probs[:, :-1]                          # background is the last class
    pred_classes = jnp.argmax(fg_probs, axis=-1)
    scores = jnp.take_along_axis(fg_probs, pred_classes[:, None], axis=-1)[:, 0]

    bd = box_deltas.reshape(-1, NUM_CLASSES, 4)
    sel_deltas = jnp.take_along_axis(bd, pred_classes[:, None, None], axis=1)[:, 0, :]
    flat_props = proposals.reshape(-1, 4)
    pred_boxes = clip_boxes(
        apply_deltas(flat_props, sel_deltas, weights=(10.0, 10.0, 5.0, 5.0)), h, w)

    # _postprocess / detector_postprocess: output size equals input size here,
    # so the rescale step is the identity.
    results = []
    for i in range(n):
        sl = slice(i * TOPK_PROPOSALS, (i + 1) * TOPK_PROPOSALS)
        results.append({
            "instances": {
                "pred_boxes": pred_boxes[sl],
                "scores": scores[sl],
                "pred_classes": pred_classes[sl],
            },
            "proposal_boxes": proposals[i],
        })
    # TODO(synk): training path (RPN + ROI-head losses vs. gt_instances) not implemented;
    # this reproduces GeneralizedRCNN.inference (eval-mode forward).
    return results


rcnn_forward = jax.jit(generalized_rcnn_inference)


# ----------------------------------------------------------------------------
if __name__ == "__main__":
    key = jax.random.PRNGKey(0)
    pkey, ikey = jax.random.split(key)
    params = init_params(pkey)
    # batched_inputs: batch of 2 images, each (C, H, W) = (3, 16, 16), values in [0, 255]
    images = jax.random.uniform(ikey, (2, 3, 16, 16), jnp.float32, 0.0, 255.0)
    results = rcnn_forward(params, images)
    jax.block_until_ready(results)
    print("KERNEL_OK")
</pallas_src>

<mosaic_0001>
module attributes {stable_mosaic.version = 11 : i64} {
  func.func @_backbone_rpn_kernel(%arg0: i32, %arg1: memref<1x256x32xf32, #tpu.memory_space<vmem>>, %arg2: memref<32x128xf32, #tpu.memory_space<vmem>>, %arg3: memref<1x128xf32, #tpu.memory_space<vmem>>, %arg4: memref<3x384x128xbf16, #tpu.memory_space<vmem>>, %arg5: memref<1x128xf32, #tpu.memory_space<vmem>>, %arg6: memref<128x128xbf16, #tpu.memory_space<vmem>>, %arg7: memref<1x128xf32, #tpu.memory_space<vmem>>, %arg8: memref<1x18x20x128xbf16, #tpu.memory_space<vmem>>, %arg9: memref<1x256x128xbf16, #tpu.memory_space<vmem>>, %arg10: memref<256x384xbf16, #tpu.memory_space<vmem>>, %arg11: memref<256x128xf32, #tpu.memory_space<vmem>>) attributes {dimension_semantics = [#tpu.dimension_semantics<parallel>], iteration_bounds = array<i64: 2>, scalar_prefetch = 0 : i64, scratch_operands = 2 : i64, tpu.core_type = #tpu.core_type<tc>, window_params = [{transform_indices = @transform_0, window_bounds = array<i64: 1, 256, 32>}, {pipeline_mode = #tpu.pipeline_mode<synchronous>, transform_indices = @transform_1, window_bounds = array<i64: 32, 128>}, {pipeline_mode = #tpu.pipeline_mode<synchronous>, transform_indices = @transform_2, window_bounds = array<i64: 1, 128>}, {pipeline_mode = #tpu.pipeline_mode<synchronous>, transform_indices = @transform_3, window_bounds = array<i64: 3, 384, 128>}, {pipeline_mode = #tpu.pipeline_mode<synchronous>, transform_indices = @transform_4, window_bounds = array<i64: 1, 128>}, {pipeline_mode = #tpu.pipeline_mode<synchronous>, transform_indices = @transform_5, window_bounds = array<i64: 128, 128>}, {pipeline_mode = #tpu.pipeline_mode<synchronous>, transform_indices = @transform_6, window_bounds = array<i64: 1, 128>}, {transform_indices = @transform_7, window_bounds = array<i64: 1, 18, 20, 128>}, {transform_indices = @transform_8, window_bounds = array<i64: 1, 256, 128>}]} {
    %c0 = arith.constant 0 : index
    %c0_0 = arith.constant 0 : index
    %c0_1 = arith.constant 0 : index
    %0 = vector.load %arg1[%c0, %c0_0, %c0_1] : memref<1x256x32xf32, #tpu.memory_space<vmem>>, vector<1x256x32xf32>
    %1 = vector.shape_cast %0 : vector<1x256x32xf32> to vector<256x32xf32>
    %c0_2 = arith.constant 0 : index
    %c0_3 = arith.constant 0 : index
    %2 = vector.load %arg2[%c0_2, %c0_3] : memref<32x128xf32, #tpu.memory_space<vmem>>, vector<32x128xf32>
    %cst = arith.constant dense<0.000000e+00> : vector<256x128xf32>
    %3 = tpu.matmul %1, %2, %cst {dimension_numbers = #tpu.dot_dimension_numbers<[1], [0], [0], [1], [0, 0, 1, 1], [], []>} : vector<256x32xf32>, vector<32x128xf32>, vector<256x128xf32> -> vector<256x128xf32>
    %c0_4 = arith.constant 0 : index
    %c0_5 = arith.constant 0 : index
    %4 = vector.load %arg3[%c0_4, %c0_5] : memref<1x128xf32, #tpu.memory_space<vmem>>, vector<1x128xf32>
    %5 = vector.broadcast %4 : vector<1x128xf32> to vector<256x128xf32>
    %6 = arith.addf %3, %5 : vector<256x128xf32>
    %cst_6 = arith.constant 0.000000e+00 : f32
    %7 = vector.broadcast %cst_6 : f32 to vector<256x128xf32>
    %8 = arith.maximumf %6, %7 : vector<256x128xf32>
    %9 = arith.truncf %8 : vector<256x128xf32> to vector<256x128xbf16>
    %cst_7 = arith.constant 0.000000e+00 : bf16
    %10 = vector.broadcast %cst_7 : bf16 to vector<1x18x20x128xbf16>
    %c0_8 = arith.constant 0 : index
    %c0_9 = arith.constant 0 : index
    %c0_10 = arith.constant 0 : index
    %c0_11 = arith.constant 0 : index
    %11 = vector.load %arg8[%c0_8, %c0_9, %c0_10, %c0_11] : memref<1x18x20x128xbf16, #tpu.memory_space<vmem>>, vector<1x18x20x128xbf16>
    tpu.vector_store %arg8[%c0_8, %c0_9, %c0_10, %c0_11], %10 {strides = array<i32>} : memref<1x18x20x128xbf16, #tpu.memory_space<vmem>>, vector<1x18x20x128xbf16>,
    %12 = vector.shape_cast %9 : vector<256x128xbf16> to vector<16x16x128xbf16>
    %c0_12 = arith.constant 0 : index
    %c1 = arith.constant 1 : index
    %c2 = arith.constant 2 : index
    %c0_13 = arith.constant 0 : index
    %13 = vector.load %arg8[%c0_12, %c1, %c2, %c0_13] : memref<1x18x20x128xbf16, #tpu.memory_space<vmem>>, vector<1x16x16x128xbf16>
    %14 = vector.shape_cast %13 : vector<1x16x16x128xbf16> to vector<16x16x128xbf16>
    %15 = vector.shape_cast %12 : vector<16x16x128xbf16> to vector<1x16x16x128xbf16>
    tpu.vector_store %arg8[%c0_12, %c1, %c2, %c0_13], %15 {strides = array<i32>} : memref<1x18x20x128xbf16, #tpu.memory_space<vmem>>, vector<1x16x16x128xbf16>,
    %c0_14 = arith.constant 0 : index
    %c0_15 = arith.constant 0 : index
    %c1_16 = arith.constant 1 : index
    %c0_17 = arith.constant 0 : index
    %16 = vector.load %arg8[%c0_14, %c0_15, %c1_16, %c0_17] : memref<1x18x20x128xbf16, #tpu.memory_space<vmem>>, vector<1x16x16x128xbf16>
    %17 = vector.shape_cast %16 : vector<1x16x16x128xbf16> to vector<16x16x128xbf16>
    %18 = vector.shape_cast %17 : vector<16x16x128xbf16> to vector<256x128xbf16>
    %c0_18 = arith.constant 0 : index
    %c0_19 = arith.constant 0 : index
    %19 = vector.load %arg10[%c0_18, %c0_19] : memref<256x384xbf16, #tpu.memory_space<vmem>>, vector<256x128xbf16>
    tpu.vector_store %arg10[%c0_18, %c0_19], %18 {strides = array<i32>} : memref<256x384xbf16, #tpu.memory_space<vmem>>, vector<256x128xbf16>,
    %c0_20 = arith.constant 0 : index
    %c0_21 = arith.constant 0 : index
    %c2_22 = arith.constant 2 : index
    %c0_23 = arith.constant 0 : index
    %20 = vector.load %arg8[%c0_20, %c0_21, %c2_22, %c0_23] : memref<1x18x20x128xbf16, #tpu.memory_space<vmem>>, vector<1x16x16x128xbf16>
    %21 = vector.shape_cast %20 : vector<1x16x16x128xbf16> to vector<16x16x128xbf16>
    %22 = vector.shape_cast %21 : vector<16x16x128xbf16> to vector<256x128xbf16>
    %c0_24 = arith.constant 0 : index
    %c128 = arith.constant 128 : index
    %23 = vector.load %arg10[%c0_24, %c128] : memref<256x384xbf16, #tpu.memory_space<vmem>>, vector<256x128xbf16>
    tpu.vector_store %arg10[%c0_24, %c128], %22 {strides = array<i32>} : memref<256x384xbf16, #tpu.memory_space<vmem>>, vector<256x128xbf16>,
    %c0_25 = arith.constant 0 : index
    %c0_26 = arith.constant 0 : index
    %c3 = arith.constant 3 : index
    %c0_27 = arith.constant 0 : index
    %24 = vector.load %arg8[%c0_25, %c0_26, %c3, %c0_27] : memref<1x18x20x128xbf16, #tpu.memory_space<vmem>>, vector<1x16x16x128xbf16>
    %25 = vector.shape_cast %24 : vector<1x16x16x128xbf16> to vector<16x16x128xbf16>
    %26 = vector.shape_cast %25 : vector<16x16x128xbf16> to vector<256x128xbf16>
    %c0_28 = arith.constant 0 : index
    %c256 = arith.constant 256 : index
    %27 = vector.load %arg10[%c0_28, %c256] : memref<256x384xbf16, #tpu.memory_space<vmem>>, vector<256x128xbf16>
    tpu.vector_store %arg10[%c0_28, %c256], %26 {strides = array<i32>} : memref<256x384xbf16, #tpu.memory_space<vmem>>, vector<256x128xbf16>,
    %c0_29 = arith.constant 0 : index
    %c0_30 = arith.constant 0 : index
    %28 = vector.load %arg10[%c0_29, %c0_30] : memref<256x384xbf16, #tpu.memory_space<vmem>>, vector<256x384xbf16>
    %c0_31 = arith.constant 0 : index
    %c0_32 = arith.constant 0 : index
    %c0_33 = arith.constant 0 : index
    %29 = vector.load %arg4[%c0_31, %c0_32, %c0_33] : memref<3x384x128xbf16, #tpu.memory_space<vmem>>, vector<1x384x128xbf16>
    %30 = vector.shape_cast %29 : vector<1x384x128xbf16> to vector<384x128xbf16>
    %cst_34 = arith.constant dense<0.000000e+00> : vector<256x128xf32>
    %31 = tpu.matmul %28, %30, %cst_34 {dimension_numbers = #tpu.dot_dimension_numbers<[1], [0], [0], [1], [0, 0, 1, 1], [], []>} : vector<256x384xbf16>, vector<384x128xbf16>, vector<256x128xf32> -> vector<256x128xf32>
    %c0_35 = arith.constant 0 : index
    %c0_36 = arith.constant 0 : index
    %32 = vector.load %arg11[%c0_35, %c0_36] : memref<256x128xf32, #tpu.memory_space<vmem>>, vector<256x128xf32>
    tpu.vector_store %arg11[%c0_35, %c0_36], %31 {strides = array<i32>} : memref<256x128xf32, #tpu.memory_space<vmem>>, vector<256x128xf32>,
    %c0_37 = arith.constant 0 : index
    %c1_38 = arith.constant 1 : index
    %c1_39 = arith.constant 1 : index
    %c0_40 = arith.constant 0 : index
    %33 = vector.load %arg8[%c0_37, %c1_38, %c1_39, %c0_40] : memref<1x18x20x128xbf16, #tpu.memory_space<vmem>>, vector<1x16x16x128xbf16>
    %34 = vector.shape_cast %33 : vector<1x16x16x128xbf16> to vector<16x16x128xbf16>
    %35 = vector.shape_cast %34 : vector<16x16x128xbf16> to vector<256x128xbf16>
    %c0_41 = arith.constant 0 : index
    %c0_42 = arith.constant 0 : index
    %36 = vector.load %arg10[%c0_41, %c0_42] : memref<256x384xbf16, #tpu.memory_space<vmem>>, vector<256x128xbf16>
    tpu.vector_store %arg10[%c0_41, %c0_42], %35 {strides = array<i32>} : memref<256x384xbf16, #tpu.memory_space<vmem>>, vector<256x128xbf16>,
    %c0_43 = arith.constant 0 : index
    %c1_44 = arith.constant 1 : index
    %c2_45 = arith.constant 2 : index
    %c0_46 = arith.constant 0 : index
    %37 = vector.load %arg8[%c0_43, %c1_44, %c2_45, %c0_46] : memref<1x18x20x128xbf16, #tpu.memory_space<vmem>>, vector<1x16x16x128xbf16>
    %38 = vector.shape_cast %37 : vector<1x16x16x128xbf16> to vector<16x16x128xbf16>
    %39 = vector.shape_cast %38 : vector<16x16x128xbf16> to vector<256x128xbf16>
    %c0_47 = arith.constant 0 : index
    %c128_48 = arith.constant 128 : index
    %40 = vector.load %arg10[%c0_47, %c128_48] : memref<256x384xbf16, #tpu.memory_space<vmem>>, vector<256x128xbf16>
    tpu.vector_store %arg10[%c0_47, %c128_48], %39 {strides = array<i32>} : memref<256x384xbf16, #tpu.memory_space<vmem>>, vector<256x128xbf16>,
    %c0_49 = arith.constant 0 : index
    %c1_50 = arith.constant 1 : index
    %c3_51 = arith.constant 3 : index
    %c0_52 = arith.constant 0 : index
    %41 = vector.load %arg8[%c0_49, %c1_50, %c3_51, %c0_52] : memref<1x18x20x128xbf16, #tpu.memory_space<vmem>>, vector<1x16x16x128xbf16>
    %42 = vector.shape_cast %41 : vector<1x16x16x128xbf16> to vector<16x16x128xbf16>
    %43 = vector.shape_cast %42 : vector<16x16x128xbf16> to vector<256x128xbf16>
    %c0_53 = arith.constant 0 : index
    %c256_54 = arith.constant 256 : index
    %44 = vector.load %arg10[%c0_53, %c256_54] : memref<256x384xbf16, #tpu.memory_space<vmem>>, vector<256x128xbf16>
    tpu.vector_store %arg10[%c0_53, %c256_54], %43 {strides = array<i32>} : memref<256x384xbf16, #tpu.memory_space<vmem>>, vector<256x128xbf16>,
    %c0_55 = arith.constant 0 : index
    %c0_56 = arith.constant 0 : index
    %45 = vector.load %arg10[%c0_55, %c0_56] : memref<256x384xbf16, #tpu.memory_space<vmem>>, vector<256x384xbf16>
    %c1_57 = arith.constant 1 : index
    %c0_58 = arith.constant 0 : index
    %c0_59 = arith.constant 0 : index
    %46 = vector.load %arg4[%c1_57, %c0_58, %c0_59] : memref<3x384x128xbf16, #tpu.memory_space<vmem>>, vector<1x384x128xbf16>
    %47 = vector.shape_cast %46 : vector<1x384x128xbf16> to vector<384x128xbf16>
    %cst_60 = arith.constant dense<0.000000e+00> : vector<256x128xf32>
    %48 = tpu.matmul %45, %47, %cst_60 {dimension_numbers = #tpu.dot_dimension_numbers<[1], [0], [0], [1], [0, 0, 1, 1], [], []>} : vector<256x384xbf16>, vector<384x128xbf16>, vector<256x128xf32> -> vector<256x128xf32>
    %c0_61 = arith.constant 0 : index
    %c0_62 = arith.constant 0 : index
    %49 = vector.load %arg11[%c0_61, %c0_62] : memref<256x128xf32, #tpu.memory_space<vmem>>, vector<256x128xf32>
    %50 = arith.addf %49, %48 : vector<256x128xf32>
    %c0_63 = arith.constant 0 : index
    %c0_64 = arith.constant 0 : index
    %51 = vector.load %arg11[%c0_63, %c0_64] : memref<256x128xf32, #tpu.memory_space<vmem>>, vector<256x128xf32>
    tpu.vector_store %arg11[%c0_63, %c0_64], %50 {strides = array<i32>} : memref<256x128xf32, #tpu.memory_space<vmem>>, vector<256x128xf32>,
    %c0_65 = arith.constant 0 : index
    %c2_66 = arith.constant 2 : index
    %c1_67 = arith.constant 1 : index
    %c0_68 = arith.constant 0 : index
    %52 = vector.load %arg8[%c0_65, %c2_66, %c1_67, %c0_68] : memref<1x18x20x128xbf16, #tpu.memory_space<vmem>>, vector<1x16x16x128xbf16>
    %53 = vector.shape_cast %52 : vector<1x16x16x128xbf16> to vector<16x16x128xbf16>
    %54 = vector.shape_cast %53 : vector<16x16x128xbf16> to vector<256x128xbf16>
    %c0_69 = arith.constant 0 : index
    %c0_70 = arith.constant 0 : index
    %55 = vector.load %arg10[%c0_69, %c0_70] : memref<256x384xbf16, #tpu.memory_space<vmem>>, vector<256x128xbf16>
    tpu.vector_store %arg10[%c0_69, %c0_70], %54 {strides = array<i32>} : memref<256x384xbf16, #tpu.memory_space<vmem>>, vector<256x128xbf16>,
    %c0_71 = arith.constant 0 : index
    %c2_72 = arith.constant 2 : index
    %c2_73 = arith.constant 2 : index
    %c0_74 = arith.constant 0 : index
    %56 = vector.load %arg8[%c0_71, %c2_72, %c2_73, %c0_74] : memref<1x18x20x128xbf16, #tpu.memory_space<vmem>>, vector<1x16x16x128xbf16>
    %57 = vector.shape_cast %56 : vector<1x16x16x128xbf16> to vector<16x16x128xbf16>
    %58 = vector.shape_cast %57 : vector<16x16x128xbf16> to vector<256x128xbf16>
    %c0_75 = arith.constant 0 : index
    %c128_76 = arith.constant 128 : index
    %59 = vector.load %arg10[%c0_75, %c128_76] : memref<256x384xbf16, #tpu.memory_space<vmem>>, vector<256x128xbf16>
    tpu.vector_store %arg10[%c0_75, %c128_76], %58 {strides = array<i32>} : memref<256x384xbf16, #tpu.memory_space<vmem>>, vector<256x128xbf16>,
    %c0_77 = arith.constant 0 : index
    %c2_78 = arith.constant 2 : index
    %c3_79 = arith.constant 3 : index
    %c0_80 = arith.constant 0 : index
    %60 = vector.load %arg8[%c0_77, %c2_78, %c3_79, %c0_80] : memref<1x18x20x128xbf16, #tpu.memory_space<vmem>>, vector<1x16x16x128xbf16>
    %61 = vector.shape_cast %60 : vector<1x16x16x128xbf16> to vector<16x16x128xbf16>
    %62 = vector.shape_cast %61 : vector<16x16x128xbf16> to vector<256x128xbf16>
    %c0_81 = arith.constant 0 : index
    %c256_82 = arith.constant 256 : index
    %63 = vector.load %arg10[%c0_81, %c256_82] : memref<256x384xbf16, #tpu.memory_space<vmem>>, vector<256x128xbf16>
    tpu.vector_store %arg10[%c0_81, %c256_82], %62 {strides = array<i32>} : memref<256x384xbf16, #tpu.memory_space<vmem>>, vector<256x128xbf16>,
    %c0_83 = arith.constant 0 : index
    %c0_84 = arith.constant 0 : index
    %64 = vector.load %arg10[%c0_83, %c0_84] : memref<256x384xbf16, #tpu.memory_space<vmem>>, vector<256x384xbf16>
    %c2_85 = arith.constant 2 : index
    %c0_86 = arith.constant 0 : index
    %c0_87 = arith.constant 0 : index
    %65 = vector.load %arg4[%c2_85, %c0_86, %c0_87] : memref<3x384x128xbf16, #tpu.memory_space<vmem>>, vector<1x384x128xbf16>
    %66 = vector.shape_cast %65 : vector<1x384x128xbf16> to vector<384x128xbf16>
    %cst_88 = arith.constant dense<0.000000e+00> : vector<256x128xf32>
    %67 = tpu.matmul %64, %66, %cst_88 {dimension_numbers = #tpu.dot_dimension_numbers<[1], [0], [0], [1], [0, 0, 1, 1], [], []>} : vector<256x384xbf16>, vector<384x128xbf16>, vector<256x128xf32> -> vector<256x128xf32>
    %c0_89 = arith.constant 0 : index
    %c0_90 = arith.constant 0 : index
    %68 = vector.load %arg11[%c0_89, %c0_90] : memref<256x128xf32, #tpu.memory_space<vmem>>, vector<256x128xf32>
    %69 = arith.addf %68, %67 : vector<256x128xf32>
    %c0_91 = arith.constant 0 : index
    %c0_92 = arith.constant 0 : index
    %70 = vector.load %arg11[%c0_91, %c0_92] : memref<256x128xf32, #tpu.memory_space<vmem>>, vector<256x128xf32>
    tpu.vector_store %arg11[%c0_91, %c0_92], %69 {strides = array<i32>} : memref<256x128xf32, #tpu.memory_space<vmem>>, vector<256x128xf32>,
    %c0_93 = arith.constant 0 : index
    %c0_94 = arith.constant 0 : index
    %71 = vector.load %arg11[%c0_93, %c0_94] : memref<256x128xf32, #tpu.memory_space<vmem>>, vector<256x128xf32>
    %c0_95 = arith.constant 0 : index
    %c0_96 = arith.constant 0 : index
    %72 = vector.load %arg5[%c0_95, %c0_96] : memref<1x128xf32, #tpu.memory_space<vmem>>, vector<1x128xf32>
    %73 = vector.broadcast %72 : vector<1x128xf32> to vector<256x128xf32>
    %74 = arith.addf %71, %73 : vector<256x128xf32>
    %cst_97 = arith.constant 0.000000e+00 : f32
    %75 = vector.broadcast %cst_97 : f32 to vector<256x128xf32>
    %76 = arith.maximumf %74, %75 : vector<256x128xf32>
    %77 = arith.truncf %76 : vector<256x128xf32> to vector<256x128xbf16>
    %c0_98 = arith.constant 0 : index
    %c0_99 = arith.constant 0 : index
    %78 = vector.load %arg6[%c0_98, %c0_99] : memref<128x128xbf16, #tpu.memory_space<vmem>>, vector<128x128xbf16>
    %cst_100 = arith.constant dense<0.000000e+00> : vector<256x128xf32>
    %79 = tpu.matmul %77, %78, %cst_100 {dimension_numbers = #tpu.dot_dimension_numbers<[1], [0], [0], [1], [0, 0, 1, 1], [], []>} : vector<256x128xbf16>, vector<128x128xbf16>, vector<256x128xf32> -> vector<256x128xf32>
    %c0_101 = arith.constant 0 : index
    %c0_102 = arith.constant 0 : index
    %80 = vector.load %arg7[%c0_101, %c0_102] : memref<1x128xf32, #tpu.memory_space<vmem>>, vector<1x128xf32>
    %81 = vector.broadcast %80 : vector<1x128xf32> to vector<256x128xf32>
    %82 = arith.addf %79, %81 : vector<256x128xf32>
    %83 = vector.shape_cast %82 : vector<256x128xf32> to vector<1x256x128xf32>
    %84 = arith.truncf %83 : vector<1x256x128xf32> to vector<1x256x128xbf16>
    %c0_103 = arith.constant 0 : index
    %c0_104 = arith.constant 0 : index
    %c0_105 = arith.constant 0 : index
    %85 = vector.load %arg9[%c0_103, %c0_104, %c0_105] : memref<1x256x128xbf16, #tpu.memory_space<vmem>>, vector<1x256x128xbf16>
    tpu.vector_store %arg9[%c0_103, %c0_104, %c0_105], %84 {strides = array<i32>} : memref<1x256x128xbf16, #tpu.memory_space<vmem>>, vector<1x256x128xbf16>,
    return
  }
  func.func @transform_0(%arg0: i32) -> (i32, i32, i32) {
    %c0_i32 = arith.constant 0 : i32
    %c0_i32_0 = arith.constant 0 : i32
    %c0_i32_1 = arith.constant 0 : i32
    return %arg0, %c0_i32, %c0_i32_0 : i32, i32, i32
  }
  func.func @transform_1(%arg0: i32) -> (i32, i32) {
    %c0_i32 = arith.constant 0 : i32
    %c0_i32_0 = arith.constant 0 : i32
    %c0_i32_1 = arith.constant 0 : i32
    return %c0_i32, %c0_i32_0 : i32, i32
  }
  func.func @transform_2(%arg0: i32) -> (i32, i32) {
    %c0_i32 = arith.constant 0 : i32
    %c0_i32_0 = arith.constant 0 : i32
    %c0_i32_1 = arith.constant 0 : i32
    return %c0_i32, %c0_i32_0 : i32, i32
  }
  func.func @transform_3(%arg0: i32) -> (i32, i32, i32) {
    %c0_i32 = arith.constant 0 : i32
    %c0_i32_0 = arith.constant 0 : i32
    %c0_i32_1 = arith.constant 0 : i32
    %c0_i32_2 = arith.constant 0 : i32
    return %c0_i32, %c0_i32_0, %c0_i32_1 : i32, i32, i32
  }
  func.func @transform_4(%arg0: i32) -> (i32, i32) {
    %c0_i32 = arith.constant 0 : i32
    %c0_i32_0 = arith.constant 0 : i32
    %c0_i32_1 = arith.constant 0 : i32
    return %c0_i32, %c0_i32_0 : i32, i32
  }
  func.func @transform_5(%arg0: i32) -> (i32, i32) {
    %c0_i32 = arith.constant 0 : i32
    %c0_i32_0 = arith.constant 0 : i32
    %c0_i32_1 = arith.constant 0 : i32
    return %c0_i32, %c0_i32_0 : i32, i32
  }
  func.func @transform_6(%arg0: i32) -> (i32, i32) {
    %c0_i32 = arith.constant 0 : i32
    %c0_i32_0 = arith.constant 0 : i32
    %c0_i32_1 = arith.constant 0 : i32
    return %c0_i32, %c0_i32_0 : i32, i32
  }
  func.func @transform_7(%arg0: i32) -> (i32, i32, i32, i32) {
    %c0_i32 = arith.constant 0 : i32
    %c0_i32_0 = arith.constant 0 : i32
    %c0_i32_1 = arith.constant 0 : i32
    %c0_i32_2 = arith.constant 0 : i32
    return %arg0, %c0_i32, %c0_i32_0, %c0_i32_1 : i32, i32, i32, i32
  }
  func.func @transform_8(%arg0: i32) -> (i32, i32, i32) {
    %c0_i32 = arith.constant 0 : i32
    %c0_i32_0 = arith.constant 0 : i32
    %c0_i32_1 = arith.constant 0 : i32
    return %arg0, %c0_i32, %c0_i32_0 : i32, i32, i32
  }
}

module attributes {stable_mosaic.version = 11 : i64} {
  func.func @_box_head_kernel(%arg0: i32, %arg1: memref<8x512xbf16, #tpu.memory_space<vmem>>, %arg2: memref<512x128xbf16, #tpu.memory_space<vmem>>, %arg3: memref<1x128xf32, #tpu.memory_space<vmem>>, %arg4: memref<128x128xbf16, #tpu.memory_space<vmem>>, %arg5: memref<1x128xf32, #tpu.memory_space<vmem>>, %arg6: memref<128x128xbf16, #tpu.memory_space<vmem>>, %arg7: memref<1x128xf32, #tpu.memory_space<vmem>>, %arg8: memref<8x128xf32, #tpu.memory_space<vmem>>) attributes {dimension_semantics = [#tpu.dimension_semantics<parallel>], iteration_bounds = array<i64: 2>, scalar_prefetch = 0 : i64, scratch_operands = 0 : i64, tpu.core_type = #tpu.core_type<tc>, window_params = [{transform_indices = @transform_0, window_bounds = array<i64: 8, 512>}, {pipeline_mode = #tpu.pipeline_mode<synchronous>, transform_indices = @transform_1, window_bounds = array<i64: 512, 128>}, {pipeline_mode = #tpu.pipeline_mode<synchronous>, transform_indices = @transform_2, window_bounds = array<i64: 1, 128>}, {pipeline_mode = #tpu.pipeline_mode<synchronous>, transform_indices = @transform_3, window_bounds = array<i64: 128, 128>}, {pipeline_mode = #tpu.pipeline_mode<synchronous>, transform_indices = @transform_4, window_bounds = array<i64: 1, 128>}, {pipeline_mode = #tpu.pipeline_mode<synchronous>, transform_indices = @transform_5, window_bounds = array<i64: 128, 128>}, {pipeline_mode = #tpu.pipeline_mode<synchronous>, transform_indices = @transform_6, window_bounds = array<i64: 1, 128>}, {transform_indices = @transform_7, window_bounds = array<i64: 8, 128>}]} {
    %c0 = arith.constant 0 : index
    %c0_0 = arith.constant 0 : index
    %0 = vector.load %arg1[%c0, %c0_0] : memref<8x512xbf16, #tpu.memory_space<vmem>>, vector<8x512xbf16>
    %c0_1 = arith.constant 0 : index
    %c0_2 = arith.constant 0 : index
    %1 = vector.load %arg2[%c0_1, %c0_2] : memref<512x128xbf16, #tpu.memory_space<vmem>>, vector<512x128xbf16>
    %cst = arith.constant dense<0.000000e+00> : vector<8x128xf32>
    %2 = tpu.matmul %0, %1, %cst {dimension_numbers = #tpu.dot_dimension_numbers<[1], [0], [0], [1], [0, 0, 1, 1], [], []>} : vector<8x512xbf16>, vector<512x128xbf16>, vector<8x128xf32> -> vector<8x128xf32>
    %c0_3 = arith.constant 0 : index
    %c0_4 = arith.constant 0 : index
    %3 = vector.load %arg3[%c0_3, %c0_4] : memref<1x128xf32, #tpu.memory_space<vmem>>, vector<1x128xf32>
    %4 = vector.broadcast %3 : vector<1x128xf32> to vector<8x128xf32>
    %5 = arith.addf %2, %4 : vector<8x128xf32>
    %cst_5 = arith.constant 0.000000e+00 : f32
    %6 = vector.broadcast %cst_5 : f32 to vector<8x128xf32>
    %7 = arith.maximumf %5, %6 : vector<8x128xf32>
    %8 = arith.truncf %7 : vector<8x128xf32> to vector<8x128xbf16>
    %c0_6 = arith.constant 0 : index
    %c0_7 = arith.constant 0 : index
    %9 = vector.load %arg4[%c0_6, %c0_7] : memref<128x128xbf16, #tpu.memory_space<vmem>>, vector<128x128xbf16>
    %cst_8 = arith.constant dense<0.000000e+00> : vector<8x128xf32>
    %10 = tpu.matmul %8, %9, %cst_8 {dimension_numbers = #tpu.dot_dimension_numbers<[1], [0], [0], [1], [0, 0, 1, 1], [], []>} : vector<8x128xbf16>, vector<128x128xbf16>, vector<8x128xf32> -> vector<8x128xf32>
    %c0_9 = arith.constant 0 : index
    %c0_10 = arith.constant 0 : index
    %11 = vector.load %arg5[%c0_9, %c0_10] : memref<1x128xf32, #tpu.memory_space<vmem>>, vector<1x128xf32>
    %12 = vector.broadcast %11 : vector<1x128xf32> to vector<8x128xf32>
    %13 = arith.addf %10, %12 : vector<8x128xf32>
    %cst_11 = arith.constant 0.000000e+00 : f32
    %14 = vector.broadcast %cst_11 : f32 to vector<8x128xf32>
    %15 = arith.maximumf %13, %14 : vector<8x128xf32>
    %16 = arith.truncf %15 : vector<8x128xf32> to vector<8x128xbf16>
    %c0_12 = arith.constant 0 : index
    %c0_13 = arith.constant 0 : index
    %17 = vector.load %arg6[%c0_12, %c0_13] : memref<128x128xbf16, #tpu.memory_space<vmem>>, vector<128x128xbf16>
    %cst_14 = arith.constant dense<0.000000e+00> : vector<8x128xf32>
    %18 = tpu.matmul %16, %17, %cst_14 {dimension_numbers = #tpu.dot_dimension_numbers<[1], [0], [0], [1], [0, 0, 1, 1], [], []>} : vector<8x128xbf16>, vector<128x128xbf16>, vector<8x128xf32> -> vector<8x128xf32>
    %c0_15 = arith.constant 0 : index
    %c0_16 = arith.constant 0 : index
    %19 = vector.load %arg7[%c0_15, %c0_16] : memref<1x128xf32, #tpu.memory_space<vmem>>, vector<1x128xf32>
    %20 = vector.broadcast %19 : vector<1x128xf32> to vector<8x128xf32>
    %21 = arith.addf %18, %20 : vector<8x128xf32>
    %c0_17 = arith.constant 0 : index
    %c0_18 = arith.constant 0 : index
    %22 = vector.load %arg8[%c0_17, %c0_18] : memref<8x128xf32, #tpu.memory_space<vmem>>, vector<8x128xf32>
    tpu.vector_store %arg8[%c0_17, %c0_18], %21 {strides = array<i32>} : memref<8x128xf32, #tpu.memory_space<vmem>>, vector<8x128xf32>,
    return
  }
  func.func @transform_0(%arg0: i32) -> (i32, i32) {
    %c0_i32 = arith.constant 0 : i32
    %c0_i32_0 = arith.constant 0 : i32
    return %arg0, %c0_i32 : i32, i32
  }
  func.func @transform_1(%arg0: i32) -> (i32, i32) {
    %c0_i32 = arith.constant 0 : i32
    %c0_i32_0 = arith.constant 0 : i32
    %c0_i32_1 = arith.constant 0 : i32
    return %c0_i32, %c0_i32_0 : i32, i32
  }
  func.func @transform_2(%arg0: i32) -> (i32, i32) {
    %c0_i32 = arith.constant 0 : i32
    %c0_i32_0 = arith.constant 0 : i32
    %c0_i32_1 = arith.constant 0 : i32
    return %c0_i32, %c0_i32_0 : i32, i32
  }
  func.func @transform_3(%arg0: i32) -> (i32, i32) {
    %c0_i32 = arith.constant 0 : i32
    %c0_i32_0 = arith.constant 0 : i32
    %c0_i32_1 = arith.constant 0 : i32
    return %c0_i32, %c0_i32_0 : i32, i32
  }
  func.func @transform_4(%arg0: i32) -> (i32, i32) {
    %c0_i32 = arith.constant 0 : i32
    %c0_i32_0 = arith.constant 0 : i32
    %c0_i32_1 = arith.constant 0 : i32
    return %c0_i32, %c0_i32_0 : i32, i32
  }
  func.func @transform_5(%arg0: i32) -> (i32, i32) {
    %c0_i32 = arith.constant 0 : i32
    %c0_i32_0 = arith.constant 0 : i32
    %c0_i32_1 = arith.constant 0 : i32
    return %c0_i32, %c0_i32_0 : i32, i32
  }
  func.func @transform_6(%arg0: i32) -> (i32, i32) {
    %c0_i32 = arith.constant 0 : i32
    %c0_i32_0 = arith.constant 0 : i32
    %c0_i32_1 = arith.constant 0 : i32
    return %c0_i32, %c0_i32_0 : i32, i32
  }
  func.func @transform_7(%arg0: i32) -> (i32, i32) {
    %c0_i32 = arith.constant 0 : i32
    %c0_i32_0 = arith.constant 0 : i32
    return %arg0, %c0_i32 : i32, i32
  }
}

</mosaic_0001>

<llo_original>
// kernel: squeeze.46
$region0: #{squeeze.46}
  %s0 = inlined_call_operand.vmem [shape: f32[1,256,12], index: 0, kind: input, shape index: {}]
  %s1 = inlined_call_operand.vmem [shape: f32[768,4], index: 1, kind: output, shape index: {}]
  %v2 = vld [vmem:[%s0] sm:$0xff]
  %vm3 = vcmask 31744
  %4 = vst.msk [vmem:[%s1] ss:$3 sm:$0xff] %vm3, %v2
  %s5 = scalar_lea.vmem %s0, 8
  %v6 = vld [vmem:[%s5] sm:$0xff]
  %vm7 = vcmask 31744
  %s8 = scalar_lea.vmem %s1, 24
  %9 = vst.msk [vmem:[%s8] ss:$3 sm:$0xff] %vm7, %v6
  %s10 = scalar_lea.vmem %s0, 16
  %v11 = vld [vmem:[%s10] sm:$0xff]
  %vm12 = vcmask 31744
  %s13 = scalar_lea.vmem %s1, 48
  %14 = vst.msk [vmem:[%s13] ss:$3 sm:$0xff] %vm12, %v11
  %s15 = scalar_lea.vmem %s0, 24
  %v16 = vld [vmem:[%s15] sm:$0xff]
  %vm17 = vcmask 31744
  %s18 = scalar_lea.vmem %s1, 72
  %19 = vst.msk [vmem:[%s18] ss:$3 sm:$0xff] %vm17, %v16
  %s20 = scalar_lea.vmem %s0, 32
  %v21 = vld [vmem:[%s20] sm:$0xff]
  %vm22 = vcmask 31744
  %s23 = scalar_lea.vmem %s1, 96
  %24 = vst.msk [vmem:[%s23] ss:$3 sm:$0xff] %vm22, %v21
  %s25 = scalar_lea.vmem %s0, 40
  %v26 = vld [vmem:[%s25] sm:$0xff]
  %vm27 = vcmask 31744
  %s28 = scalar_lea.vmem %s1, 120
  %29 = vst.msk [vmem:[%s28] ss:$3 sm:$0xff] %vm27, %v26
  %s30 = scalar_lea.vmem %s0, 48
  %v31 = vld [vmem:[%s30] sm:$0xff]
  %vm32 = vcmask 31744
  %s33 = scalar_lea.vmem %s1, 144
  %34 = vst.msk [vmem:[%s33] ss:$3 sm:$0xff] %vm32, %v31
  %s35 = scalar_lea.vmem %s0, 56
  %v36 = vld [vmem:[%s35] sm:$0xff]
  %vm37 = vcmask 31744
  %s38 = scalar_lea.vmem %s1, 168
  %39 = vst.msk [vmem:[%s38] ss:$3 sm:$0xff] %vm37, %v36
  %s40 = scalar_lea.vmem %s0, 64
  %v41 = vld [vmem:[%s40] sm:$0xff]
  %vm42 = vcmask 31744
  %s43 = scalar_lea.vmem %s1, 192
  %44 = vst.msk [vmem:[%s43] ss:$3 sm:$0xff] %vm42, %v41
  %s45 = scalar_lea.vmem %s0, 72
  %v46 = vld [vmem:[%s45] sm:$0xff]
  %vm47 = vcmask 31744
  %s48 = scalar_lea.vmem %s1, 216
  %49 = vst.msk [vmem:[%s48] ss:$3 sm:$0xff] %vm47, %v46
  %s50 = scalar_lea.vmem %s0, 80
  %v51 = vld [vmem:[%s50] sm:$0xff]
  %vm52 = vcmask 31744
  %s53 = scalar_lea.vmem %s1, 240
  %54 = vst.msk [vmem:[%s53] ss:$3 sm:$0xff] %vm52, %v51
  %s55 = scalar_lea.vmem %s0, 88
  %v56 = vld [vmem:[%s55] sm:$0xff]
  %vm57 = vcmask 31744
  %s58 = scalar_lea.vmem %s1, 264
  %59 = vst.msk [vmem:[%s58] ss:$3 sm:$0xff] %vm57, %v56
  %s60 = scalar_lea.vmem %s0, 96
  %v61 = vld [vmem:[%s60] sm:$0xff]
  %vm62 = vcmask 31744
  %s63 = scalar_lea.vmem %s1, 288
  %64 = vst.msk [vmem:[%s63] ss:$3 sm:$0xff] %vm62, %v61
  %s65 = scalar_lea.vmem %s0, 104
  %v66 = vld [vmem:[%s65] sm:$0xff]
  %vm67 = vcmask 31744
  %s68 = scalar_lea.vmem %s1, 312
  %69 = vst.msk [vmem:[%s68] ss:$3 sm:$0xff] %vm67, %v66
  %s70 = scalar_lea.vmem %s0, 112
  %v71 = vld [vmem:[%s70] sm:$0xff]
  %vm72 = vcmask 31744
  %s73 = scalar_lea.vmem %s1, 336
  %74 = vst.msk [vmem:[%s73] ss:$3 sm:$0xff] %vm72, %v71
  %s75 = scalar_lea.vmem %s0, 120
  %v76 = vld [vmem:[%s75] sm:$0xff]
  %vm77 = vcmask 31744
  %s78 = scalar_lea.vmem %s1, 360
  %79 = vst.msk [vmem:[%s78] ss:$3 sm:$0xff] %vm77, %v76
  %s80 = scalar_lea.vmem %s0, 128
  %v81 = vld [vmem:[%s80] sm:$0xff]
  %vm82 = vcmask 31744
  %s83 = scalar_lea.vmem %s1, 384
  %84 = vst.msk [vmem:[%s83] ss:$3 sm:$0xff] %vm82, %v81
  %s85 = scalar_lea.vmem %s0, 136
  %v86 = vld [vmem:[%s85] sm:$0xff]
  %vm87 = vcmask 31744
  %s88 = scalar_lea.vmem %s1, 408
  %89 = vst.msk [vmem:[%s88] ss:$3 sm:$0xff] %vm87, %v86
  %s90 = scalar_lea.vmem %s0, 144
  %v91 = vld [vmem:[%s90] sm:$0xff]
  %vm92 = vcmask 31744
  %s93 = scalar_lea.vmem %s1, 432
  %94 = vst.msk [vmem:[%s93] ss:$3 sm:$0xff] %vm92, %v91
  %s95 = scalar_lea.vmem %s0, 152
  %v96 = vld [vmem:[%s95] sm:$0xff]
  %vm97 = vcmask 31744
  %s98 = scalar_lea.vmem %s1, 456
  %99 = vst.msk [vmem:[%s98] ss:$3 sm:$0xff] %vm97, %v96
  %s100 = scalar_lea.vmem %s0, 160
  %v101 = vld [vmem:[%s100] sm:$0xff]
  %vm102 = vcmask 31744
  %s103 = scalar_lea.vmem %s1, 480
  %104 = vst.msk [vmem:[%s103] ss:$3 sm:$0xff] %vm102, %v101
  %s105 = scalar_lea.vmem %s0, 168
  %v106 = vld [vmem:[%s105] sm:$0xff]
  %vm107 = vcmask 31744
  %s108 = scalar_lea.vmem %s1, 504
  %109 = vst.msk [vmem:[%s108] ss:$3 sm:$0xff] %vm107, %v106
  %s110 = scalar_lea.vmem %s0, 176
  %v111 = vld [vmem:[%s110] sm:$0xff]
  %vm112 = vcmask 31744
  %s113 = scalar_lea.vmem %s1, 528
  %114 = vst.msk [vmem:[%s113] ss:$3 sm:$0xff] %vm112, %v111
  %s115 = scalar_lea.vmem %s0, 184
  %v116 = vld [vmem:[%s115] sm:$0xff]
  %vm117 = vcmask 31744
  %s118 = scalar_lea.vmem %s1, 552
  %119 = vst.msk [vmem:[%s118] ss:$3 sm:$0xff] %vm117, %v116
  %s120 = scalar_lea.vmem %s0, 192
  %v121 = vld [vmem:[%s120] sm:$0xff]
  %vm122 = vcmask 31744
  %s123 = scalar_lea.vmem %s1, 576
  %124 = vst.msk [vmem:[%s123] ss:$3 sm:$0xff] %vm122, %v121
  %s125 = scalar_lea.vmem %s0, 200
  %v126 = vld [vmem:[%s125] sm:$0xff]
  %vm127 = vcmask 31744
  %s128 = scalar_lea.vmem %s1, 600
  %129 = vst.msk [vmem:[%s128] ss:$3 sm:$0xff] %vm127, %v126
  %s130 = scalar_lea.vmem %s0, 208
  %v131 = vld [vmem:[%s130] sm:$0xff]
  %vm132 = vcmask 31744
  %s133 = scalar_lea.vmem %s1, 624
  %134 = vst.msk [vmem:[%s133] ss:$3 sm:$0xff] %vm132, %v131
  %s135 = scalar_lea.vmem %s0, 216
  %v136 = vld [vmem:[%s135] sm:$0xff]
  %vm137 = vcmask 31744
  %s138 = scalar_lea.vmem %s1, 648
  %139 = vst.msk [vmem:[%s138] ss:$3 sm:$0xff] %vm137, %v136
  %s140 = scalar_lea.vmem %s0, 224
  %v141 = vld [vmem:[%s140] sm:$0xff]
  %vm142 = vcmask 31744
  %s143 = scalar_lea.vmem %s1, 672
  %144 = vst.msk [vmem:[%s143] ss:$3 sm:$0xff] %vm142, %v141
  %s145 = scalar_lea.vmem %s0, 232
  %v146 = vld [vmem:[%s145] sm:$0xff]
  %vm147 = vcmask 31744
  %s148 = scalar_lea.vmem %s1, 696
  %149 = vst.msk [vmem:[%s148] ss:$3 sm:$0xff] %vm147, %v146
  %s150 = scalar_lea.vmem %s0, 240
  %v151 = vld [vmem:[%s150] sm:$0xff]
  %vm152 = vcmask 31744
  %s153 = scalar_lea.vmem %s1, 720
  %154 = vst.msk [vmem:[%s153] ss:$3 sm:$0xff] %vm152, %v151
  %s155 = scalar_lea.vmem %s0, 248
  %v156 = vld [vmem:[%s155] sm:$0xff]
  %vm157 = vcmask 31744
  %s158 = scalar_lea.vmem %s1, 744
  %159 = vst.msk [vmem:[%s158] ss:$3 sm:$0xff] %vm157, %v156
  %s160 = scalar_lea.vmem %s0, 21
  %s161 = smov 3
  %v162 = vld [vmem:[%s160] ss:$-21 sm:%s161]
  %s163 = scalar_lea.vmem %s0, 4294967285
  %s164 = smov 12
  %v165 = vld [vmem:[%s163] ss:$11 sm:%s164]
  %vm166 = vcmask 1043458
  %v167 = vsel %vm166, %v165, %v162
  %s168 = scalar_lea.vmem %s0, 4294967253
  %v169 = vld [vmem:[%s168] ss:$11 sm:$0x70]
  %vm170 = vcmask 1046532
  %v171 = vsel %vm170, %v169, %v167
  %s172 = scalar_lea.vmem %s0, 4294967291
  %v173 = vld [vmem:[%s172] sm:$0x80]
  %vm174 = vcmask 1047559
  %v175 = vsel %vm174, %v173, %v171
  %176 = vrot.lane.b32.xlu0 %v175, 124
  %v177 = vpop.permute.xlu0 %176
  %vm178 = vcmask 31744
  %s179 = scalar_lea.vmem %s1, 64
  %180 = vst.msk [vmem:[%s179] ss:$-63 sm:$0x3] %vm178, %v177
  %s181 = scalar_lea.vmem %s1, 4294967264
  %182 = vst.msk [vmem:[%s181] ss:$33 sm:$0xc] %vm178, %v177
  %s183 = scalar_lea.vmem %s1, 4294967168
  %184 = vst.msk [vmem:[%s183] ss:$33 sm:$0x70] %vm178, %v177
  %185 = vst.msk [vmem:[%s1] sm:$0x80] %vm178, %v177
  %s186 = scalar_lea.vmem %s0, 53
  %s187 = smov 3
  %v188 = vld [vmem:[%s186] ss:$-21 sm:%s187]
  %s189 = scalar_lea.vmem %s0, 21
  %s190 = smov 12
  %v191 = vld [vmem:[%s189] ss:$11 sm:%s190]
  %vm192 = vcmask 1043458
  %v193 = vsel %vm192, %v191, %v188
  %s194 = scalar_lea.vmem %s0, 4294967285
  %v195 = vld [vmem:[%s194] ss:$11 sm:$0x70]
  %vm196 = vcmask 1046532
  %v197 = vsel %vm196, %v195, %v193
  %s198 = scalar_lea.vmem %s0, 27
  %v199 = vld [vmem:[%s198] sm:$0x80]
  %vm200 = vcmask 1047559
  %v201 = vsel %vm200, %v199, %v197
  %202 = vrot.lane.b32.xlu0 %v201, 124
  %v203 = vpop.permute.xlu0 %202
  %vm204 = vcmask 31744
  %s205 = scalar_lea.vmem %s1, 160
  %206 = vst.msk [vmem:[%s205] ss:$-63 sm:$0x3] %vm204, %v203
  %s207 = scalar_lea.vmem %s1, 64
  %208 = vst.msk [vmem:[%s207] ss:$33 sm:$0xc] %vm204, %v203
  %s209 = scalar_lea.vmem %s1, 4294967264
  %210 = vst.msk [vmem:[%s209] ss:$33 sm:$0x70] %vm204, %v203
  %s211 = scalar_lea.vmem %s1, 96
  %212 = vst.msk [vmem:[%s211] sm:$0x80] %vm204, %v203
  %s213 = scalar_lea.vmem %s0, 85
  %s214 = smov 3
  %v215 = vld [vmem:[%s213] ss:$-21 sm:%s214]
  %s216 = scalar_lea.vmem %s0, 53
  %s217 = smov 12
  %v218 = vld [vmem:[%s216] ss:$11 sm:%s217]
  %vm219 = vcmask 1043458
  %v220 = vsel %vm219, %v218, %v215
  %s221 = scalar_lea.vmem %s0, 21
  %v222 = vld [vmem:[%s221] ss:$11 sm:$0x70]
  %vm223 = vcmask 1046532
  %v224 = vsel %vm223, %v222, %v220
  %s225 = scalar_lea.vmem %s0, 59
  %v226 = vld [vmem:[%s225] sm:$0x80]
  %vm227 = vcmask 1047559
  %v228 = vsel %vm227, %v226, %v224
  %229 = vrot.lane.b32.xlu0 %v228, 124
  %v230 = vpop.permute.xlu0 %229
  %vm231 = vcmask 31744
  %s232 = scalar_lea.vmem %s1, 256
  %233 = vst.msk [vmem:[%s232] ss:$-63 sm:$0x3] %vm231, %v230
  %s234 = scalar_lea.vmem %s1, 160
  %235 = vst.msk [vmem:[%s234] ss:$33 sm:$0xc] %vm231, %v230
  %s236 = scalar_lea.vmem %s1, 64
  %237 = vst.msk [vmem:[%s236] ss:$33 sm:$0x70] %vm231, %v230
  %s238 = scalar_lea.vmem %s1, 192
  %239 = vst.msk [vmem:[%s238] sm:$0x80] %vm231, %v230
  %s240 = scalar_lea.vmem %s0, 117
  %s241 = smov 3
  %v242 = vld [vmem:[%s240] ss:$-21 sm:%s241]
  %s243 = scalar_lea.vmem %s0, 85
  %s244 = smov 12
  %v245 = vld [vmem:[%s243] ss:$11 sm:%s244]
  %vm246 = vcmask 1043458
  %v247 = vsel %vm246, %v245, %v242
  %s248 = scalar_lea.vmem %s0, 53
  %v249 = vld [vmem:[%s248] ss:$11 sm:$0x70]
  %vm250 = vcmask 1046532
  %v251 = vsel %vm250, %v249, %v247
  %s252 = scalar_lea.vmem %s0, 91
  %v253 = vld [vmem:[%s252] sm:$0x80]
  %vm254 = vcmask 1047559
  %v255 = vsel %vm254, %v253, %v251
  %256 = vrot.lane.b32.xlu0 %v255, 124
  %v257 = vpop.permute.xlu0 %256
  %vm258 = vcmask 31744
  %s259 = scalar_lea.vmem %s1, 352
  %260 = vst.msk [vmem:[%s259] ss:$-63 sm:$0x3] %vm258, %v257
  %s261 = scalar_lea.vmem %s1, 256
  %262 = vst.msk [vmem:[%s261] ss:$33 sm:$0xc] %vm258, %v257
  %s263 = scalar_lea.vmem %s1, 160
  %264 = vst.msk [vmem:[%s263] ss:$33 sm:$0x70] %vm258, %v257
  %s265 = scalar_lea.vmem %s1, 288
  %266 = vst.msk [vmem:[%s265] sm:$0x80] %vm258, %v257
  %s267 = scalar_lea.vmem %s0, 149
  %s268 = smov 3
  %v269 = vld [vmem:[%s267] ss:$-21 sm:%s268]
  %s270 = scalar_lea.vmem %s0, 117
  %s271 = smov 12
  %v272 = vld [vmem:[%s270] ss:$11 sm:%s271]
  %vm273 = vcmask 1043458
  %v274 = vsel %vm273, %v272, %v269
  %s275 = scalar_lea.vmem %s0, 85
  %v276 = vld [vmem:[%s275] ss:$11 sm:$0x70]
  %vm277 = vcmask 1046532
  %v278 = vsel %vm277, %v276, %v274
  %s279 = scalar_lea.vmem %s0, 123
  %v280 = vld [vmem:[%s279] sm:$0x80]
  %vm281 = vcmask 1047559
  %v282 = vsel %vm281, %v280, %v278
  %283 = vrot.lane.b32.xlu0 %v282, 124
  %v284 = vpop.permute.xlu0 %283
  %vm285 = vcmask 31744
  %s286 = scalar_lea.vmem %s1, 448
  %287 = vst.msk [vmem:[%s286] ss:$-63 sm:$0x3] %vm285, %v284
  %s288 = scalar_lea.vmem %s1, 352
  %289 = vst.msk [vmem:[%s288] ss:$33 sm:$0xc] %vm285, %v284
  %s290 = scalar_lea.vmem %s1, 256
  %291 = vst.msk [vmem:[%s290] ss:$33 sm:$0x70] %vm285, %v284
  %s292 = scalar_lea.vmem %s1, 384
  %293 = vst.msk [vmem:[%s292] sm:$0x80] %vm285, %v284
  %s294 = scalar_lea.vmem %s0, 181
  %s295 = smov 3
  %v296 = vld [vmem:[%s294] ss:$-21 sm:%s295]
  %s297 = scalar_lea.vmem %s0, 149
  %s298 = smov 12
  %v299 = vld [vmem:[%s297] ss:$11 sm:%s298]
  %vm300 = vcmask 1043458
  %v301 = vsel %vm300, %v299, %v296
  %s302 = scalar_lea.vmem %s0, 117
  %v303 = vld [vmem:[%s302] ss:$11 sm:$0x70]
  %vm304 = vcmask 1046532
  %v305 = vsel %vm304, %v303, %v301
  %s306 = scalar_lea.vmem %s0, 155
  %v307 = vld [vmem:[%s306] sm:$0x80]
  %vm308 = vcmask 1047559
  %v309 = vsel %vm308, %v307, %v305
  %310 = vrot.lane.b32.xlu0 %v309, 124
  %v311 = vpop.permute.xlu0 %310
  %vm312 = vcmask 31744
  %s313 = scalar_lea.vmem %s1, 544
  %314 = vst.msk [vmem:[%s313] ss:$-63 sm:$0x3] %vm312, %v311
  %s315 = scalar_lea.vmem %s1, 448
  %316 = vst.msk [vmem:[%s315] ss:$33 sm:$0xc] %vm312, %v311
  %s317 = scalar_lea.vmem %s1, 352
  %318 = vst.msk [vmem:[%s317] ss:$33 sm:$0x70] %vm312, %v311
  %s319 = scalar_lea.vmem %s1, 480
  %320 = vst.msk [vmem:[%s319] sm:$0x80] %vm312, %v311
  %s321 = scalar_lea.vmem %s0, 213
  %s322 = smov 3
  %v323 = vld [vmem:[%s321] ss:$-21 sm:%s322]
  %s324 = scalar_lea.vmem %s0, 181
  %s325 = smov 12
  %v326 = vld [vmem:[%s324] ss:$11 sm:%s325]
  %vm327 = vcmask 1043458
  %v328 = vsel %vm327, %v326, %v323
  %s329 = scalar_lea.vmem %s0, 149
  %v330 = vld [vmem:[%s329] ss:$11 sm:$0x70]
  %vm331 = vcmask 1046532
  %v332 = vsel %vm331, %v330, %v328
  %s333 = scalar_lea.vmem %s0, 187
  %v334 = vld [vmem:[%s333] sm:$0x80]
  %vm335 = vcmask 1047559
  %v336 = vsel %vm335, %v334, %v332
  %337 = vrot.lane.b32.xlu0 %v336, 124
  %v338 = vpop.permute.xlu0 %337
  %vm339 = vcmask 31744
  %s340 = scalar_lea.vmem %s1, 640
  %341 = vst.msk [vmem:[%s340] ss:$-63 sm:$0x3] %vm339, %v338
  %s342 = scalar_lea.vmem %s1, 544
  %343 = vst.msk [vmem:[%s342] ss:$33 sm:$0xc] %vm339, %v338
  %s344 = scalar_lea.vmem %s1, 448
  %345 = vst.msk [vmem:[%s344] ss:$33 sm:$0x70] %vm339, %v338
  %s346 = scalar_lea.vmem %s1, 576
  %347 = vst.msk [vmem:[%s346] sm:$0x80] %vm339, %v338
  %s348 = scalar_lea.vmem %s0, 245
  %s349 = smov 3
  %v350 = vld [vmem:[%s348] ss:$-21 sm:%s349]
  %s351 = scalar_lea.vmem %s0, 213
  %s352 = smov 12
  %v353 = vld [vmem:[%s351] ss:$11 sm:%s352]
  %vm354 = vcmask 1043458
  %v355 = vsel %vm354, %v353, %v350
  %s356 = scalar_lea.vmem %s0, 181
  %v357 = vld [vmem:[%s356] ss:$11 sm:$0x70]
  %vm358 = vcmask 1046532
  %v359 = vsel %vm358, %v357, %v355
  %s360 = scalar_lea.vmem %s0, 219
  %v361 = vld [vmem:[%s360] sm:$0x80]
  %vm362 = vcmask 1047559
  %v363 = vsel %vm362, %v361, %v359
  %364 = vrot.lane.b32.xlu0 %v363, 124
  %v365 = vpop.permute.xlu0 %364
  %vm366 = vcmask 31744
  %s367 = scalar_lea.vmem %s1, 736
  %368 = vst.msk [vmem:[%s367] ss:$-63 sm:$0x3] %vm366, %v365
  %s369 = scalar_lea.vmem %s1, 640
  %370 = vst.msk [vmem:[%s369] ss:$33 sm:$0xc] %vm366, %v365
  %s371 = scalar_lea.vmem %s1, 544
  %372 = vst.msk [vmem:[%s371] ss:$33 sm:$0x70] %vm366, %v365
  %s373 = scalar_lea.vmem %s1, 672
  %374 = vst.msk [vmem:[%s373] sm:$0x80] %vm366, %v365
  %s375 = scalar_lea.vmem %s0, 13
  %s376 = smov 3
  %v377 = vld [vmem:[%s375] ss:$11 sm:%s376]
  %s378 = scalar_lea.vmem %s0, 4294967277
  %v379 = vld [vmem:[%s378] ss:$11 sm:$0x1c]
  %vm380 = vcmask 1044482
  %v381 = vsel %vm380, %v379, %v377
  %s382 = scalar_lea.vmem %s0, 4294967245
  %v383 = vld [vmem:[%s382] ss:$11 sm:$0xe0]
  %vm384 = vcmask 1047557
  %v385 = vsel %vm384, %v383, %v381
  %386 = vrot.lane.b32.xlu0 %v385, 124
  %v387 = vpop.permute.xlu0 %386
  %vm388 = vcmask 31744
  %s389 = scalar_lea.vmem %s1, 40
  %390 = vst.msk [vmem:[%s389] ss:$33 sm:$0x3] %vm388, %v387
  %s391 = scalar_lea.vmem %s1, 4294967240
  %392 = vst.msk [vmem:[%s391] ss:$33 sm:$0x1c] %vm388, %v387
  %s393 = scalar_lea.vmem %s1, 4294967144
  %394 = vst.msk [vmem:[%s393] ss:$33 sm:$0xe0] %vm388, %v387
  %s395 = scalar_lea.vmem %s0, 45
  %s396 = smov 3
  %v397 = vld [vmem:[%s395] ss:$11 sm:%s396]
  %s398 = scalar_lea.vmem %s0, 13
  %v399 = vld [vmem:[%s398] ss:$11 sm:$0x1c]
  %vm400 = vcmask 1044482
  %v401 = vsel %vm400, %v399, %v397
  %s402 = scalar_lea.vmem %s0, 4294967277
  %v403 = vld [vmem:[%s402] ss:$11 sm:$0xe0]
  %vm404 = vcmask 1047557
  %v405 = vsel %vm404, %v403, %v401
  %406 = vrot.lane.b32.xlu0 %v405, 124
  %v407 = vpop.permute.xlu0 %406
  %vm408 = vcmask 31744
  %s409 = scalar_lea.vmem %s1, 136
  %410 = vst.msk [vmem:[%s409] ss:$33 sm:$0x3] %vm408, %v407
  %s411 = scalar_lea.vmem %s1, 40
  %412 = vst.msk [vmem:[%s411] ss:$33 sm:$0x1c] %vm408, %v407
  %s413 = scalar_lea.vmem %s1, 4294967240
  %414 = vst.msk [vmem:[%s413] ss:$33 sm:$0xe0] %vm408, %v407
  %s415 = scalar_lea.vmem %s0, 77
  %s416 = smov 3
  %v417 = vld [vmem:[%s415] ss:$11 sm:%s416]
  %s418 = scalar_lea.vmem %s0, 45
  %v419 = vld [vmem:[%s418] ss:$11 sm:$0x1c]
  %vm420 = vcmask 1044482
  %v421 = vsel %vm420, %v419, %v417
  %s422 = scalar_lea.vmem %s0, 13
  %v423 = vld [vmem:[%s422] ss:$11 sm:$0xe0]
  %vm424 = vcmask 1047557
  %v425 = vsel %vm424, %v423, %v421
  %426 = vrot.lane.b32.xlu0 %v425, 124
  %v427 = vpop.permute.xlu0 %426
  %vm428 = vcmask 31744
  %s429 = scalar_lea.vmem %s1, 232
  %430 = vst.msk [vmem:[%s429] ss:$33 sm:$0x3] %vm428, %v427
  %s431 = scalar_lea.vmem %s1, 136
  %432 = vst.msk [vmem:[%s431] ss:$33 sm:$0x1c] %vm428, %v427
  %s433 = scalar_lea.vmem %s1, 40
  %434 = vst.msk [vmem:[%s433] ss:$33 sm:$0xe0] %vm428, %v427
  %s435 = scalar_lea.vmem %s0, 109
  %s436 = smov 3
  %v437 = vld [vmem:[%s435] ss:$11 sm:%s436]
  %s438 = scalar_lea.vmem %s0, 77
  %v439 = vld [vmem:[%s438] ss:$11 sm:$0x1c]
  %vm440 = vcmask 1044482
  %v441 = vsel %vm440, %v439, %v437
  %s442 = scalar_lea.vmem %s0, 45
  %v443 = vld [vmem:[%s442] ss:$11 sm:$0xe0]
  %vm444 = vcmask 1047557
  %v445 = vsel %vm444, %v443, %v441
  %446 = vrot.lane.b32.xlu0 %v445, 124
  %v447 = vpop.permute.xlu0 %446
  %vm448 = vcmask 31744
  %s449 = scalar_lea.vmem %s1, 328
  %450 = vst.msk [vmem:[%s449] ss:$33 sm:$0x3] %vm448, %v447
  %s451 = scalar_lea.vmem %s1, 232
  %452 = vst.msk [vmem:[%s451] ss:$33 sm:$0x1c] %vm448, %v447
  %s453 = scalar_lea.vmem %s1, 136
  %454 = vst.msk [vmem:[%s453] ss:$33 sm:$0xe0] %vm448, %v447
  %s455 = scalar_lea.vmem %s0, 141
  %s456 = smov 3
  %v457 = vld [vmem:[%s455] ss:$11 sm:%s456]
  %s458 = scalar_lea.vmem %s0, 109
  %v459 = vld [vmem:[%s458] ss:$11 sm:$0x1c]
  %vm460 = vcmask 1044482
  %v461 = vsel %vm460, %v459, %v457
  %s462 = scalar_lea.vmem %s0, 77
  %v463 = vld [vmem:[%s462] ss:$11 sm:$0xe0]
  %vm464 = vcmask 1047557
  %v465 = vsel %vm464, %v463, %v461
  %466 = vrot.lane.b32.xlu0 %v465, 124
  %v467 = vpop.permute.xlu0 %466
  %vm468 = vcmask 31744
  %s469 = scalar_lea.vmem %s1, 424
  %470 = vst.msk [vmem:[%s469] ss:$33 sm:$0x3] %vm468, %v467
  %s471 = scalar_lea.vmem %s1, 328
  %472 = vst.msk [vmem:[%s471] ss:$33 sm:$0x1c] %vm468, %v467
  %s473 = scalar_lea.vmem %s1, 232
  %474 = vst.msk [vmem:[%s473] ss:$33 sm:$0xe0] %vm468, %v467
  %s475 = scalar_lea.vmem %s0, 173
  %s476 = smov 3
  %v477 = vld [vmem:[%s475] ss:$11 sm:%s476]
  %s478 = scalar_lea.vmem %s0, 141
  %v479 = vld [vmem:[%s478] ss:$11 sm:$0x1c]
  %vm480 = vcmask 1044482
  %v481 = vsel %vm480, %v479, %v477
  %s482 = scalar_lea.vmem %s0, 109
  %v483 = vld [vmem:[%s482] ss:$11 sm:$0xe0]
  %vm484 = vcmask 1047557
  %v485 = vsel %vm484, %v483, %v481
  %486 = vrot.lane.b32.xlu0 %v485, 124
  %v487 = vpop.permute.xlu0 %486
  %vm488 = vcmask 31744
  %s489 = scalar_lea.vmem %s1, 520
  %490 = vst.msk [vmem:[%s489] ss:$33 sm:$0x3] %vm488, %v487
  %s491 = scalar_lea.vmem %s1, 424
  %492 = vst.msk [vmem:[%s491] ss:$33 sm:$0x1c] %vm488, %v487
  %s493 = scalar_lea.vmem %s1, 328
  %494 = vst.msk [vmem:[%s493] ss:$33 sm:$0xe0] %vm488, %v487
  %s495 = scalar_lea.vmem %s0, 205
  %s496 = smov 3
  %v497 = vld [vmem:[%s495] ss:$11 sm:%s496]
  %s498 = scalar_lea.vmem %s0, 173
  %v499 = vld [vmem:[%s498] ss:$11 sm:$0x1c]
  %vm500 = vcmask 1044482
  %v501 = vsel %vm500, %v499, %v497
  %s502 = scalar_lea.vmem %s0, 141
  %v503 = vld [vmem:[%s502] ss:$11 sm:$0xe0]
  %vm504 = vcmask 1047557
  %v505 = vsel %vm504, %v503, %v501
  %506 = vrot.lane.b32.xlu0 %v505, 124
  %v507 = vpop.permute.xlu0 %506
  %vm508 = vcmask 31744
  %s509 = scalar_lea.vmem %s1, 616
  %510 = vst.msk [vmem:[%s509] ss:$33 sm:$0x3] %vm508, %v507
  %s511 = scalar_lea.vmem %s1, 520
  %512 = vst.msk [vmem:[%s511] ss:$33 sm:$0x1c] %vm508, %v507
  %s513 = scalar_lea.vmem %s1, 424
  %514 = vst.msk [vmem:[%s513] ss:$33 sm:$0xe0] %vm508, %v507
  %s515 = scalar_lea.vmem %s0, 237
  %s516 = smov 3
  %v517 = vld [vmem:[%s515] ss:$11 sm:%s516]
  %s518 = scalar_lea.vmem %s0, 205
  %v519 = vld [vmem:[%s518] ss:$11 sm:$0x1c]
  %vm520 = vcmask 1044482
  %v521 = vsel %vm520, %v519, %v517
  %s522 = scalar_lea.vmem %s0, 173
  %v523 = vld [vmem:[%s522] ss:$11 sm:$0xe0]
  %vm524 = vcmask 1047557
  %v525 = vsel %vm524, %v523, %v521
  %526 = vrot.lane.b32.xlu0 %v525, 124
  %v527 = vpop.permute.xlu0 %526
  %vm528 = vcmask 31744
  %s529 = scalar_lea.vmem %s1, 712
  %530 = vst.msk [vmem:[%s529] ss:$33 sm:$0x3] %vm528, %v527
  %s531 = scalar_lea.vmem %s1, 616
  %532 = vst.msk [vmem:[%s531] ss:$33 sm:$0x1c] %vm528, %v527
  %s533 = scalar_lea.vmem %s1, 520
  %534 = vst.msk [vmem:[%s533] ss:$33 sm:$0xe0] %vm528, %v527
  %s535 = scalar_lea.vmem %s0, 5
  %v536 = vld [vmem:[%s535] ss:$11 sm:$0x7]
  %s537 = scalar_lea.vmem %s0, 4294967269
  %v538 = vld [vmem:[%s537] ss:$11 sm:$0x38]
  %vm539 = vcmask 1045507
  %v540 = vsel %vm539, %v538, %v536
  %s541 = scalar_lea.vmem %s0, 4294967237
  %s542 = smov 192
  %v543 = vld [vmem:[%s541] ss:$11 sm:%s542]
  %vm544 = vcmask 1047558
  %v545 = vsel %vm544, %v543, %v540
  %546 = vrot.lane.b32.xlu0 %v545, 124
  %v547 = vpop.permute.xlu0 %546
  %vm548 = vcmask 31744
  %s549 = scalar_lea.vmem %s1, 16
  %550 = vst.msk [vmem:[%s549] ss:$33 sm:$0x7] %vm548, %v547
  %s551 = scalar_lea.vmem %s1, 4294967216
  %552 = vst.msk [vmem:[%s551] ss:$33 sm:$0x38] %vm548, %v547
  %s553 = scalar_lea.vmem %s1, 4294967120
  %554 = vst.msk [vmem:[%s553] ss:$33 sm:$0xc0] %vm548, %v547
  %s555 = scalar_lea.vmem %s0, 37
  %v556 = vld [vmem:[%s555] ss:$11 sm:$0x7]
  %s557 = scalar_lea.vmem %s0, 5
  %v558 = vld [vmem:[%s557] ss:$11 sm:$0x38]
  %vm559 = vcmask 1045507
  %v560 = vsel %vm559, %v558, %v556
  %s561 = scalar_lea.vmem %s0, 4294967269
  %s562 = smov 192
  %v563 = vld [vmem:[%s561] ss:$11 sm:%s562]
  %vm564 = vcmask 1047558
  %v565 = vsel %vm564, %v563, %v560
  %566 = vrot.lane.b32.xlu0 %v565, 124
  %v567 = vpop.permute.xlu0 %566
  %vm568 = vcmask 31744
  %s569 = scalar_lea.vmem %s1, 112
  %570 = vst.msk [vmem:[%s569] ss:$33 sm:$0x7] %vm568, %v567
  %s571 = scalar_lea.vmem %s1, 16
  %572 = vst.msk [vmem:[%s571] ss:$33 sm:$0x38] %vm568, %v567
  %s573 = scalar_lea.vmem %s1, 4294967216
  %574 = vst.msk [vmem:[%s573] ss:$33 sm:$0xc0] %vm568, %v567
  %s575 = scalar_lea.vmem %s0, 69
  %v576 = vld [vmem:[%s575] ss:$11 sm:$0x7]
  %s577 = scalar_lea.vmem %s0, 37
  %v578 = vld [vmem:[%s577] ss:$11 sm:$0x38]
  %vm579 = vcmask 1045507
  %v580 = vsel %vm579, %v578, %v576
  %s581 = scalar_lea.vmem %s0, 5
  %s582 = smov 192
  %v583 = vld [vmem:[%s581] ss:$11 sm:%s582]
  %vm584 = vcmask 1047558
  %v585 = vsel %vm584, %v583, %v580
  %586 = vrot.lane.b32.xlu0 %v585, 124
  %v587 = vpop.permute.xlu0 %586
  %vm588 = vcmask 31744
  %s589 = scalar_lea.vmem %s1, 208
  %590 = vst.msk [vmem:[%s589] ss:$33 sm:$0x7] %vm588, %v587
  %s591 = scalar_lea.vmem %s1, 112
  %592 = vst.msk [vmem:[%s591] ss:$33 sm:$0x38] %vm588, %v587
  %s593 = scalar_lea.vmem %s1, 16
  %594 = vst.msk [vmem:[%s593] ss:$33 sm:$0xc0] %vm588, %v587
  %s595 = scalar_lea.vmem %s0, 101
  %v596 = vld [vmem:[%s595] ss:$11 sm:$0x7]
  %s597 = scalar_lea.vmem %s0, 69
  %v598 = vld [vmem:[%s597] ss:$11 sm:$0x38]
  %vm599 = vcmask 1045507
  %v600 = vsel %vm599, %v598, %v596
  %s601 = scalar_lea.vmem %s0, 37
  %s602 = smov 192
  %v603 = vld [vmem:[%s601] ss:$11 sm:%s602]
  %vm604 = vcmask 1047558
  %v605 = vsel %vm604, %v603, %v600
  %606 = vrot.lane.b32.xlu0 %v605, 124
  %v607 = vpop.permute.xlu0 %606
  %vm608 = vcmask 31744
  %s609 = scalar_lea.vmem %s1, 304
  %610 = vst.msk [vmem:[%s609] ss:$33 sm:$0x7] %vm608, %v607
  %s611 = scalar_lea.vmem %s1, 208
  %612 = vst.msk [vmem:[%s611] ss:$33 sm:$0x38] %vm608, %v607
  %s613 = scalar_lea.vmem %s1, 112
  %614 = vst.msk [vmem:[%s613] ss:$33 sm:$0xc0] %vm608, %v607
  %s615 = scalar_lea.vmem %s0, 133
  %v616 = vld [vmem:[%s615] ss:$11 sm:$0x7]
  %s617 = scalar_lea.vmem %s0, 101
  %v618 = vld [vmem:[%s617] ss:$11 sm:$0x38]
  %vm619 = vcmask 1045507
  %v620 = vsel %vm619, %v618, %v616
  %s621 = scalar_lea.vmem %s0, 69
  %s622 = smov 192
  %v623 = vld [vmem:[%s621] ss:$11 sm:%s622]
  %vm624 = vcmask 1047558
  %v625 = vsel %vm624, %v623, %v620
  %626 = vrot.lane.b32.xlu0 %v625, 124
  %v627 = vpop.permute.xlu0 %626
  %vm628 = vcmask 31744
  %s629 = scalar_lea.vmem %s1, 400
  %630 = vst.msk [vmem:[%s629] ss:$33 sm:$0x7] %vm628, %v627
  %s631 = scalar_lea.vmem %s1, 304
  %632 = vst.msk [vmem:[%s631] ss:$33 sm:$0x38] %vm628, %v627
  %s633 = scalar_lea.vmem %s1, 208
  %634 = vst.msk [vmem:[%s633] ss:$33 sm:$0xc0] %vm628, %v627
  %s635 = scalar_lea.vmem %s0, 165
  %v636 = vld [vmem:[%s635] ss:$11 sm:$0x7]
  %s637 = scalar_lea.vmem %s0, 133
  %v638 = vld [vmem:[%s637] ss:$11 sm:$0x38]
  %vm639 = vcmask 1045507
  %v640 = vsel %vm639, %v638, %v636
  %s641 = scalar_lea.vmem %s0, 101
  %s642 = smov 192
  %v643 = vld [vmem:[%s641] ss:$11 sm:%s642]
  %vm644 = vcmask 1047558
  %v645 = vsel %vm644, %v643, %v640
  %646 = vrot.lane.b32.xlu0 %v645, 124
  %v647 = vpop.permute.xlu0 %646
  %vm648 = vcmask 31744
  %s649 = scalar_lea.vmem %s1, 496
  %650 = vst.msk [vmem:[%s649] ss:$33 sm:$0x7] %vm648, %v647
  %s651 = scalar_lea.vmem %s1, 400
  %652 = vst.msk [vmem:[%s651] ss:$33 sm:$0x38] %vm648, %v647
  %s653 = scalar_lea.vmem %s1, 304
  %654 = vst.msk [vmem:[%s653] ss:$33 sm:$0xc0] %vm648, %v647
  %s655 = scalar_lea.vmem %s0, 197
  %v656 = vld [vmem:[%s655] ss:$11 sm:$0x7]
  %s657 = scalar_lea.vmem %s0, 165
  %v658 = vld [vmem:[%s657] ss:$11 sm:$0x38]
  %vm659 = vcmask 1045507
  %v660 = vsel %vm659, %v658, %v656
  %s661 = scalar_lea.vmem %s0, 133
  %s662 = smov 192
  %v663 = vld [vmem:[%s661] ss:$11 sm:%s662]
  %vm664 = vcmask 1047558
  %v665 = vsel %vm664, %v663, %v660
  %666 = vrot.lane.b32.xlu0 %v665, 124
  %v667 = vpop.permute.xlu0 %666
  %vm668 = vcmask 31744
  %s669 = scalar_lea.vmem %s1, 592
  %670 = vst.msk [vmem:[%s669] ss:$33 sm:$0x7] %vm668, %v667
  %s671 = scalar_lea.vmem %s1, 496
  %672 = vst.msk [vmem:[%s671] ss:$33 sm:$0x38] %vm668, %v667
  %s673 = scalar_lea.vmem %s1, 400
  %674 = vst.msk [vmem:[%s673] ss:$33 sm:$0xc0] %vm668, %v667
  %s675 = scalar_lea.vmem %s0, 229
  %v676 = vld [vmem:[%s675] ss:$11 sm:$0x7]
  %s677 = scalar_lea.vmem %s0, 197
  %v678 = vld [vmem:[%s677] ss:$11 sm:$0x38]
  %vm679 = vcmask 1045507
  %v680 = vsel %vm679, %v678, %v676
  %s681 = scalar_lea.vmem %s0, 165
  %s682 = smov 192
  %v683 = vld [vmem:[%s681] ss:$11 sm:%s682]
  %vm684 = vcmask 1047558
  %v685 = vsel %vm684, %v683, %v680
  %686 = vrot.lane.b32.xlu0 %v685, 124
  %v687 = vpop.permute.xlu0 %686
  %vm688 = vcmask 31744
  %s689 = scalar_lea.vmem %s1, 688
  %690 = vst.msk [vmem:[%s689] ss:$33 sm:$0x7] %vm688, %v687
  %s691 = scalar_lea.vmem %s1, 592
  %692 = vst.msk [vmem:[%s691] ss:$33 sm:$0x38] %vm688, %v687
  %s693 = scalar_lea.vmem %s1, 496
  %694 = vst.msk [vmem:[%s693] ss:$33 sm:$0xc0] %vm688, %v687
  %s695 = scalar_lea.vmem %s0, 29
  %s696 = smov 3
  %v697 = vld [vmem:[%s695] ss:$-21 sm:%s696]
  %s698 = scalar_lea.vmem %s0, 4294967293
  %s699 = smov 12
  %v700 = vld [vmem:[%s698] ss:$11 sm:%s699]
  %vm701 = vcmask 1043458
  %v702 = vsel %vm701, %v700, %v697
  %s703 = scalar_lea.vmem %s0, 4294967261
  %v704 = vld [vmem:[%s703] ss:$11 sm:$0x70]
  %vm705 = vcmask 1046532
  %v706 = vsel %vm705, %v704, %v702
  %s707 = scalar_lea.vmem %s0, 3
  %v708 = vld [vmem:[%s707] sm:$0x80]
  %vm709 = vcmask 1047559
  %v710 = vsel %vm709, %v708, %v706
  %711 = vrot.lane.b32.xlu0 %v710, 124
  %v712 = vpop.permute.xlu0 %711
  %vm713 = vcmask 31744
  %s714 = scalar_lea.vmem %s1, 88
  %715 = vst.msk [vmem:[%s714] ss:$-63 sm:$0x3] %vm713, %v712
  %s716 = scalar_lea.vmem %s1, 4294967288
  %717 = vst.msk [vmem:[%s716] ss:$33 sm:$0xc] %vm713, %v712
  %s718 = scalar_lea.vmem %s1, 4294967192
  %719 = vst.msk [vmem:[%s718] ss:$33 sm:$0x70] %vm713, %v712
  %s720 = scalar_lea.vmem %s1, 24
  %721 = vst.msk [vmem:[%s720] sm:$0x80] %vm713, %v712
  %s722 = scalar_lea.vmem %s0, 61
  %s723 = smov 3
  %v724 = vld [vmem:[%s722] ss:$-21 sm:%s723]
  %s725 = scalar_lea.vmem %s0, 29
  %s726 = smov 12
  %v727 = vld [vmem:[%s725] ss:$11 sm:%s726]
  %vm728 = vcmask 1043458
  %v729 = vsel %vm728, %v727, %v724
  %s730 = scalar_lea.vmem %s0, 4294967293
  %v731 = vld [vmem:[%s730] ss:$11 sm:$0x70]
  %vm732 = vcmask 1046532
  %v733 = vsel %vm732, %v731, %v729
  %s734 = scalar_lea.vmem %s0, 35
  %v735 = vld [vmem:[%s734] sm:$0x80]
  %vm736 = vcmask 1047559
  %v737 = vsel %vm736, %v735, %v733
  %738 = vrot.lane.b32.xlu0 %v737, 124
  %v739 = vpop.permute.xlu0 %738
  %vm740 = vcmask 31744
  %s741 = scalar_lea.vmem %s1, 184
  %742 = vst.msk [vmem:[%s741] ss:$-63 sm:$0x3] %vm740, %v739
  %s743 = scalar_lea.vmem %s1, 88
  %744 = vst.msk [vmem:[%s743] ss:$33 sm:$0xc] %vm740, %v739
  %s745 = scalar_lea.vmem %s1, 4294967288
  %746 = vst.msk [vmem:[%s745] ss:$33 sm:$0x70] %vm740, %v739
  %s747 = scalar_lea.vmem %s1, 120
  %748 = vst.msk [vmem:[%s747] sm:$0x80] %vm740, %v739
  %s749 = scalar_lea.vmem %s0, 93
  %s750 = smov 3
  %v751 = vld [vmem:[%s749] ss:$-21 sm:%s750]
  %s752 = scalar_lea.vmem %s0, 61
  %s753 = smov 12
  %v754 = vld [vmem:[%s752] ss:$11 sm:%s753]
  %vm755 = vcmask 1043458
  %v756 = vsel %vm755, %v754, %v751
  %s757 = scalar_lea.vmem %s0, 29
  %v758 = vld [vmem:[%s757] ss:$11 sm:$0x70]
  %vm759 = vcmask 1046532
  %v760 = vsel %vm759, %v758, %v756
  %s761 = scalar_lea.vmem %s0, 67
  %v762 = vld [vmem:[%s761] sm:$0x80]
  %vm763 = vcmask 1047559
  %v764 = vsel %vm763, %v762, %v760
  %765 = vrot.lane.b32.xlu0 %v764, 124
  %v766 = vpop.permute.xlu0 %765
  %vm767 = vcmask 31744
  %s768 = scalar_lea.vmem %s1, 280
  %769 = vst.msk [vmem:[%s768] ss:$-63 sm:$0x3] %vm767, %v766
  %s770 = scalar_lea.vmem %s1, 184
  %771 = vst.msk [vmem:[%s770] ss:$33 sm:$0xc] %vm767, %v766
  %s772 = scalar_lea.vmem %s1, 88
  %773 = vst.msk [vmem:[%s772] ss:$33 sm:$0x70] %vm767, %v766
  %s774 = scalar_lea.vmem %s1, 216
  %775 = vst.msk [vmem:[%s774] sm:$0x80] %vm767, %v766
  %s776 = scalar_lea.vmem %s0, 125
  %s777 = smov 3
  %v778 = vld [vmem:[%s776] ss:$-21 sm:%s777]
  %s779 = scalar_lea.vmem %s0, 93
  %s780 = smov 12
  %v781 = vld [vmem:[%s779] ss:$11 sm:%s780]
  %vm782 = vcmask 1043458
  %v783 = vsel %vm782, %v781, %v778
  %s784 = scalar_lea.vmem %s0, 61
  %v785 = vld [vmem:[%s784] ss:$11 sm:$0x70]
  %vm786 = vcmask 1046532
  %v787 = vsel %vm786, %v785, %v783
  %s788 = scalar_lea.vmem %s0, 99
  %v789 = vld [vmem:[%s788] sm:$0x80]
  %vm790 = vcmask 1047559
  %v791 = vsel %vm790, %v789, %v787
  %792 = vrot.lane.b32.xlu0 %v791, 124
  %v793 = vpop.permute.xlu0 %792
  %vm794 = vcmask 31744
  %s795 = scalar_lea.vmem %s1, 376
  %796 = vst.msk [vmem:[%s795] ss:$-63 sm:$0x3] %vm794, %v793
  %s797 = scalar_lea.vmem %s1, 280
  %798 = vst.msk [vmem:[%s797] ss:$33 sm:$0xc] %vm794, %v793
  %s799 = scalar_lea.vmem %s1, 184
  %800 = vst.msk [vmem:[%s799] ss:$33 sm:$0x70] %vm794, %v793
  %s801 = scalar_lea.vmem %s1, 312
  %802 = vst.msk [vmem:[%s801] sm:$0x80] %vm794, %v793
  %s803 = scalar_lea.vmem %s0, 157
  %s804 = smov 3
  %v805 = vld [vmem:[%s803] ss:$-21 sm:%s804]
  %s806 = scalar_lea.vmem %s0, 125
  %s807 = smov 12
  %v808 = vld [vmem:[%s806] ss:$11 sm:%s807]
  %vm809 = vcmask 1043458
  %v810 = vsel %vm809, %v808, %v805
  %s811 = scalar_lea.vmem %s0, 93
  %v812 = vld [vmem:[%s811] ss:$11 sm:$0x70]
  %vm813 = vcmask 1046532
  %v814 = vsel %vm813, %v812, %v810
  %s815 = scalar_lea.vmem %s0, 131
  %v816 = vld [vmem:[%s815] sm:$0x80]
  %vm817 = vcmask 1047559
  %v818 = vsel %vm817, %v816, %v814
  %819 = vrot.lane.b32.xlu0 %v818, 124
  %v820 = vpop.permute.xlu0 %819
  %vm821 = vcmask 31744
  %s822 = scalar_lea.vmem %s1, 472
  %823 = vst.msk [vmem:[%s822] ss:$-63 sm:$0x3] %vm821, %v820
  %s824 = scalar_lea.vmem %s1, 376
  %825 = vst.msk [vmem:[%s824] ss:$33 sm:$0xc] %vm821, %v820
  %s826 = scalar_lea.vmem %s1, 280
  %827 = vst.msk [vmem:[%s826] ss:$33 sm:$0x70] %vm821, %v820
  %s828 = scalar_lea.vmem %s1, 408
  %829 = vst.msk [vmem:[%s828] sm:$0x80] %vm821, %v820
  %s830 = scalar_lea.vmem %s0, 189
  %s831 = smov 3
  %v832 = vld [vmem:[%s830] ss:$-21 sm:%s831]
  %s833 = scalar_lea.vmem %s0, 157
  %s834 = smov 12
  %v835 = vld [vmem:[%s833] ss:$11 sm:%s834]
  %vm836 = vcmask 1043458
  %v837 = vsel %vm836, %v835, %v832
  %s838 = scalar_lea.vmem %s0, 125
  %v839 = vld [vmem:[%s838] ss:$11 sm:$0x70]
  %vm840 = vcmask 1046532
  %v841 = vsel %vm840, %v839, %v837
  %s842 = scalar_lea.vmem %s0, 163
  %v843 = vld [vmem:[%s842] sm:$0x80]
  %vm844 = vcmask 1047559
  %v845 = vsel %vm844, %v843, %v841
  %846 = vrot.lane.b32.xlu0 %v845, 124
  %v847 = vpop.permute.xlu0 %846
  %vm848 = vcmask 31744
  %s849 = scalar_lea.vmem %s1, 568
  %850 = vst.msk [vmem:[%s849] ss:$-63 sm:$0x3] %vm848, %v847
  %s851 = scalar_lea.vmem %s1, 472
  %852 = vst.msk [vmem:[%s851] ss:$33 sm:$0xc] %vm848, %v847
  %s853 = scalar_lea.vmem %s1, 376
  %854 = vst.msk [vmem:[%s853] ss:$33 sm:$0x70] %vm848, %v847
  %s855 = scalar_lea.vmem %s1, 504
  %856 = vst.msk [vmem:[%s855] sm:$0x80] %vm848, %v847
  %s857 = scalar_lea.vmem %s0, 221
  %s858 = smov 3
  %v859 = vld [vmem:[%s857] ss:$-21 sm:%s858]
  %s860 = scalar_lea.vmem %s0, 189
  %s861 = smov 12
  %v862 = vld [vmem:[%s860] ss:$11 sm:%s861]
  %vm863 = vcmask 1043458
  %v864 = vsel %vm863, %v862, %v859
  %s865 = scalar_lea.vmem %s0, 157
  %v866 = vld [vmem:[%s865] ss:$11 sm:$0x70]
  %vm867 = vcmask 1046532
  %v868 = vsel %vm867, %v866, %v864
  %s869 = scalar_lea.vmem %s0, 195
  %v870 = vld [vmem:[%s869] sm:$0x80]
  %vm871 = vcmask 1047559
  %v872 = vsel %vm871, %v870, %v868
  %873 = vrot.lane.b32.xlu0 %v872, 124
  %v874 = vpop.permute.xlu0 %873
  %vm875 = vcmask 31744
  %s876 = scalar_lea.vmem %s1, 664
  %877 = vst.msk [vmem:[%s876] ss:$-63 sm:$0x3] %vm875, %v874
  %s878 = scalar_lea.vmem %s1, 568
  %879 = vst.msk [vmem:[%s878] ss:$33 sm:$0xc] %vm875, %v874
  %s880 = scalar_lea.vmem %s1, 472
  %881 = vst.msk [vmem:[%s880] ss:$33 sm:$0x70] %vm875, %v874
  %s882 = scalar_lea.vmem %s1, 600
  %883 = vst.msk [vmem:[%s882] sm:$0x80] %vm875, %v874
  %s884 = scalar_lea.vmem %s0, 253
  %s885 = smov 3
  %v886 = vld [vmem:[%s884] ss:$-21 sm:%s885]
  %s887 = scalar_lea.vmem %s0, 221
  %s888 = smov 12
  %v889 = vld [vmem:[%s887] ss:$11 sm:%s888]
  %vm890 = vcmask 1043458
  %v891 = vsel %vm890, %v889, %v886
  %s892 = scalar_lea.vmem %s0, 189
  %v893 = vld [vmem:[%s892] ss:$11 sm:$0x70]
  %vm894 = vcmask 1046532
  %v895 = vsel %vm894, %v893, %v891
  %s896 = scalar_lea.vmem %s0, 227
  %v897 = vld [vmem:[%s896] sm:$0x80]
  %vm898 = vcmask 1047559
  %v899 = vsel %vm898, %v897, %v895
  %900 = vrot.lane.b32.xlu0 %v899, 124
  %v901 = vpop.permute.xlu0 %900
  %vm902 = vcmask 31744
  %s903 = scalar_lea.vmem %s1, 760
  %904 = vst.msk [vmem:[%s903] ss:$-63 sm:$0x3] %vm902, %v901
  %s905 = scalar_lea.vmem %s1, 664
  %906 = vst.msk [vmem:[%s905] ss:$33 sm:$0xc] %vm902, %v901
  %s907 = scalar_lea.vmem %s1, 568
  %908 = vst.msk [vmem:[%s907] ss:$33 sm:$0x70] %vm902, %v901
  %s909 = scalar_lea.vmem %s1, 696
  %910 = vst.msk [vmem:[%s909] sm:$0x80] %vm902, %v901
  %s911 = scalar_lea.vmem %s0, 10
  %s912 = smov 3
  %v913 = vld [vmem:[%s911] ss:$11 sm:%s912]
  %s914 = scalar_lea.vmem %s0, 4294967274
  %v915 = vld [vmem:[%s914] ss:$11 sm:$0x1c]
  %vm916 = vcmask 1044482
  %v917 = vsel %vm916, %v915, %v913
  %s918 = scalar_lea.vmem %s0, 4294967242
  %v919 = vld [vmem:[%s918] ss:$11 sm:$0xe0]
  %vm920 = vcmask 1047557
  %v921 = vsel %vm920, %v919, %v917
  %922 = vrot.lane.b32.xlu0 %v921, 120
  %v923 = vpop.permute.xlu0 %922
  %vm924 = vcmask 31744
  %s925 = scalar_lea.vmem %s1, 32
  %926 = vst.msk [vmem:[%s925] ss:$33 sm:$0x3] %vm924, %v923
  %s927 = scalar_lea.vmem %s1, 4294967232
  %928 = vst.msk [vmem:[%s927] ss:$33 sm:$0x1c] %vm924, %v923
  %s929 = scalar_lea.vmem %s1, 4294967136
  %930 = vst.msk [vmem:[%s929] ss:$33 sm:$0xe0] %vm924, %v923
  %s931 = scalar_lea.vmem %s0, 42
  %s932 = smov 3
  %v933 = vld [vmem:[%s931] ss:$11 sm:%s932]
  %s934 = scalar_lea.vmem %s0, 10
  %v935 = vld [vmem:[%s934] ss:$11 sm:$0x1c]
  %vm936 = vcmask 1044482
  %v937 = vsel %vm936, %v935, %v933
  %s938 = scalar_lea.vmem %s0, 4294967274
  %v939 = vld [vmem:[%s938] ss:$11 sm:$0xe0]
  %vm940 = vcmask 1047557
  %v941 = vsel %vm940, %v939, %v937
  %942 = vrot.lane.b32.xlu0 %v941, 120
  %v943 = vpop.permute.xlu0 %942
  %vm944 = vcmask 31744
  %s945 = scalar_lea.vmem %s1, 128
  %946 = vst.msk [vmem:[%s945] ss:$33 sm:$0x3] %vm944, %v943
  %s947 = scalar_lea.vmem %s1, 32
  %948 = vst.msk [vmem:[%s947] ss:$33 sm:$0x1c] %vm944, %v943
  %s949 = scalar_lea.vmem %s1, 4294967232
  %950 = vst.msk [vmem:[%s949] ss:$33 sm:$0xe0] %vm944, %v943
  %s951 = scalar_lea.vmem %s0, 74
  %s952 = smov 3
  %v953 = vld [vmem:[%s951] ss:$11 sm:%s952]
  %s954 = scalar_lea.vmem %s0, 42
  %v955 = vld [vmem:[%s954] ss:$11 sm:$0x1c]
  %vm956 = vcmask 1044482
  %v957 = vsel %vm956, %v955, %v953
  %s958 = scalar_lea.vmem %s0, 10
  %v959 = vld [vmem:[%s958] ss:$11 sm:$0xe0]
  %vm960 = vcmask 1047557
  %v961 = vsel %vm960, %v959, %v957
  %962 = vrot.lane.b32.xlu0 %v961, 120
  %v963 = vpop.permute.xlu0 %962
  %vm964 = vcmask 31744
  %s965 = scalar_lea.vmem %s1, 224
  %966 = vst.msk [vmem:[%s965] ss:$33 sm:$0x3] %vm964, %v963
  %s967 = scalar_lea.vmem %s1, 128
  %968 = vst.msk [vmem:[%s967] ss:$33 sm:$0x1c] %vm964, %v963
  %s969 = scalar_lea.vmem %s1, 32
  %970 = vst.msk [vmem:[%s969] ss:$33 sm:$0xe0] %vm964, %v963
  %s971 = scalar_lea.vmem %s0, 106
  %s972 = smov 3
  %v973 = vld [vmem:[%s971] ss:$11 sm:%s972]
  %s974 = scalar_lea.vmem %s0, 74
  %v975 = vld [vmem:[%s974] ss:$11 sm:$0x1c]
  %vm976 = vcmask 1044482
  %v977 = vsel %vm976, %v975, %v973
  %s978 = scalar_lea.vmem %s0, 42
  %v979 = vld [vmem:[%s978] ss:$11 sm:$0xe0]
  %vm980 = vcmask 1047557
  %v981 = vsel %vm980, %v979, %v977
  %982 = vrot.lane.b32.xlu0 %v981, 120
  %v983 = vpop.permute.xlu0 %982
  %vm984 = vcmask 31744
  %s985 = scalar_lea.vmem %s1, 320
  %986 = vst.msk [vmem:[%s985] ss:$33 sm:$0x3] %vm984, %v983
  %s987 = scalar_lea.vmem %s1, 224
  %988 = vst.msk [vmem:[%s987] ss:$33 sm:$0x1c] %vm984, %v983
  %s989 = scalar_lea.vmem %s1, 128
  %990 = vst.msk [vmem:[%s989] ss:$33 sm:$0xe0] %vm984, %v983
  %s991 = scalar_lea.vmem %s0, 138
  %s992 = smov 3
  %v993 = vld [vmem:[%s991] ss:$11 sm:%s992]
  %s994 = scalar_lea.vmem %s0, 106
  %v995 = vld [vmem:[%s994] ss:$11 sm:$0x1c]
  %vm996 = vcmask 1044482
  %v997 = vsel %vm996, %v995, %v993
  %s998 = scalar_lea.vmem %s0, 74
  %v999 = vld [vmem:[%s998] ss:$11 sm:$0xe0]
  %vm1000 = vcmask 1047557
  %v1001 = vsel %vm1000, %v999, %v997
  %1002 = vrot.lane.b32.xlu0 %v1001, 120
  %v1003 = vpop.permute.xlu0 %1002
  %vm1004 = vcmask 31744
  %s1005 = scalar_lea.vmem %s1, 416
  %1006 = vst.msk [vmem:[%s1005] ss:$33 sm:$0x3] %vm1004, %v1003
  %s1007 = scalar_lea.vmem %s1, 320
  %1008 = vst.msk [vmem:[%s1007] ss:$33 sm:$0x1c] %vm1004, %v1003
  %s1009 = scalar_lea.vmem %s1, 224
  %1010 = vst.msk [vmem:[%s1009] ss:$33 sm:$0xe0] %vm1004, %v1003
  %s1011 = scalar_lea.vmem %s0, 170
  %s1012 = smov 3
  %v1013 = vld [vmem:[%s1011] ss:$11 sm:%s1012]
  %s1014 = scalar_lea.vmem %s0, 138
  %v1015 = vld [vmem:[%s1014] ss:$11 sm:$0x1c]
  %vm1016 = vcmask 1044482
  %v1017 = vsel %vm1016, %v1015, %v1013
  %s1018 = scalar_lea.vmem %s0, 106
  %v1019 = vld [vmem:[%s1018] ss:$11 sm:$0xe0]
  %vm1020 = vcmask 1047557
  %v1021 = vsel %vm1020, %v1019, %v1017
  %1022 = vrot.lane.b32.xlu0 %v1021, 120
  %v1023 = vpop.permute.xlu0 %1022
  %vm1024 = vcmask 31744
  %s1025 = scalar_lea.vmem %s1, 512
  %1026 = vst.msk [vmem:[%s1025] ss:$33 sm:$0x3] %vm1024, %v1023
  %s1027 = scalar_lea.vmem %s1, 416
  %1028 = vst.msk [vmem:[%s1027] ss:$33 sm:$0x1c] %vm1024, %v1023
  %s1029 = scalar_lea.vmem %s1, 320
  %1030 = vst.msk [vmem:[%s1029] ss:$33 sm:$0xe0] %vm1024, %v1023
  %s1031 = scalar_lea.vmem %s0, 202
  %s1032 = smov 3
  %v1033 = vld [vmem:[%s1031] ss:$11 sm:%s1032]
  %s1034 = scalar_lea.vmem %s0, 170
  %v1035 = vld [vmem:[%s1034] ss:$11 sm:$0x1c]
  %vm1036 = vcmask 1044482
  %v1037 = vsel %vm1036, %v1035, %v1033
  %s1038 = scalar_lea.vmem %s0, 138
  %v1039 = vld [vmem:[%s1038] ss:$11 sm:$0xe0]
  %vm1040 = vcmask 1047557
  %v1041 = vsel %vm1040, %v1039, %v1037
  %1042 = vrot.lane.b32.xlu0 %v1041, 120
  %v1043 = vpop.permute.xlu0 %1042
  %vm1044 = vcmask 31744
  %s1045 = scalar_lea.vmem %s1, 608
  %1046 = vst.msk [vmem:[%s1045] ss:$33 sm:$0x3] %vm1044, %v1043
  %s1047 = scalar_lea.vmem %s1, 512
  %1048 = vst.msk [vmem:[%s1047] ss:$33 sm:$0x1c] %vm1044, %v1043
  %s1049 = scalar_lea.vmem %s1, 416
  %1050 = vst.msk [vmem:[%s1049] ss:$33 sm:$0xe0] %vm1044, %v1043
  %s1051 = scalar_lea.vmem %s0, 234
  %s1052 = smov 3
  %v1053 = vld [vmem:[%s1051] ss:$11 sm:%s1052]
  %s1054 = scalar_lea.vmem %s0, 202
  %v1055 = vld [vmem:[%s1054] ss:$11 sm:$0x1c]
  %vm1056 = vcmask 1044482
  %v1057 = vsel %vm1056, %v1055, %v1053
  %s1058 = scalar_lea.vmem %s0, 170
  %v1059 = vld [vmem:[%s1058] ss:$11 sm:$0xe0]
  %vm1060 = vcmask 1047557
  %v1061 = vsel %vm1060, %v1059, %v1057
  %1062 = vrot.lane.b32.xlu0 %v1061, 120
  %v1063 = vpop.permute.xlu0 %1062
  %vm1064 = vcmask 31744
  %s1065 = scalar_lea.vmem %s1, 704
  %1066 = vst.msk [vmem:[%s1065] ss:$33 sm:$0x3] %vm1064, %v1063
  %s1067 = scalar_lea.vmem %s1, 608
  %1068 = vst.msk [vmem:[%s1067] ss:$33 sm:$0x1c] %vm1064, %v1063
  %s1069 = scalar_lea.vmem %s1, 512
  %1070 = vst.msk [vmem:[%s1069] ss:$33 sm:$0xe0] %vm1064, %v1063
  %s1071 = scalar_lea.vmem %s0, 2
  %v1072 = vld [vmem:[%s1071] ss:$11 sm:$0x7]
  %s1073 = scalar_lea.vmem %s0, 4294967266
  %v1074 = vld [vmem:[%s1073] ss:$11 sm:$0x38]
  %vm1075 = vcmask 1045507
  %v1076 = vsel %vm1075, %v1074, %v1072
  %s1077 = scalar_lea.vmem %s0, 4294967234
  %s1078 = smov 192
  %v1079 = vld [vmem:[%s1077] ss:$11 sm:%s1078]
  %vm1080 = vcmask 1047558
  %v1081 = vsel %vm1080, %v1079, %v1076
  %1082 = vrot.lane.b32.xlu0 %v1081, 120
  %v1083 = vpop.permute.xlu0 %1082
  %vm1084 = vcmask 31744
  %s1085 = scalar_lea.vmem %s1, 8
  %1086 = vst.msk [vmem:[%s1085] ss:$33 sm:$0x7] %vm1084, %v1083
  %s1087 = scalar_lea.vmem %s1, 4294967208
  %1088 = vst.msk [vmem:[%s1087] ss:$33 sm:$0x38] %vm1084, %v1083
  %s1089 = scalar_lea.vmem %s1, 4294967112
  %1090 = vst.msk [vmem:[%s1089] ss:$33 sm:$0xc0] %vm1084, %v1083
  %s1091 = scalar_lea.vmem %s0, 34
  %v1092 = vld [vmem:[%s1091] ss:$11 sm:$0x7]
  %s1093 = scalar_lea.vmem %s0, 2
  %v1094 = vld [vmem:[%s1093] ss:$11 sm:$0x38]
  %vm1095 = vcmask 1045507
  %v1096 = vsel %vm1095, %v1094, %v1092
  %s1097 = scalar_lea.vmem %s0, 4294967266
  %s1098 = smov 192
  %v1099 = vld [vmem:[%s1097] ss:$11 sm:%s1098]
  %vm1100 = vcmask 1047558
  %v1101 = vsel %vm1100, %v1099, %v1096
  %1102 = vrot.lane.b32.xlu0 %v1101, 120
  %v1103 = vpop.permute.xlu0 %1102
  %vm1104 = vcmask 31744
  %s1105 = scalar_lea.vmem %s1, 104
  %1106 = vst.msk [vmem:[%s1105] ss:$33 sm:$0x7] %vm1104, %v1103
  %s1107 = scalar_lea.vmem %s1, 8
  %1108 = vst.msk [vmem:[%s1107] ss:$33 sm:$0x38] %vm1104, %v1103
  %s1109 = scalar_lea.vmem %s1, 4294967208
  %1110 = vst.msk [vmem:[%s1109] ss:$33 sm:$0xc0] %vm1104, %v1103
  %s1111 = scalar_lea.vmem %s0, 66
  %v1112 = vld [vmem:[%s1111] ss:$11 sm:$0x7]
  %s1113 = scalar_lea.vmem %s0, 34
  %v1114 = vld [vmem:[%s1113] ss:$11 sm:$0x38]
  %vm1115 = vcmask 1045507
  %v1116 = vsel %vm1115, %v1114, %v1112
  %s1117 = scalar_lea.vmem %s0, 2
  %s1118 = smov 192
  %v1119 = vld [vmem:[%s1117] ss:$11 sm:%s1118]
  %vm1120 = vcmask 1047558
  %v1121 = vsel %vm1120, %v1119, %v1116
  %1122 = vrot.lane.b32.xlu0 %v1121, 120
  %v1123 = vpop.permute.xlu0 %1122
  %vm1124 = vcmask 31744
  %s1125 = scalar_lea.vmem %s1, 200
  %1126 = vst.msk [vmem:[%s1125] ss:$33 sm:$0x7] %vm1124, %v1123
  %s1127 = scalar_lea.vmem %s1, 104
  %1128 = vst.msk [vmem:[%s1127] ss:$33 sm:$0x38] %vm1124, %v1123
  %s1129 = scalar_lea.vmem %s1, 8
  %1130 = vst.msk [vmem:[%s1129] ss:$33 sm:$0xc0] %vm1124, %v1123
  %s1131 = scalar_lea.vmem %s0, 98
  %v1132 = vld [vmem:[%s1131] ss:$11 sm:$0x7]
  %s1133 = scalar_lea.vmem %s0, 66
  %v1134 = vld [vmem:[%s1133] ss:$11 sm:$0x38]
  %vm1135 = vcmask 1045507
  %v1136 = vsel %vm1135, %v1134, %v1132
  %s1137 = scalar_lea.vmem %s0, 34
  %s1138 = smov 192
  %v1139 = vld [vmem:[%s1137] ss:$11 sm:%s1138]
  %vm1140 = vcmask 1047558
  %v1141 = vsel %vm1140, %v1139, %v1136
  %1142 = vrot.lane.b32.xlu0 %v1141, 120
  %v1143 = vpop.permute.xlu0 %1142
  %vm1144 = vcmask 31744
  %s1145 = scalar_lea.vmem %s1, 296
  %1146 = vst.msk [vmem:[%s1145] ss:$33 sm:$0x7] %vm1144, %v1143
  %s1147 = scalar_lea.vmem %s1, 200
  %1148 = vst.msk [vmem:[%s1147] ss:$33 sm:$0x38] %vm1144, %v1143
  %s1149 = scalar_lea.vmem %s1, 104
  %1150 = vst.msk [vmem:[%s1149] ss:$33 sm:$0xc0] %vm1144, %v1143
  %s1151 = scalar_lea.vmem %s0, 130
  %v1152 = vld [vmem:[%s1151] ss:$11 sm:$0x7]
  %s1153 = scalar_lea.vmem %s0, 98
  %v1154 = vld [vmem:[%s1153] ss:$11 sm:$0x38]
  %vm1155 = vcmask 1045507
  %v1156 = vsel %vm1155, %v1154, %v1152
  %s1157 = scalar_lea.vmem %s0, 66
  %s1158 = smov 192
  %v1159 = vld [vmem:[%s1157] ss:$11 sm:%s1158]
  %vm1160 = vcmask 1047558
  %v1161 = vsel %vm1160, %v1159, %v1156
  %1162 = vrot.lane.b32.xlu0 %v1161, 120
  %v1163 = vpop.permute.xlu0 %1162
  %vm1164 = vcmask 31744
  %s1165 = scalar_lea.vmem %s1, 392
  %1166 = vst.msk [vmem:[%s1165] ss:$33 sm:$0x7] %vm1164, %v1163
  %s1167 = scalar_lea.vmem %s1, 296
  %1168 = vst.msk [vmem:[%s1167] ss:$33 sm:$0x38] %vm1164, %v1163
  %s1169 = scalar_lea.vmem %s1, 200
  %1170 = vst.msk [vmem:[%s1169] ss:$33 sm:$0xc0] %vm1164, %v1163
  %s1171 = scalar_lea.vmem %s0, 162
  %v1172 = vld [vmem:[%s1171] ss:$11 sm:$0x7]
  %s1173 = scalar_lea.vmem %s0, 130
  %v1174 = vld [vmem:[%s1173] ss:$11 sm:$0x38]
  %vm1175 = vcmask 1045507
  %v1176 = vsel %vm1175, %v1174, %v1172
  %s1177 = scalar_lea.vmem %s0, 98
  %s1178 = smov 192
  %v1179 = vld [vmem:[%s1177] ss:$11 sm:%s1178]
  %vm1180 = vcmask 1047558
  %v1181 = vsel %vm1180, %v1179, %v1176
  %1182 = vrot.lane.b32.xlu0 %v1181, 120
  %v1183 = vpop.permute.xlu0 %1182
  %vm1184 = vcmask 31744
  %s1185 = scalar_lea.vmem %s1, 488
  %1186 = vst.msk [vmem:[%s1185] ss:$33 sm:$0x7] %vm1184, %v1183
  %s1187 = scalar_lea.vmem %s1, 392
  %1188 = vst.msk [vmem:[%s1187] ss:$33 sm:$0x38] %vm1184, %v1183
  %s1189 = scalar_lea.vmem %s1, 296
  %1190 = vst.msk [vmem:[%s1189] ss:$33 sm:$0xc0] %vm1184, %v1183
  %s1191 = scalar_lea.vmem %s0, 194
  %v1192 = vld [vmem:[%s1191] ss:$11 sm:$0x7]
  %s1193 = scalar_lea.vmem %s0, 162
  %v1194 = vld [vmem:[%s1193] ss:$11 sm:$0x38]
  %vm1195 = vcmask 1045507
  %v1196 = vsel %vm1195, %v1194, %v1192
  %s1197 = scalar_lea.vmem %s0, 130
  %s1198 = smov 192
  %v1199 = vld [vmem:[%s1197] ss:$11 sm:%s1198]
  %vm1200 = vcmask 1047558
  %v1201 = vsel %vm1200, %v1199, %v1196
  %1202 = vrot.lane.b32.xlu0 %v1201, 120
  %v1203 = vpop.permute.xlu0 %1202
  %vm1204 = vcmask 31744
  %s1205 = scalar_lea.vmem %s1, 584
  %1206 = vst.msk [vmem:[%s1205] ss:$33 sm:$0x7] %vm1204, %v1203
  %s1207 = scalar_lea.vmem %s1, 488
  %1208 = vst.msk [vmem:[%s1207] ss:$33 sm:$0x38] %vm1204, %v1203
  %s1209 = scalar_lea.vmem %s1, 392
  %1210 = vst.msk [vmem:[%s1209] ss:$33 sm:$0xc0] %vm1204, %v1203
  %s1211 = scalar_lea.vmem %s0, 226
  %v1212 = vld [vmem:[%s1211] ss:$11 sm:$0x7]
  %s1213 = scalar_lea.vmem %s0, 194
  %v1214 = vld [vmem:[%s1213] ss:$11 sm:$0x38]
  %vm1215 = vcmask 1045507
  %v1216 = vsel %vm1215, %v1214, %v1212
  %s1217 = scalar_lea.vmem %s0, 162
  %s1218 = smov 192
  %v1219 = vld [vmem:[%s1217] ss:$11 sm:%s1218]
  %vm1220 = vcmask 1047558
  %v1221 = vsel %vm1220, %v1219, %v1216
  %1222 = vrot.lane.b32.xlu0 %v1221, 120
  %v1223 = vpop.permute.xlu0 %1222
  %vm1224 = vcmask 31744
  %s1225 = scalar_lea.vmem %s1, 680
  %1226 = vst.msk [vmem:[%s1225] ss:$33 sm:$0x7] %vm1224, %v1223
  %s1227 = scalar_lea.vmem %s1, 584
  %1228 = vst.msk [vmem:[%s1227] ss:$33 sm:$0x38] %vm1224, %v1223
  %s1229 = scalar_lea.vmem %s1, 488
  %1230 = vst.msk [vmem:[%s1229] ss:$33 sm:$0xc0] %vm1224, %v1223
  %s1231 = scalar_lea.vmem %s0, 26
  %s1232 = smov 3
  %v1233 = vld [vmem:[%s1231] ss:$-21 sm:%s1232]
  %s1234 = scalar_lea.vmem %s0, 4294967290
  %s1235 = smov 12
  %v1236 = vld [vmem:[%s1234] ss:$11 sm:%s1235]
  %vm1237 = vcmask 1043458
  %v1238 = vsel %vm1237, %v1236, %v1233
  %s1239 = scalar_lea.vmem %s0, 4294967258
  %v1240 = vld [vmem:[%s1239] ss:$11 sm:$0x70]
  %vm1241 = vcmask 1046532
  %v1242 = vsel %vm1241, %v1240, %v1238
  %v1243 = vld [vmem:[%s0] sm:$0x80]
  %vm1244 = vcmask 1047559
  %v1245 = vsel %vm1244, %v1243, %v1242
  %1246 = vrot.lane.b32.xlu0 %v1245, 120
  %v1247 = vpop.permute.xlu0 %1246
  %vm1248 = vcmask 31744
  %s1249 = scalar_lea.vmem %s1, 80
  %1250 = vst.msk [vmem:[%s1249] ss:$-63 sm:$0x3] %vm1248, %v1247
  %s1251 = scalar_lea.vmem %s1, 4294967280
  %1252 = vst.msk [vmem:[%s1251] ss:$33 sm:$0xc] %vm1248, %v1247
  %s1253 = scalar_lea.vmem %s1, 4294967184
  %1254 = vst.msk [vmem:[%s1253] ss:$33 sm:$0x70] %vm1248, %v1247
  %s1255 = scalar_lea.vmem %s1, 16
  %1256 = vst.msk [vmem:[%s1255] sm:$0x80] %vm1248, %v1247
  %s1257 = scalar_lea.vmem %s0, 58
  %s1258 = smov 3
  %v1259 = vld [vmem:[%s1257] ss:$-21 sm:%s1258]
  %s1260 = scalar_lea.vmem %s0, 26
  %s1261 = smov 12
  %v1262 = vld [vmem:[%s1260] ss:$11 sm:%s1261]
  %vm1263 = vcmask 1043458
  %v1264 = vsel %vm1263, %v1262, %v1259
  %s1265 = scalar_lea.vmem %s0, 4294967290
  %v1266 = vld [vmem:[%s1265] ss:$11 sm:$0x70]
  %vm1267 = vcmask 1046532
  %v1268 = vsel %vm1267, %v1266, %v1264
  %s1269 = scalar_lea.vmem %s0, 32
  %v1270 = vld [vmem:[%s1269] sm:$0x80]
  %vm1271 = vcmask 1047559
  %v1272 = vsel %vm1271, %v1270, %v1268
  %1273 = vrot.lane.b32.xlu0 %v1272, 120
  %v1274 = vpop.permute.xlu0 %1273
  %vm1275 = vcmask 31744
  %s1276 = scalar_lea.vmem %s1, 176
  %1277 = vst.msk [vmem:[%s1276] ss:$-63 sm:$0x3] %vm1275, %v1274
  %s1278 = scalar_lea.vmem %s1, 80
  %1279 = vst.msk [vmem:[%s1278] ss:$33 sm:$0xc] %vm1275, %v1274
  %s1280 = scalar_lea.vmem %s1, 4294967280
  %1281 = vst.msk [vmem:[%s1280] ss:$33 sm:$0x70] %vm1275, %v1274
  %s1282 = scalar_lea.vmem %s1, 112
  %1283 = vst.msk [vmem:[%s1282] sm:$0x80] %vm1275, %v1274
  %s1284 = scalar_lea.vmem %s0, 90
  %s1285 = smov 3
  %v1286 = vld [vmem:[%s1284] ss:$-21 sm:%s1285]
  %s1287 = scalar_lea.vmem %s0, 58
  %s1288 = smov 12
  %v1289 = vld [vmem:[%s1287] ss:$11 sm:%s1288]
  %vm1290 = vcmask 1043458
  %v1291 = vsel %vm1290, %v1289, %v1286
  %s1292 = scalar_lea.vmem %s0, 26
  %v1293 = vld [vmem:[%s1292] ss:$11 sm:$0x70]
  %vm1294 = vcmask 1046532
  %v1295 = vsel %vm1294, %v1293, %v1291
  %s1296 = scalar_lea.vmem %s0, 64
  %v1297 = vld [vmem:[%s1296] sm:$0x80]
  %vm1298 = vcmask 1047559
  %v1299 = vsel %vm1298, %v1297, %v1295
  %1300 = vrot.lane.b32.xlu0 %v1299, 120
  %v1301 = vpop.permute.xlu0 %1300
  %vm1302 = vcmask 31744
  %s1303 = scalar_lea.vmem %s1, 272
  %1304 = vst.msk [vmem:[%s1303] ss:$-63 sm:$0x3] %vm1302, %v1301
  %s1305 = scalar_lea.vmem %s1, 176
  %1306 = vst.msk [vmem:[%s1305] ss:$33 sm:$0xc] %vm1302, %v1301
  %s1307 = scalar_lea.vmem %s1, 80
  %1308 = vst.msk [vmem:[%s1307] ss:$33 sm:$0x70] %vm1302, %v1301
  %s1309 = scalar_lea.vmem %s1, 208
  %1310 = vst.msk [vmem:[%s1309] sm:$0x80] %vm1302, %v1301
  %s1311 = scalar_lea.vmem %s0, 122
  %s1312 = smov 3
  %v1313 = vld [vmem:[%s1311] ss:$-21 sm:%s1312]
  %s1314 = scalar_lea.vmem %s0, 90
  %s1315 = smov 12
  %v1316 = vld [vmem:[%s1314] ss:$11 sm:%s1315]
  %vm1317 = vcmask 1043458
  %v1318 = vsel %vm1317, %v1316, %v1313
  %s1319 = scalar_lea.vmem %s0, 58
  %v1320 = vld [vmem:[%s1319] ss:$11 sm:$0x70]
  %vm1321 = vcmask 1046532
  %v1322 = vsel %vm1321, %v1320, %v1318
  %s1323 = scalar_lea.vmem %s0, 96
  %v1324 = vld [vmem:[%s1323] sm:$0x80]
  %vm1325 = vcmask 1047559
  %v1326 = vsel %vm1325, %v1324, %v1322
  %1327 = vrot.lane.b32.xlu0 %v1326, 120
  %v1328 = vpop.permute.xlu0 %1327
  %vm1329 = vcmask 31744
  %s1330 = scalar_lea.vmem %s1, 368
  %1331 = vst.msk [vmem:[%s1330] ss:$-63 sm:$0x3] %vm1329, %v1328
  %s1332 = scalar_lea.vmem %s1, 272
  %1333 = vst.msk [vmem:[%s1332] ss:$33 sm:$0xc] %vm1329, %v1328
  %s1334 = scalar_lea.vmem %s1, 176
  %1335 = vst.msk [vmem:[%s1334] ss:$33 sm:$0x70] %vm1329, %v1328
  %s1336 = scalar_lea.vmem %s1, 304
  %1337 = vst.msk [vmem:[%s1336] sm:$0x80] %vm1329, %v1328
  %s1338 = scalar_lea.vmem %s0, 154
  %s1339 = smov 3
  %v1340 = vld [vmem:[%s1338] ss:$-21 sm:%s1339]
  %s1341 = scalar_lea.vmem %s0, 122
  %s1342 = smov 12
  %v1343 = vld [vmem:[%s1341] ss:$11 sm:%s1342]
  %vm1344 = vcmask 1043458
  %v1345 = vsel %vm1344, %v1343, %v1340
  %s1346 = scalar_lea.vmem %s0, 90
  %v1347 = vld [vmem:[%s1346] ss:$11 sm:$0x70]
  %vm1348 = vcmask 1046532
  %v1349 = vsel %vm1348, %v1347, %v1345
  %s1350 = scalar_lea.vmem %s0, 128
  %v1351 = vld [vmem:[%s1350] sm:$0x80]
  %vm1352 = vcmask 1047559
  %v1353 = vsel %vm1352, %v1351, %v1349
  %1354 = vrot.lane.b32.xlu0 %v1353, 120
  %v1355 = vpop.permute.xlu0 %1354
  %vm1356 = vcmask 31744
  %s1357 = scalar_lea.vmem %s1, 464
  %1358 = vst.msk [vmem:[%s1357] ss:$-63 sm:$0x3] %vm1356, %v1355
  %s1359 = scalar_lea.vmem %s1, 368
  %1360 = vst.msk [vmem:[%s1359] ss:$33 sm:$0xc] %vm1356, %v1355
  %s1361 = scalar_lea.vmem %s1, 272
  %1362 = vst.msk [vmem:[%s1361] ss:$33 sm:$0x70] %vm1356, %v1355
  %s1363 = scalar_lea.vmem %s1, 400
  %1364 = vst.msk [vmem:[%s1363] sm:$0x80] %vm1356, %v1355
  %s1365 = scalar_lea.vmem %s0, 186
  %s1366 = smov 3
  %v1367 = vld [vmem:[%s1365] ss:$-21 sm:%s1366]
  %s1368 = scalar_lea.vmem %s0, 154
  %s1369 = smov 12
  %v1370 = vld [vmem:[%s1368] ss:$11 sm:%s1369]
  %vm1371 = vcmask 1043458
  %v1372 = vsel %vm1371, %v1370, %v1367
  %s1373 = scalar_lea.vmem %s0, 122
  %v1374 = vld [vmem:[%s1373] ss:$11 sm:$0x70]
  %vm1375 = vcmask 1046532
  %v1376 = vsel %vm1375, %v1374, %v1372
  %s1377 = scalar_lea.vmem %s0, 160
  %v1378 = vld [vmem:[%s1377] sm:$0x80]
  %vm1379 = vcmask 1047559
  %v1380 = vsel %vm1379, %v1378, %v1376
  %1381 = vrot.lane.b32.xlu0 %v1380, 120
  %v1382 = vpop.permute.xlu0 %1381
  %vm1383 = vcmask 31744
  %s1384 = scalar_lea.vmem %s1, 560
  %1385 = vst.msk [vmem:[%s1384] ss:$-63 sm:$0x3] %vm1383, %v1382
  %s1386 = scalar_lea.vmem %s1, 464
  %1387 = vst.msk [vmem:[%s1386] ss:$33 sm:$0xc] %vm1383, %v1382
  %s1388 = scalar_lea.vmem %s1, 368
  %1389 = vst.msk [vmem:[%s1388] ss:$33 sm:$0x70] %vm1383, %v1382
  %s1390 = scalar_lea.vmem %s1, 496
  %1391 = vst.msk [vmem:[%s1390] sm:$0x80] %vm1383, %v1382
  %s1392 = scalar_lea.vmem %s0, 218
  %s1393 = smov 3
  %v1394 = vld [vmem:[%s1392] ss:$-21 sm:%s1393]
  %s1395 = scalar_lea.vmem %s0, 186
  %s1396 = smov 12
  %v1397 = vld [vmem:[%s1395] ss:$11 sm:%s1396]
  %vm1398 = vcmask 1043458
  %v1399 = vsel %vm1398, %v1397, %v1394
  %s1400 = scalar_lea.vmem %s0, 154
  %v1401 = vld [vmem:[%s1400] ss:$11 sm:$0x70]
  %vm1402 = vcmask 1046532
  %v1403 = vsel %vm1402, %v1401, %v1399
  %s1404 = scalar_lea.vmem %s0, 192
  %v1405 = vld [vmem:[%s1404] sm:$0x80]
  %vm1406 = vcmask 1047559
  %v1407 = vsel %vm1406, %v1405, %v1403
  %1408 = vrot.lane.b32.xlu0 %v1407, 120
  %v1409 = vpop.permute.xlu0 %1408
  %vm1410 = vcmask 31744
  %s1411 = scalar_lea.vmem %s1, 656
  %1412 = vst.msk [vmem:[%s1411] ss:$-63 sm:$0x3] %vm1410, %v1409
  %s1413 = scalar_lea.vmem %s1, 560
  %1414 = vst.msk [vmem:[%s1413] ss:$33 sm:$0xc] %vm1410, %v1409
  %s1415 = scalar_lea.vmem %s1, 464
  %1416 = vst.msk [vmem:[%s1415] ss:$33 sm:$0x70] %vm1410, %v1409
  %s1417 = scalar_lea.vmem %s1, 592
  %1418 = vst.msk [vmem:[%s1417] sm:$0x80] %vm1410, %v1409
  %s1419 = scalar_lea.vmem %s0, 250
  %s1420 = smov 3
  %v1421 = vld [vmem:[%s1419] ss:$-21 sm:%s1420]
  %s1422 = scalar_lea.vmem %s0, 218
  %s1423 = smov 12
  %v1424 = vld [vmem:[%s1422] ss:$11 sm:%s1423]
  %vm1425 = vcmask 1043458
  %v1426 = vsel %vm1425, %v1424, %v1421
  %s1427 = scalar_lea.vmem %s0, 186
  %v1428 = vld [vmem:[%s1427] ss:$11 sm:$0x70]
  %vm1429 = vcmask 1046532
  %v1430 = vsel %vm1429, %v1428, %v1426
  %s1431 = scalar_lea.vmem %s0, 224
  %v1432 = vld [vmem:[%s1431] sm:$0x80]
  %vm1433 = vcmask 1047559
  %v1434 = vsel %vm1433, %v1432, %v1430
  %1435 = vrot.lane.b32.xlu0 %v1434, 120
  %v1436 = vpop.permute.xlu0 %1435
  %vm1437 = vcmask 31744
  %s1438 = scalar_lea.vmem %s1, 752
  %1439 = vst.msk [vmem:[%s1438] ss:$-63 sm:$0x3] %vm1437, %v1436
  %s1440 = scalar_lea.vmem %s1, 656
  %1441 = vst.msk [vmem:[%s1440] ss:$33 sm:$0xc] %vm1437, %v1436
  %s1442 = scalar_lea.vmem %s1, 560
  %1443 = vst.msk [vmem:[%s1442] ss:$33 sm:$0x70] %vm1437, %v1436
  %s1444 = scalar_lea.vmem %s1, 688
  %1445 = vst.msk [vmem:[%s1444] sm:$0x80] %vm1437, %v1436
  %s1446 = scalar_lea.vmem %s0, 18
  %s1447 = smov 3
  %v1448 = vld [vmem:[%s1446] ss:$11 sm:%s1447]
  %s1449 = scalar_lea.vmem %s0, 4294967282
  %v1450 = vld [vmem:[%s1449] ss:$11 sm:$0x1c]
  %vm1451 = vcmask 1044482
  %v1452 = vsel %vm1451, %v1450, %v1448
  %s1453 = scalar_lea.vmem %s0, 4294967250
  %v1454 = vld [vmem:[%s1453] ss:$11 sm:$0xe0]
  %vm1455 = vcmask 1047557
  %v1456 = vsel %vm1455, %v1454, %v1452
  %1457 = vrot.lane.b32.xlu0 %v1456, 120
  %v1458 = vpop.permute.xlu0 %1457
  %vm1459 = vcmask 31744
  %s1460 = scalar_lea.vmem %s1, 56
  %1461 = vst.msk [vmem:[%s1460] ss:$33 sm:$0x3] %vm1459, %v1458
  %s1462 = scalar_lea.vmem %s1, 4294967256
  %1463 = vst.msk [vmem:[%s1462] ss:$33 sm:$0x1c] %vm1459, %v1458
  %s1464 = scalar_lea.vmem %s1, 4294967160
  %1465 = vst.msk [vmem:[%s1464] ss:$33 sm:$0xe0] %vm1459, %v1458
  %s1466 = scalar_lea.vmem %s0, 50
  %s1467 = smov 3
  %v1468 = vld [vmem:[%s1466] ss:$11 sm:%s1467]
  %s1469 = scalar_lea.vmem %s0, 18
  %v1470 = vld [vmem:[%s1469] ss:$11 sm:$0x1c]
  %vm1471 = vcmask 1044482
  %v1472 = vsel %vm1471, %v1470, %v1468
  %s1473 = scalar_lea.vmem %s0, 4294967282
  %v1474 = vld [vmem:[%s1473] ss:$11 sm:$0xe0]
  %vm1475 = vcmask 1047557
  %v1476 = vsel %vm1475, %v1474, %v1472
  %1477 = vrot.lane.b32.xlu0 %v1476, 120
  %v1478 = vpop.permute.xlu0 %1477
  %vm1479 = vcmask 31744
  %s1480 = scalar_lea.vmem %s1, 152
  %1481 = vst.msk [vmem:[%s1480] ss:$33 sm:$0x3] %vm1479, %v1478
  %s1482 = scalar_lea.vmem %s1, 56
  %1483 = vst.msk [vmem:[%s1482] ss:$33 sm:$0x1c] %vm1479, %v1478
  %s1484 = scalar_lea.vmem %s1, 4294967256
  %1485 = vst.msk [vmem:[%s1484] ss:$33 sm:$0xe0] %vm1479, %v1478
  %s1486 = scalar_lea.vmem %s0, 82
  %s1487 = smov 3
  %v1488 = vld [vmem:[%s1486] ss:$11 sm:%s1487]
  %s1489 = scalar_lea.vmem %s0, 50
  %v1490 = vld [vmem:[%s1489] ss:$11 sm:$0x1c]
  %vm1491 = vcmask 1044482
  %v1492 = vsel %vm1491, %v1490, %v1488
  %s1493 = scalar_lea.vmem %s0, 18
  %v1494 = vld [vmem:[%s1493] ss:$11 sm:$0xe0]
  %vm1495 = vcmask 1047557
  %v1496 = vsel %vm1495, %v1494, %v1492
  %1497 = vrot.lane.b32.xlu0 %v1496, 120
  %v1498 = vpop.permute.xlu0 %1497
  %vm1499 = vcmask 31744
  %s1500 = scalar_lea.vmem %s1, 248
  %1501 = vst.msk [vmem:[%s1500] ss:$33 sm:$0x3] %vm1499, %v1498
  %s1502 = scalar_lea.vmem %s1, 152
  %1503 = vst.msk [vmem:[%s1502] ss:$33 sm:$0x1c] %vm1499, %v1498
  %s1504 = scalar_lea.vmem %s1, 56
  %1505 = vst.msk [vmem:[%s1504] ss:$33 sm:$0xe0] %vm1499, %v1498
  %s1506 = scalar_lea.vmem %s0, 114
  %s1507 = smov 3
  %v1508 = vld [vmem:[%s1506] ss:$11 sm:%s1507]
  %s1509 = scalar_lea.vmem %s0, 82
  %v1510 = vld [vmem:[%s1509] ss:$11 sm:$0x1c]
  %vm1511 = vcmask 1044482
  %v1512 = vsel %vm1511, %v1510, %v1508
  %s1513 = scalar_lea.vmem %s0, 50
  %v1514 = vld [vmem:[%s1513] ss:$11 sm:$0xe0]
  %vm1515 = vcmask 1047557
  %v1516 = vsel %vm1515, %v1514, %v1512
  %1517 = vrot.lane.b32.xlu0 %v1516, 120
  %v1518 = vpop.permute.xlu0 %1517
  %vm1519 = vcmask 31744
  %s1520 = scalar_lea.vmem %s1, 344
  %1521 = vst.msk [vmem:[%s1520] ss:$33 sm:$0x3] %vm1519, %v1518
  %s1522 = scalar_lea.vmem %s1, 248
  %1523 = vst.msk [vmem:[%s1522] ss:$33 sm:$0x1c] %vm1519, %v1518
  %s1524 = scalar_lea.vmem %s1, 152
  %1525 = vst.msk [vmem:[%s1524] ss:$33 sm:$0xe0] %vm1519, %v1518
  %s1526 = scalar_lea.vmem %s0, 146
  %s1527 = smov 3
  %v1528 = vld [vmem:[%s1526] ss:$11 sm:%s1527]
  %s1529 = scalar_lea.vmem %s0, 114
  %v1530 = vld [vmem:[%s1529] ss:$11 sm:$0x1c]
  %vm1531 = vcmask 1044482
  %v1532 = vsel %vm1531, %v1530, %v1528
  %s1533 = scalar_lea.vmem %s0, 82
  %v1534 = vld [vmem:[%s1533] ss:$11 sm:$0xe0]
  %vm1535 = vcmask 1047557
  %v1536 = vsel %vm1535, %v1534, %v1532
  %1537 = vrot.lane.b32.xlu0 %v1536, 120
  %v1538 = vpop.permute.xlu0 %1537
  %vm1539 = vcmask 31744
  %s1540 = scalar_lea.vmem %s1, 440
  %1541 = vst.msk [vmem:[%s1540] ss:$33 sm:$0x3] %vm1539, %v1538
  %s1542 = scalar_lea.vmem %s1, 344
  %1543 = vst.msk [vmem:[%s1542] ss:$33 sm:$0x1c] %vm1539, %v1538
  %s1544 = scalar_lea.vmem %s1, 248
  %1545 = vst.msk [vmem:[%s1544] ss:$33 sm:$0xe0] %vm1539, %v1538
  %s1546 = scalar_lea.vmem %s0, 178
  %s1547 = smov 3
  %v1548 = vld [vmem:[%s1546] ss:$11 sm:%s1547]
  %s1549 = scalar_lea.vmem %s0, 146
  %v1550 = vld [vmem:[%s1549] ss:$11 sm:$0x1c]
  %vm1551 = vcmask 1044482
  %v1552 = vsel %vm1551, %v1550, %v1548
  %s1553 = scalar_lea.vmem %s0, 114
  %v1554 = vld [vmem:[%s1553] ss:$11 sm:$0xe0]
  %vm1555 = vcmask 1047557
  %v1556 = vsel %vm1555, %v1554, %v1552
  %1557 = vrot.lane.b32.xlu0 %v1556, 120
  %v1558 = vpop.permute.xlu0 %1557
  %vm1559 = vcmask 31744
  %s1560 = scalar_lea.vmem %s1, 536
  %1561 = vst.msk [vmem:[%s1560] ss:$33 sm:$0x3] %vm1559, %v1558
  %s1562 = scalar_lea.vmem %s1, 440
  %1563 = vst.msk [vmem:[%s1562] ss:$33 sm:$0x1c] %vm1559, %v1558
  %s1564 = scalar_lea.vmem %s1, 344
  %1565 = vst.msk [vmem:[%s1564] ss:$33 sm:$0xe0] %vm1559, %v1558
  %s1566 = scalar_lea.vmem %s0, 210
  %s1567 = smov 3
  %v1568 = vld [vmem:[%s1566] ss:$11 sm:%s1567]
  %s1569 = scalar_lea.vmem %s0, 178
  %v1570 = vld [vmem:[%s1569] ss:$11 sm:$0x1c]
  %vm1571 = vcmask 1044482
  %v1572 = vsel %vm1571, %v1570, %v1568
  %s1573 = scalar_lea.vmem %s0, 146
  %v1574 = vld [vmem:[%s1573] ss:$11 sm:$0xe0]
  %vm1575 = vcmask 1047557
  %v1576 = vsel %vm1575, %v1574, %v1572
  %1577 = vrot.lane.b32.xlu0 %v1576, 120
  %v1578 = vpop.permute.xlu0 %1577
  %vm1579 = vcmask 31744
  %s1580 = scalar_lea.vmem %s1, 632
  %1581 = vst.msk [vmem:[%s1580] ss:$33 sm:$0x3] %vm1579, %v1578
  %s1582 = scalar_lea.vmem %s1, 536
  %1583 = vst.msk [vmem:[%s1582] ss:$33 sm:$0x1c] %vm1579, %v1578
  %s1584 = scalar_lea.vmem %s1, 440
  %1585 = vst.msk [vmem:[%s1584] ss:$33 sm:$0xe0] %vm1579, %v1578
  %s1586 = scalar_lea.vmem %s0, 242
  %s1587 = smov 3
  %v1588 = vld [vmem:[%s1586] ss:$11 sm:%s1587]
  %s1589 = scalar_lea.vmem %s0, 210
  %v1590 = vld [vmem:[%s1589] ss:$11 sm:$0x1c]
  %vm1591 = vcmask 1044482
  %v1592 = vsel %vm1591, %v1590, %v1588
  %s1593 = scalar_lea.vmem %s0, 178
  %v1594 = vld [vmem:[%s1593] ss:$11 sm:$0xe0]
  %vm1595 = vcmask 1047557
  %v1596 = vsel %vm1595, %v1594, %v1592
  %1597 = vrot.lane.b32.xlu0 %v1596, 120
  %v1598 = vpop.permute.xlu0 %1597
  %vm1599 = vcmask 31744
  %s1600 = scalar_lea.vmem %s1, 728
  %1601 = vst.msk [vmem:[%s1600] ss:$33 sm:$0x3] %vm1599, %v1598
  %s1602 = scalar_lea.vmem %s1, 632
  %1603 = vst.msk [vmem:[%s1602] ss:$33 sm:$0x1c] %vm1599, %v1598
  %s1604 = scalar_lea.vmem %s1, 536
  %1605 = vst.msk [vmem:[%s1604] ss:$33 sm:$0xe0] %vm1599, %v1598

// kernel: squeeze.57
$region0: #{squeeze.57}
  %s0 = inlined_call_operand.vmem [shape: f32[1,256,3], index: 0, kind: input, shape index: {}]
  %s1 = inlined_call_operand.vmem [shape: f32[768], index: 1, kind: output, shape index: {}]
  %v2 = vld [vmem:[%s0] sm:$0x1]
  %s3 = scalar_lea.vmem %s0, 127
  %v4 = vld [vmem:[%s3] sm:$0x2]
  %vm5 = vcmask 1041409
  %v6 = vsel %vm5, %v4, %v2
  %vm7 = vcmask 23552
  %8 = vst.msk [vmem:[%s1] ss:$3 sm:$0x3] %vm7, %v6
  %s9 = scalar_lea.vmem %s0, 85
  %v10 = vld [vmem:[%s9] sm:$0x1]
  %s11 = scalar_lea.vmem %s0, 212
  %v12 = vld [vmem:[%s11] sm:$0x2]
  %vm13 = vcmask 1041409
  %v14 = vsel %vm13, %v12, %v10
  %s15 = scalar_lea.vmem %s0, 85
  %v16 = vld [vmem:[%s15] sm:$0x1]
  %s17 = scalar_lea.vmem %s0, 212
  %v18 = vld [vmem:[%s17] sm:$0x2]
  %vm19 = vcmask 1041409
  %v20 = vsel %vm19, %v18, %v16
  %vm21 = vcmask 7168
  %v22 = vsel %vm21, %v20, %v14
  %23 = vrot.lane.b32.xlu0 %v22, 127
  %v24 = vpop.permute.xlu0 %23
  %vm25 = vcmask 15360
  %s26 = scalar_lea.vmem %s1, 2
  %27 = vst.msk [vmem:[%s26] ss:$3 sm:$0x3] %vm25, %v24
  %vm28 = vcmask 1048568
  %s29 = scalar_lea.vmem %s1, 1
  %30 = vst.msk [vmem:[%s29] ss:$3 sm:$0x3] %vm28, %v24
  %s31 = scalar_lea.vmem %s0, 42
  %v32 = vld [vmem:[%s31] sm:$0x1]
  %s33 = scalar_lea.vmem %s0, 169
  %v34 = vld [vmem:[%s33] sm:$0x2]
  %vm35 = vcmask 1041409
  %v36 = vsel %vm35, %v34, %v32
  %s37 = scalar_lea.vmem %s0, 42
  %v38 = vld [vmem:[%s37] sm:$0x1]
  %s39 = scalar_lea.vmem %s0, 169
  %v40 = vld [vmem:[%s39] sm:$0x2]
  %vm41 = vcmask 1041409
  %v42 = vsel %vm41, %v40, %v38
  %vm43 = vcmask 15360
  %v44 = vsel %vm43, %v42, %v36
  %45 = vrot.lane.b32.xlu0 %v44, 126
  %v46 = vpop.permute.xlu0 %45
  %vm47 = vcmask 7168
  %s48 = scalar_lea.vmem %s1, 1
  %49 = vst.msk [vmem:[%s48] ss:$3 sm:$0x3] %vm47, %v46
  %vm50 = vcmask 1048560
  %51 = vst.msk [vmem:[%s1] ss:$3 sm:$0x3] %vm50, %v46
  %s52 = scalar_lea.vmem %s0, 127
  %v53 = vld [vmem:[%s52] sm:$0x1]
  %s54 = scalar_lea.vmem %s0, 254
  %v55 = vld [vmem:[%s54] sm:$0x2]
  %vm56 = vcmask 1041409
  %v57 = vsel %vm56, %v55, %v53
  %58 = vrot.lane.b32.xlu0 %v57, 125
  %v59 = vpop.permute.xlu0 %58
  %vm60 = vcmask 1048552
  %s61 = scalar_lea.vmem %s1, 2
  %62 = vst.msk [vmem:[%s61] ss:$3 sm:$0x3] %vm60, %v59
  %s63 = scalar_lea.vmem %s0, 84
  %v64 = vld [vmem:[%s63] sm:$0x1]
  %s65 = scalar_lea.vmem %s0, 211
  %v66 = vld [vmem:[%s65] sm:$0x2]
  %vm67 = vcmask 1041409
  %v68 = vsel %vm67, %v66, %v64
  %69 = vrot.lane.b32.xlu0 %v68, 124
  %v70 = vpop.permute.xlu0 %69
  %vm71 = vcmask 1040352
  %s72 = scalar_lea.vmem %s1, 1
  %73 = vst.msk [vmem:[%s72] ss:$3 sm:$0x3] %vm71, %v70
  %s74 = scalar_lea.vmem %s0, 41
  %v75 = vld [vmem:[%s74] sm:$0x1]
  %s76 = scalar_lea.vmem %s0, 168
  %v77 = vld [vmem:[%s76] sm:$0x2]
  %vm78 = vcmask 1041409
  %v79 = vsel %vm78, %v77, %v75
  %80 = vrot.lane.b32.xlu0 %v79, 123
  %v81 = vpop.permute.xlu0 %80
  %vm82 = vcmask 1032152
  %83 = vst.msk [vmem:[%s1] ss:$3 sm:$0x3] %vm82, %v81
  %s84 = scalar_lea.vmem %s0, 126
  %v85 = vld [vmem:[%s84] sm:$0x1]
  %s86 = scalar_lea.vmem %s0, 253
  %v87 = vld [vmem:[%s86] sm:$0x2]
  %vm88 = vcmask 1041409
  %v89 = vsel %vm88, %v87, %v85
  %90 = vrot.lane.b32.xlu0 %v89, 122
  %v91 = vpop.permute.xlu0 %90
  %vm92 = vcmask 1023952
  %s93 = scalar_lea.vmem %s1, 2
  %94 = vst.msk [vmem:[%s93] ss:$3 sm:$0x3] %vm92, %v91
  %s95 = scalar_lea.vmem %s0, 83
  %v96 = vld [vmem:[%s95] sm:$0x1]
  %s97 = scalar_lea.vmem %s0, 210
  %v98 = vld [vmem:[%s97] sm:$0x2]
  %vm99 = vcmask 1041409
  %v100 = vsel %vm99, %v98, %v96
  %101 = vrot.lane.b32.xlu0 %v100, 121
  %v102 = vpop.permute.xlu0 %101
  %vm103 = vcmask 1015752
  %s104 = scalar_lea.vmem %s1, 1
  %105 = vst.msk [vmem:[%s104] ss:$3 sm:$0x3] %vm103, %v102
  %s106 = scalar_lea.vmem %s0, 40
  %v107 = vld [vmem:[%s106] sm:$0x1]
  %s108 = scalar_lea.vmem %s0, 167
  %v109 = vld [vmem:[%s108] sm:$0x2]
  %vm110 = vcmask 1041409
  %v111 = vsel %vm110, %v109, %v107
  %112 = vrot.lane.b32.xlu0 %v111, 120
  %v113 = vpop.permute.xlu0 %112
  %vm114 = vcmask 1007552
  %115 = vst.msk [vmem:[%s1] ss:$3 sm:$0x3] %vm114, %v113
  %s116 = scalar_lea.vmem %s0, 125
  %v117 = vld [vmem:[%s116] sm:$0x1]
  %s118 = scalar_lea.vmem %s0, 252
  %v119 = vld [vmem:[%s118] sm:$0x2]
  %vm120 = vcmask 1041409
  %v121 = vsel %vm120, %v119, %v117
  %122 = vrot.lane.b32.xlu0 %v121, 119
  %v123 = vpop.permute.xlu0 %122
  %vm124 = vcmask 999352
  %s125 = scalar_lea.vmem %s1, 2
  %126 = vst.msk [vmem:[%s125] ss:$3 sm:$0x3] %vm124, %v123
  %s127 = scalar_lea.vmem %s0, 82
  %v128 = vld [vmem:[%s127] sm:$0x1]
  %s129 = scalar_lea.vmem %s0, 209
  %v130 = vld [vmem:[%s129] sm:$0x2]
  %vm131 = vcmask 1041409
  %v132 = vsel %vm131, %v130, %v128
  %133 = vrot.lane.b32.xlu0 %v132, 118
  %v134 = vpop.permute.xlu0 %133
  %vm135 = vcmask 991152
  %s136 = scalar_lea.vmem %s1, 1
  %137 = vst.msk [vmem:[%s136] ss:$3 sm:$0x3] %vm135, %v134
  %s138 = scalar_lea.vmem %s0, 39
  %v139 = vld [vmem:[%s138] sm:$0x1]
  %s140 = scalar_lea.vmem %s0, 166
  %v141 = vld [vmem:[%s140] sm:$0x2]
  %vm142 = vcmask 1041409
  %v143 = vsel %vm142, %v141, %v139
  %144 = vrot.lane.b32.xlu0 %v143, 117
  %v145 = vpop.permute.xlu0 %144
  %vm146 = vcmask 982952
  %147 = vst.msk [vmem:[%s1] ss:$3 sm:$0x3] %vm146, %v145
  %s148 = scalar_lea.vmem %s0, 124
  %v149 = vld [vmem:[%s148] sm:$0x1]
  %s150 = scalar_lea.vmem %s0, 251
  %v151 = vld [vmem:[%s150] sm:$0x2]
  %vm152 = vcmask 1041409
  %v153 = vsel %vm152, %v151, %v149
  %154 = vrot.lane.b32.xlu0 %v153, 116
  %v155 = vpop.permute.xlu0 %154
  %vm156 = vcmask 974752
  %s157 = scalar_lea.vmem %s1, 2
  %158 = vst.msk [vmem:[%s157] ss:$3 sm:$0x3] %vm156, %v155
  %s159 = scalar_lea.vmem %s0, 81
  %v160 = vld [vmem:[%s159] sm:$0x1]
  %s161 = scalar_lea.vmem %s0, 208
  %v162 = vld [vmem:[%s161] sm:$0x2]
  %vm163 = vcmask 1041409
  %v164 = vsel %vm163, %v162, %v160
  %165 = vrot.lane.b32.xlu0 %v164, 115
  %v166 = vpop.permute.xlu0 %165
  %vm167 = vcmask 966552
  %s168 = scalar_lea.vmem %s1, 1
  %169 = vst.msk [vmem:[%s168] ss:$3 sm:$0x3] %vm167, %v166
  %s170 = scalar_lea.vmem %s0, 38
  %v171 = vld [vmem:[%s170] sm:$0x1]
  %s172 = scalar_lea.vmem %s0, 165
  %v173 = vld [vmem:[%s172] sm:$0x2]
  %vm174 = vcmask 1041409
  %v175 = vsel %vm174, %v173, %v171
  %176 = vrot.lane.b32.xlu0 %v175, 114
  %v177 = vpop.permute.xlu0 %176
  %vm178 = vcmask 958352
  %179 = vst.msk [vmem:[%s1] ss:$3 sm:$0x3] %vm178, %v177
  %s180 = scalar_lea.vmem %s0, 123
  %v181 = vld [vmem:[%s180] sm:$0x1]
  %s182 = scalar_lea.vmem %s0, 250
  %v183 = vld [vmem:[%s182] sm:$0x2]
  %vm184 = vcmask 1041409
  %v185 = vsel %vm184, %v183, %v181
  %186 = vrot.lane.b32.xlu0 %v185, 113
  %v187 = vpop.permute.xlu0 %186
  %vm188 = vcmask 950152
  %s189 = scalar_lea.vmem %s1, 2
  %190 = vst.msk [vmem:[%s189] ss:$3 sm:$0x3] %vm188, %v187
  %s191 = scalar_lea.vmem %s0, 80
  %v192 = vld [vmem:[%s191] sm:$0x1]
  %s193 = scalar_lea.vmem %s0, 207
  %v194 = vld [vmem:[%s193] sm:$0x2]
  %vm195 = vcmask 1041409
  %v196 = vsel %vm195, %v194, %v192
  %197 = vrot.lane.b32.xlu0 %v196, 112
  %v198 = vpop.permute.xlu0 %197
  %vm199 = vcmask 941952
  %s200 = scalar_lea.vmem %s1, 1
  %201 = vst.msk [vmem:[%s200] ss:$3 sm:$0x3] %vm199, %v198
  %s202 = scalar_lea.vmem %s0, 37
  %v203 = vld [vmem:[%s202] sm:$0x1]
  %s204 = scalar_lea.vmem %s0, 164
  %v205 = vld [vmem:[%s204] sm:$0x2]
  %vm206 = vcmask 1041409
  %v207 = vsel %vm206, %v205, %v203
  %208 = vrot.lane.b32.xlu0 %v207, 111
  %v209 = vpop.permute.xlu0 %208
  %vm210 = vcmask 933752
  %211 = vst.msk [vmem:[%s1] ss:$3 sm:$0x3] %vm210, %v209
  %s212 = scalar_lea.vmem %s0, 122
  %v213 = vld [vmem:[%s212] sm:$0x1]
  %s214 = scalar_lea.vmem %s0, 249
  %v215 = vld [vmem:[%s214] sm:$0x2]
  %vm216 = vcmask 1041409
  %v217 = vsel %vm216, %v215, %v213
  %218 = vrot.lane.b32.xlu0 %v217, 110
  %v219 = vpop.permute.xlu0 %218
  %vm220 = vcmask 925552
  %s221 = scalar_lea.vmem %s1, 2
  %222 = vst.msk [vmem:[%s221] ss:$3 sm:$0x3] %vm220, %v219
  %s223 = scalar_lea.vmem %s0, 79
  %v224 = vld [vmem:[%s223] sm:$0x1]
  %s225 = scalar_lea.vmem %s0, 206
  %v226 = vld [vmem:[%s225] sm:$0x2]
  %vm227 = vcmask 1041409
  %v228 = vsel %vm227, %v226, %v224
  %229 = vrot.lane.b32.xlu0 %v228, 109
  %v230 = vpop.permute.xlu0 %229
  %vm231 = vcmask 917352
  %s232 = scalar_lea.vmem %s1, 1
  %233 = vst.msk [vmem:[%s232] ss:$3 sm:$0x3] %vm231, %v230
  %s234 = scalar_lea.vmem %s0, 36
  %v235 = vld [vmem:[%s234] sm:$0x1]
  %s236 = scalar_lea.vmem %s0, 163
  %v237 = vld [vmem:[%s236] sm:$0x2]
  %vm238 = vcmask 1041409
  %v239 = vsel %vm238, %v237, %v235
  %240 = vrot.lane.b32.xlu0 %v239, 108
  %v241 = vpop.permute.xlu0 %240
  %vm242 = vcmask 909152
  %243 = vst.msk [vmem:[%s1] ss:$3 sm:$0x3] %vm242, %v241
  %s244 = scalar_lea.vmem %s0, 121
  %v245 = vld [vmem:[%s244] sm:$0x1]
  %s246 = scalar_lea.vmem %s0, 248
  %v247 = vld [vmem:[%s246] sm:$0x2]
  %vm248 = vcmask 1041409
  %v249 = vsel %vm248, %v247, %v245
  %250 = vrot.lane.b32.xlu0 %v249, 107
  %v251 = vpop.permute.xlu0 %250
  %vm252 = vcmask 900952
  %s253 = scalar_lea.vmem %s1, 2
  %254 = vst.msk [vmem:[%s253] ss:$3 sm:$0x3] %vm252, %v251
  %s255 = scalar_lea.vmem %s0, 78
  %v256 = vld [vmem:[%s255] sm:$0x1]
  %s257 = scalar_lea.vmem %s0, 205
  %v258 = vld [vmem:[%s257] sm:$0x2]
  %vm259 = vcmask 1041409
  %v260 = vsel %vm259, %v258, %v256
  %261 = vrot.lane.b32.xlu0 %v260, 106
  %v262 = vpop.permute.xlu0 %261
  %vm263 = vcmask 892752
  %s264 = scalar_lea.vmem %s1, 1
  %265 = vst.msk [vmem:[%s264] ss:$3 sm:$0x3] %vm263, %v262
  %s266 = scalar_lea.vmem %s0, 35
  %v267 = vld [vmem:[%s266] sm:$0x1]
  %s268 = scalar_lea.vmem %s0, 162
  %v269 = vld [vmem:[%s268] sm:$0x2]
  %vm270 = vcmask 1041409
  %v271 = vsel %vm270, %v269, %v267
  %272 = vrot.lane.b32.xlu0 %v271, 105
  %v273 = vpop.permute.xlu0 %272
  %vm274 = vcmask 884552
  %275 = vst.msk [vmem:[%s1] ss:$3 sm:$0x3] %vm274, %v273
  %s276 = scalar_lea.vmem %s0, 120
  %v277 = vld [vmem:[%s276] sm:$0x1]
  %s278 = scalar_lea.vmem %s0, 247
  %v279 = vld [vmem:[%s278] sm:$0x2]
  %vm280 = vcmask 1041409
  %v281 = vsel %vm280, %v279, %v277
  %282 = vrot.lane.b32.xlu0 %v281, 104
  %v283 = vpop.permute.xlu0 %282
  %vm284 = vcmask 876352
  %s285 = scalar_lea.vmem %s1, 2
  %286 = vst.msk [vmem:[%s285] ss:$3 sm:$0x3] %vm284, %v283
  %s287 = scalar_lea.vmem %s0, 77
  %v288 = vld [vmem:[%s287] sm:$0x1]
  %s289 = scalar_lea.vmem %s0, 204
  %v290 = vld [vmem:[%s289] sm:$0x2]
  %vm291 = vcmask 1041409
  %v292 = vsel %vm291, %v290, %v288
  %293 = vrot.lane.b32.xlu0 %v292, 103
  %v294 = vpop.permute.xlu0 %293
  %vm295 = vcmask 868152
  %s296 = scalar_lea.vmem %s1, 1
  %297 = vst.msk [vmem:[%s296] ss:$3 sm:$0x3] %vm295, %v294
  %s298 = scalar_lea.vmem %s0, 34
  %v299 = vld [vmem:[%s298] sm:$0x1]
  %s300 = scalar_lea.vmem %s0, 161
  %v301 = vld [vmem:[%s300] sm:$0x2]
  %vm302 = vcmask 1041409
  %v303 = vsel %vm302, %v301, %v299
  %304 = vrot.lane.b32.xlu0 %v303, 102
  %v305 = vpop.permute.xlu0 %304
  %vm306 = vcmask 859952
  %307 = vst.msk [vmem:[%s1] ss:$3 sm:$0x3] %vm306, %v305
  %s308 = scalar_lea.vmem %s0, 119
  %v309 = vld [vmem:[%s308] sm:$0x1]
  %s310 = scalar_lea.vmem %s0, 246
  %v311 = vld [vmem:[%s310] sm:$0x2]
  %vm312 = vcmask 1041409
  %v313 = vsel %vm312, %v311, %v309
  %314 = vrot.lane.b32.xlu0 %v313, 101
  %v315 = vpop.permute.xlu0 %314
  %vm316 = vcmask 851752
  %s317 = scalar_lea.vmem %s1, 2
  %318 = vst.msk [vmem:[%s317] ss:$3 sm:$0x3] %vm316, %v315
  %s319 = scalar_lea.vmem %s0, 76
  %v320 = vld [vmem:[%s319] sm:$0x1]
  %s321 = scalar_lea.vmem %s0, 203
  %v322 = vld [vmem:[%s321] sm:$0x2]
  %vm323 = vcmask 1041409
  %v324 = vsel %vm323, %v322, %v320
  %325 = vrot.lane.b32.xlu0 %v324, 100
  %v326 = vpop.permute.xlu0 %325
  %vm327 = vcmask 843552
  %s328 = scalar_lea.vmem %s1, 1
  %329 = vst.msk [vmem:[%s328] ss:$3 sm:$0x3] %vm327, %v326
  %s330 = scalar_lea.vmem %s0, 33
  %v331 = vld [vmem:[%s330] sm:$0x1]
  %s332 = scalar_lea.vmem %s0, 160
  %v333 = vld [vmem:[%s332] sm:$0x2]
  %vm334 = vcmask 1041409
  %v335 = vsel %vm334, %v333, %v331
  %336 = vrot.lane.b32.xlu0 %v335, 99
  %v337 = vpop.permute.xlu0 %336
  %vm338 = vcmask 835352
  %339 = vst.msk [vmem:[%s1] ss:$3 sm:$0x3] %vm338, %v337
  %s340 = scalar_lea.vmem %s0, 118
  %v341 = vld [vmem:[%s340] sm:$0x1]
  %s342 = scalar_lea.vmem %s0, 245
  %v343 = vld [vmem:[%s342] sm:$0x2]
  %vm344 = vcmask 1041409
  %v345 = vsel %vm344, %v343, %v341
  %346 = vrot.lane.b32.xlu0 %v345, 98
  %v347 = vpop.permute.xlu0 %346
  %vm348 = vcmask 827152
  %s349 = scalar_lea.vmem %s1, 2
  %350 = vst.msk [vmem:[%s349] ss:$3 sm:$0x3] %vm348, %v347
  %s351 = scalar_lea.vmem %s0, 75
  %v352 = vld [vmem:[%s351] sm:$0x1]
  %s353 = scalar_lea.vmem %s0, 202
  %v354 = vld [vmem:[%s353] sm:$0x2]
  %vm355 = vcmask 1041409
  %v356 = vsel %vm355, %v354, %v352
  %357 = vrot.lane.b32.xlu0 %v356, 97
  %v358 = vpop.permute.xlu0 %357
  %vm359 = vcmask 818952
  %s360 = scalar_lea.vmem %s1, 1
  %361 = vst.msk [vmem:[%s360] ss:$3 sm:$0x3] %vm359, %v358
  %s362 = scalar_lea.vmem %s0, 32
  %v363 = vld [vmem:[%s362] sm:$0x1]
  %s364 = scalar_lea.vmem %s0, 159
  %v365 = vld [vmem:[%s364] sm:$0x2]
  %vm366 = vcmask 1041409
  %v367 = vsel %vm366, %v365, %v363
  %368 = vrot.lane.b32.xlu0 %v367, 96
  %v369 = vpop.permute.xlu0 %368
  %vm370 = vcmask 810752
  %371 = vst.msk [vmem:[%s1] ss:$3 sm:$0x3] %vm370, %v369
  %s372 = scalar_lea.vmem %s0, 117
  %v373 = vld [vmem:[%s372] sm:$0x1]
  %s374 = scalar_lea.vmem %s0, 244
  %v375 = vld [vmem:[%s374] sm:$0x2]
  %vm376 = vcmask 1041409
  %v377 = vsel %vm376, %v375, %v373
  %378 = vrot.lane.b32.xlu0 %v377, 95
  %v379 = vpop.permute.xlu0 %378
  %vm380 = vcmask 802552
  %s381 = scalar_lea.vmem %s1, 2
  %382 = vst.msk [vmem:[%s381] ss:$3 sm:$0x3] %vm380, %v379
  %s383 = scalar_lea.vmem %s0, 74
  %v384 = vld [vmem:[%s383] sm:$0x1]
  %s385 = scalar_lea.vmem %s0, 201
  %v386 = vld [vmem:[%s385] sm:$0x2]
  %vm387 = vcmask 1041409
  %v388 = vsel %vm387, %v386, %v384
  %389 = vrot.lane.b32.xlu0 %v388, 94
  %v390 = vpop.permute.xlu0 %389
  %vm391 = vcmask 794352
  %s392 = scalar_lea.vmem %s1, 1
  %393 = vst.msk [vmem:[%s392] ss:$3 sm:$0x3] %vm391, %v390
  %s394 = scalar_lea.vmem %s0, 31
  %v395 = vld [vmem:[%s394] sm:$0x1]
  %s396 = scalar_lea.vmem %s0, 158
  %v397 = vld [vmem:[%s396] sm:$0x2]
  %vm398 = vcmask 1041409
  %v399 = vsel %vm398, %v397, %v395
  %400 = vrot.lane.b32.xlu0 %v399, 93
  %v401 = vpop.permute.xlu0 %400
  %vm402 = vcmask 786152
  %403 = vst.msk [vmem:[%s1] ss:$3 sm:$0x3] %vm402, %v401
  %s404 = scalar_lea.vmem %s0, 116
  %v405 = vld [vmem:[%s404] sm:$0x1]
  %s406 = scalar_lea.vmem %s0, 243
  %v407 = vld [vmem:[%s406] sm:$0x2]
  %vm408 = vcmask 1041409
  %v409 = vsel %vm408, %v407, %v405
  %410 = vrot.lane.b32.xlu0 %v409, 92
  %v411 = vpop.permute.xlu0 %410
  %vm412 = vcmask 777952
  %s413 = scalar_lea.vmem %s1, 2
  %414 = vst.msk [vmem:[%s413] ss:$3 sm:$0x3] %vm412, %v411
  %s415 = scalar_lea.vmem %s0, 73
  %v416 = vld [vmem:[%s415] sm:$0x1]
  %s417 = scalar_lea.vmem %s0, 200
  %v418 = vld [vmem:[%s417] sm:$0x2]
  %vm419 = vcmask 1041409
  %v420 = vsel %vm419, %v418, %v416
  %421 = vrot.lane.b32.xlu0 %v420, 91
  %v422 = vpop.permute.xlu0 %421
  %vm423 = vcmask 769752
  %s424 = scalar_lea.vmem %s1, 1
  %425 = vst.msk [vmem:[%s424] ss:$3 sm:$0x3] %vm423, %v422
  %s426 = scalar_lea.vmem %s0, 30
  %v427 = vld [vmem:[%s426] sm:$0x1]
  %s428 = scalar_lea.vmem %s0, 157
  %v429 = vld [vmem:[%s428] sm:$0x2]
  %vm430 = vcmask 1041409
  %v431 = vsel %vm430, %v429, %v427
  %432 = vrot.lane.b32.xlu0 %v431, 90
  %v433 = vpop.permute.xlu0 %432
  %vm434 = vcmask 761552
  %435 = vst.msk [vmem:[%s1] ss:$3 sm:$0x3] %vm434, %v433
  %s436 = scalar_lea.vmem %s0, 115
  %v437 = vld [vmem:[%s436] sm:$0x1]
  %s438 = scalar_lea.vmem %s0, 242
  %v439 = vld [vmem:[%s438] sm:$0x2]
  %vm440 = vcmask 1041409
  %v441 = vsel %vm440, %v439, %v437
  %442 = vrot.lane.b32.xlu0 %v441, 89
  %v443 = vpop.permute.xlu0 %442
  %vm444 = vcmask 753352
  %s445 = scalar_lea.vmem %s1, 2
  %446 = vst.msk [vmem:[%s445] ss:$3 sm:$0x3] %vm444, %v443
  %s447 = scalar_lea.vmem %s0, 72
  %v448 = vld [vmem:[%s447] sm:$0x1]
  %s449 = scalar_lea.vmem %s0, 199
  %v450 = vld [vmem:[%s449] sm:$0x2]
  %vm451 = vcmask 1041409
  %v452 = vsel %vm451, %v450, %v448
  %453 = vrot.lane.b32.xlu0 %v452, 88
  %v454 = vpop.permute.xlu0 %453
  %vm455 = vcmask 745152
  %s456 = scalar_lea.vmem %s1, 1
  %457 = vst.msk [vmem:[%s456] ss:$3 sm:$0x3] %vm455, %v454
  %s458 = scalar_lea.vmem %s0, 29
  %v459 = vld [vmem:[%s458] sm:$0x1]
  %s460 = scalar_lea.vmem %s0, 156
  %v461 = vld [vmem:[%s460] sm:$0x2]
  %vm462 = vcmask 1041409
  %v463 = vsel %vm462, %v461, %v459
  %464 = vrot.lane.b32.xlu0 %v463, 87
  %v465 = vpop.permute.xlu0 %464
  %vm466 = vcmask 736952
  %467 = vst.msk [vmem:[%s1] ss:$3 sm:$0x3] %vm466, %v465
  %s468 = scalar_lea.vmem %s0, 114
  %v469 = vld [vmem:[%s468] sm:$0x1]
  %s470 = scalar_lea.vmem %s0, 241
  %v471 = vld [vmem:[%s470] sm:$0x2]
  %vm472 = vcmask 1041409
  %v473 = vsel %vm472, %v471, %v469
  %474 = vrot.lane.b32.xlu0 %v473, 86
  %v475 = vpop.permute.xlu0 %474
  %vm476 = vcmask 728752
  %s477 = scalar_lea.vmem %s1, 2
  %478 = vst.msk [vmem:[%s477] ss:$3 sm:$0x3] %vm476, %v475
  %s479 = scalar_lea.vmem %s0, 71
  %v480 = vld [vmem:[%s479] sm:$0x1]
  %s481 = scalar_lea.vmem %s0, 198
  %v482 = vld [vmem:[%s481] sm:$0x2]
  %vm483 = vcmask 1041409
  %v484 = vsel %vm483, %v482, %v480
  %485 = vrot.lane.b32.xlu0 %v484, 85
  %v486 = vpop.permute.xlu0 %485
  %vm487 = vcmask 720552
  %s488 = scalar_lea.vmem %s1, 1
  %489 = vst.msk [vmem:[%s488] ss:$3 sm:$0x3] %vm487, %v486
  %s490 = scalar_lea.vmem %s0, 28
  %v491 = vld [vmem:[%s490] sm:$0x1]
  %s492 = scalar_lea.vmem %s0, 155
  %v493 = vld [vmem:[%s492] sm:$0x2]
  %vm494 = vcmask 1041409
  %v495 = vsel %vm494, %v493, %v491
  %496 = vrot.lane.b32.xlu0 %v495, 84
  %v497 = vpop.permute.xlu0 %496
  %vm498 = vcmask 712352
  %499 = vst.msk [vmem:[%s1] ss:$3 sm:$0x3] %vm498, %v497
  %s500 = scalar_lea.vmem %s0, 113
  %v501 = vld [vmem:[%s500] sm:$0x1]
  %s502 = scalar_lea.vmem %s0, 240
  %v503 = vld [vmem:[%s502] sm:$0x2]
  %vm504 = vcmask 1041409
  %v505 = vsel %vm504, %v503, %v501
  %506 = vrot.lane.b32.xlu0 %v505, 83
  %v507 = vpop.permute.xlu0 %506
  %vm508 = vcmask 704152
  %s509 = scalar_lea.vmem %s1, 2
  %510 = vst.msk [vmem:[%s509] ss:$3 sm:$0x3] %vm508, %v507
  %s511 = scalar_lea.vmem %s0, 70
  %v512 = vld [vmem:[%s511] sm:$0x1]
  %s513 = scalar_lea.vmem %s0, 197
  %v514 = vld [vmem:[%s513] sm:$0x2]
  %vm515 = vcmask 1041409
  %v516 = vsel %vm515, %v514, %v512
  %517 = vrot.lane.b32.xlu0 %v516, 82
  %v518 = vpop.permute.xlu0 %517
  %vm519 = vcmask 695952
  %s520 = scalar_lea.vmem %s1, 1
  %521 = vst.msk [vmem:[%s520] ss:$3 sm:$0x3] %vm519, %v518
  %s522 = scalar_lea.vmem %s0, 27
  %v523 = vld [vmem:[%s522] sm:$0x1]
  %s524 = scalar_lea.vmem %s0, 154
  %v525 = vld [vmem:[%s524] sm:$0x2]
  %vm526 = vcmask 1041409
  %v527 = vsel %vm526, %v525, %v523
  %528 = vrot.lane.b32.xlu0 %v527, 81
  %v529 = vpop.permute.xlu0 %528
  %vm530 = vcmask 687752
  %531 = vst.msk [vmem:[%s1] ss:$3 sm:$0x3] %vm530, %v529
  %s532 = scalar_lea.vmem %s0, 112
  %v533 = vld [vmem:[%s532] sm:$0x1]
  %s534 = scalar_lea.vmem %s0, 239
  %v535 = vld [vmem:[%s534] sm:$0x2]
  %vm536 = vcmask 1041409
  %v537 = vsel %vm536, %v535, %v533
  %538 = vrot.lane.b32.xlu0 %v537, 80
  %v539 = vpop.permute.xlu0 %538
  %vm540 = vcmask 679552
  %s541 = scalar_lea.vmem %s1, 2
  %542 = vst.msk [vmem:[%s541] ss:$3 sm:$0x3] %vm540, %v539
  %s543 = scalar_lea.vmem %s0, 69
  %v544 = vld [vmem:[%s543] sm:$0x1]
  %s545 = scalar_lea.vmem %s0, 196
  %v546 = vld [vmem:[%s545] sm:$0x2]
  %vm547 = vcmask 1041409
  %v548 = vsel %vm547, %v546, %v544
  %549 = vrot.lane.b32.xlu0 %v548, 79
  %v550 = vpop.permute.xlu0 %549
  %vm551 = vcmask 671352
  %s552 = scalar_lea.vmem %s1, 1
  %553 = vst.msk [vmem:[%s552] ss:$3 sm:$0x3] %vm551, %v550
  %s554 = scalar_lea.vmem %s0, 26
  %v555 = vld [vmem:[%s554] sm:$0x1]
  %s556 = scalar_lea.vmem %s0, 153
  %v557 = vld [vmem:[%s556] sm:$0x2]
  %vm558 = vcmask 1041409
  %v559 = vsel %vm558, %v557, %v555
  %560 = vrot.lane.b32.xlu0 %v559, 78
  %v561 = vpop.permute.xlu0 %560
  %vm562 = vcmask 663152
  %563 = vst.msk [vmem:[%s1] ss:$3 sm:$0x3] %vm562, %v561
  %s564 = scalar_lea.vmem %s0, 111
  %v565 = vld [vmem:[%s564] sm:$0x1]
  %s566 = scalar_lea.vmem %s0, 238
  %v567 = vld [vmem:[%s566] sm:$0x2]
  %vm568 = vcmask 1041409
  %v569 = vsel %vm568, %v567, %v565
  %570 = vrot.lane.b32.xlu0 %v569, 77
  %v571 = vpop.permute.xlu0 %570
  %vm572 = vcmask 654952
  %s573 = scalar_lea.vmem %s1, 2
  %574 = vst.msk [vmem:[%s573] ss:$3 sm:$0x3] %vm572, %v571
  %s575 = scalar_lea.vmem %s0, 68
  %v576 = vld [vmem:[%s575] sm:$0x1]
  %s577 = scalar_lea.vmem %s0, 195
  %v578 = vld [vmem:[%s577] sm:$0x2]
  %vm579 = vcmask 1041409
  %v580 = vsel %vm579, %v578, %v576
  %581 = vrot.lane.b32.xlu0 %v580, 76
  %v582 = vpop.permute.xlu0 %581
  %vm583 = vcmask 646752
  %s584 = scalar_lea.vmem %s1, 1
  %585 = vst.msk [vmem:[%s584] ss:$3 sm:$0x3] %vm583, %v582
  %s586 = scalar_lea.vmem %s0, 25
  %v587 = vld [vmem:[%s586] sm:$0x1]
  %s588 = scalar_lea.vmem %s0, 152
  %v589 = vld [vmem:[%s588] sm:$0x2]
  %vm590 = vcmask 1041409
  %v591 = vsel %vm590, %v589, %v587
  %592 = vrot.lane.b32.xlu0 %v591, 75
  %v593 = vpop.permute.xlu0 %592
  %vm594 = vcmask 638552
  %595 = vst.msk [vmem:[%s1] ss:$3 sm:$0x3] %vm594, %v593
  %s596 = scalar_lea.vmem %s0, 110
  %v597 = vld [vmem:[%s596] sm:$0x1]
  %s598 = scalar_lea.vmem %s0, 237
  %v599 = vld [vmem:[%s598] sm:$0x2]
  %vm600 = vcmask 1041409
  %v601 = vsel %vm600, %v599, %v597
  %602 = vrot.lane.b32.xlu0 %v601, 74
  %v603 = vpop.permute.xlu0 %602
  %vm604 = vcmask 630352
  %s605 = scalar_lea.vmem %s1, 2
  %606 = vst.msk [vmem:[%s605] ss:$3 sm:$0x3] %vm604, %v603
  %s607 = scalar_lea.vmem %s0, 67
  %v608 = vld [vmem:[%s607] sm:$0x1]
  %s609 = scalar_lea.vmem %s0, 194
  %v610 = vld [vmem:[%s609] sm:$0x2]
  %vm611 = vcmask 1041409
  %v612 = vsel %vm611, %v610, %v608
  %613 = vrot.lane.b32.xlu0 %v612, 73
  %v614 = vpop.permute.xlu0 %613
  %vm615 = vcmask 622152
  %s616 = scalar_lea.vmem %s1, 1
  %617 = vst.msk [vmem:[%s616] ss:$3 sm:$0x3] %vm615, %v614
  %s618 = scalar_lea.vmem %s0, 24
  %v619 = vld [vmem:[%s618] sm:$0x1]
  %s620 = scalar_lea.vmem %s0, 151
  %v621 = vld [vmem:[%s620] sm:$0x2]
  %vm622 = vcmask 1041409
  %v623 = vsel %vm622, %v621, %v619
  %624 = vrot.lane.b32.xlu0 %v623, 72
  %v625 = vpop.permute.xlu0 %624
  %vm626 = vcmask 613952
  %627 = vst.msk [vmem:[%s1] ss:$3 sm:$0x3] %vm626, %v625
  %s628 = scalar_lea.vmem %s0, 109
  %v629 = vld [vmem:[%s628] sm:$0x1]
  %s630 = scalar_lea.vmem %s0, 236
  %v631 = vld [vmem:[%s630] sm:$0x2]
  %vm632 = vcmask 1041409
  %v633 = vsel %vm632, %v631, %v629
  %634 = vrot.lane.b32.xlu0 %v633, 71
  %v635 = vpop.permute.xlu0 %634
  %vm636 = vcmask 605752
  %s637 = scalar_lea.vmem %s1, 2
  %638 = vst.msk [vmem:[%s637] ss:$3 sm:$0x3] %vm636, %v635
  %s639 = scalar_lea.vmem %s0, 66
  %v640 = vld [vmem:[%s639] sm:$0x1]
  %s641 = scalar_lea.vmem %s0, 193
  %v642 = vld [vmem:[%s641] sm:$0x2]
  %vm643 = vcmask 1041409
  %v644 = vsel %vm643, %v642, %v640
  %645 = vrot.lane.b32.xlu0 %v644, 70
  %v646 = vpop.permute.xlu0 %645
  %vm647 = vcmask 597552
  %s648 = scalar_lea.vmem %s1, 1
  %649 = vst.msk [vmem:[%s648] ss:$3 sm:$0x3] %vm647, %v646
  %s650 = scalar_lea.vmem %s0, 23
  %v651 = vld [vmem:[%s650] sm:$0x1]
  %s652 = scalar_lea.vmem %s0, 150
  %v653 = vld [vmem:[%s652] sm:$0x2]
  %vm654 = vcmask 1041409
  %v655 = vsel %vm654, %v653, %v651
  %656 = vrot.lane.b32.xlu0 %v655, 69
  %v657 = vpop.permute.xlu0 %656
  %vm658 = vcmask 589352
  %659 = vst.msk [vmem:[%s1] ss:$3 sm:$0x3] %vm658, %v657
  %s660 = scalar_lea.vmem %s0, 108
  %v661 = vld [vmem:[%s660] sm:$0x1]
  %s662 = scalar_lea.vmem %s0, 235
  %v663 = vld [vmem:[%s662] sm:$0x2]
  %vm664 = vcmask 1041409
  %v665 = vsel %vm664, %v663, %v661
  %666 = vrot.lane.b32.xlu0 %v665, 68
  %v667 = vpop.permute.xlu0 %666
  %vm668 = vcmask 581152
  %s669 = scalar_lea.vmem %s1, 2
  %670 = vst.msk [vmem:[%s669] ss:$3 sm:$0x3] %vm668, %v667
  %s671 = scalar_lea.vmem %s0, 65
  %v672 = vld [vmem:[%s671] sm:$0x1]
  %s673 = scalar_lea.vmem %s0, 192
  %v674 = vld [vmem:[%s673] sm:$0x2]
  %vm675 = vcmask 1041409
  %v676 = vsel %vm675, %v674, %v672
  %677 = vrot.lane.b32.xlu0 %v676, 67
  %v678 = vpop.permute.xlu0 %677
  %vm679 = vcmask 572952
  %s680 = scalar_lea.vmem %s1, 1
  %681 = vst.msk [vmem:[%s680] ss:$3 sm:$0x3] %vm679, %v678
  %s682 = scalar_lea.vmem %s0, 22
  %v683 = vld [vmem:[%s682] sm:$0x1]
  %s684 = scalar_lea.vmem %s0, 149
  %v685 = vld [vmem:[%s684] sm:$0x2]
  %vm686 = vcmask 1041409
  %v687 = vsel %vm686, %v685, %v683
  %688 = vrot.lane.b32.xlu0 %v687, 66
  %v689 = vpop.permute.xlu0 %688
  %vm690 = vcmask 564752
  %691 = vst.msk [vmem:[%s1] ss:$3 sm:$0x3] %vm690, %v689
  %s692 = scalar_lea.vmem %s0, 107
  %v693 = vld [vmem:[%s692] sm:$0x1]
  %s694 = scalar_lea.vmem %s0, 234
  %v695 = vld [vmem:[%s694] sm:$0x2]
  %vm696 = vcmask 1041409
  %v697 = vsel %vm696, %v695, %v693
  %698 = vrot.lane.b32.xlu0 %v697, 65
  %v699 = vpop.permute.xlu0 %698
  %vm700 = vcmask 556552
  %s701 = scalar_lea.vmem %s1, 2
  %702 = vst.msk [vmem:[%s701] ss:$3 sm:$0x3] %vm700, %v699
  %s703 = scalar_lea.vmem %s0, 64
  %v704 = vld [vmem:[%s703] sm:$0x1]
  %s705 = scalar_lea.vmem %s0, 191
  %v706 = vld [vmem:[%s705] sm:$0x2]
  %vm707 = vcmask 1041409
  %v708 = vsel %vm707, %v706, %v704
  %709 = vrot.lane.b32.xlu0 %v708, 64
  %v710 = vpop.permute.xlu0 %709
  %vm711 = vcmask 548352
  %s712 = scalar_lea.vmem %s1, 1
  %713 = vst.msk [vmem:[%s712] ss:$3 sm:$0x3] %vm711, %v710
  %s714 = scalar_lea.vmem %s0, 21
  %v715 = vld [vmem:[%s714] sm:$0x1]
  %s716 = scalar_lea.vmem %s0, 148
  %v717 = vld [vmem:[%s716] sm:$0x2]
  %vm718 = vcmask 1041409
  %v719 = vsel %vm718, %v717, %v715
  %720 = vrot.lane.b32.xlu0 %v719, 63
  %v721 = vpop.permute.xlu0 %720
  %vm722 = vcmask 540152
  %723 = vst.msk [vmem:[%s1] ss:$3 sm:$0x3] %vm722, %v721
  %s724 = scalar_lea.vmem %s0, 106
  %v725 = vld [vmem:[%s724] sm:$0x1]
  %s726 = scalar_lea.vmem %s0, 233
  %v727 = vld [vmem:[%s726] sm:$0x2]
  %vm728 = vcmask 1041409
  %v729 = vsel %vm728, %v727, %v725
  %730 = vrot.lane.b32.xlu0 %v729, 62
  %v731 = vpop.permute.xlu0 %730
  %vm732 = vcmask 531952
  %s733 = scalar_lea.vmem %s1, 2
  %734 = vst.msk [vmem:[%s733] ss:$3 sm:$0x3] %vm732, %v731
  %s735 = scalar_lea.vmem %s0, 63
  %v736 = vld [vmem:[%s735] sm:$0x1]
  %s737 = scalar_lea.vmem %s0, 190
  %v738 = vld [vmem:[%s737] sm:$0x2]
  %vm739 = vcmask 1041409
  %v740 = vsel %vm739, %v738, %v736
  %741 = vrot.lane.b32.xlu0 %v740, 61
  %v742 = vpop.permute.xlu0 %741
  %vm743 = vcmask 523752
  %s744 = scalar_lea.vmem %s1, 1
  %745 = vst.msk [vmem:[%s744] ss:$3 sm:$0x3] %vm743, %v742
  %s746 = scalar_lea.vmem %s0, 20
  %v747 = vld [vmem:[%s746] sm:$0x1]
  %s748 = scalar_lea.vmem %s0, 147
  %v749 = vld [vmem:[%s748] sm:$0x2]
  %vm750 = vcmask 1041409
  %v751 = vsel %vm750, %v749, %v747
  %752 = vrot.lane.b32.xlu0 %v751, 60
  %v753 = vpop.permute.xlu0 %752
  %vm754 = vcmask 515552
  %755 = vst.msk [vmem:[%s1] ss:$3 sm:$0x3] %vm754, %v753
  %s756 = scalar_lea.vmem %s0, 105
  %v757 = vld [vmem:[%s756] sm:$0x1]
  %s758 = scalar_lea.vmem %s0, 232
  %v759 = vld [vmem:[%s758] sm:$0x2]
  %vm760 = vcmask 1041409
  %v761 = vsel %vm760, %v759, %v757
  %762 = vrot.lane.b32.xlu0 %v761, 59
  %v763 = vpop.permute.xlu0 %762
  %vm764 = vcmask 507352
  %s765 = scalar_lea.vmem %s1, 2
  %766 = vst.msk [vmem:[%s765] ss:$3 sm:$0x3] %vm764, %v763
  %s767 = scalar_lea.vmem %s0, 62
  %v768 = vld [vmem:[%s767] sm:$0x1]
  %s769 = scalar_lea.vmem %s0, 189
  %v770 = vld [vmem:[%s769] sm:$0x2]
  %vm771 = vcmask 1041409
  %v772 = vsel %vm771, %v770, %v768
  %773 = vrot.lane.b32.xlu0 %v772, 58
  %v774 = vpop.permute.xlu0 %773
  %vm775 = vcmask 499152
  %s776 = scalar_lea.vmem %s1, 1
  %777 = vst.msk [vmem:[%s776] ss:$3 sm:$0x3] %vm775, %v774
  %s778 = scalar_lea.vmem %s0, 19
  %v779 = vld [vmem:[%s778] sm:$0x1]
  %s780 = scalar_lea.vmem %s0, 146
  %v781 = vld [vmem:[%s780] sm:$0x2]
  %vm782 = vcmask 1041409
  %v783 = vsel %vm782, %v781, %v779
  %784 = vrot.lane.b32.xlu0 %v783, 57
  %v785 = vpop.permute.xlu0 %784
  %vm786 = vcmask 490952
  %787 = vst.msk [vmem:[%s1] ss:$3 sm:$0x3] %vm786, %v785
  %s788 = scalar_lea.vmem %s0, 104
  %v789 = vld [vmem:[%s788] sm:$0x1]
  %s790 = scalar_lea.vmem %s0, 231
  %v791 = vld [vmem:[%s790] sm:$0x2]
  %vm792 = vcmask 1041409
  %v793 = vsel %vm792, %v791, %v789
  %794 = vrot.lane.b32.xlu0 %v793, 56
  %v795 = vpop.permute.xlu0 %794
  %vm796 = vcmask 482752
  %s797 = scalar_lea.vmem %s1, 2
  %798 = vst.msk [vmem:[%s797] ss:$3 sm:$0x3] %vm796, %v795
  %s799 = scalar_lea.vmem %s0, 61
  %v800 = vld [vmem:[%s799] sm:$0x1]
  %s801 = scalar_lea.vmem %s0, 188
  %v802 = vld [vmem:[%s801] sm:$0x2]
  %vm803 = vcmask 1041409
  %v804 = vsel %vm803, %v802, %v800
  %805 = vrot.lane.b32.xlu0 %v804, 55
  %v806 = vpop.permute.xlu0 %805
  %vm807 = vcmask 474552
  %s808 = scalar_lea.vmem %s1, 1
  %809 = vst.msk [vmem:[%s808] ss:$3 sm:$0x3] %vm807, %v806
  %s810 = scalar_lea.vmem %s0, 18
  %v811 = vld [vmem:[%s810] sm:$0x1]
  %s812 = scalar_lea.vmem %s0, 145
  %v813 = vld [vmem:[%s812] sm:$0x2]
  %vm814 = vcmask 1041409
  %v815 = vsel %vm814, %v813, %v811
  %816 = vrot.lane.b32.xlu0 %v815, 54
  %v817 = vpop.permute.xlu0 %816
  %vm818 = vcmask 466352
  %819 = vst.msk [vmem:[%s1] ss:$3 sm:$0x3] %vm818, %v817
  %s820 = scalar_lea.vmem %s0, 103
  %v821 = vld [vmem:[%s820] sm:$0x1]
  %s822 = scalar_lea.vmem %s0, 230
  %v823 = vld [vmem:[%s822] sm:$0x2]
  %vm824 = vcmask 1041409
  %v825 = vsel %vm824, %v823, %v821
  %826 = vrot.lane.b32.xlu0 %v825, 53
  %v827 = vpop.permute.xlu0 %826
  %vm828 = vcmask 458152
  %s829 = scalar_lea.vmem %s1, 2
  %830 = vst.msk [vmem:[%s829] ss:$3 sm:$0x3] %vm828, %v827
  %s831 = scalar_lea.vmem %s0, 60
  %v832 = vld [vmem:[%s831] sm:$0x1]
  %s833 = scalar_lea.vmem %s0, 187
  %v834 = vld [vmem:[%s833] sm:$0x2]
  %vm835 = vcmask 1041409
  %v836 = vsel %vm835, %v834, %v832
  %837 = vrot.lane.b32.xlu0 %v836, 52
  %v838 = vpop.permute.xlu0 %837
  %vm839 = vcmask 449952
  %s840 = scalar_lea.vmem %s1, 1
  %841 = vst.msk [vmem:[%s840] ss:$3 sm:$0x3] %vm839, %v838
  %s842 = scalar_lea.vmem %s0, 17
  %v843 = vld [vmem:[%s842] sm:$0x1]
  %s844 = scalar_lea.vmem %s0, 144
  %v845 = vld [vmem:[%s844] sm:$0x2]
  %vm846 = vcmask 1041409
  %v847 = vsel %vm846, %v845, %v843
  %848 = vrot.lane.b32.xlu0 %v847, 51
  %v849 = vpop.permute.xlu0 %848
  %vm850 = vcmask 441752
  %851 = vst.msk [vmem:[%s1] ss:$3 sm:$0x3] %vm850, %v849
  %s852 = scalar_lea.vmem %s0, 102
  %v853 = vld [vmem:[%s852] sm:$0x1]
  %s854 = scalar_lea.vmem %s0, 229
  %v855 = vld [vmem:[%s854] sm:$0x2]
  %vm856 = vcmask 1041409
  %v857 = vsel %vm856, %v855, %v853
  %858 = vrot.lane.b32.xlu0 %v857, 50
  %v859 = vpop.permute.xlu0 %858
  %vm860 = vcmask 433552
  %s861 = scalar_lea.vmem %s1, 2
  %862 = vst.msk [vmem:[%s861] ss:$3 sm:$0x3] %vm860, %v859
  %s863 = scalar_lea.vmem %s0, 59
  %v864 = vld [vmem:[%s863] sm:$0x1]
  %s865 = scalar_lea.vmem %s0, 186
  %v866 = vld [vmem:[%s865] sm:$0x2]
  %vm867 = vcmask 1041409
  %v868 = vsel %vm867, %v866, %v864
  %869 = vrot.lane.b32.xlu0 %v868, 49
  %v870 = vpop.permute.xlu0 %869
  %vm871 = vcmask 425352
  %s872 = scalar_lea.vmem %s1, 1
  %873 = vst.msk [vmem:[%s872] ss:$3 sm:$0x3] %vm871, %v870
  %s874 = scalar_lea.vmem %s0, 16
  %v875 = vld [vmem:[%s874] sm:$0x1]
  %s876 = scalar_lea.vmem %s0, 143
  %v877 = vld [vmem:[%s876] sm:$0x2]
  %vm878 = vcmask 1041409
  %v879 = vsel %vm878, %v877, %v875
  %880 = vrot.lane.b32.xlu0 %v879, 48
  %v881 = vpop.permute.xlu0 %880
  %vm882 = vcmask 417152
  %883 = vst.msk [vmem:[%s1] ss:$3 sm:$0x3] %vm882, %v881
  %s884 = scalar_lea.vmem %s0, 101
  %v885 = vld [vmem:[%s884] sm:$0x1]
  %s886 = scalar_lea.vmem %s0, 228
  %v887 = vld [vmem:[%s886] sm:$0x2]
  %vm888 = vcmask 1041409
  %v889 = vsel %vm888, %v887, %v885
  %890 = vrot.lane.b32.xlu0 %v889, 47
  %v891 = vpop.permute.xlu0 %890
  %vm892 = vcmask 408952
  %s893 = scalar_lea.vmem %s1, 2
  %894 = vst.msk [vmem:[%s893] ss:$3 sm:$0x3] %vm892, %v891
  %s895 = scalar_lea.vmem %s0, 58
  %v896 = vld [vmem:[%s895] sm:$0x1]
  %s897 = scalar_lea.vmem %s0, 185
  %v898 = vld [vmem:[%s897] sm:$0x2]
  %vm899 = vcmask 1041409
  %v900 = vsel %vm899, %v898, %v896
  %901 = vrot.lane.b32.xlu0 %v900, 46
  %v902 = vpop.permute.xlu0 %901
  %vm903 = vcmask 400752
  %s904 = scalar_lea.vmem %s1, 1
  %905 = vst.msk [vmem:[%s904] ss:$3 sm:$0x3] %vm903, %v902
  %s906 = scalar_lea.vmem %s0, 15
  %v907 = vld [vmem:[%s906] sm:$0x1]
  %s908 = scalar_lea.vmem %s0, 142
  %v909 = vld [vmem:[%s908] sm:$0x2]
  %vm910 = vcmask 1041409
  %v911 = vsel %vm910, %v909, %v907
  %912 = vrot.lane.b32.xlu0 %v911, 45
  %v913 = vpop.permute.xlu0 %912
  %vm914 = vcmask 392552
  %915 = vst.msk [vmem:[%s1] ss:$3 sm:$0x3] %vm914, %v913
  %s916 = scalar_lea.vmem %s0, 100
  %v917 = vld [vmem:[%s916] sm:$0x1]
  %s918 = scalar_lea.vmem %s0, 227
  %v919 = vld [vmem:[%s918] sm:$0x2]
  %vm920 = vcmask 1041409
  %v921 = vsel %vm920, %v919, %v917
  %922 = vrot.lane.b32.xlu0 %v921, 44
  %v923 = vpop.permute.xlu0 %922
  %vm924 = vcmask 384352
  %s925 = scalar_lea.vmem %s1, 2
  %926 = vst.msk [vmem:[%s925] ss:$3 sm:$0x3] %vm924, %v923
  %s927 = scalar_lea.vmem %s0, 57
  %v928 = vld [vmem:[%s927] sm:$0x1]
  %s929 = scalar_lea.vmem %s0, 184
  %v930 = vld [vmem:[%s929] sm:$0x2]
  %vm931 = vcmask 1041409
  %v932 = vsel %vm931, %v930, %v928
  %933 = vrot.lane.b32.xlu0 %v932, 43
  %v934 = vpop.permute.xlu0 %933
  %vm935 = vcmask 376152
  %s936 = scalar_lea.vmem %s1, 1
  %937 = vst.msk [vmem:[%s936] ss:$3 sm:$0x3] %vm935, %v934
  %s938 = scalar_lea.vmem %s0, 14
  %v939 = vld [vmem:[%s938] sm:$0x1]
  %s940 = scalar_lea.vmem %s0, 141
  %v941 = vld [vmem:[%s940] sm:$0x2]
  %vm942 = vcmask 1041409
  %v943 = vsel %vm942, %v941, %v939
  %944 = vrot.lane.b32.xlu0 %v943, 42
  %v945 = vpop.permute.xlu0 %944
  %vm946 = vcmask 367952
  %947 = vst.msk [vmem:[%s1] ss:$3 sm:$0x3] %vm946, %v945
  %s948 = scalar_lea.vmem %s0, 99
  %v949 = vld [vmem:[%s948] sm:$0x1]
  %s950 = scalar_lea.vmem %s0, 226
  %v951 = vld [vmem:[%s950] sm:$0x2]
  %vm952 = vcmask 1041409
  %v953 = vsel %vm952, %v951, %v949
  %954 = vrot.lane.b32.xlu0 %v953, 41
  %v955 = vpop.permute.xlu0 %954
  %vm956 = vcmask 359752
  %s957 = scalar_lea.vmem %s1, 2
  %958 = vst.msk [vmem:[%s957] ss:$3 sm:$0x3] %vm956, %v955
  %s959 = scalar_lea.vmem %s0, 56
  %v960 = vld [vmem:[%s959] sm:$0x1]
  %s961 = scalar_lea.vmem %s0, 183
  %v962 = vld [vmem:[%s961] sm:$0x2]
  %vm963 = vcmask 1041409
  %v964 = vsel %vm963, %v962, %v960
  %965 = vrot.lane.b32.xlu0 %v964, 40
  %v966 = vpop.permute.xlu0 %965
  %vm967 = vcmask 351552
  %s968 = scalar_lea.vmem %s1, 1
  %969 = vst.msk [vmem:[%s968] ss:$3 sm:$0x3] %vm967, %v966
  %s970 = scalar_lea.vmem %s0, 13
  %v971 = vld [vmem:[%s970] sm:$0x1]
  %s972 = scalar_lea.vmem %s0, 140
  %v973 = vld [vmem:[%s972] sm:$0x2]
  %vm974 = vcmask 1041409
  %v975 = vsel %vm974, %v973, %v971
  %976 = vrot.lane.b32.xlu0 %v975, 39
  %v977 = vpop.permute.xlu0 %976
  %vm978 = vcmask 343352
  %979 = vst.msk [vmem:[%s1] ss:$3 sm:$0x3] %vm978, %v977
  %s980 = scalar_lea.vmem %s0, 98
  %v981 = vld [vmem:[%s980] sm:$0x1]
  %s982 = scalar_lea.vmem %s0, 225
  %v983 = vld [vmem:[%s982] sm:$0x2]
  %vm984 = vcmask 1041409
  %v985 = vsel %vm984, %v983, %v981
  %986 = vrot.lane.b32.xlu0 %v985, 38
  %v987 = vpop.permute.xlu0 %986
  %vm988 = vcmask 335152
  %s989 = scalar_lea.vmem %s1, 2
  %990 = vst.msk [vmem:[%s989] ss:$3 sm:$0x3] %vm988, %v987
  %s991 = scalar_lea.vmem %s0, 55
  %v992 = vld [vmem:[%s991] sm:$0x1]
  %s993 = scalar_lea.vmem %s0, 182
  %v994 = vld [vmem:[%s993] sm:$0x2]
  %vm995 = vcmask 1041409
  %v996 = vsel %vm995, %v994, %v992
  %997 = vrot.lane.b32.xlu0 %v996, 37
  %v998 = vpop.permute.xlu0 %997
  %vm999 = vcmask 326952
  %s1000 = scalar_lea.vmem %s1, 1
  %1001 = vst.msk [vmem:[%s1000] ss:$3 sm:$0x3] %vm999, %v998
  %s1002 = scalar_lea.vmem %s0, 12
  %v1003 = vld [vmem:[%s1002] sm:$0x1]
  %s1004 = scalar_lea.vmem %s0, 139
  %v1005 = vld [vmem:[%s1004] sm:$0x2]
  %vm1006 = vcmask 1041409
  %v1007 = vsel %vm1006, %v1005, %v1003
  %1008 = vrot.lane.b32.xlu0 %v1007, 36
  %v1009 = vpop.permute.xlu0 %1008
  %vm1010 = vcmask 318752
  %1011 = vst.msk [vmem:[%s1] ss:$3 sm:$0x3] %vm1010, %v1009
  %s1012 = scalar_lea.vmem %s0, 97
  %v1013 = vld [vmem:[%s1012] sm:$0x1]
  %s1014 = scalar_lea.vmem %s0, 224
  %v1015 = vld [vmem:[%s1014] sm:$0x2]
  %vm1016 = vcmask 1041409
  %v1017 = vsel %vm1016, %v1015, %v1013
  %1018 = vrot.lane.b32.xlu0 %v1017, 35
  %v1019 = vpop.permute.xlu0 %1018
  %vm1020 = vcmask 310552
  %s1021 = scalar_lea.vmem %s1, 2
  %1022 = vst.msk [vmem:[%s1021] ss:$3 sm:$0x3] %vm1020, %v1019
  %s1023 = scalar_lea.vmem %s0, 54
  %v1024 = vld [vmem:[%s1023] sm:$0x1]
  %s1025 = scalar_lea.vmem %s0, 181
  %v1026 = vld [vmem:[%s1025] sm:$0x2]
  %vm1027 = vcmask 1041409
  %v1028 = vsel %vm1027, %v1026, %v1024
  %1029 = vrot.lane.b32.xlu0 %v1028, 34
  %v1030 = vpop.permute.xlu0 %1029
  %vm1031 = vcmask 302352
  %s1032 = scalar_lea.vmem %s1, 1
  %1033 = vst.msk [vmem:[%s1032] ss:$3 sm:$0x3] %vm1031, %v1030
  %s1034 = scalar_lea.vmem %s0, 11
  %v1035 = vld [vmem:[%s1034] sm:$0x1]
  %s1036 = scalar_lea.vmem %s0, 138
  %v1037 = vld [vmem:[%s1036] sm:$0x2]
  %vm1038 = vcmask 1041409
  %v1039 = vsel %vm1038, %v1037, %v1035
  %1040 = vrot.lane.b32.xlu0 %v1039, 33
  %v1041 = vpop.permute.xlu0 %1040
  %vm1042 = vcmask 294152
  %1043 = vst.msk [vmem:[%s1] ss:$3 sm:$0x3] %vm1042, %v1041
  %s1044 = scalar_lea.vmem %s0, 96
  %v1045 = vld [vmem:[%s1044] sm:$0x1]
  %s1046 = scalar_lea.vmem %s0, 223
  %v1047 = vld [vmem:[%s1046] sm:$0x2]
  %vm1048 = vcmask 1041409
  %v1049 = vsel %vm1048, %v1047, %v1045
  %1050 = vrot.lane.b32.xlu0 %v1049, 32
  %v1051 = vpop.permute.xlu0 %1050
  %vm1052 = vcmask 285952
  %s1053 = scalar_lea.vmem %s1, 2
  %1054 = vst.msk [vmem:[%s1053] ss:$3 sm:$0x3] %vm1052, %v1051
  %s1055 = scalar_lea.vmem %s0, 53
  %v1056 = vld [vmem:[%s1055] sm:$0x1]
  %s1057 = scalar_lea.vmem %s0, 180
  %v1058 = vld [vmem:[%s1057] sm:$0x2]
  %vm1059 = vcmask 1041409
  %v1060 = vsel %vm1059, %v1058, %v1056
  %1061 = vrot.lane.b32.xlu0 %v1060, 31
  %v1062 = vpop.permute.xlu0 %1061
  %vm1063 = vcmask 277752
  %s1064 = scalar_lea.vmem %s1, 1
  %1065 = vst.msk [vmem:[%s1064] ss:$3 sm:$0x3] %vm1063, %v1062
  %s1066 = scalar_lea.vmem %s0, 10
  %v1067 = vld [vmem:[%s1066] sm:$0x1]
  %s1068 = scalar_lea.vmem %s0, 137
  %v1069 = vld [vmem:[%s1068] sm:$0x2]
  %vm1070 = vcmask 1041409
  %v1071 = vsel %vm1070, %v1069, %v1067
  %1072 = vrot.lane.b32.xlu0 %v1071, 30
  %v1073 = vpop.permute.xlu0 %1072
  %vm1074 = vcmask 269552
  %1075 = vst.msk [vmem:[%s1] ss:$3 sm:$0x3] %vm1074, %v1073
  %s1076 = scalar_lea.vmem %s0, 95
  %v1077 = vld [vmem:[%s1076] sm:$0x1]
  %s1078 = scalar_lea.vmem %s0, 222
  %v1079 = vld [vmem:[%s1078] sm:$0x2]
  %vm1080 = vcmask 1041409
  %v1081 = vsel %vm1080, %v1079, %v1077
  %1082 = vrot.lane.b32.xlu0 %v1081, 29
  %v1083 = vpop.permute.xlu0 %1082
  %vm1084 = vcmask 261352
  %s1085 = scalar_lea.vmem %s1, 2
  %1086 = vst.msk [vmem:[%s1085] ss:$3 sm:$0x3] %vm1084, %v1083
  %s1087 = scalar_lea.vmem %s0, 52
  %v1088 = vld [vmem:[%s1087] sm:$0x1]
  %s1089 = scalar_lea.vmem %s0, 179
  %v1090 = vld [vmem:[%s1089] sm:$0x2]
  %vm1091 = vcmask 1041409
  %v1092 = vsel %vm1091, %v1090, %v1088
  %1093 = vrot.lane.b32.xlu0 %v1092, 28
  %v1094 = vpop.permute.xlu0 %1093
  %vm1095 = vcmask 253152
  %s1096 = scalar_lea.vmem %s1, 1
  %1097 = vst.msk [vmem:[%s1096] ss:$3 sm:$0x3] %vm1095, %v1094
  %s1098 = scalar_lea.vmem %s0, 9
  %v1099 = vld [vmem:[%s1098] sm:$0x1]
  %s1100 = scalar_lea.vmem %s0, 136
  %v1101 = vld [vmem:[%s1100] sm:$0x2]
  %vm1102 = vcmask 1041409
  %v1103 = vsel %vm1102, %v1101, %v1099
  %1104 = vrot.lane.b32.xlu0 %v1103, 27
  %v1105 = vpop.permute.xlu0 %1104
  %vm1106 = vcmask 244952
  %1107 = vst.msk [vmem:[%s1] ss:$3 sm:$0x3] %vm1106, %v1105
  %s1108 = scalar_lea.vmem %s0, 94
  %v1109 = vld [vmem:[%s1108] sm:$0x1]
  %s1110 = scalar_lea.vmem %s0, 221
  %v1111 = vld [vmem:[%s1110] sm:$0x2]
  %vm1112 = vcmask 1041409
  %v1113 = vsel %vm1112, %v1111, %v1109
  %1114 = vrot.lane.b32.xlu0 %v1113, 26
  %v1115 = vpop.permute.xlu0 %1114
  %vm1116 = vcmask 236752
  %s1117 = scalar_lea.vmem %s1, 2
  %1118 = vst.msk [vmem:[%s1117] ss:$3 sm:$0x3] %vm1116, %v1115
  %s1119 = scalar_lea.vmem %s0, 51
  %v1120 = vld [vmem:[%s1119] sm:$0x1]
  %s1121 = scalar_lea.vmem %s0, 178
  %v1122 = vld [vmem:[%s1121] sm:$0x2]
  %vm1123 = vcmask 1041409
  %v1124 = vsel %vm1123, %v1122, %v1120
  %1125 = vrot.lane.b32.xlu0 %v1124, 25
  %v1126 = vpop.permute.xlu0 %1125
  %vm1127 = vcmask 228552
  %s1128 = scalar_lea.vmem %s1, 1
  %1129 = vst.msk [vmem:[%s1128] ss:$3 sm:$0x3] %vm1127, %v1126
  %s1130 = scalar_lea.vmem %s0, 8
  %v1131 = vld [vmem:[%s1130] sm:$0x1]
  %s1132 = scalar_lea.vmem %s0, 135
  %v1133 = vld [vmem:[%s1132] sm:$0x2]
  %vm1134 = vcmask 1041409
  %v1135 = vsel %vm1134, %v1133, %v1131
  %1136 = vrot.lane.b32.xlu0 %v1135, 24
  %v1137 = vpop.permute.xlu0 %1136
  %vm1138 = vcmask 220352
  %1139 = vst.msk [vmem:[%s1] ss:$3 sm:$0x3] %vm1138, %v1137
  %s1140 = scalar_lea.vmem %s0, 93
  %v1141 = vld [vmem:[%s1140] sm:$0x1]
  %s1142 = scalar_lea.vmem %s0, 220
  %v1143 = vld [vmem:[%s1142] sm:$0x2]
  %vm1144 = vcmask 1041409
  %v1145 = vsel %vm1144, %v1143, %v1141
  %1146 = vrot.lane.b32.xlu0 %v1145, 23
  %v1147 = vpop.permute.xlu0 %1146
  %vm1148 = vcmask 212152
  %s1149 = scalar_lea.vmem %s1, 2
  %1150 = vst.msk [vmem:[%s1149] ss:$3 sm:$0x3] %vm1148, %v1147
  %s1151 = scalar_lea.vmem %s0, 50
  %v1152 = vld [vmem:[%s1151] sm:$0x1]
  %s1153 = scalar_lea.vmem %s0, 177
  %v1154 = vld [vmem:[%s1153] sm:$0x2]
  %vm1155 = vcmask 1041409
  %v1156 = vsel %vm1155, %v1154, %v1152
  %1157 = vrot.lane.b32.xlu0 %v1156, 22
  %v1158 = vpop.permute.xlu0 %1157
  %vm1159 = vcmask 203952
  %s1160 = scalar_lea.vmem %s1, 1
  %1161 = vst.msk [vmem:[%s1160] ss:$3 sm:$0x3] %vm1159, %v1158
  %s1162 = scalar_lea.vmem %s0, 7
  %v1163 = vld [vmem:[%s1162] sm:$0x1]
  %s1164 = scalar_lea.vmem %s0, 134
  %v1165 = vld [vmem:[%s1164] sm:$0x2]
  %vm1166 = vcmask 1041409
  %v1167 = vsel %vm1166, %v1165, %v1163
  %1168 = vrot.lane.b32.xlu0 %v1167, 21
  %v1169 = vpop.permute.xlu0 %1168
  %vm1170 = vcmask 195752
  %1171 = vst.msk [vmem:[%s1] ss:$3 sm:$0x3] %vm1170, %v1169
  %s1172 = scalar_lea.vmem %s0, 92
  %v1173 = vld [vmem:[%s1172] sm:$0x1]
  %s1174 = scalar_lea.vmem %s0, 219
  %v1175 = vld [vmem:[%s1174] sm:$0x2]
  %vm1176 = vcmask 1041409
  %v1177 = vsel %vm1176, %v1175, %v1173
  %1178 = vrot.lane.b32.xlu0 %v1177, 20
  %v1179 = vpop.permute.xlu0 %1178
  %vm1180 = vcmask 187552
  %s1181 = scalar_lea.vmem %s1, 2
  %1182 = vst.msk [vmem:[%s1181] ss:$3 sm:$0x3] %vm1180, %v1179
  %s1183 = scalar_lea.vmem %s0, 49
  %v1184 = vld [vmem:[%s1183] sm:$0x1]
  %s1185 = scalar_lea.vmem %s0, 176
  %v1186 = vld [vmem:[%s1185] sm:$0x2]
  %vm1187 = vcmask 1041409
  %v1188 = vsel %vm1187, %v1186, %v1184
  %1189 = vrot.lane.b32.xlu0 %v1188, 19
  %v1190 = vpop.permute.xlu0 %1189
  %vm1191 = vcmask 179352
  %s1192 = scalar_lea.vmem %s1, 1
  %1193 = vst.msk [vmem:[%s1192] ss:$3 sm:$0x3] %vm1191, %v1190
  %s1194 = scalar_lea.vmem %s0, 6
  %v1195 = vld [vmem:[%s1194] sm:$0x1]
  %s1196 = scalar_lea.vmem %s0, 133
  %v1197 = vld [vmem:[%s1196] sm:$0x2]
  %vm1198 = vcmask 1041409
  %v1199 = vsel %vm1198, %v1197, %v1195
  %1200 = vrot.lane.b32.xlu0 %v1199, 18
  %v1201 = vpop.permute.xlu0 %1200
  %vm1202 = vcmask 171152
  %1203 = vst.msk [vmem:[%s1] ss:$3 sm:$0x3] %vm1202, %v1201
  %s1204 = scalar_lea.vmem %s0, 91
  %v1205 = vld [vmem:[%s1204] sm:$0x1]
  %s1206 = scalar_lea.vmem %s0, 218
  %v1207 = vld [vmem:[%s1206] sm:$0x2]
  %vm1208 = vcmask 1041409
  %v1209 = vsel %vm1208, %v1207, %v1205
  %1210 = vrot.lane.b32.xlu0 %v1209, 17
  %v1211 = vpop.permute.xlu0 %1210
  %vm1212 = vcmask 162952
  %s1213 = scalar_lea.vmem %s1, 2
  %1214 = vst.msk [vmem:[%s1213] ss:$3 sm:$0x3] %vm1212, %v1211
  %s1215 = scalar_lea.vmem %s0, 48
  %v1216 = vld [vmem:[%s1215] sm:$0x1]
  %s1217 = scalar_lea.vmem %s0, 175
  %v1218 = vld [vmem:[%s1217] sm:$0x2]
  %vm1219 = vcmask 1041409
  %v1220 = vsel %vm1219, %v1218, %v1216
  %1221 = vrot.lane.b32.xlu0 %v1220, 16
  %v1222 = vpop.permute.xlu0 %1221
  %vm1223 = vcmask 154752
  %s1224 = scalar_lea.vmem %s1, 1
  %1225 = vst.msk [vmem:[%s1224] ss:$3 sm:$0x3] %vm1223, %v1222
  %s1226 = scalar_lea.vmem %s0, 5
  %v1227 = vld [vmem:[%s1226] sm:$0x1]
  %s1228 = scalar_lea.vmem %s0, 132
  %v1229 = vld [vmem:[%s1228] sm:$0x2]
  %vm1230 = vcmask 1041409
  %v1231 = vsel %vm1230, %v1229, %v1227
  %1232 = vrot.lane.b32.xlu0 %v1231, 15
  %v1233 = vpop.permute.xlu0 %1232
  %vm1234 = vcmask 146552
  %1235 = vst.msk [vmem:[%s1] ss:$3 sm:$0x3] %vm1234, %v1233
  %s1236 = scalar_lea.vmem %s0, 90
  %v1237 = vld [vmem:[%s1236] sm:$0x1]
  %s1238 = scalar_lea.vmem %s0, 217
  %v1239 = vld [vmem:[%s1238] sm:$0x2]
  %vm1240 = vcmask 1041409
  %v1241 = vsel %vm1240, %v1239, %v1237
  %1242 = vrot.lane.b32.xlu0 %v1241, 14
  %v1243 = vpop.permute.xlu0 %1242
  %vm1244 = vcmask 138352
  %s1245 = scalar_lea.vmem %s1, 2
  %1246 = vst.msk [vmem:[%s1245] ss:$3 sm:$0x3] %vm1244, %v1243
  %s1247 = scalar_lea.vmem %s0, 47
  %v1248 = vld [vmem:[%s1247] sm:$0x1]
  %s1249 = scalar_lea.vmem %s0, 174
  %v1250 = vld [vmem:[%s1249] sm:$0x2]
  %vm1251 = vcmask 1041409
  %v1252 = vsel %vm1251, %v1250, %v1248
  %1253 = vrot.lane.b32.xlu0 %v1252, 13
  %v1254 = vpop.permute.xlu0 %1253
  %vm1255 = vcmask 130152
  %s1256 = scalar_lea.vmem %s1, 1
  %1257 = vst.msk [vmem:[%s1256] ss:$3 sm:$0x3] %vm1255, %v1254
  %s1258 = scalar_lea.vmem %s0, 4
  %v1259 = vld [vmem:[%s1258] sm:$0x1]
  %s1260 = scalar_lea.vmem %s0, 131
  %v1261 = vld [vmem:[%s1260] sm:$0x2]
  %vm1262 = vcmask 1041409
  %v1263 = vsel %vm1262, %v1261, %v1259
  %1264 = vrot.lane.b32.xlu0 %v1263, 12
  %v1265 = vpop.permute.xlu0 %1264
  %vm1266 = vcmask 121952
  %1267 = vst.msk [vmem:[%s1] ss:$3 sm:$0x3] %vm1266, %v1265
  %s1268 = scalar_lea.vmem %s0, 89
  %v1269 = vld [vmem:[%s1268] sm:$0x1]
  %s1270 = scalar_lea.vmem %s0, 216
  %v1271 = vld [vmem:[%s1270] sm:$0x2]
  %vm1272 = vcmask 1041409
  %v1273 = vsel %vm1272, %v1271, %v1269
  %1274 = vrot.lane.b32.xlu0 %v1273, 11
  %v1275 = vpop.permute.xlu0 %1274
  %vm1276 = vcmask 113752
  %s1277 = scalar_lea.vmem %s1, 2
  %1278 = vst.msk [vmem:[%s1277] ss:$3 sm:$0x3] %vm1276, %v1275
  %s1279 = scalar_lea.vmem %s0, 46
  %v1280 = vld [vmem:[%s1279] sm:$0x1]
  %s1281 = scalar_lea.vmem %s0, 173
  %v1282 = vld [vmem:[%s1281] sm:$0x2]
  %vm1283 = vcmask 1041409
  %v1284 = vsel %vm1283, %v1282, %v1280
  %1285 = vrot.lane.b32.xlu0 %v1284, 10
  %v1286 = vpop.permute.xlu0 %1285
  %vm1287 = vcmask 105552
  %s1288 = scalar_lea.vmem %s1, 1
  %1289 = vst.msk [vmem:[%s1288] ss:$3 sm:$0x3] %vm1287, %v1286
  %s1290 = scalar_lea.vmem %s0, 3
  %v1291 = vld [vmem:[%s1290] sm:$0x1]
  %s1292 = scalar_lea.vmem %s0, 130
  %v1293 = vld [vmem:[%s1292] sm:$0x2]
  %vm1294 = vcmask 1041409
  %v1295 = vsel %vm1294, %v1293, %v1291
  %1296 = vrot.lane.b32.xlu0 %v1295, 9
  %v1297 = vpop.permute.xlu0 %1296
  %vm1298 = vcmask 97352
  %1299 = vst.msk [vmem:[%s1] ss:$3 sm:$0x3] %vm1298, %v1297
  %s1300 = scalar_lea.vmem %s0, 88
  %v1301 = vld [vmem:[%s1300] sm:$0x1]
  %s1302 = scalar_lea.vmem %s0, 215
  %v1303 = vld [vmem:[%s1302] sm:$0x2]
  %vm1304 = vcmask 1041409
  %v1305 = vsel %vm1304, %v1303, %v1301
  %1306 = vrot.lane.b32.xlu0 %v1305, 8
  %v1307 = vpop.permute.xlu0 %1306
  %vm1308 = vcmask 89152
  %s1309 = scalar_lea.vmem %s1, 2
  %1310 = vst.msk [vmem:[%s1309] ss:$3 sm:$0x3] %vm1308, %v1307
  %s1311 = scalar_lea.vmem %s0, 45
  %v1312 = vld [vmem:[%s1311] sm:$0x1]
  %s1313 = scalar_lea.vmem %s0, 172
  %v1314 = vld [vmem:[%s1313] sm:$0x2]
  %vm1315 = vcmask 1041409
  %v1316 = vsel %vm1315, %v1314, %v1312
  %1317 = vrot.lane.b32.xlu0 %v1316, 7
  %v1318 = vpop.permute.xlu0 %1317
  %vm1319 = vcmask 80952
  %s1320 = scalar_lea.vmem %s1, 1
  %1321 = vst.msk [vmem:[%s1320] ss:$3 sm:$0x3] %vm1319, %v1318
  %s1322 = scalar_lea.vmem %s0, 2
  %v1323 = vld [vmem:[%s1322] sm:$0x1]
  %s1324 = scalar_lea.vmem %s0, 129
  %v1325 = vld [vmem:[%s1324] sm:$0x2]
  %vm1326 = vcmask 1041409
  %v1327 = vsel %vm1326, %v1325, %v1323
  %1328 = vrot.lane.b32.xlu0 %v1327, 6
  %v1329 = vpop.permute.xlu0 %1328
  %vm1330 = vcmask 72752
  %1331 = vst.msk [vmem:[%s1] ss:$3 sm:$0x3] %vm1330, %v1329
  %s1332 = scalar_lea.vmem %s0, 87
  %v1333 = vld [vmem:[%s1332] sm:$0x1]
  %s1334 = scalar_lea.vmem %s0, 214
  %v1335 = vld [vmem:[%s1334] sm:$0x2]
  %vm1336 = vcmask 1041409
  %v1337 = vsel %vm1336, %v1335, %v1333
  %1338 = vrot.lane.b32.xlu0 %v1337, 5
  %v1339 = vpop.permute.xlu0 %1338
  %vm1340 = vcmask 64552
  %s1341 = scalar_lea.vmem %s1, 2
  %1342 = vst.msk [vmem:[%s1341] ss:$3 sm:$0x3] %vm1340, %v1339
  %s1343 = scalar_lea.vmem %s0, 44
  %v1344 = vld [vmem:[%s1343] sm:$0x1]
  %s1345 = scalar_lea.vmem %s0, 171
  %v1346 = vld [vmem:[%s1345] sm:$0x2]
  %vm1347 = vcmask 1041409
  %v1348 = vsel %vm1347, %v1346, %v1344
  %1349 = vrot.lane.b32.xlu0 %v1348, 4
  %v1350 = vpop.permute.xlu0 %1349
  %vm1351 = vcmask 56352
  %s1352 = scalar_lea.vmem %s1, 1
  %1353 = vst.msk [vmem:[%s1352] ss:$3 sm:$0x3] %vm1351, %v1350
  %s1354 = scalar_lea.vmem %s0, 1
  %v1355 = vld [vmem:[%s1354] sm:$0x1]
  %s1356 = scalar_lea.vmem %s0, 128
  %v1357 = vld [vmem:[%s1356] sm:$0x2]
  %vm1358 = vcmask 1041409
  %v1359 = vsel %vm1358, %v1357, %v1355
  %1360 = vrot.lane.b32.xlu0 %v1359, 3
  %v1361 = vpop.permute.xlu0 %1360
  %vm1362 = vcmask 48152
  %1363 = vst.msk [vmem:[%s1] ss:$3 sm:$0x3] %vm1362, %v1361
  %s1364 = scalar_lea.vmem %s0, 86
  %v1365 = vld [vmem:[%s1364] sm:$0x1]
  %s1366 = scalar_lea.vmem %s0, 213
  %v1367 = vld [vmem:[%s1366] sm:$0x2]
  %vm1368 = vcmask 1041409
  %v1369 = vsel %vm1368, %v1367, %v1365
  %1370 = vrot.lane.b32.xlu0 %v1369, 2
  %v1371 = vpop.permute.xlu0 %1370
  %vm1372 = vcmask 39952
  %s1373 = scalar_lea.vmem %s1, 2
  %1374 = vst.msk [vmem:[%s1373] ss:$3 sm:$0x3] %vm1372, %v1371
  %s1375 = scalar_lea.vmem %s0, 43
  %v1376 = vld [vmem:[%s1375] sm:$0x1]
  %s1377 = scalar_lea.vmem %s0, 170
  %v1378 = vld [vmem:[%s1377] sm:$0x2]
  %vm1379 = vcmask 1041409
  %v1380 = vsel %vm1379, %v1378, %v1376
  %1381 = vrot.lane.b32.xlu0 %v1380, 1
  %v1382 = vpop.permute.xlu0 %1381
  %vm1383 = vcmask 31752
  %s1384 = scalar_lea.vmem %s1, 1
  %1385 = vst.msk [vmem:[%s1384] ss:$3 sm:$0x3] %vm1383, %v1382

// kernel: generalized_rcnn_inference.2
$region0: #{generalized_rcnn_inference.2}
  #allocation0 [shape = 'u32[]', space=smem, size = 0x4, offset = 0x4, fixed_abs, tag = 'smem constant byte address 0x4 - core index']
  #allocation1 [shape = 'u32[144,128]{1,0:T(1,128)}', space=vmem, size = 0x12000, scoped, tag = 'internal scratch']
  #allocation2 [shape = 'bf16[256,384]{1,0:T(16,128)(2,1)}', space=vmem, size = 0x30000, scoped, tag = 'scratch operand']
  #allocation3 [shape = 'f32[256,128]{1,0:T(8,128)}', space=vmem, size = 0x20000, scoped, tag = 'scratch operand']
  %s0 = inlined_call_operand.vmem [shape: f32[2,256,32], index: 0, kind: input, shape index: {}]
  %s1 = inlined_call_operand.vmem [shape: f32[32,128], index: 1, kind: input, shape index: {}]
  %s2 = inlined_call_operand.vmem [shape: f32[1,128], index: 2, kind: input, shape index: {}]
  %s3 = inlined_call_operand.vmem [shape: bf16[3,384,128], index: 3, kind: input, shape index: {}]
  %s4 = inlined_call_operand.vmem [shape: f32[1,128], index: 4, kind: input, shape index: {}]
  %s5 = inlined_call_operand.vmem [shape: bf16[128,128], index: 5, kind: input, shape index: {}]
  %s6 = inlined_call_operand.vmem [shape: f32[1,128], index: 6, kind: input, shape index: {}]
  %s7 = inlined_call_operand.vmem [shape: bf16[2,18,20,128], index: 7, kind: output, shape index: {0}]
  %s8 = inlined_call_operand.vmem [shape: bf16[2,256,128], index: 8, kind: output, shape index: {1}]
  %9 = xla_tuple %s7, %s8
  %s10 = sld [smem:[#allocation0]]
  $region69: #{generalized_rcnn_inference.2} parent=0
    _
  %s12 = ssub.s32 1, %s10
  %s13 = scalar_select 0, %s12, %s10
  loop: start=0, step=1, limit=4
  $region2: #{generalized_rcnn_inference.2} parent=0 // loop_pre_header
    _
  $region3: #{generalized_rcnn_inference.2} parent=0 // loop_header
    %s15 = sphi 0, %s19
    %p16 = scmp.ge.s32.totalorder %s15, 4
    %s25 = sphi 0, %s27
    %s28 = sphi 0, %s25
    %s29 = sphi 0, %s28
    %s45 = sphi 0, %s29
    %s49 = sphi 0, %s49
    %s51 = sphi 0, %s49
    %s52 = sphi 0, %s51
    %s66 = sphi 0, %s52
    %s70 = sphi 0, %s70
    %s72 = sphi 0, %s70
    %s73 = sphi 0, %s72
    %s87 = sphi 0, %s73
    %s91 = sphi 0, %s91
    %s93 = sphi 0, %s91
    %s94 = sphi 0, %s93
    %s108 = sphi 0, %s94
    %s112 = sphi 0, %s112
    %s114 = sphi 0, %s112
    %s115 = sphi 0, %s114
    %s129 = sphi 0, %s115
    %s133 = sphi 0, %s133
    %s135 = sphi 0, %s133
    %s136 = sphi 0, %s135
    %s150 = sphi 0, %s136
    %s154 = sphi 0, %s154
    %s156 = sphi 0, %s154
    %s157 = sphi 0, %s156
    %s171 = sphi 0, %s157
    %s177 = sphi 0, %s179
    %s180 = sphi 0, %s177
    %s181 = sphi 0, %s180
    %s197 = sphi 0, %s181
    %s203 = sphi 0, %s205
    %s206 = sphi 0, %s203
    %s207 = sphi 0, %s206
    %s223 = sphi 0, %s207
  $region4: #{generalized_rcnn_inference.2} parent=0 // loop_header_branch
    %18 = sbr.rel (%p16) target = $region8
  $region5: #{generalized_rcnn_inference.2} parent=0 // loop_body
    %s20 = ssub.s32 %s15, 1
    %s21 = ssub.s32 %s15, 2
    %s22 = sadd.s32 %s15, 1
    %s23 = ssub.s32 %s15, %s22
    %p24 = scmp.eq.s32.totalorder %s23, 0
    %s26 = sadd.s32 %s25, 1
    %s27 = scalar_select %p24, %s25, %s26
    %p30 = pneg %p24
    %p31 = scmp.eq.s32.totalorder %s15, 1
    %p32 = por %p30, %p31
    %p33 = scmp.ne.s32.totalorder %s25, %s28
    %p34 = scmp.eq.s32.totalorder %s15, 0
    %p35 = por %p33, %p34
    %p36 = scmp.ne.s32.totalorder %s25, %s28
    %p37 = scmp.eq.s32.totalorder %s20, 1
    %p38 = por %p36, %p37
    %p39 = scmp.ne.s32.totalorder %s28, %s29
    %p40 = scmp.eq.s32.totalorder %s20, 0
    %p41 = por %p39, %p40
    %p42 = scmp.ne.s32.totalorder %s28, %s29
    %p43 = scmp.eq.s32.totalorder %s21, 1
    %p44 = por %p42, %p43
    %p46 = scmp.ne.s32.totalorder %s29, %s45
    %p47 = scmp.eq.s32.totalorder %s21, 0
    %p48 = por %p46, %p47
    %s50 = sadd.s32 %s49, 1
    %p53 = scmp.eq.s32.totalorder %s15, 1
    %p54 = scmp.ne.s32.totalorder %s49, %s51
    %p55 = scmp.eq.s32.totalorder %s15, 0
    %p56 = por %p54, %p55
    %p57 = scmp.ne.s32.totalorder %s49, %s51
    %p58 = scmp.eq.s32.totalorder %s20, 1
    %p59 = por %p57, %p58
    %p60 = scmp.ne.s32.totalorder %s51, %s52
    %p61 = scmp.eq.s32.totalorder %s20, 0
    %p62 = por %p60, %p61
    %p63 = scmp.ne.s32.totalorder %s51, %s52
    %p64 = scmp.eq.s32.totalorder %s21, 1
    %p65 = por %p63, %p64
    %p67 = scmp.ne.s32.totalorder %s52, %s66
    %p68 = scmp.eq.s32.totalorder %s21, 0
    %p69 = por %p67, %p68
    %s71 = sadd.s32 %s70, 1
    %p74 = scmp.eq.s32.totalorder %s15, 1
    %p75 = scmp.ne.s32.totalorder %s70, %s72
    %p76 = scmp.eq.s32.totalorder %s15, 0
    %p77 = por %p75, %p76
    %p78 = scmp.ne.s32.totalorder %s70, %s72
    %p79 = scmp.eq.s32.totalorder %s20, 1
    %p80 = por %p78, %p79
    %p81 = scmp.ne.s32.totalorder %s72, %s73
    %p82 = scmp.eq.s32.totalorder %s20, 0
    %p83 = por %p81, %p82
    %p84 = scmp.ne.s32.totalorder %s72, %s73
    %p85 = scmp.eq.s32.totalorder %s21, 1
    %p86 = por %p84, %p85
    %p88 = scmp.ne.s32.totalorder %s73, %s87
    %p89 = scmp.eq.s32.totalorder %s21, 0
    %p90 = por %p88, %p89
    %s92 = sadd.s32 %s91, 1
    %p95 = scmp.eq.s32.totalorder %s15, 1
    %p96 = scmp.ne.s32.totalorder %s91, %s93
    %p97 = scmp.eq.s32.totalorder %s15, 0
    %p98 = por %p96, %p97
    %p99 = scmp.ne.s32.totalorder %s91, %s93
    %p100 = scmp.eq.s32.totalorder %s20, 1
    %p101 = por %p99, %p100
    %p102 = scmp.ne.s32.totalorder %s93, %s94
    %p103 = scmp.eq.s32.totalorder %s20, 0
    %p104 = por %p102, %p103
    %p105 = scmp.ne.s32.totalorder %s93, %s94
    %p106 = scmp.eq.s32.totalorder %s21, 1
    %p107 = por %p105, %p106
    %p109 = scmp.ne.s32.totalorder %s94, %s108
    %p110 = scmp.eq.s32.totalorder %s21, 0
    %p111 = por %p109, %p110
    %s113 = sadd.s32 %s112, 1
    %p116 = scmp.eq.s32.totalorder %s15, 1
    %p117 = scmp.ne.s32.totalorder %s112, %s114
    %p118 = scmp.eq.s32.totalorder %s15, 0
    %p119 = por %p117, %p118
    %p120 = scmp.ne.s32.totalorder %s112, %s114
    %p121 = scmp.eq.s32.totalorder %s20, 1
    %p122 = por %p120, %p121
    %p123 = scmp.ne.s32.totalorder %s114, %s115
    %p124 = scmp.eq.s32.totalorder %s20, 0
    %p125 = por %p123, %p124
    %p126 = scmp.ne.s32.totalorder %s114, %s115
    %p127 = scmp.eq.s32.totalorder %s21, 1
    %p128 = por %p126, %p127
    %p130 = scmp.ne.s32.totalorder %s115, %s129
    %p131 = scmp.eq.s32.totalorder %s21, 0
    %p132 = por %p130, %p131
    %s134 = sadd.s32 %s133, 1
    %p137 = scmp.eq.s32.totalorder %s15, 1
    %p138 = scmp.ne.s32.totalorder %s133, %s135
    %p139 = scmp.eq.s32.totalorder %s15, 0
    %p140 = por %p138, %p139
    %p141 = scmp.ne.s32.totalorder %s133, %s135
    %p142 = scmp.eq.s32.totalorder %s20, 1
    %p143 = por %p141, %p142
    %p144 = scmp.ne.s32.totalorder %s135, %s136
    %p145 = scmp.eq.s32.totalorder %s20, 0
    %p146 = por %p144, %p145
    %p147 = scmp.ne.s32.totalorder %s135, %s136
    %p148 = scmp.eq.s32.totalorder %s21, 1
    %p149 = por %p147, %p148
    %p151 = scmp.ne.s32.totalorder %s136, %s150
    %p152 = scmp.eq.s32.totalorder %s21, 0
    %p153 = por %p151, %p152
    %s155 = sadd.s32 %s154, 1
    %p158 = scmp.eq.s32.totalorder %s15, 1
    %p159 = scmp.ne.s32.totalorder %s154, %s156
    %p160 = scmp.eq.s32.totalorder %s15, 0
    %p161 = por %p159, %p160
    %p162 = scmp.ne.s32.totalorder %s154, %s156
    %p163 = scmp.eq.s32.totalorder %s20, 1
    %p164 = por %p162, %p163
    %p165 = scmp.ne.s32.totalorder %s156, %s157
    %p166 = scmp.eq.s32.totalorder %s20, 0
    %p167 = por %p165, %p166
    %p168 = scmp.ne.s32.totalorder %s156, %s157
    %p169 = scmp.eq.s32.totalorder %s21, 1
    %p170 = por %p168, %p169
    %p172 = scmp.ne.s32.totalorder %s157, %s171
    %p173 = scmp.eq.s32.totalorder %s21, 0
    %p174 = por %p172, %p173
    %s175 = ssub.s32 %s15, %s22
    %p176 = scmp.eq.s32.totalorder %s175, 0
    %s178 = sadd.s32 %s177, 1
    %s179 = scalar_select %p176, %s177, %s178
    %p182 = pneg %p176
    %p183 = scmp.eq.s32.totalorder %s15, 1
    %p184 = por %p182, %p183
    %p185 = scmp.ne.s32.totalorder %s177, %s180
    %p186 = scmp.eq.s32.totalorder %s15, 0
    %p187 = por %p185, %p186
    %p188 = scmp.ne.s32.totalorder %s177, %s180
    %p189 = scmp.eq.s32.totalorder %s20, 1
    %p190 = por %p188, %p189
    %p191 = scmp.ne.s32.totalorder %s180, %s181
    %p192 = scmp.eq.s32.totalorder %s20, 0
    %p193 = por %p191, %p192
    %p194 = scmp.ne.s32.totalorder %s180, %s181
    %p195 = scmp.eq.s32.totalorder %s21, 1
    %p196 = por %p194, %p195
    %p198 = scmp.ne.s32.totalorder %s181, %s197
    %p199 = scmp.eq.s32.totalorder %s21, 0
    %p200 = por %p198, %p199
    %s201 = ssub.s32 %s15, %s22
    %p202 = scmp.eq.s32.totalorder %s201, 0
    %s204 = sadd.s32 %s203, 1
    %s205 = scalar_select %p202, %s203, %s204
    %p208 = pneg %p202
    %p209 = scmp.eq.s32.totalorder %s15, 1
    %p210 = por %p208, %p209
    %p211 = scmp.ne.s32.totalorder %s203, %s206
    %p212 = scmp.eq.s32.totalorder %s15, 0
    %p213 = por %p211, %p212
    %p214 = scmp.ne.s32.totalorder %s203, %s206
    %p215 = scmp.eq.s32.totalorder %s20, 1
    %p216 = por %p214, %p215
    %p217 = scmp.ne.s32.totalorder %s206, %s207
    %p218 = scmp.eq.s32.totalorder %s20, 0
    %p219 = por %p217, %p218
    %p220 = scmp.ne.s32.totalorder %s206, %s207
    %p221 = scmp.eq.s32.totalorder %s21, 1
    %p222 = por %p220, %p221
    %p224 = scmp.ne.s32.totalorder %s207, %s223
    %p225 = scmp.eq.s32.totalorder %s21, 0
    %p226 = por %p224, %p225
    %p227 = scmp.le.s32.totalorder 1, %s15
    %p228 = scmp.lt.s32.totalorder %s15, 3
    %p229 = pnand %p227, %p228
    %p230 = pneg %p229
    // Predicated region
    $region9: #{generalized_rcnn_inference.2} parent=5 // pred_check
      _
    $region10: #{generalized_rcnn_inference.2} parent=5 // pred_check_branch
      %232 = sbr.rel (%p229) target = $region12
    $region11: #{generalized_rcnn_inference.2} parent=5 // pred_region
      %s233 = ssub.s32 %s15, 1
      // Predicated region
      $region13: #{generalized_rcnn_inference.2} parent=11 // pred_check
        %p234 = pneg %p62
      $region14: #{generalized_rcnn_inference.2} parent=11 // pred_check_branch
        %236 = sbr.rel (%p234) target = $region16
      $region15: #{generalized_rcnn_inference.2} parent=11 // pred_region
        _
      $region16: #{generalized_rcnn_inference.2} parent=11 // pred_fallthru
        _
      // Predicated region
      $region17: #{generalized_rcnn_inference.2} parent=11 // pred_check
        %p237 = pneg %p83
      $region18: #{generalized_rcnn_inference.2} parent=11 // pred_check_branch
        %239 = sbr.rel (%p237) target = $region20
      $region19: #{generalized_rcnn_inference.2} parent=11 // pred_region
        _
      $region20: #{generalized_rcnn_inference.2} parent=11 // pred_fallthru
        _
      // Predicated region
      $region21: #{generalized_rcnn_inference.2} parent=11 // pred_check
        %p240 = pneg %p104
      $region22: #{generalized_rcnn_inference.2} parent=11 // pred_check_branch
        %242 = sbr.rel (%p240) target = $region24
      $region23: #{generalized_rcnn_inference.2} parent=11 // pred_region
        _
      $region24: #{generalized_rcnn_inference.2} parent=11 // pred_fallthru
        _
      // Predicated region
      $region25: #{generalized_rcnn_inference.2} parent=11 // pred_check
        %p243 = pneg %p125
      $region26: #{generalized_rcnn_inference.2} parent=11 // pred_check_branch
        %245 = sbr.rel (%p243) target = $region28
      $region27: #{generalized_rcnn_inference.2} parent=11 // pred_region
        _
      $region28: #{generalized_rcnn_inference.2} parent=11 // pred_fallthru
        _
      // Predicated region
      $region29: #{generalized_rcnn_inference.2} parent=11 // pred_check
        %p246 = pneg %p146
      $region30: #{generalized_rcnn_inference.2} parent=11 // pred_check_branch
        %248 = sbr.rel (%p246) target = $region32
      $region31: #{generalized_rcnn_inference.2} parent=11 // pred_region
        _
      $region32: #{generalized_rcnn_inference.2} parent=11 // pred_fallthru
        _
      // Predicated region
      $region33: #{generalized_rcnn_inference.2} parent=11 // pred_check
        %p249 = pneg %p167
      $region34: #{generalized_rcnn_inference.2} parent=11 // pred_check_branch
        %251 = sbr.rel (%p249) target = $region36
      $region35: #{generalized_rcnn_inference.2} parent=11 // pred_region
        _
      $region36: #{generalized_rcnn_inference.2} parent=11 // pred_fallthru
        _
    $region12: #{generalized_rcnn_inference.2} parent=5 // pred_fallthru
      _
    %p252 = scmp.lt.s32.totalorder %s15, 2
    // Predicated region
    $region37: #{generalized_rcnn_inference.2} parent=5 // pred_check
      %p253 = pneg %p252
    $region38: #{generalized_rcnn_inference.2} parent=5 // pred_check_branch
      %255 = sbr.rel (%p253) target = $region40
    $region39: #{generalized_rcnn_inference.2} parent=5 // pred_region
      // Predicated region
      $region41: #{generalized_rcnn_inference.2} parent=39 // pred_check
        %p256 = pneg %p35
      $region42: #{generalized_rcnn_inference.2} parent=39 // pred_check_branch
        %258 = sbr.rel (%p256) target = $region44
      $region43: #{generalized_rcnn_inference.2} parent=39 // pred_region
        %p259 = scmp.lt.s32.totalorder %s15, 1
        %s260 = scalar_select %p259, %s15, 1
        %s261 = smul.addr %s260, 32
        %s262 = smul.addr %s261, 8
        %s263 = scalar_lea.vmem %s0, %s262
      $region44: #{generalized_rcnn_inference.2} parent=39 // pred_fallthru
        _
    $region40: #{generalized_rcnn_inference.2} parent=5 // pred_fallthru
      _
    %p264 = scmp.le.s32.totalorder 1, %s15
    %p265 = scmp.lt.s32.totalorder %s15, 3
    %p266 = pnand %p264, %p265
    %p267 = pneg %p266
    // Predicated region
    $region45: #{generalized_rcnn_inference.2} parent=5 // pred_check
      _
    $region46: #{generalized_rcnn_inference.2} parent=5 // pred_check_branch
      %269 = sbr.rel (%p266) target = $region48
    $region47: #{generalized_rcnn_inference.2} parent=5 // pred_region
      %s270 = ssub.s32 %s15, 1
      %p271 = scmp.lt.s32.totalorder %s20, 1
      %s272 = scalar_select %p271, %s20, 1
      %s273 = smul.addr %s272, 32
      %s274 = smul.addr %s273, 8
      %s275 = scalar_lea.vmem %s0, %s274
      %p276 = pneg %p41
      %p277 = pneg %p38
      %p278 = pneg %p62
      %p279 = pneg %p59
      %p280 = pneg %p83
      %p281 = pneg %p80
      %p282 = pneg %p104
      %p283 = pneg %p101
      %p284 = pneg %p125
      %p285 = pneg %p122
      %p286 = pneg %p146
      %p287 = pneg %p143
      %p288 = pneg %p167
      %p289 = pneg %p164
      %p290 = pneg %p193
      %p291 = pneg %p190
      %p292 = scmp.lt.s32.totalorder %s20, 1
      %s293 = scalar_select %p292, %s20, 1
      %s294 = smul.addr %s293, 54
      %s295 = smul.addr %s294, 4
      %s296 = scalar_lea.vmem %s7, %s295
      %p297 = pneg %p219
      %p298 = pneg %p216
      %p299 = scmp.lt.s32.totalorder %s20, 1
      %s300 = scalar_select %p299, %s20, 1
      %s301 = smul.addr %s300, 32
      %s302 = smul.addr %s301, 4
      %s303 = scalar_lea.vmem %s8, %s302
      %p304 = scmp.lt.s32.totalorder %s20, 1
      %s305 = scalar_select %p304, %s20, 1
      %s306 = smul.addr %s305, 32
      %s307 = smul.addr %s306, 8
      %s308 = scalar_lea.vmem %s0, %s307
      %p309 = scmp.lt.s32.totalorder %s20, 1
      %s310 = scalar_select %p309, %s20, 1
      %s311 = smul.addr %s310, 54
      %s312 = smul.addr %s311, 4
      %s313 = scalar_lea.vmem %s7, %s312
      %p314 = scmp.lt.s32.totalorder %s20, 1
      %s315 = scalar_select %p314, %s20, 1
      %s316 = smul.addr %s315, 32
      %s317 = smul.addr %s316, 4
      %s318 = scalar_lea.vmem %s8, %s317
      %v320 = vld [vmem:[%s308] sm:$0xff]
      %v321 = vld [vmem:[%s308 + $0x8] sm:$0xff]
      %v322 = vld [vmem:[%s308 + $0x10] sm:$0xff]
      %v323 = vld [vmem:[%s308 + $0x18] sm:$0xff]
      %v324 = vld [vmem:[%s308 + $0x20] sm:$0xff]
      %v325 = vld [vmem:[%s308 + $0x28] sm:$0xff]
      %v326 = vld [vmem:[%s308 + $0x30] sm:$0xff]
      %v327 = vld [vmem:[%s308 + $0x38] sm:$0xff]
      %v328 = vld [vmem:[%s308 + $0x40] sm:$0xff]
      %v329 = vld [vmem:[%s308 + $0x48] sm:$0xff]
      %v330 = vld [vmem:[%s308 + $0x50] sm:$0xff]
      %v331 = vld [vmem:[%s308 + $0x58] sm:$0xff]
      %v332 = vld [vmem:[%s308 + $0x60] sm:$0xff]
      %v333 = vld [vmem:[%s308 + $0x68] sm:$0xff]
      %v334 = vld [vmem:[%s308 + $0x70] sm:$0xff]
      %v335 = vld [vmem:[%s308 + $0x78] sm:$0xff]
      %v336 = vld [vmem:[%s308 + $0x80] sm:$0xff]
      %v337 = vld [vmem:[%s308 + $0x88] sm:$0xff]
      %v338 = vld [vmem:[%s308 + $0x90] sm:$0xff]
      %v339 = vld [vmem:[%s308 + $0x98] sm:$0xff]
      %v340 = vld [vmem:[%s308 + $0xa0] sm:$0xff]
      %v341 = vld [vmem:[%s308 + $0xa8] sm:$0xff]
      %v342 = vld [vmem:[%s308 + $0xb0] sm:$0xff]
      %v343 = vld [vmem:[%s308 + $0xb8] sm:$0xff]
      %v344 = vld [vmem:[%s308 + $0xc0] sm:$0xff]
      %v345 = vld [vmem:[%s308 + $0xc8] sm:$0xff]
      %v346 = vld [vmem:[%s308 + $0xd0] sm:$0xff]
      %v347 = vld [vmem:[%s308 + $0xd8] sm:$0xff]
      %v348 = vld [vmem:[%s308 + $0xe0] sm:$0xff]
      %v349 = vld [vmem:[%s308 + $0xe8] sm:$0xff]
      %v350 = vld [vmem:[%s308 + $0xf0] sm:$0xff]
      %v351 = vld [vmem:[%s308 + $0xf8] sm:$0xff]
      %v352 = vld [vmem:[%s1] sm:$0xff]
      %v353 = vld [vmem:[%s1 + $0x8] sm:$0xff]
      %v354 = vld [vmem:[%s1 + $0x10] sm:$0xff]
      %v355 = vld [vmem:[%s1 + $0x18] sm:$0xff]
      %v356 = vld [vmem:[%s2] sm:$0x1]
      %v358 = vlaneseq
      %v359 = vshrl.u32 %v358, 7
      %v360 = vsub.s32 0, %v359
      %v361 = vrot.slane %v356, %v360
      %vm363 = vcmask 261120
      %v365 = vsel %vm363, %v320, 0
      %v368 = vsel %vm363, %v321, 0
      %v371 = vsel %vm363, %v322, 0
      %v374 = vsel %vm363, %v323, 0
      %v377 = vsel %vm363, %v324, 0
      %v380 = vsel %vm363, %v325, 0
      %v383 = vsel %vm363, %v326, 0
      %v386 = vsel %vm363, %v327, 0
      %v389 = vsel %vm363, %v328, 0
      %v392 = vsel %vm363, %v329, 0
      %v395 = vsel %vm363, %v330, 0
      %v398 = vsel %vm363, %v331, 0
      %v401 = vsel %vm363, %v332, 0
      %v404 = vsel %vm363, %v333, 0
      %v407 = vsel %vm363, %v334, 0
      %v410 = vsel %vm363, %v335, 0
      %v413 = vsel %vm363, %v336, 0
      %v416 = vsel %vm363, %v337, 0
      %v419 = vsel %vm363, %v338, 0
      %v422 = vsel %vm363, %v339, 0
      %v425 = vsel %vm363, %v340, 0
      %v428 = vsel %vm363, %v341, 0
      %v431 = vsel %vm363, %v342, 0
      %v434 = vsel %vm363, %v343, 0
      %v437 = vsel %vm363, %v344, 0
      %v440 = vsel %vm363, %v345, 0
      %v443 = vsel %vm363, %v346, 0
      %v446 = vsel %vm363, %v347, 0
      %v449 = vsel %vm363, %v348, 0
      %v452 = vsel %vm363, %v349, 0
      %v455 = vsel %vm363, %v350, 0
      %v458 = vsel %vm363, %v351, 0
      %460 = vmatprep.subr.mxu0 0.0
      %461 = vmatpush1.msra.mxu0 %v352
      %462 = vmatprep.subr.mxu0 0.0
      %463 = vmatpush1.msra.mxu0 %v353
      %464 = vmatprep.subr.mxu0 0.0
      %465 = vmatpush1.msra.mxu0 %v354
      %466 = vmatprep.subr.mxu0 0.0
      %467 = vmatpush1.msra.mxu0 %v355
      %468 = vmatprep.subr.mxu0 0.0
      %469 = vmatpush1.msra.mxu0 0.0
      %470 = vmatprep.subr.mxu0 0.0
      %471 = vmatpush1.msra.mxu0 0.0
      %472 = vmatprep.subr.mxu0 0.0
      %473 = vmatpush1.msra.mxu0 0.0
      %474 = vmatprep.subr.mxu0 0.0
      %475 = vmatpush1.msra.mxu0 0.0
      %476 = vmatprep.subr.mxu0 0.0
      %477 = vmatpush1.msra.mxu0 0.0
      %478 = vmatprep.subr.mxu0 0.0
      %479 = vmatpush1.msra.mxu0 0.0
      %480 = vmatprep.subr.mxu0 0.0
      %481 = vmatpush1.msra.mxu0 0.0
      %482 = vmatprep.subr.mxu0 0.0
      %483 = vmatpush1.msra.mxu0 0.0
      %484 = vmatprep.subr.mxu0 0.0
      %485 = vmatpush1.msra.mxu0 0.0
      %486 = vmatprep.subr.mxu0 0.0
      %487 = vmatpush1.msra.mxu0 0.0
      %488 = vmatprep.subr.mxu0 0.0
      %489 = vmatpush1.msra.mxu0 0.0
      %490 = vmatprep.subr.mxu0 0.0
      %491 = vmatpush1.msra.mxu0 0.0
      %492 = vmatprep.subr.mxu0 0.0
      %493 = vmatpush1.msra.mxu0 0.0
      %494 = vmatprep.subr.mxu0 0.0
      %495 = vmatpush1.msra.mxu0 0.0
      %496 = vmatprep.subr.mxu0 0.0
      %497 = vmatpush1.msra.mxu0 0.0
      %498 = vmatprep.subr.mxu0 0.0
      %499 = vmatpush1.msra.mxu0 0.0
      %500 = vmatprep.subr.mxu0 0.0
      %501 = vmatpush1.msra.mxu0 0.0
      %502 = vmatprep.subr.mxu0 0.0
      %503 = vmatpush1.msra.mxu0 0.0
      %504 = vmatprep.subr.mxu0 0.0
      %505 = vmatpush1.msra.mxu0 0.0
      %506 = vmatprep.subr.mxu0 0.0
      %507 = vmatpush1.msra.mxu0 0.0
      %508 = vmatprep.subr.mxu0 0.0
      %509 = vmatpush1.msra.mxu0 0.0
      %510 = vmatprep.subr.mxu0 0.0
      %511 = vmatpush1.msra.mxu0 0.0
      %512 = vmatprep.subr.mxu0 0.0
      %513 = vmatpush1.msra.mxu0 0.0
      %514 = vmatprep.subr.mxu0 0.0
      %515 = vmatpush1.msra.mxu0 0.0
      %516 = vmatprep.subr.mxu0 0.0
      %517 = vmatpush1.msra.mxu0 0.0
      %518 = vmatprep.subr.mxu0 0.0
      %519 = vmatpush1.msra.mxu0 0.0
      %520 = vmatprep.subr.mxu0 0.0
      %521 = vmatpush1.msra.mxu0 0.0
      %522 = vmatprep.subr.mxu0 0.0
      %523 = vmatpush1.msra.mxu0 0.0
      %524 = vmatprep.mubr.f32.mxu0 0.0
      %525 = vmatmul.mubr.f32.gmra.mrb[0].mxu0 %v365
      %v526 = vpop.f32.mrb[0].mxu0
      %v527 = vadd.f32 %v361, %v526
      %v528 = vpop.f32.mrb[0].mxu0
      %529 = vmatprep.mubr.f32.mxu0 0.0
      %530 = vmatmul.mubr.f32.gmra.mrb[0].mxu0 %v368
      %v531 = vpop.f32.mrb[0].mxu0
      %v532 = vadd.f32 %v361, %v531
      %v533 = vpop.f32.mrb[0].mxu0
      %534 = vmatprep.mubr.f32.mxu0 0.0
      %535 = vmatmul.mubr.f32.gmra.mrb[0].mxu0 %v371
      %v536 = vpop.f32.mrb[0].mxu0
      %v537 = vadd.f32 %v361, %v536
      %v538 = vpop.f32.mrb[0].mxu0
      %539 = vmatprep.mubr.f32.mxu0 0.0
      %540 = vmatmul.mubr.f32.gmra.mrb[0].mxu0 %v374
      %v541 = vpop.f32.mrb[0].mxu0
      %v542 = vadd.f32 %v361, %v541
      %v543 = vpop.f32.mrb[0].mxu0
      %544 = vmatprep.mubr.f32.mxu0 0.0
      %545 = vmatmul.mubr.f32.gmra.mrb[0].mxu0 %v377
      %v546 = vpop.f32.mrb[0].mxu0
      %v547 = vadd.f32 %v361, %v546
      %v548 = vpop.f32.mrb[0].mxu0
      %549 = vmatprep.mubr.f32.mxu0 0.0
      %550 = vmatmul.mubr.f32.gmra.mrb[0].mxu0 %v380
      %v551 = vpop.f32.mrb[0].mxu0
      %v552 = vadd.f32 %v361, %v551
      %v553 = vpop.f32.mrb[0].mxu0
      %554 = vmatprep.mubr.f32.mxu0 0.0
      %555 = vmatmul.mubr.f32.gmra.mrb[0].mxu0 %v383
      %v556 = vpop.f32.mrb[0].mxu0
      %v557 = vadd.f32 %v361, %v556
      %v558 = vpop.f32.mrb[0].mxu0
      %559 = vmatprep.mubr.f32.mxu0 0.0
      %560 = vmatmul.mubr.f32.gmra.mrb[0].mxu0 %v386
      %v561 = vpop.f32.mrb[0].mxu0
      %v562 = vadd.f32 %v361, %v561
      %v563 = vpop.f32.mrb[0].mxu0
      %564 = vmatprep.mubr.f32.mxu0 0.0
      %565 = vmatmul.mubr.f32.gmra.mrb[0].mxu0 %v389
      %v566 = vpop.f32.mrb[0].mxu0
      %v567 = vadd.f32 %v361, %v566
      %v568 = vpop.f32.mrb[0].mxu0
      %569 = vmatprep.mubr.f32.mxu0 0.0
      %570 = vmatmul.mubr.f32.gmra.mrb[0].mxu0 %v392
      %v571 = vpop.f32.mrb[0].mxu0
      %v572 = vadd.f32 %v361, %v571
      %v573 = vpop.f32.mrb[0].mxu0
      %574 = vmatprep.mubr.f32.mxu0 0.0
      %575 = vmatmul.mubr.f32.gmra.mrb[0].mxu0 %v395
      %v576 = vpop.f32.mrb[0].mxu0
      %v577 = vadd.f32 %v361, %v576
      %v578 = vpop.f32.mrb[0].mxu0
      %579 = vmatprep.mubr.f32.mxu0 0.0
      %580 = vmatmul.mubr.f32.gmra.mrb[0].mxu0 %v398
      %v581 = vpop.f32.mrb[0].mxu0
      %v582 = vadd.f32 %v361, %v581
      %v583 = vpop.f32.mrb[0].mxu0
      %584 = vmatprep.mubr.f32.mxu0 0.0
      %585 = vmatmul.mubr.f32.gmra.mrb[0].mxu0 %v401
      %v586 = vpop.f32.mrb[0].mxu0
      %v587 = vadd.f32 %v361, %v586
      %v588 = vpop.f32.mrb[0].mxu0
      %589 = vmatprep.mubr.f32.mxu0 0.0
      %590 = vmatmul.mubr.f32.gmra.mrb[0].mxu0 %v404
      %v591 = vpop.f32.mrb[0].mxu0
      %v592 = vadd.f32 %v361, %v591
      %v593 = vpop.f32.mrb[0].mxu0
      %594 = vmatprep.mubr.f32.mxu0 0.0
      %595 = vmatmul.mubr.f32.gmra.mrb[0].mxu0 %v407
      %v596 = vpop.f32.mrb[0].mxu0
      %v597 = vadd.f32 %v361, %v596
      %v598 = vpop.f32.mrb[0].mxu0
      %599 = vmatprep.mubr.f32.mxu0 0.0
      %600 = vmatmul.mubr.f32.gmra.mrb[0].mxu0 %v410
      %v601 = vpop.f32.mrb[0].mxu0
      %v602 = vadd.f32 %v361, %v601
      %v603 = vpop.f32.mrb[0].mxu0
      %604 = vmatprep.mubr.f32.mxu0 0.0
      %605 = vmatmul.mubr.f32.gmra.mrb[0].mxu0 %v413
      %v606 = vpop.f32.mrb[0].mxu0
      %v607 = vadd.f32 %v361, %v606
      %v608 = vpop.f32.mrb[0].mxu0
      %609 = vmatprep.mubr.f32.mxu0 0.0
      %610 = vmatmul.mubr.f32.gmra.mrb[0].mxu0 %v416
      %v611 = vpop.f32.mrb[0].mxu0
      %v612 = vadd.f32 %v361, %v611
      %v613 = vpop.f32.mrb[0].mxu0
      %614 = vmatprep.mubr.f32.mxu0 0.0
      %615 = vmatmul.mubr.f32.gmra.mrb[0].mxu0 %v419
      %v616 = vpop.f32.mrb[0].mxu0
      %v617 = vadd.f32 %v361, %v616
      %v618 = vpop.f32.mrb[0].mxu0
      %619 = vmatprep.mubr.f32.mxu0 0.0
      %620 = vmatmul.mubr.f32.gmra.mrb[0].mxu0 %v422
      %v621 = vpop.f32.mrb[0].mxu0
      %v622 = vadd.f32 %v361, %v621
      %v623 = vpop.f32.mrb[0].mxu0
      %624 = vmatprep.mubr.f32.mxu0 0.0
      %625 = vmatmul.mubr.f32.gmra.mrb[0].mxu0 %v425
      %v626 = vpop.f32.mrb[0].mxu0
      %v627 = vadd.f32 %v361, %v626
      %v628 = vpop.f32.mrb[0].mxu0
      %629 = vmatprep.mubr.f32.mxu0 0.0
      %630 = vmatmul.mubr.f32.gmra.mrb[0].mxu0 %v428
      %v631 = vpop.f32.mrb[0].mxu0
      %v632 = vadd.f32 %v361, %v631
      %v633 = vpop.f32.mrb[0].mxu0
      %634 = vmatprep.mubr.f32.mxu0 0.0
      %635 = vmatmul.mubr.f32.gmra.mrb[0].mxu0 %v431
      %v636 = vpop.f32.mrb[0].mxu0
      %v637 = vadd.f32 %v361, %v636
      %v638 = vpop.f32.mrb[0].mxu0
      %639 = vmatprep.mubr.f32.mxu0 0.0
      %640 = vmatmul.mubr.f32.gmra.mrb[0].mxu0 %v434
      %v641 = vpop.f32.mrb[0].mxu0
      %v642 = vadd.f32 %v361, %v641
      %v643 = vpop.f32.mrb[0].mxu0
      %644 = vmatprep.mubr.f32.mxu0 0.0
      %645 = vmatmul.mubr.f32.gmra.mrb[0].mxu0 %v437
      %v646 = vpop.f32.mrb[0].mxu0
      %v647 = vadd.f32 %v361, %v646
      %v648 = vpop.f32.mrb[0].mxu0
      %649 = vmatprep.mubr.f32.mxu0 0.0
      %650 = vmatmul.mubr.f32.gmra.mrb[0].mxu0 %v440
      %v651 = vpop.f32.mrb[0].mxu0
      %v652 = vadd.f32 %v361, %v651
      %v653 = vpop.f32.mrb[0].mxu0
      %654 = vmatprep.mubr.f32.mxu0 0.0
      %655 = vmatmul.mubr.f32.gmra.mrb[0].mxu0 %v443
      %v656 = vpop.f32.mrb[0].mxu0
      %v657 = vadd.f32 %v361, %v656
      %v658 = vpop.f32.mrb[0].mxu0
      %659 = vmatprep.mubr.f32.mxu0 0.0
      %660 = vmatmul.mubr.f32.gmra.mrb[0].mxu0 %v446
      %v661 = vpop.f32.mrb[0].mxu0
      %v662 = vadd.f32 %v361, %v661
      %v663 = vpop.f32.mrb[0].mxu0
      %664 = vmatprep.mubr.f32.mxu0 0.0
      %665 = vmatmul.mubr.f32.gmra.mrb[0].mxu0 %v449
      %v666 = vpop.f32.mrb[0].mxu0
      %v667 = vadd.f32 %v361, %v666
      %v668 = vpop.f32.mrb[0].mxu0
      %669 = vmatprep.mubr.f32.mxu0 0.0
      %670 = vmatmul.mubr.f32.gmra.mrb[0].mxu0 %v452
      %v671 = vpop.f32.mrb[0].mxu0
      %v672 = vadd.f32 %v361, %v671
      %v673 = vpop.f32.mrb[0].mxu0
      %674 = vmatprep.mubr.f32.mxu0 0.0
      %675 = vmatmul.mubr.f32.gmra.mrb[0].mxu0 %v455
      %v676 = vpop.f32.mrb[0].mxu0
      %v677 = vadd.f32 %v361, %v676
      %v678 = vpop.f32.mrb[0].mxu0
      %679 = vmatprep.mubr.f32.mxu0 0.0
      %680 = vmatmul.mubr.f32.gmra.mrb[0].mxu0 %v458
      %v681 = vpop.f32.mrb[0].mxu0
      %v682 = vadd.f32 %v361, %v681
      %v683 = vpop.f32.mrb[0].mxu0
      %684 = vdwg.mxu0
      %v685 = vmax.f32 %v527, 0.0
      %v686 = vmax.f32 %v532, 0.0
      %v687 = vmax.f32 %v537, 0.0
      %v688 = vmax.f32 %v542, 0.0
      %v689 = vmax.f32 %v547, 0.0
      %v690 = vmax.f32 %v552, 0.0
      %v691 = vmax.f32 %v557, 0.0
      %v692 = vmax.f32 %v562, 0.0
      %v693 = vmax.f32 %v567, 0.0
      %v694 = vmax.f32 %v572, 0.0
      %v695 = vmax.f32 %v577, 0.0
      %v696 = vmax.f32 %v582, 0.0
      %v697 = vmax.f32 %v587, 0.0
      %v698 = vmax.f32 %v592, 0.0
      %v699 = vmax.f32 %v597, 0.0
      %v700 = vmax.f32 %v602, 0.0
      %v701 = vmax.f32 %v607, 0.0
      %v702 = vmax.f32 %v612, 0.0
      %v703 = vmax.f32 %v617, 0.0
      %v704 = vmax.f32 %v622, 0.0
      %v705 = vmax.f32 %v627, 0.0
      %v706 = vmax.f32 %v632, 0.0
      %v707 = vmax.f32 %v637, 0.0
      %v708 = vmax.f32 %v642, 0.0
      %v709 = vmax.f32 %v647, 0.0
      %v710 = vmax.f32 %v652, 0.0
      %v711 = vmax.f32 %v657, 0.0
      %v712 = vmax.f32 %v662, 0.0
      %v713 = vmax.f32 %v667, 0.0
      %v714 = vmax.f32 %v672, 0.0
      %v715 = vmax.f32 %v677, 0.0
      %v716 = vmax.f32 %v682, 0.0
      %v717 = vpack.c.bf16 %v686, %v685
      %v718 = vpack.c.bf16 %v688, %v687
      %v719 = vpack.c.bf16 %v690, %v689
      %v720 = vpack.c.bf16 %v692, %v691
      %v721 = vpack.c.bf16 %v694, %v693
      %v722 = vpack.c.bf16 %v696, %v695
      %v723 = vpack.c.bf16 %v698, %v697
      %v724 = vpack.c.bf16 %v700, %v699
      %v725 = vpack.c.bf16 %v702, %v701
      %v726 = vpack.c.bf16 %v704, %v703
      %v727 = vpack.c.bf16 %v706, %v705
      %v728 = vpack.c.bf16 %v708, %v707
      %v729 = vpack.c.bf16 %v710, %v709
      %v730 = vpack.c.bf16 %v712, %v711
      %v731 = vpack.c.bf16 %v714, %v713
      %v732 = vpack.c.bf16 %v716, %v715
      %733 = vst [vmem:[%s313] sm:$0xf] 0
      %734 = vst [vmem:[%s313 + $0x4] sm:$0xf] 0
      %735 = vst [vmem:[%s313 + $0x8] sm:$0x3] 0
      %736 = vst [vmem:[%s313 + $0xc] sm:$0xf] 0
      %737 = vst [vmem:[%s313 + $0x10] sm:$0xf] 0
      %738 = vst [vmem:[%s313 + $0x14] sm:$0x3] 0
      %739 = vst [vmem:[%s313 + $0x18] sm:$0xf] 0
      %740 = vst [vmem:[%s313 + $0x1c] sm:$0xf] 0
      %741 = vst [vmem:[%s313 + $0x20] sm:$0x3] 0
      %742 = vst [vmem:[%s313 + $0x24] sm:$0xf] 0
      %743 = vst [vmem:[%s313 + $0x28] sm:$0xf] 0
      %744 = vst [vmem:[%s313 + $0x2c] sm:$0x3] 0
      %745 = vst [vmem:[%s313 + $0x30] sm:$0xf] 0
      %746 = vst [vmem:[%s313 + $0x34] sm:$0xf] 0
      %747 = vst [vmem:[%s313 + $0x38] sm:$0x3] 0
      %748 = vst [vmem:[%s313 + $0x3c] sm:$0xf] 0
      %749 = vst [vmem:[%s313 + $0x40] sm:$0xf] 0
      %750 = vst [vmem:[%s313 + $0x44] sm:$0x3] 0
      %751 = vst [vmem:[%s313 + $0x48] sm:$0xf] 0
      %752 = vst [vmem:[%s313 + $0x4c] sm:$0xf] 0
      %753 = vst [vmem:[%s313 + $0x50] sm:$0x3] 0
      %754 = vst [vmem:[%s313 + $0x54] sm:$0xf] 0
      %755 = vst [vmem:[%s313 + $0x58] sm:$0xf] 0
      %756 = vst [vmem:[%s313 + $0x5c] sm:$0x3] 0
      %757 = vst [vmem:[%s313 + $0x60] sm:$0xf] 0
      %758 = vst [vmem:[%s313 + $0x64] sm:$0xf] 0
      %759 = vst [vmem:[%s313 + $0x68] sm:$0x3] 0
      %760 = vst [vmem:[%s313 + $0x6c] sm:$0xf] 0
      %761 = vst [vmem:[%s313 + $0x70] sm:$0xf] 0
      %762 = vst [vmem:[%s313 + $0x74] sm:$0x3] 0
      %763 = vst [vmem:[%s313 + $0x78] sm:$0xf] 0
      %764 = vst [vmem:[%s313 + $0x7c] sm:$0xf] 0
      %765 = vst [vmem:[%s313 + $0x80] sm:$0x3] 0
      %766 = vst [vmem:[%s313 + $0x84] sm:$0xf] 0
      %767 = vst [vmem:[%s313 + $0x88] sm:$0xf] 0
      %768 = vst [vmem:[%s313 + $0x8c] sm:$0x3] 0
      %769 = vst [vmem:[%s313 + $0x90] sm:$0xf] 0
      %770 = vst [vmem:[%s313 + $0x94] sm:$0xf] 0
      %771 = vst [vmem:[%s313 + $0x98] sm:$0x3] 0
      %772 = vst [vmem:[%s313 + $0x9c] sm:$0xf] 0
      %773 = vst [vmem:[%s313 + $0xa0] sm:$0xf] 0
      %774 = vst [vmem:[%s313 + $0xa4] sm:$0x3] 0
      %775 = vst [vmem:[%s313 + $0xa8] sm:$0xf] 0
      %776 = vst [vmem:[%s313 + $0xac] sm:$0xf] 0
      %777 = vst [vmem:[%s313 + $0xb0] sm:$0x3] 0
      %778 = vst [vmem:[%s313 + $0xb4] sm:$0xf] 0
      %779 = vst [vmem:[%s313 + $0xb8] sm:$0xf] 0
      %780 = vst [vmem:[%s313 + $0xbc] sm:$0x3] 0
      %781 = vst [vmem:[%s313 + $0xc0] sm:$0xf] 0
      %782 = vst [vmem:[%s313 + $0xc4] sm:$0xf] 0
      %783 = vst [vmem:[%s313 + $0xc8] sm:$0x3] 0
      %784 = vst [vmem:[%s313 + $0xcc] sm:$0xf] 0
      %785 = vst [vmem:[%s313 + $0xd0] sm:$0xf] 0
      %786 = vst [vmem:[%s313 + $0xd4] sm:$0x3] 0
      %v803 = vunpack.c.l.b16 %v717
      %v804 = vunpack.c.h.b16 %v717
      %v805 = vunpack.c.l.b16 %v718
      %v806 = vunpack.c.h.b16 %v718
      %v807 = vunpack.c.l.b16 %v719
      %v808 = vunpack.c.h.b16 %v719
      %v809 = vunpack.c.l.b16 %v720
      %v810 = vunpack.c.h.b16 %v720
      %v811 = vunpack.c.l.b16 %v721
      %v812 = vunpack.c.h.b16 %v721
      %v813 = vunpack.c.l.b16 %v722
      %v814 = vunpack.c.h.b16 %v722
      %v815 = vunpack.c.l.b16 %v723
      %v816 = vunpack.c.h.b16 %v723
      %v817 = vunpack.c.l.b16 %v724
      %v818 = vunpack.c.h.b16 %v724
      %v819 = vunpack.c.l.b16 %v725
      %v820 = vunpack.c.h.b16 %v725
      %v821 = vunpack.c.l.b16 %v726
      %v822 = vunpack.c.h.b16 %v726
      %v823 = vunpack.c.l.b16 %v727
      %v824 = vunpack.c.h.b16 %v727
      %v825 = vunpack.c.l.b16 %v728
      %v826 = vunpack.c.h.b16 %v728
      %v827 = vunpack.c.l.b16 %v729
      %v828 = vunpack.c.h.b16 %v729
      %v829 = vunpack.c.l.b16 %v730
      %v830 = vunpack.c.h.b16 %v730
      %v831 = vunpack.c.l.b16 %v731
      %v832 = vunpack.c.h.b16 %v731
      %v833 = vunpack.c.l.b16 %v732
      %v834 = vunpack.c.h.b16 %v732
      %v835 = vpack.c.b16 %v803, %v803
      %v836 = vpack.c.b16 %v804, %v804
      %v837 = vpack.c.b16 %v805, %v805
      %v838 = vpack.c.b16 %v806, %v806
      %v839 = vpack.c.b16 %v807, %v807
      %v840 = vpack.c.b16 %v808, %v808
      %v841 = vpack.c.b16 %v809, %v809
      %v842 = vpack.c.b16 %v810, %v810
      %v843 = vpack.c.b16 %v811, %v811
      %v844 = vpack.c.b16 %v812, %v812
      %v845 = vpack.c.b16 %v813, %v813
      %v846 = vpack.c.b16 %v814, %v814
      %v847 = vpack.c.b16 %v815, %v815
      %v848 = vpack.c.b16 %v816, %v816
      %v849 = vpack.c.b16 %v817, %v817
      %v850 = vpack.c.b16 %v818, %v818
      %v851 = vpack.c.b16 %v819, %v819
      %v852 = vpack.c.b16 %v820, %v820
      %v853 = vpack.c.b16 %v821, %v821
      %v854 = vpack.c.b16 %v822, %v822
      %v855 = vpack.c.b16 %v823, %v823
      %v856 = vpack.c.b16 %v824, %v824
      %v857 = vpack.c.b16 %v825, %v825
      %v858 = vpack.c.b16 %v826, %v826
      %v859 = vpack.c.b16 %v827, %v827
      %v860 = vpack.c.b16 %v828, %v828
      %v861 = vpack.c.b16 %v829, %v829
      %v862 = vpack.c.b16 %v830, %v830
      %v863 = vpack.c.b16 %v831, %v831
      %v864 = vpack.c.b16 %v832, %v832
      %v865 = vpack.c.b16 %v833, %v833
      %v866 = vpack.c.b16 %v834, %v834
      %vm867 = vcmask 1040384
      %vm868 = vcmask 1044484
      %vm869 = vmor %vm867, %vm868
      %v870 = vrot.slane %v835, 7
      %v871 = vrot.slane %v870, 4
      %v872 = vrot.slane %v836, 7
      %v873 = vsel %vm869, %v871, %v872
      %v874 = vrot.slane %v872, 4
      %v875 = vrot.slane %v837, 7
      %v876 = vrot.slane %v875, 4
      %v877 = vrot.slane %v838, 7
      %v878 = vsel %vm869, %v876, %v877
      %v879 = vrot.slane %v877, 4
      %v880 = vrot.slane %v839, 7
      %v881 = vrot.slane %v880, 4
      %v882 = vrot.slane %v840, 7
      %v883 = vsel %vm869, %v881, %v882
      %v884 = vrot.slane %v882, 4
      %v885 = vrot.slane %v841, 7
      %v886 = vrot.slane %v885, 4
      %v887 = vrot.slane %v842, 7
      %v888 = vsel %vm869, %v886, %v887
      %v889 = vrot.slane %v887, 4
      %v890 = vrot.slane %v843, 7
      %v891 = vrot.slane %v890, 4
      %v892 = vrot.slane %v844, 7
      %v893 = vsel %vm869, %v891, %v892
      %v894 = vrot.slane %v892, 4
      %v895 = vrot.slane %v845, 7
      %v896 = vrot.slane %v895, 4
      %v897 = vrot.slane %v846, 7
      %v898 = vsel %vm869, %v896, %v897
      %v899 = vrot.slane %v897, 4
      %v900 = vrot.slane %v847, 7
      %v901 = vrot.slane %v900, 4
      %v902 = vrot.slane %v848, 7
      %v903 = vsel %vm869, %v901, %v902
      %v904 = vrot.slane %v902, 4
      %v905 = vrot.slane %v849, 7
      %v906 = vrot.slane %v905, 4
      %v907 = vrot.slane %v850, 7
      %v908 = vsel %vm869, %v906, %v907
      %v909 = vrot.slane %v907, 4
      %v910 = vrot.slane %v851, 7
      %v911 = vrot.slane %v910, 4
      %v912 = vrot.slane %v852, 7
      %v913 = vsel %vm869, %v911, %v912
      %v914 = vrot.slane %v912, 4
      %v915 = vrot.slane %v853, 7
      %v916 = vrot.slane %v915, 4
      %v917 = vrot.slane %v854, 7
      %v918 = vsel %vm869, %v916, %v917
      %v919 = vrot.slane %v917, 4
      %v920 = vrot.slane %v855, 7
      %v921 = vrot.slane %v920, 4
      %v922 = vrot.slane %v856, 7
      %v923 = vsel %vm869, %v921, %v922
      %v924 = vrot.slane %v922, 4
      %v925 = vrot.slane %v857, 7
      %v926 = vrot.slane %v925, 4
      %v927 = vrot.slane %v858, 7
      %v928 = vsel %vm869, %v926, %v927
      %v929 = vrot.slane %v927, 4
      %v930 = vrot.slane %v859, 7
      %v931 = vrot.slane %v930, 4
      %v932 = vrot.slane %v860, 7
      %v933 = vsel %vm869, %v931, %v932
      %v934 = vrot.slane %v932, 4
      %v935 = vrot.slane %v861, 7
      %v936 = vrot.slane %v935, 4
      %v937 = vrot.slane %v862, 7
      %v938 = vsel %vm869, %v936, %v937
      %v939 = vrot.slane %v937, 4
      %v940 = vrot.slane %v863, 7
      %v941 = vrot.slane %v940, 4
      %v942 = vrot.slane %v864, 7
      %v943 = vsel %vm869, %v941, %v942
      %v944 = vrot.slane %v942, 4
      %v945 = vrot.slane %v865, 7
      %v946 = vrot.slane %v945, 4
      %v947 = vrot.slane %v866, 7
      %v948 = vsel %vm869, %v946, %v947
      %v949 = vrot.slane %v947, 4
      %s998 = scalar_lea.vmem %s313, 12
      %999 = vst [vmem:[%s998] sm:$0xe] %v870
      %1000 = vst [vmem:[%s998 + $0x4] sm:$0xf] %v873
      %1001 = vst [vmem:[%s998 + $0x8] sm:$0x1] %v874
      %1002 = vst [vmem:[%s998 + $0xc] sm:$0xe] %v875
      %1003 = vst [vmem:[%s998 + $0x10] sm:$0xf] %v878
      %1004 = vst [vmem:[%s998 + $0x14] sm:$0x1] %v879
      %1005 = vst [vmem:[%s998 + $0x18] sm:$0xe] %v880
      %1006 = vst [vmem:[%s998 + $0x1c] sm:$0xf] %v883
      %1007 = vst [vmem:[%s998 + $0x20] sm:$0x1] %v884
      %1008 = vst [vmem:[%s998 + $0x24] sm:$0xe] %v885
      %1009 = vst [vmem:[%s998 + $0x28] sm:$0xf] %v888
      %1010 = vst [vmem:[%s998 + $0x2c] sm:$0x1] %v889
      %1011 = vst [vmem:[%s998 + $0x30] sm:$0xe] %v890
      %1012 = vst [vmem:[%s998 + $0x34] sm:$0xf] %v893
      %1013 = vst [vmem:[%s998 + $0x38] sm:$0x1] %v894
      %1014 = vst [vmem:[%s998 + $0x3c] sm:$0xe] %v895
      %1015 = vst [vmem:[%s998 + $0x40] sm:$0xf] %v898
      %1016 = vst [vmem:[%s998 + $0x44] sm:$0x1] %v899
      %1017 = vst [vmem:[%s998 + $0x48] sm:$0xe] %v900
      %1018 = vst [vmem:[%s998 + $0x4c] sm:$0xf] %v903
      %1019 = vst [vmem:[%s998 + $0x50] sm:$0x1] %v904
      %1020 = vst [vmem:[%s998 + $0x54] sm:$0xe] %v905
      %1021 = vst [vmem:[%s998 + $0x58] sm:$0xf] %v908
      %1022 = vst [vmem:[%s998 + $0x5c] sm:$0x1] %v909
      %1023 = vst [vmem:[%s998 + $0x60] sm:$0xe] %v910
      %1024 = vst [vmem:[%s998 + $0x64] sm:$0xf] %v913
      %1025 = vst [vmem:[%s998 + $0x68] sm:$0x1] %v914
      %1026 = vst [vmem:[%s998 + $0x6c] sm:$0xe] %v915
      %1027 = vst [vmem:[%s998 + $0x70] sm:$0xf] %v918
      %1028 = vst [vmem:[%s998 + $0x74] sm:$0x1] %v919
      %1029 = vst [vmem:[%s998 + $0x78] sm:$0xe] %v920
      %1030 = vst [vmem:[%s998 + $0x7c] sm:$0xf] %v923
      %1031 = vst [vmem:[%s998 + $0x80] sm:$0x1] %v924
      %1032 = vst [vmem:[%s998 + $0x84] sm:$0xe] %v925
      %1033 = vst [vmem:[%s998 + $0x88] sm:$0xf] %v928
      %1034 = vst [vmem:[%s998 + $0x8c] sm:$0x1] %v929
      %1035 = vst [vmem:[%s998 + $0x90] sm:$0xe] %v930
      %1036 = vst [vmem:[%s998 + $0x94] sm:$0xf] %v933
      %1037 = vst [vmem:[%s998 + $0x98] sm:$0x1] %v934
      %1038 = vst [vmem:[%s998 + $0x9c] sm:$0xe] %v935
      %1039 = vst [vmem:[%s998 + $0xa0] sm:$0xf] %v938
      %1040 = vst [vmem:[%s998 + $0xa4] sm:$0x1] %v939
      %1041 = vst [vmem:[%s998 + $0xa8] sm:$0xe] %v940
      %1042 = vst [vmem:[%s998 + $0xac] sm:$0xf] %v943
      %1043 = vst [vmem:[%s998 + $0xb0] sm:$0x1] %v944
      %1044 = vst [vmem:[%s998 + $0xb4] sm:$0xe] %v945
      %1045 = vst [vmem:[%s998 + $0xb8] sm:$0xf] %v948
      %1046 = vst [vmem:[%s998 + $0xbc] sm:$0x1] %v949
      %v1047 = vld [vmem:[%s313] sm:$0xf]
      %v1048 = vld [vmem:[%s313 + $0x4] sm:$0xf]
      %v1049 = vld [vmem:[%s313 + $0x8] sm:$0x1]
      %v1050 = vld [vmem:[%s313 + $0xc] sm:$0xf]
      %v1051 = vld [vmem:[%s313 + $0x10] sm:$0xf]
      %v1052 = vld [vmem:[%s313 + $0x14] sm:$0x1]
      %v1053 = vld [vmem:[%s313 + $0x18] sm:$0xf]
      %v1054 = vld [vmem:[%s313 + $0x1c] sm:$0xf]
      %v1055 = vld [vmem:[%s313 + $0x20] sm:$0x1]
      %v1056 = vld [vmem:[%s313 + $0x24] sm:$0xf]
      %v1057 = vld [vmem:[%s313 + $0x28] sm:$0xf]
      %v1058 = vld [vmem:[%s313 + $0x2c] sm:$0x1]
      %v1059 = vld [vmem:[%s313 + $0x30] sm:$0xf]
      %v1060 = vld [vmem:[%s313 + $0x34] sm:$0xf]
      %v1061 = vld [vmem:[%s313 + $0x38] sm:$0x1]
      %v1062 = vld [vmem:[%s313 + $0x3c] sm:$0xf]
      %v1063 = vld [vmem:[%s313 + $0x40] sm:$0xf]
      %v1064 = vld [vmem:[%s313 + $0x44] sm:$0x1]
      %v1065 = vld [vmem:[%s313 + $0x48] sm:$0xf]
      %v1066 = vld [vmem:[%s313 + $0x4c] sm:$0xf]
      %v1067 = vld [vmem:[%s313 + $0x50] sm:$0x1]
      %v1068 = vld [vmem:[%s313 + $0x54] sm:$0xf]
      %v1069 = vld [vmem:[%s313 + $0x58] sm:$0xf]
      %v1070 = vld [vmem:[%s313 + $0x5c] sm:$0x1]
      %v1071 = vld [vmem:[%s313 + $0x60] sm:$0xf]
      %v1072 = vld [vmem:[%s313 + $0x64] sm:$0xf]
      %v1073 = vld [vmem:[%s313 + $0x68] sm:$0x1]
      %v1074 = vld [vmem:[%s313 + $0x6c] sm:$0xf]
      %v1075 = vld [vmem:[%s313 + $0x70] sm:$0xf]
      %v1076 = vld [vmem:[%s313 + $0x74] sm:$0x1]
      %v1077 = vld [vmem:[%s313 + $0x78] sm:$0xf]
      %v1078 = vld [vmem:[%s313 + $0x7c] sm:$0xf]
      %v1079 = vld [vmem:[%s313 + $0x80] sm:$0x1]
      %v1080 = vld [vmem:[%s313 + $0x84] sm:$0xf]
      %v1081 = vld [vmem:[%s313 + $0x88] sm:$0xf]
      %v1082 = vld [vmem:[%s313 + $0x8c] sm:$0x1]
      %v1083 = vld [vmem:[%s313 + $0x90] sm:$0xf]
      %v1084 = vld [vmem:[%s313 + $0x94] sm:$0xf]
      %v1085 = vld [vmem:[%s313 + $0x98] sm:$0x1]
      %v1086 = vld [vmem:[%s313 + $0x9c] sm:$0xf]
      %v1087 = vld [vmem:[%s313 + $0xa0] sm:$0xf]
      %v1088 = vld [vmem:[%s313 + $0xa4] sm:$0x1]
      %v1089 = vld [vmem:[%s313 + $0xa8] sm:$0xf]
      %v1090 = vld [vmem:[%s313 + $0xac] sm:$0xf]
      %v1091 = vld [vmem:[%s313 + $0xb0] sm:$0x1]
      %v1092 = vld [vmem:[%s313 + $0xb4] sm:$0xf]
      %v1093 = vld [vmem:[%s313 + $0xb8] sm:$0xf]
      %v1094 = vld [vmem:[%s313 + $0xbc] sm:$0x1]
      %vm1095 = vsmask.f32 3328
      %vm1096 = vsmask.f32 7440
      %vm1097 = vmor %vm1095, %vm1096
      %v1099 = vshrl.u32 %v1047, 16
      %v1101 = vrot.slane %v1099, 4
      %v1102 = vshll.u32 %v1047, 16
      %v1104 = vrot.slane %v1102, 5
      %v1105 = vor.u32 %v1101, %v1104
      %v1106 = vrot.slane %v1105, 4
      %v1108 = vshll.u32 %v1048, 16
      %v1110 = vrot.slane %v1108, 5
      %v1111 = vsel %vm1097, %v1106, %v1110
      %v1112 = vshrl.u32 %v1048, 16
      %v1114 = vrot.slane %v1112, 4
      %v1115 = vor.u32 %v1114, %v1110
      %v1116 = vrot.slane %v1115, 4
      %v1118 = vshll.u32 %v1049, 16
      %v1120 = vrot.slane %v1118, 5
      %v1121 = vsel %vm1097, %v1116, %v1120
      %v1123 = vshrl.u32 %v1050, 16
      %v1125 = vrot.slane %v1123, 4
      %v1126 = vshll.u32 %v1050, 16
      %v1128 = vrot.slane %v1126, 5
      %v1129 = vor.u32 %v1125, %v1128
      %v1130 = vrot.slane %v1129, 4
      %v1132 = vshll.u32 %v1051, 16
      %v1134 = vrot.slane %v1132, 5
      %v1135 = vsel %vm1097, %v1130, %v1134
      %v1136 = vshrl.u32 %v1051, 16
      %v1138 = vrot.slane %v1136, 4
      %v1139 = vor.u32 %v1138, %v1134
      %v1140 = vrot.slane %v1139, 4
      %v1142 = vshll.u32 %v1052, 16
      %v1144 = vrot.slane %v1142, 5
      %v1145 = vsel %vm1097, %v1140, %v1144
      %v1147 = vshrl.u32 %v1053, 16
      %v1149 = vrot.slane %v1147, 4
      %v1150 = vshll.u32 %v1053, 16
      %v1152 = vrot.slane %v1150, 5
      %v1153 = vor.u32 %v1149, %v1152
      %v1154 = vrot.slane %v1153, 4
      %v1156 = vshll.u32 %v1054, 16
      %v1158 = vrot.slane %v1156, 5
      %v1159 = vsel %vm1097, %v1154, %v1158
      %v1160 = vshrl.u32 %v1054, 16
      %v1162 = vrot.slane %v1160, 4
      %v1163 = vor.u32 %v1162, %v1158
      %v1164 = vrot.slane %v1163, 4
      %v1166 = vshll.u32 %v1055, 16
      %v1168 = vrot.slane %v1166, 5
      %v1169 = vsel %vm1097, %v1164, %v1168
      %v1171 = vshrl.u32 %v1056, 16
      %v1173 = vrot.slane %v1171, 4
      %v1174 = vshll.u32 %v1056, 16
      %v1176 = vrot.slane %v1174, 5
      %v1177 = vor.u32 %v1173, %v1176
      %v1178 = vrot.slane %v1177, 4
      %v1180 = vshll.u32 %v1057, 16
      %v1182 = vrot.slane %v1180, 5
      %v1183 = vsel %vm1097, %v1178, %v1182
      %v1184 = vshrl.u32 %v1057, 16
      %v1186 = vrot.slane %v1184, 4
      %v1187 = vor.u32 %v1186, %v1182
      %v1188 = vrot.slane %v1187, 4
      %v1190 = vshll.u32 %v1058, 16
      %v1192 = vrot.slane %v1190, 5
      %v1193 = vsel %vm1097, %v1188, %v1192
      %v1195 = vshrl.u32 %v1059, 16
      %v1197 = vrot.slane %v1195, 4
      %v1198 = vshll.u32 %v1059, 16
      %v1200 = vrot.slane %v1198, 5
      %v1201 = vor.u32 %v1197, %v1200
      %v1202 = vrot.slane %v1201, 4
      %v1204 = vshll.u32 %v1060, 16
      %v1206 = vrot.slane %v1204, 5
      %v1207 = vsel %vm1097, %v1202, %v1206
      %v1208 = vshrl.u32 %v1060, 16
      %v1210 = vrot.slane %v1208, 4
      %v1211 = vor.u32 %v1210, %v1206
      %v1212 = vrot.slane %v1211, 4
      %v1214 = vshll.u32 %v1061, 16
      %v1216 = vrot.slane %v1214, 5
      %v1217 = vsel %vm1097, %v1212, %v1216
      %v1219 = vshrl.u32 %v1062, 16
      %v1221 = vrot.slane %v1219, 4
      %v1222 = vshll.u32 %v1062, 16
      %v1224 = vrot.slane %v1222, 5
      %v1225 = vor.u32 %v1221, %v1224
      %v1226 = vrot.slane %v1225, 4
      %v1228 = vshll.u32 %v1063, 16
      %v1230 = vrot.slane %v1228, 5
      %v1231 = vsel %vm1097, %v1226, %v1230
      %v1232 = vshrl.u32 %v1063, 16
      %v1234 = vrot.slane %v1232, 4
      %v1235 = vor.u32 %v1234, %v1230
      %v1236 = vrot.slane %v1235, 4
      %v1238 = vshll.u32 %v1064, 16
      %v1240 = vrot.slane %v1238, 5
      %v1241 = vsel %vm1097, %v1236, %v1240
      %v1243 = vshrl.u32 %v1065, 16
      %v1245 = vrot.slane %v1243, 4
      %v1246 = vshll.u32 %v1065, 16
      %v1248 = vrot.slane %v1246, 5
      %v1249 = vor.u32 %v1245, %v1248
      %v1250 = vrot.slane %v1249, 4
      %v1252 = vshll.u32 %v1066, 16
      %v1254 = vrot.slane %v1252, 5
      %v1255 = vsel %vm1097, %v1250, %v1254
      %v1256 = vshrl.u32 %v1066, 16
      %v1258 = vrot.slane %v1256, 4
      %v1259 = vor.u32 %v1258, %v1254
      %v1260 = vrot.slane %v1259, 4
      %v1262 = vshll.u32 %v1067, 16
      %v1264 = vrot.slane %v1262, 5
      %v1265 = vsel %vm1097, %v1260, %v1264
      %v1267 = vshrl.u32 %v1068, 16
      %v1269 = vrot.slane %v1267, 4
      %v1270 = vshll.u32 %v1068, 16
      %v1272 = vrot.slane %v1270, 5
      %v1273 = vor.u32 %v1269, %v1272
      %v1274 = vrot.slane %v1273, 4
      %v1276 = vshll.u32 %v1069, 16
      %v1278 = vrot.slane %v1276, 5
      %v1279 = vsel %vm1097, %v1274, %v1278
      %v1280 = vshrl.u32 %v1069, 16
      %v1282 = vrot.slane %v1280, 4
      %v1283 = vor.u32 %v1282, %v1278
      %v1284 = vrot.slane %v1283, 4
      %v1286 = vshll.u32 %v1070, 16
      %v1288 = vrot.slane %v1286, 5
      %v1289 = vsel %vm1097, %v1284, %v1288
      %v1291 = vshrl.u32 %v1071, 16
      %v1293 = vrot.slane %v1291, 4
      %v1294 = vshll.u32 %v1071, 16
      %v1296 = vrot.slane %v1294, 5
      %v1297 = vor.u32 %v1293, %v1296
      %v1298 = vrot.slane %v1297, 4
      %v1300 = vshll.u32 %v1072, 16
      %v1302 = vrot.slane %v1300, 5
      %v1303 = vsel %vm1097, %v1298, %v1302
      %v1304 = vshrl.u32 %v1072, 16
      %v1306 = vrot.slane %v1304, 4
      %v1307 = vor.u32 %v1306, %v1302
      %v1308 = vrot.slane %v1307, 4
      %v1310 = vshll.u32 %v1073, 16
      %v1312 = vrot.slane %v1310, 5
      %v1313 = vsel %vm1097, %v1308, %v1312
      %v1315 = vshrl.u32 %v1074, 16
      %v1317 = vrot.slane %v1315, 4
      %v1318 = vshll.u32 %v1074, 16
      %v1320 = vrot.slane %v1318, 5
      %v1321 = vor.u32 %v1317, %v1320
      %v1322 = vrot.slane %v1321, 4
      %v1324 = vshll.u32 %v1075, 16
      %v1326 = vrot.slane %v1324, 5
      %v1327 = vsel %vm1097, %v1322, %v1326
      %v1328 = vshrl.u32 %v1075, 16
      %v1330 = vrot.slane %v1328, 4
      %v1331 = vor.u32 %v1330, %v1326
      %v1332 = vrot.slane %v1331, 4
      %v1334 = vshll.u32 %v1076, 16
      %v1336 = vrot.slane %v1334, 5
      %v1337 = vsel %vm1097, %v1332, %v1336
      %v1339 = vshrl.u32 %v1077, 16
      %v1341 = vrot.slane %v1339, 4
      %v1342 = vshll.u32 %v1077, 16
      %v1344 = vrot.slane %v1342, 5
      %v1345 = vor.u32 %v1341, %v1344
      %v1346 = vrot.slane %v1345, 4
      %v1348 = vshll.u32 %v1078, 16
      %v1350 = vrot.slane %v1348, 5
      %v1351 = vsel %vm1097, %v1346, %v1350
      %v1352 = vshrl.u32 %v1078, 16
      %v1354 = vrot.slane %v1352, 4
      %v1355 = vor.u32 %v1354, %v1350
      %v1356 = vrot.slane %v1355, 4
      %v1358 = vshll.u32 %v1079, 16
      %v1360 = vrot.slane %v1358, 5
      %v1361 = vsel %vm1097, %v1356, %v1360
      %v1363 = vshrl.u32 %v1080, 16
      %v1365 = vrot.slane %v1363, 4
      %v1366 = vshll.u32 %v1080, 16
      %v1368 = vrot.slane %v1366, 5
      %v1369 = vor.u32 %v1365, %v1368
      %v1370 = vrot.slane %v1369, 4
      %v1372 = vshll.u32 %v1081, 16
      %v1374 = vrot.slane %v1372, 5
      %v1375 = vsel %vm1097, %v1370, %v1374
      %v1376 = vshrl.u32 %v1081, 16
      %v1378 = vrot.slane %v1376, 4
      %v1379 = vor.u32 %v1378, %v1374
      %v1380 = vrot.slane %v1379, 4
      %v1382 = vshll.u32 %v1082, 16
      %v1384 = vrot.slane %v1382, 5
      %v1385 = vsel %vm1097, %v1380, %v1384
      %v1387 = vshrl.u32 %v1083, 16
      %v1389 = vrot.slane %v1387, 4
      %v1390 = vshll.u32 %v1083, 16
      %v1392 = vrot.slane %v1390, 5
      %v1393 = vor.u32 %v1389, %v1392
      %v1394 = vrot.slane %v1393, 4
      %v1396 = vshll.u32 %v1084, 16
      %v1398 = vrot.slane %v1396, 5
      %v1399 = vsel %vm1097, %v1394, %v1398
      %v1400 = vshrl.u32 %v1084, 16
      %v1402 = vrot.slane %v1400, 4
      %v1403 = vor.u32 %v1402, %v1398
      %v1404 = vrot.slane %v1403, 4
      %v1406 = vshll.u32 %v1085, 16
      %v1408 = vrot.slane %v1406, 5
      %v1409 = vsel %vm1097, %v1404, %v1408
      %v1411 = vshrl.u32 %v1086, 16
      %v1413 = vrot.slane %v1411, 4
      %v1414 = vshll.u32 %v1086, 16
      %v1416 = vrot.slane %v1414, 5
      %v1417 = vor.u32 %v1413, %v1416
      %v1418 = vrot.slane %v1417, 4
      %v1420 = vshll.u32 %v1087, 16
      %v1422 = vrot.slane %v1420, 5
      %v1423 = vsel %vm1097, %v1418, %v1422
      %v1424 = vshrl.u32 %v1087, 16
      %v1426 = vrot.slane %v1424, 4
      %v1427 = vor.u32 %v1426, %v1422
      %v1428 = vrot.slane %v1427, 4
      %v1430 = vshll.u32 %v1088, 16
      %v1432 = vrot.slane %v1430, 5
      %v1433 = vsel %vm1097, %v1428, %v1432
      %v1435 = vshrl.u32 %v1089, 16
      %v1437 = vrot.slane %v1435, 4
      %v1438 = vshll.u32 %v1089, 16
      %v1440 = vrot.slane %v1438, 5
      %v1441 = vor.u32 %v1437, %v1440
      %v1442 = vrot.slane %v1441, 4
      %v1444 = vshll.u32 %v1090, 16
      %v1446 = vrot.slane %v1444, 5
      %v1447 = vsel %vm1097, %v1442, %v1446
      %v1448 = vshrl.u32 %v1090, 16
      %v1450 = vrot.slane %v1448, 4
      %v1451 = vor.u32 %v1450, %v1446
      %v1452 = vrot.slane %v1451, 4
      %v1454 = vshll.u32 %v1091, 16
      %v1456 = vrot.slane %v1454, 5
      %v1457 = vsel %vm1097, %v1452, %v1456
      %v1459 = vshrl.u32 %v1092, 16
      %v1461 = vrot.slane %v1459, 4
      %v1462 = vshll.u32 %v1092, 16
      %v1464 = vrot.slane %v1462, 5
      %v1465 = vor.u32 %v1461, %v1464
      %v1466 = vrot.slane %v1465, 4
      %v1468 = vshll.u32 %v1093, 16
      %v1470 = vrot.slane %v1468, 5
      %v1471 = vsel %vm1097, %v1466, %v1470
      %v1472 = vshrl.u32 %v1093, 16
      %v1474 = vrot.slane %v1472, 4
      %v1475 = vor.u32 %v1474, %v1470
      %v1476 = vrot.slane %v1475, 4
      %v1478 = vshll.u32 %v1094, 16
      %v1480 = vrot.slane %v1478, 5
      %v1481 = vsel %vm1097, %v1476, %v1480
      %v1482 = vunpack.c.l.b16 %v1111
      %v1483 = vunpack.c.l.b16 %v1121
      %v1484 = vunpack.c.l.b16 %v1135
      %v1485 = vunpack.c.l.b16 %v1145
      %v1486 = vunpack.c.l.b16 %v1159
      %v1487 = vunpack.c.l.b16 %v1169
      %v1488 = vunpack.c.l.b16 %v1183
      %v1489 = vunpack.c.l.b16 %v1193
      %v1490 = vunpack.c.l.b16 %v1207
      %v1491 = vunpack.c.l.b16 %v1217
      %v1492 = vunpack.c.l.b16 %v1231
      %v1493 = vunpack.c.l.b16 %v1241
      %v1494 = vunpack.c.l.b16 %v1255
      %v1495 = vunpack.c.l.b16 %v1265
      %v1496 = vunpack.c.l.b16 %v1279
      %v1497 = vunpack.c.l.b16 %v1289
      %v1498 = vunpack.c.l.b16 %v1303
      %v1499 = vunpack.c.l.b16 %v1313
      %v1500 = vunpack.c.l.b16 %v1327
      %v1501 = vunpack.c.l.b16 %v1337
      %v1502 = vunpack.c.l.b16 %v1351
      %v1503 = vunpack.c.l.b16 %v1361
      %v1504 = vunpack.c.l.b16 %v1375
      %v1505 = vunpack.c.l.b16 %v1385
      %v1506 = vunpack.c.l.b16 %v1399
      %v1507 = vunpack.c.l.b16 %v1409
      %v1508 = vunpack.c.l.b16 %v1423
      %v1509 = vunpack.c.l.b16 %v1433
      %v1510 = vunpack.c.l.b16 %v1447
      %v1511 = vunpack.c.l.b16 %v1457
      %v1512 = vunpack.c.l.b16 %v1471
      %v1513 = vunpack.c.l.b16 %v1481
      %v1514 = vpack.c.b16 %v1483, %v1482
      %v1515 = vpack.c.b16 %v1485, %v1484
      %v1516 = vpack.c.b16 %v1487, %v1486
      %v1517 = vpack.c.b16 %v1489, %v1488
      %v1518 = vpack.c.b16 %v1491, %v1490
      %v1519 = vpack.c.b16 %v1493, %v1492
      %v1520 = vpack.c.b16 %v1495, %v1494
      %v1521 = vpack.c.b16 %v1497, %v1496
      %v1522 = vpack.c.b16 %v1499, %v1498
      %v1523 = vpack.c.b16 %v1501, %v1500
      %v1524 = vpack.c.b16 %v1503, %v1502
      %v1525 = vpack.c.b16 %v1505, %v1504
      %v1526 = vpack.c.b16 %v1507, %v1506
      %v1527 = vpack.c.b16 %v1509, %v1508
      %v1528 = vpack.c.b16 %v1511, %v1510
      %v1529 = vpack.c.b16 %v1513, %v1512
      %1546 = vst [vmem:[#allocation2] sm:$0xff] %v1514
      %1547 = vst [vmem:[#allocation2 + $0x18] sm:$0xff] %v1515
      %1548 = vst [vmem:[#allocation2 + $0x30] sm:$0xff] %v1516
      %1549 = vst [vmem:[#allocation2 + $0x48] sm:$0xff] %v1517
      %1550 = vst [vmem:[#allocation2 + $0x60] sm:$0xff] %v1518
      %1551 = vst [vmem:[#allocation2 + $0x78] sm:$0xff] %v1519
      %1552 = vst [vmem:[#allocation2 + $0x90] sm:$0xff] %v1520
      %1553 = vst [vmem:[#allocation2 + $0xa8] sm:$0xff] %v1521
      %1554 = vst [vmem:[#allocation2 + $0xc0] sm:$0xff] %v1522
      %1555 = vst [vmem:[#allocation2 + $0xd8] sm:$0xff] %v1523
      %1556 = vst [vmem:[#allocation2 + $0xf0] sm:$0xff] %v1524
      %1557 = vst [vmem:[#allocation2 + $0x108] sm:$0xff] %v1525
      %1558 = vst [vmem:[#allocation2 + $0x120] sm:$0xff] %v1526
      %1559 = vst [vmem:[#allocation2 + $0x138] sm:$0xff] %v1527
      %1560 = vst [vmem:[#allocation2 + $0x150] sm:$0xff] %v1528
      %1561 = vst [vmem:[#allocation2 + $0x168] sm:$0xff] %v1529
      %v1562 = vld [vmem:[%s313] sm:$0xe]
      %v1563 = vld [vmem:[%s313 + $0x4] sm:$0xf]
      %v1564 = vld [vmem:[%s313 + $0x8] sm:$0x1]
      %v1565 = vld [vmem:[%s313 + $0xc] sm:$0xe]
      %v1566 = vld [vmem:[%s313 + $0x10] sm:$0xf]
      %v1567 = vld [vmem:[%s313 + $0x14] sm:$0x1]
      %v1568 = vld [vmem:[%s313 + $0x18] sm:$0xe]
      %v1569 = vld [vmem:[%s313 + $0x1c] sm:$0xf]
      %v1570 = vld [vmem:[%s313 + $0x20] sm:$0x1]
      %v1571 = vld [vmem:[%s313 + $0x24] sm:$0xe]
      %v1572 = vld [vmem:[%s313 + $0x28] sm:$0xf]
      %v1573 = vld [vmem:[%s313 + $0x2c] sm:$0x1]
      %v1574 = vld [vmem:[%s313 + $0x30] sm:$0xe]
      %v1575 = vld [vmem:[%s313 + $0x34] sm:$0xf]
      %v1576 = vld [vmem:[%s313 + $0x38] sm:$0x1]
      %v1577 = vld [vmem:[%s313 + $0x3c] sm:$0xe]
      %v1578 = vld [vmem:[%s313 + $0x40] sm:$0xf]
      %v1579 = vld [vmem:[%s313 + $0x44] sm:$0x1]
      %v1580 = vld [vmem:[%s313 + $0x48] sm:$0xe]
      %v1581 = vld [vmem:[%s313 + $0x4c] sm:$0xf]
      %v1582 = vld [vmem:[%s313 + $0x50] sm:$0x1]
      %v1583 = vld [vmem:[%s313 + $0x54] sm:$0xe]
      %v1584 = vld [vmem:[%s313 + $0x58] sm:$0xf]
      %v1585 = vld [vmem:[%s313 + $0x5c] sm:$0x1]
      %v1586 = vld [vmem:[%s313 + $0x60] sm:$0xe]
      %v1587 = vld [vmem:[%s313 + $0x64] sm:$0xf]
      %v1588 = vld [vmem:[%s313 + $0x68] sm:$0x1]
      %v1589 = vld [vmem:[%s313 + $0x6c] sm:$0xe]
      %v1590 = vld [vmem:[%s313 + $0x70] sm:$0xf]
      %v1591 = vld [vmem:[%s313 + $0x74] sm:$0x1]
      %v1592 = vld [vmem:[%s313 + $0x78] sm:$0xe]
      %v1593 = vld [vmem:[%s313 + $0x7c] sm:$0xf]
      %v1594 = vld [vmem:[%s313 + $0x80] sm:$0x1]
      %v1595 = vld [vmem:[%s313 + $0x84] sm:$0xe]
      %v1596 = vld [vmem:[%s313 + $0x88] sm:$0xf]
      %v1597 = vld [vmem:[%s313 + $0x8c] sm:$0x1]
      %v1598 = vld [vmem:[%s313 + $0x90] sm:$0xe]
      %v1599 = vld [vmem:[%s313 + $0x94] sm:$0xf]
      %v1600 = vld [vmem:[%s313 + $0x98] sm:$0x1]
      %v1601 = vld [vmem:[%s313 + $0x9c] sm:$0xe]
      %v1602 = vld [vmem:[%s313 + $0xa0] sm:$0xf]
      %v1603 = vld [vmem:[%s313 + $0xa4] sm:$0x1]
      %v1604 = vld [vmem:[%s313 + $0xa8] sm:$0xe]
      %v1605 = vld [vmem:[%s313 + $0xac] sm:$0xf]
      %v1606 = vld [vmem:[%s313 + $0xb0] sm:$0x1]
      %v1607 = vld [vmem:[%s313 + $0xb4] sm:$0xe]
      %v1608 = vld [vmem:[%s313 + $0xb8] sm:$0xf]
      %v1609 = vld [vmem:[%s313 + $0xbc] sm:$0x1]
      %vm1658 = vcmask 1042432
      %vm1659 = vcmask 1046532
      %vm1660 = vmor %vm1658, %vm1659
      %v1661 = vrot.slane %v1562, 5
      %v1662 = vrot.slane %v1661, 4
      %v1663 = vrot.slane %v1563, 5
      %v1664 = vsel %vm1660, %v1662, %v1663
      %v1665 = vrot.slane %v1663, 4
      %v1666 = vrot.slane %v1564, 5
      %v1667 = vsel %vm1660, %v1665, %v1666
      %v1668 = vrot.slane %v1565, 5
      %v1669 = vrot.slane %v1668, 4
      %v1670 = vrot.slane %v1566, 5
      %v1671 = vsel %vm1660, %v1669, %v1670
      %v1672 = vrot.slane %v1670, 4
      %v1673 = vrot.slane %v1567, 5
      %v1674 = vsel %vm1660, %v1672, %v1673
      %v1675 = vrot.slane %v1568, 5
      %v1676 = vrot.slane %v1675, 4
      %v1677 = vrot.slane %v1569, 5
      %v1678 = vsel %vm1660, %v1676, %v1677
      %v1679 = vrot.slane %v1677, 4
      %v1680 = vrot.slane %v1570, 5
      %v1681 = vsel %vm1660, %v1679, %v1680
      %v1682 = vrot.slane %v1571, 5
      %v1683 = vrot.slane %v1682, 4
      %v1684 = vrot.slane %v1572, 5
      %v1685 = vsel %vm1660, %v1683, %v1684
      %v1686 = vrot.slane %v1684, 4
      %v1687 = vrot.slane %v1573, 5
      %v1688 = vsel %vm1660, %v1686, %v1687
      %v1689 = vrot.slane %v1574, 5
      %v1690 = vrot.slane %v1689, 4
      %v1691 = vrot.slane %v1575, 5
      %v1692 = vsel %vm1660, %v1690, %v1691
      %v1693 = vrot.slane %v1691, 4
      %v1694 = vrot.slane %v1576, 5
      %v1695 = vsel %vm1660, %v1693, %v1694
      %v1696 = vrot.slane %v1577, 5
      %v1697 = vrot.slane %v1696, 4
      %v1698 = vrot.slane %v1578, 5
      %v1699 = vsel %vm1660, %v1697, %v1698
      %v1700 = vrot.slane %v1698, 4
      %v1701 = vrot.slane %v1579, 5
      %v1702 = vsel %vm1660, %v1700, %v1701
      %v1703 = vrot.slane %v1580, 5
      %v1704 = vrot.slane %v1703, 4
      %v1705 = vrot.slane %v1581, 5
      %v1706 = vsel %vm1660, %v1704, %v1705
      %v1707 = vrot.slane %v1705, 4
      %v1708 = vrot.slane %v1582, 5
      %v1709 = vsel %vm1660, %v1707, %v1708
      %v1710 = vrot.slane %v1583, 5
      %v1711 = vrot.slane %v1710, 4
      %v1712 = vrot.slane %v1584, 5
      %v1713 = vsel %vm1660, %v1711, %v1712
      %v1714 = vrot.slane %v1712, 4
      %v1715 = vrot.slane %v1585, 5
      %v1716 = vsel %vm1660, %v1714, %v1715
      %v1717 = vrot.slane %v1586, 5
      %v1718 = vrot.slane %v1717, 4
      %v1719 = vrot.slane %v1587, 5
      %v1720 = vsel %vm1660, %v1718, %v1719
      %v1721 = vrot.slane %v1719, 4
      %v1722 = vrot.slane %v1588, 5
      %v1723 = vsel %vm1660, %v1721, %v1722
      %v1724 = vrot.slane %v1589, 5
      %v1725 = vrot.slane %v1724, 4
      %v1726 = vrot.slane %v1590, 5
      %v1727 = vsel %vm1660, %v1725, %v1726
      %v1728 = vrot.slane %v1726, 4
      %v1729 = vrot.slane %v1591, 5
      %v1730 = vsel %vm1660, %v1728, %v1729
      %v1731 = vrot.slane %v1592, 5
      %v1732 = vrot.slane %v1731, 4
      %v1733 = vrot.slane %v1593, 5
      %v1734 = vsel %vm1660, %v1732, %v1733
      %v1735 = vrot.slane %v1733, 4
      %v1736 = vrot.slane %v1594, 5
      %v1737 = vsel %vm1660, %v1735, %v1736
      %v1738 = vrot.slane %v1595, 5
      %v1739 = vrot.slane %v1738, 4
      %v1740 = vrot.slane %v1596, 5
      %v1741 = vsel %vm1660, %v1739, %v1740
      %v1742 = vrot.slane %v1740, 4
      %v1743 = vrot.slane %v1597, 5
      %v1744 = vsel %vm1660, %v1742, %v1743
      %v1745 = vrot.slane %v1598, 5
      %v1746 = vrot.slane %v1745, 4
      %v1747 = vrot.slane %v1599, 5
      %v1748 = vsel %vm1660, %v1746, %v1747
      %v1749 = vrot.slane %v1747, 4
      %v1750 = vrot.slane %v1600, 5
      %v1751 = vsel %vm1660, %v1749, %v1750
      %v1752 = vrot.slane %v1601, 5
      %v1753 = vrot.slane %v1752, 4
      %v1754 = vrot.slane %v1602, 5
      %v1755 = vsel %vm1660, %v1753, %v1754
      %v1756 = vrot.slane %v1754, 4
      %v1757 = vrot.slane %v1603, 5
      %v1758 = vsel %vm1660, %v1756, %v1757
      %v1759 = vrot.slane %v1604, 5
      %v1760 = vrot.slane %v1759, 4
      %v1761 = vrot.slane %v1605, 5
      %v1762 = vsel %vm1660, %v1760, %v1761
      %v1763 = vrot.slane %v1761, 4
      %v1764 = vrot.slane %v1606, 5
      %v1765 = vsel %vm1660, %v1763, %v1764
      %v1766 = vrot.slane %v1607, 5
      %v1767 = vrot.slane %v1766, 4
      %v1768 = vrot.slane %v1608, 5
      %v1769 = vsel %vm1660, %v1767, %v1768
      %v1770 = vrot.slane %v1768, 4
      %v1771 = vrot.slane %v1609, 5
      %v1772 = vsel %vm1660, %v1770, %v1771
      %v1773 = vunpack.c.l.b16 %v1664
      %v1774 = vunpack.c.l.b16 %v1667
      %v1775 = vunpack.c.l.b16 %v1671
      %v1776 = vunpack.c.l.b16 %v1674
      %v1777 = vunpack.c.l.b16 %v1678
      %v1778 = vunpack.c.l.b16 %v1681
      %v1779 = vunpack.c.l.b16 %v1685
      %v1780 = vunpack.c.l.b16 %v1688
      %v1781 = vunpack.c.l.b16 %v1692
      %v1782 = vunpack.c.l.b16 %v1695
      %v1783 = vunpack.c.l.b16 %v1699
      %v1784 = vunpack.c.l.b16 %v1702
      %v1785 = vunpack.c.l.b16 %v1706
      %v1786 = vunpack.c.l.b16 %v1709
      %v1787 = vunpack.c.l.b16 %v1713
      %v1788 = vunpack.c.l.b16 %v1716
      %v1789 = vunpack.c.l.b16 %v1720
      %v1790 = vunpack.c.l.b16 %v1723
      %v1791 = vunpack.c.l.b16 %v1727
      %v1792 = vunpack.c.l.b16 %v1730
      %v1793 = vunpack.c.l.b16 %v1734
      %v1794 = vunpack.c.l.b16 %v1737
      %v1795 = vunpack.c.l.b16 %v1741
      %v1796 = vunpack.c.l.b16 %v1744
      %v1797 = vunpack.c.l.b16 %v1748
      %v1798 = vunpack.c.l.b16 %v1751
      %v1799 = vunpack.c.l.b16 %v1755
      %v1800 = vunpack.c.l.b16 %v1758
      %v1801 = vunpack.c.l.b16 %v1762
      %v1802 = vunpack.c.l.b16 %v1765
      %v1803 = vunpack.c.l.b16 %v1769
      %v1804 = vunpack.c.l.b16 %v1772
      %v1805 = vpack.c.b16 %v1774, %v1773
      %v1806 = vpack.c.b16 %v1776, %v1775
      %v1807 = vpack.c.b16 %v1778, %v1777
      %v1808 = vpack.c.b16 %v1780, %v1779
      %v1809 = vpack.c.b16 %v1782, %v1781
      %v1810 = vpack.c.b16 %v1784, %v1783
      %v1811 = vpack.c.b16 %v1786, %v1785
      %v1812 = vpack.c.b16 %v1788, %v1787
      %v1813 = vpack.c.b16 %v1790, %v1789
      %v1814 = vpack.c.b16 %v1792, %v1791
      %v1815 = vpack.c.b16 %v1794, %v1793
      %v1816 = vpack.c.b16 %v1796, %v1795
      %v1817 = vpack.c.b16 %v1798, %v1797
      %v1818 = vpack.c.b16 %v1800, %v1799
      %v1819 = vpack.c.b16 %v1802, %v1801
      %v1820 = vpack.c.b16 %v1804, %v1803
      %1837 = vst [vmem:[#allocation2 + $0x8] sm:$0xff] %v1805
      %1838 = vst [vmem:[#allocation2 + $0x20] sm:$0xff] %v1806
      %1839 = vst [vmem:[#allocation2 + $0x38] sm:$0xff] %v1807
      %1840 = vst [vmem:[#allocation2 + $0x50] sm:$0xff] %v1808
      %1841 = vst [vmem:[#allocation2 + $0x68] sm:$0xff] %v1809
      %1842 = vst [vmem:[#allocation2 + $0x80] sm:$0xff] %v1810
      %1843 = vst [vmem:[#allocation2 + $0x98] sm:$0xff] %v1811
      %1844 = vst [vmem:[#allocation2 + $0xb0] sm:$0xff] %v1812
      %1845 = vst [vmem:[#allocation2 + $0xc8] sm:$0xff] %v1813
      %1846 = vst [vmem:[#allocation2 + $0xe0] sm:$0xff] %v1814
      %1847 = vst [vmem:[#allocation2 + $0xf8] sm:$0xff] %v1815
      %1848 = vst [vmem:[#allocation2 + $0x110] sm:$0xff] %v1816
      %1849 = vst [vmem:[#allocation2 + $0x128] sm:$0xff] %v1817
      %1850 = vst [vmem:[#allocation2 + $0x140] sm:$0xff] %v1818
      %1851 = vst [vmem:[#allocation2 + $0x158] sm:$0xff] %v1819
      %1852 = vst [vmem:[#allocation2 + $0x170] sm:$0xff] %v1820
      %v1853 = vld [vmem:[%s313] sm:$0xe]
      %v1854 = vld [vmem:[%s313 + $0x4] sm:$0xf]
      %v1855 = vld [vmem:[%s313 + $0x8] sm:$0x3]
      %v1856 = vld [vmem:[%s313 + $0xc] sm:$0xe]
      %v1857 = vld [vmem:[%s313 + $0x10] sm:$0xf]
      %v1858 = vld [vmem:[%s313 + $0x14] sm:$0x3]
      %v1859 = vld [vmem:[%s313 + $0x18] sm:$0xe]
      %v1860 = vld [vmem:[%s313 + $0x1c] sm:$0xf]
      %v1861 = vld [vmem:[%s313 + $0x20] sm:$0x3]
      %v1862 = vld [vmem:[%s313 + $0x24] sm:$0xe]
      %v1863 = vld [vmem:[%s313 + $0x28] sm:$0xf]
      %v1864 = vld [vmem:[%s313 + $0x2c] sm:$0x3]
      %v1865 = vld [vmem:[%s313 + $0x30] sm:$0xe]
      %v1866 = vld [vmem:[%s313 + $0x34] sm:$0xf]
      %v1867 = vld [vmem:[%s313 + $0x38] sm:$0x3]
      %v1868 = vld [vmem:[%s313 + $0x3c] sm:$0xe]
      %v1869 = vld [vmem:[%s313 + $0x40] sm:$0xf]
      %v1870 = vld [vmem:[%s313 + $0x44] sm:$0x3]
      %v1871 = vld [vmem:[%s313 + $0x48] sm:$0xe]
      %v1872 = vld [vmem:[%s313 + $0x4c] sm:$0xf]
      %v1873 = vld [vmem:[%s313 + $0x50] sm:$0x3]
      %v1874 = vld [vmem:[%s313 + $0x54] sm:$0xe]
      %v1875 = vld [vmem:[%s313 + $0x58] sm:$0xf]
      %v1876 = vld [vmem:[%s313 + $0x5c] sm:$0x3]
      %v1877 = vld [vmem:[%s313 + $0x60] sm:$0xe]
      %v1878 = vld [vmem:[%s313 + $0x64] sm:$0xf]
      %v1879 = vld [vmem:[%s313 + $0x68] sm:$0x3]
      %v1880 = vld [vmem:[%s313 + $0x6c] sm:$0xe]
      %v1881 = vld [vmem:[%s313 + $0x70] sm:$0xf]
      %v1882 = vld [vmem:[%s313 + $0x74] sm:$0x3]
      %v1883 = vld [vmem:[%s313 + $0x78] sm:$0xe]
      %v1884 = vld [vmem:[%s313 + $0x7c] sm:$0xf]
      %v1885 = vld [vmem:[%s313 + $0x80] sm:$0x3]
      %v1886 = vld [vmem:[%s313 + $0x84] sm:$0xe]
      %v1887 = vld [vmem:[%s313 + $0x88] sm:$0xf]
      %v1888 = vld [vmem:[%s313 + $0x8c] sm:$0x3]
      %v1889 = vld [vmem:[%s313 + $0x90] sm:$0xe]
      %v1890 = vld [vmem:[%s313 + $0x94] sm:$0xf]
      %v1891 = vld [vmem:[%s313 + $0x98] sm:$0x3]
      %v1892 = vld [vmem:[%s313 + $0x9c] sm:$0xe]
      %v1893 = vld [vmem:[%s313 + $0xa0] sm:$0xf]
      %v1894 = vld [vmem:[%s313 + $0xa4] sm:$0x3]
      %v1895 = vld [vmem:[%s313 + $0xa8] sm:$0xe]
      %v1896 = vld [vmem:[%s313 + $0xac] sm:$0xf]
      %v1897 = vld [vmem:[%s313 + $0xb0] sm:$0x3]
      %v1898 = vld [vmem:[%s313 + $0xb4] sm:$0xe]
      %v1899 = vld [vmem:[%s313 + $0xb8] sm:$0xf]
      %v1900 = vld [vmem:[%s313 + $0xbc] sm:$0x3]
      %vm1901 = vsmask.f32 2304
      %vm1902 = vsmask.f32 6416
      %vm1903 = vmor %vm1901, %vm1902
      %v1905 = vshrl.u32 %v1853, 16
      %v1907 = vrot.slane %v1905, 5
      %v1908 = vshll.u32 %v1853, 16
      %v1910 = vrot.slane %v1908, 6
      %v1911 = vor.u32 %v1907, %v1910
      %v1912 = vrot.slane %v1911, 4
      %v1914 = vshrl.u32 %v1854, 16
      %v1916 = vrot.slane %v1914, 5
      %v1917 = vshll.u32 %v1854, 16
      %v1919 = vrot.slane %v1917, 6
      %v1920 = vor.u32 %v1916, %v1919
      %v1921 = vsel %vm1903, %v1912, %v1920
      %v1922 = vrot.slane %v1920, 4
      %v1924 = vshrl.u32 %v1855, 16
      %v1926 = vrot.slane %v1924, 5
      %v1927 = vshll.u32 %v1855, 16
      %v1929 = vrot.slane %v1927, 6
      %v1930 = vor.u32 %v1926, %v1929
      %v1931 = vsel %vm1903, %v1922, %v1930
      %v1933 = vshrl.u32 %v1856, 16
      %v1935 = vrot.slane %v1933, 5
      %v1936 = vshll.u32 %v1856, 16
      %v1938 = vrot.slane %v1936, 6
      %v1939 = vor.u32 %v1935, %v1938
      %v1940 = vrot.slane %v1939, 4
      %v1942 = vshrl.u32 %v1857, 16
      %v1944 = vrot.slane %v1942, 5
      %v1945 = vshll.u32 %v1857, 16
      %v1947 = vrot.slane %v1945, 6
      %v1948 = vor.u32 %v1944, %v1947
      %v1949 = vsel %vm1903, %v1940, %v1948
      %v1950 = vrot.slane %v1948, 4
      %v1952 = vshrl.u32 %v1858, 16
      %v1954 = vrot.slane %v1952, 5
      %v1955 = vshll.u32 %v1858, 16
      %v1957 = vrot.slane %v1955, 6
      %v1958 = vor.u32 %v1954, %v1957
      %v1959 = vsel %vm1903, %v1950, %v1958
      %v1961 = vshrl.u32 %v1859, 16
      %v1963 = vrot.slane %v1961, 5
      %v1964 = vshll.u32 %v1859, 16
      %v1966 = vrot.slane %v1964, 6
      %v1967 = vor.u32 %v1963, %v1966
      %v1968 = vrot.slane %v1967, 4
      %v1970 = vshrl.u32 %v1860, 16
      %v1972 = vrot.slane %v1970, 5
      %v1973 = vshll.u32 %v1860, 16
      %v1975 = vrot.slane %v1973, 6
      %v1976 = vor.u32 %v1972, %v1975
      %v1977 = vsel %vm1903, %v1968, %v1976
      %v1978 = vrot.slane %v1976, 4
      %v1980 = vshrl.u32 %v1861, 16
      %v1982 = vrot.slane %v1980, 5
      %v1983 = vshll.u32 %v1861, 16
      %v1985 = vrot.slane %v1983, 6
      %v1986 = vor.u32 %v1982, %v1985
      %v1987 = vsel %vm1903, %v1978, %v1986
      %v1989 = vshrl.u32 %v1862, 16
      %v1991 = vrot.slane %v1989, 5
      %v1992 = vshll.u32 %v1862, 16
      %v1994 = vrot.slane %v1992, 6
      %v1995 = vor.u32 %v1991, %v1994
      %v1996 = vrot.slane %v1995, 4
      %v1998 = vshrl.u32 %v1863, 16
      %v2000 = vrot.slane %v1998, 5
      %v2001 = vshll.u32 %v1863, 16
      %v2003 = vrot.slane %v2001, 6
      %v2004 = vor.u32 %v2000, %v2003
      %v2005 = vsel %vm1903, %v1996, %v2004
      %v2006 = vrot.slane %v2004, 4
      %v2008 = vshrl.u32 %v1864, 16
      %v2010 = vrot.slane %v2008, 5
      %v2011 = vshll.u32 %v1864, 16
      %v2013 = vrot.slane %v2011, 6
      %v2014 = vor.u32 %v2010, %v2013
      %v2015 = vsel %vm1903, %v2006, %v2014
      %v2017 = vshrl.u32 %v1865, 16
      %v2019 = vrot.slane %v2017, 5
      %v2020 = vshll.u32 %v1865, 16
      %v2022 = vrot.slane %v2020, 6
      %v2023 = vor.u32 %v2019, %v2022
      %v2024 = vrot.slane %v2023, 4
      %v2026 = vshrl.u32 %v1866, 16
      %v2028 = vrot.slane %v2026, 5
      %v2029 = vshll.u32 %v1866, 16
      %v2031 = vrot.slane %v2029, 6
      %v2032 = vor.u32 %v2028, %v2031
      %v2033 = vsel %vm1903, %v2024, %v2032
      %v2034 = vrot.slane %v2032, 4
      %v2036 = vshrl.u32 %v1867, 16
      %v2038 = vrot.slane %v2036, 5
      %v2039 = vshll.u32 %v1867, 16
      %v2041 = vrot.slane %v2039, 6
      %v2042 = vor.u32 %v2038, %v2041
      %v2043 = vsel %vm1903, %v2034, %v2042
      %v2045 = vshrl.u32 %v1868, 16
      %v2047 = vrot.slane %v2045, 5
      %v2048 = vshll.u32 %v1868, 16
      %v2050 = vrot.slane %v2048, 6
      %v2051 = vor.u32 %v2047, %v2050
      %v2052 = vrot.slane %v2051, 4
      %v2054 = vshrl.u32 %v1869, 16
      %v2056 = vrot.slane %v2054, 5
      %v2057 = vshll.u32 %v1869, 16
      %v2059 = vrot.slane %v2057, 6
      %v2060 = vor.u32 %v2056, %v2059
      %v2061 = vsel %vm1903, %v2052, %v2060
      %v2062 = vrot.slane %v2060, 4
      %v2064 = vshrl.u32 %v1870, 16
      %v2066 = vrot.slane %v2064, 5
      %v2067 = vshll.u32 %v1870, 16
      %v2069 = vrot.slane %v2067, 6
      %v2070 = vor.u32 %v2066, %v2069
      %v2071 = vsel %vm1903, %v2062, %v2070
      %v2073 = vshrl.u32 %v1871, 16
      %v2075 = vrot.slane %v2073, 5
      %v2076 = vshll.u32 %v1871, 16
      %v2078 = vrot.slane %v2076, 6
      %v2079 = vor.u32 %v2075, %v2078
      %v2080 = vrot.slane %v2079, 4
      %v2082 = vshrl.u32 %v1872, 16
      %v2084 = vrot.slane %v2082, 5
      %v2085 = vshll.u32 %v1872, 16
      %v2087 = vrot.slane %v2085, 6
      %v2088 = vor.u32 %v2084, %v2087
      %v2089 = vsel %vm1903, %v2080, %v2088
      %v2090 = vrot.slane %v2088, 4
      %v2092 = vshrl.u32 %v1873, 16
      %v2094 = vrot.slane %v2092, 5
      %v2095 = vshll.u32 %v1873, 16
      %v2097 = vrot.slane %v2095, 6
      %v2098 = vor.u32 %v2094, %v2097
      %v2099 = vsel %vm1903, %v2090, %v2098
      %v2101 = vshrl.u32 %v1874, 16
      %v2103 = vrot.slane %v2101, 5
      %v2104 = vshll.u32 %v1874, 16
      %v2106 = vrot.slane %v2104, 6
      %v2107 = vor.u32 %v2103, %v2106
      %v2108 = vrot.slane %v2107, 4
      %v2110 = vshrl.u32 %v1875, 16
      %v2112 = vrot.slane %v2110, 5
      %v2113 = vshll.u32 %v1875, 16
      %v2115 = vrot.slane %v2113, 6
      %v2116 = vor.u32 %v2112, %v2115
      %v2117 = vsel %vm1903, %v2108, %v2116
      %v2118 = vrot.slane %v2116, 4
      %v2120 = vshrl.u32 %v1876, 16
      %v2122 = vrot.slane %v2120, 5
      %v2123 = vshll.u32 %v1876, 16
      %v2125 = vrot.slane %v2123, 6
      %v2126 = vor.u32 %v2122, %v2125
      %v2127 = vsel %vm1903, %v2118, %v2126
      %v2129 = vshrl.u32 %v1877, 16
      %v2131 = vrot.slane %v2129, 5
      %v2132 = vshll.u32 %v1877, 16
      %v2134 = vrot.slane %v2132, 6
      %v2135 = vor.u32 %v2131, %v2134
      %v2136 = vrot.slane %v2135, 4
      %v2138 = vshrl.u32 %v1878, 16
      %v2140 = vrot.slane %v2138, 5
      %v2141 = vshll.u32 %v1878, 16
      %v2143 = vrot.slane %v2141, 6
      %v2144 = vor.u32 %v2140, %v2143
      %v2145 = vsel %vm1903, %v2136, %v2144
      %v2146 = vrot.slane %v2144, 4
      %v2148 = vshrl.u32 %v1879, 16
      %v2150 = vrot.slane %v2148, 5
      %v2151 = vshll.u32 %v1879, 16
      %v2153 = vrot.slane %v2151, 6
      %v2154 = vor.u32 %v2150, %v2153
      %v2155 = vsel %vm1903, %v2146, %v2154
      %v2157 = vshrl.u32 %v1880, 16
      %v2159 = vrot.slane %v2157, 5
      %v2160 = vshll.u32 %v1880, 16
      %v2162 = vrot.slane %v2160, 6
      %v2163 = vor.u32 %v2159, %v2162
      %v2164 = vrot.slane %v2163, 4
      %v2166 = vshrl.u32 %v1881, 16
      %v2168 = vrot.slane %v2166, 5
      %v2169 = vshll.u32 %v1881, 16
      %v2171 = vrot.slane %v2169, 6
      %v2172 = vor.u32 %v2168, %v2171
      %v2173 = vsel %vm1903, %v2164, %v2172
      %v2174 = vrot.slane %v2172, 4
      %v2176 = vshrl.u32 %v1882, 16
      %v2178 = vrot.slane %v2176, 5
      %v2179 = vshll.u32 %v1882, 16
      %v2181 = vrot.slane %v2179, 6
      %v2182 = vor.u32 %v2178, %v2181
      %v2183 = vsel %vm1903, %v2174, %v2182
      %v2185 = vshrl.u32 %v1883, 16
      %v2187 = vrot.slane %v2185, 5
      %v2188 = vshll.u32 %v1883, 16
      %v2190 = vrot.slane %v2188, 6
      %v2191 = vor.u32 %v2187, %v2190
      %v2192 = vrot.slane %v2191, 4
      %v2194 = vshrl.u32 %v1884, 16
      %v2196 = vrot.slane %v2194, 5
      %v2197 = vshll.u32 %v1884, 16
      %v2199 = vrot.slane %v2197, 6
      %v2200 = vor.u32 %v2196, %v2199
      %v2201 = vsel %vm1903, %v2192, %v2200
      %v2202 = vrot.slane %v2200, 4
      %v2204 = vshrl.u32 %v1885, 16
      %v2206 = vrot.slane %v2204, 5
      %v2207 = vshll.u32 %v1885, 16
      %v2209 = vrot.slane %v2207, 6
      %v2210 = vor.u32 %v2206, %v2209
      %v2211 = vsel %vm1903, %v2202, %v2210
      %v2213 = vshrl.u32 %v1886, 16
      %v2215 = vrot.slane %v2213, 5
      %v2216 = vshll.u32 %v1886, 16
      %v2218 = vrot.slane %v2216, 6
      %v2219 = vor.u32 %v2215, %v2218
      %v2220 = vrot.slane %v2219, 4
      %v2222 = vshrl.u32 %v1887, 16
      %v2224 = vrot.slane %v2222, 5
      %v2225 = vshll.u32 %v1887, 16
      %v2227 = vrot.slane %v2225, 6
      %v2228 = vor.u32 %v2224, %v2227
      %v2229 = vsel %vm1903, %v2220, %v2228
      %v2230 = vrot.slane %v2228, 4
      %v2232 = vshrl.u32 %v1888, 16
      %v2234 = vrot.slane %v2232, 5
      %v2235 = vshll.u32 %v1888, 16
      %v2237 = vrot.slane %v2235, 6
      %v2238 = vor.u32 %v2234, %v2237
      %v2239 = vsel %vm1903, %v2230, %v2238
      %v2241 = vshrl.u32 %v1889, 16
      %v2243 = vrot.slane %v2241, 5
      %v2244 = vshll.u32 %v1889, 16
      %v2246 = vrot.slane %v2244, 6
      %v2247 = vor.u32 %v2243, %v2246
      %v2248 = vrot.slane %v2247, 4
      %v2250 = vshrl.u32 %v1890, 16
      %v2252 = vrot.slane %v2250, 5
      %v2253 = vshll.u32 %v1890, 16
      %v2255 = vrot.slane %v2253, 6
      %v2256 = vor.u32 %v2252, %v2255
      %v2257 = vsel %vm1903, %v2248, %v2256
      %v2258 = vrot.slane %v2256, 4
      %v2260 = vshrl.u32 %v1891, 16
      %v2262 = vrot.slane %v2260, 5
      %v2263 = vshll.u32 %v1891, 16
      %v2265 = vrot.slane %v2263, 6
      %v2266 = vor.u32 %v2262, %v2265
      %v2267 = vsel %vm1903, %v2258, %v2266
      %v2269 = vshrl.u32 %v1892, 16
      %v2271 = vrot.slane %v2269, 5
      %v2272 = vshll.u32 %v1892, 16
      %v2274 = vrot.slane %v2272, 6
      %v2275 = vor.u32 %v2271, %v2274
      %v2276 = vrot.slane %v2275, 4
      %v2278 = vshrl.u32 %v1893, 16
      %v2280 = vrot.slane %v2278, 5
      %v2281 = vshll.u32 %v1893, 16
      %v2283 = vrot.slane %v2281, 6
      %v2284 = vor.u32 %v2280, %v2283
      %v2285 = vsel %vm1903, %v2276, %v2284
      %v2286 = vrot.slane %v2284, 4
      %v2288 = vshrl.u32 %v1894, 16
      %v2290 = vrot.slane %v2288, 5
      %v2291 = vshll.u32 %v1894, 16
      %v2293 = vrot.slane %v2291, 6
      %v2294 = vor.u32 %v2290, %v2293
      %v2295 = vsel %vm1903, %v2286, %v2294
      %v2297 = vshrl.u32 %v1895, 16
      %v2299 = vrot.slane %v2297, 5
      %v2300 = vshll.u32 %v1895, 16
      %v2302 = vrot.slane %v2300, 6
      %v2303 = vor.u32 %v2299, %v2302
      %v2304 = vrot.slane %v2303, 4
      %v2306 = vshrl.u32 %v1896, 16
      %v2308 = vrot.slane %v2306, 5
      %v2309 = vshll.u32 %v1896, 16
      %v2311 = vrot.slane %v2309, 6
      %v2312 = vor.u32 %v2308, %v2311
      %v2313 = vsel %vm1903, %v2304, %v2312
      %v2314 = vrot.slane %v2312, 4
      %v2316 = vshrl.u32 %v1897, 16
      %v2318 = vrot.slane %v2316, 5
      %v2319 = vshll.u32 %v1897, 16
      %v2321 = vrot.slane %v2319, 6
      %v2322 = vor.u32 %v2318, %v2321
      %v2323 = vsel %vm1903, %v2314, %v2322
      %v2325 = vshrl.u32 %v1898, 16
      %v2327 = vrot.slane %v2325, 5
      %v2328 = vshll.u32 %v1898, 16
      %v2330 = vrot.slane %v2328, 6
      %v2331 = vor.u32 %v2327, %v2330
      %v2332 = vrot.slane %v2331, 4
      %v2334 = vshrl.u32 %v1899, 16
      %v2336 = vrot.slane %v2334, 5
      %v2337 = vshll.u32 %v1899, 16
      %v2339 = vrot.slane %v2337, 6
      %v2340 = vor.u32 %v2336, %v2339
      %v2341 = vsel %vm1903, %v2332, %v2340
      %v2342 = vrot.slane %v2340, 4
      %v2344 = vshrl.u32 %v1900, 16
      %v2346 = vrot.slane %v2344, 5
      %v2347 = vshll.u32 %v1900, 16
      %v2349 = vrot.slane %v2347, 6
      %v2350 = vor.u32 %v2346, %v2349
      %v2351 = vsel %vm1903, %v2342, %v2350
      %v2352 = vunpack.c.l.b16 %v1921
      %v2353 = vunpack.c.l.b16 %v1931
      %v2354 = vunpack.c.l.b16 %v1949
      %v2355 = vunpack.c.l.b16 %v1959
      %v2356 = vunpack.c.l.b16 %v1977
      %v2357 = vunpack.c.l.b16 %v1987
      %v2358 = vunpack.c.l.b16 %v2005
      %v2359 = vunpack.c.l.b16 %v2015
      %v2360 = vunpack.c.l.b16 %v2033
      %v2361 = vunpack.c.l.b16 %v2043
      %v2362 = vunpack.c.l.b16 %v2061
      %v2363 = vunpack.c.l.b16 %v2071
      %v2364 = vunpack.c.l.b16 %v2089
      %v2365 = vunpack.c.l.b16 %v2099
      %v2366 = vunpack.c.l.b16 %v2117
      %v2367 = vunpack.c.l.b16 %v2127
      %v2368 = vunpack.c.l.b16 %v2145
      %v2369 = vunpack.c.l.b16 %v2155
      %v2370 = vunpack.c.l.b16 %v2173
      %v2371 = vunpack.c.l.b16 %v2183
      %v2372 = vunpack.c.l.b16 %v2201
      %v2373 = vunpack.c.l.b16 %v2211
      %v2374 = vunpack.c.l.b16 %v2229
      %v2375 = vunpack.c.l.b16 %v2239
      %v2376 = vunpack.c.l.b16 %v2257
      %v2377 = vunpack.c.l.b16 %v2267
      %v2378 = vunpack.c.l.b16 %v2285
      %v2379 = vunpack.c.l.b16 %v2295
      %v2380 = vunpack.c.l.b16 %v2313
      %v2381 = vunpack.c.l.b16 %v2323
      %v2382 = vunpack.c.l.b16 %v2341
      %v2383 = vunpack.c.l.b16 %v2351
      %v2384 = vpack.c.b16 %v2353, %v2352
      %v2385 = vpack.c.b16 %v2355, %v2354
      %v2386 = vpack.c.b16 %v2357, %v2356
      %v2387 = vpack.c.b16 %v2359, %v2358
      %v2388 = vpack.c.b16 %v2361, %v2360
      %v2389 = vpack.c.b16 %v2363, %v2362
      %v2390 = vpack.c.b16 %v2365, %v2364
      %v2391 = vpack.c.b16 %v2367, %v2366
      %v2392 = vpack.c.b16 %v2369, %v2368
      %v2393 = vpack.c.b16 %v2371, %v2370
      %v2394 = vpack.c.b16 %v2373, %v2372
      %v2395 = vpack.c.b16 %v2375, %v2374
      %v2396 = vpack.c.b16 %v2377, %v2376
      %v2397 = vpack.c.b16 %v2379, %v2378
      %v2398 = vpack.c.b16 %v2381, %v2380
      %v2399 = vpack.c.b16 %v2383, %v2382
      %2416 = vst [vmem:[#allocation2 + $0x10] sm:$0xff] %v2384
      %2417 = vst [vmem:[#allocation2 + $0x28] sm:$0xff] %v2385
      %2418 = vst [vmem:[#allocation2 + $0x40] sm:$0xff] %v2386
      %2419 = vst [vmem:[#allocation2 + $0x58] sm:$0xff] %v2387
      %2420 = vst [vmem:[#allocation2 + $0x70] sm:$0xff] %v2388
      %2421 = vst [vmem:[#allocation2 + $0x88] sm:$0xff] %v2389
      %2422 = vst [vmem:[#allocation2 + $0xa0] sm:$0xff] %v2390
      %2423 = vst [vmem:[#allocation2 + $0xb8] sm:$0xff] %v2391
      %2424 = vst [vmem:[#allocation2 + $0xd0] sm:$0xff] %v2392
      %2425 = vst [vmem:[#allocation2 + $0xe8] sm:$0xff] %v2393
      %2426 = vst [vmem:[#allocation2 + $0x100] sm:$0xff] %v2394
      %2427 = vst [vmem:[#allocation2 + $0x118] sm:$0xff] %v2395
      %2428 = vst [vmem:[#allocation2 + $0x130] sm:$0xff] %v2396
      %2429 = vst [vmem:[#allocation2 + $0x148] sm:$0xff] %v2397
      %2430 = vst [vmem:[#allocation2 + $0x160] sm:$0xff] %v2398
      %2431 = vst [vmem:[#allocation2 + $0x178] sm:$0xff] %v2399
      %v2432 = vld [vmem:[#allocation2] sm:$0xff]
      %v2433 = vld [vmem:[#allocation2 + $0x8] sm:$0xff]
      %v2434 = vld [vmem:[#allocation2 + $0x10] sm:$0xff]
      %v2435 = vld [vmem:[#allocation2 + $0x18] sm:$0xff]
      %v2436 = vld [vmem:[#allocation2 + $0x20] sm:$0xff]
      %v2437 = vld [vmem:[#allocation2 + $0x28] sm:$0xff]
      %v2438 = vld [vmem:[#allocation2 + $0x30] sm:$0xff]
      %v2439 = vld [vmem:[#allocation2 + $0x38] sm:$0xff]
      %v2440 = vld [vmem:[#allocation2 + $0x40] sm:$0xff]
      %v2441 = vld [vmem:[#allocation2 + $0x48] sm:$0xff]
      %v2442 = vld [vmem:[#allocation2 + $0x50] sm:$0xff]
      %v2443 = vld [vmem:[#allocation2 + $0x58] sm:$0xff]
      %v2444 = vld [vmem:[#allocation2 + $0x60] sm:$0xff]
      %v2445 = vld [vmem:[#allocation2 + $0x68] sm:$0xff]
      %v2446 = vld [vmem:[#allocation2 + $0x70] sm:$0xff]
      %v2447 = vld [vmem:[#allocation2 + $0x78] sm:$0xff]
      %v2448 = vld [vmem:[#allocation2 + $0x80] sm:$0xff]
      %v2449 = vld [vmem:[#allocation2 + $0x88] sm:$0xff]
      %v2450 = vld [vmem:[#allocation2 + $0x90] sm:$0xff]
      %v2451 = vld [vmem:[#allocation2 + $0x98] sm:$0xff]
      %v2452 = vld [vmem:[#allocation2 + $0xa0] sm:$0xff]
      %v2453 = vld [vmem:[#allocation2 + $0xa8] sm:$0xff]
      %v2454 = vld [vmem:[#allocation2 + $0xb0] sm:$0xff]
      %v2455 = vld [vmem:[#allocation2 + $0xb8] sm:$0xff]
      %v2456 = vld [vmem:[#allocation2 + $0xc0] sm:$0xff]
      %v2457 = vld [vmem:[#allocation2 + $0xc8] sm:$0xff]
      %v2458 = vld [vmem:[#allocation2 + $0xd0] sm:$0xff]
      %v2459 = vld [vmem:[#allocation2 + $0xd8] sm:$0xff]
      %v2460 = vld [vmem:[#allocation2 + $0xe0] sm:$0xff]
      %v2461 = vld [vmem:[#allocation2 + $0xe8] sm:$0xff]
      %v2462 = vld [vmem:[#allocation2 + $0xf0] sm:$0xff]
      %v2463 = vld [vmem:[#allocation2 + $0xf8] sm:$0xff]
      %v2464 = vld [vmem:[#allocation2 + $0x100] sm:$0xff]
      %v2465 = vld [vmem:[#allocation2 + $0x108] sm:$0xff]
      %v2466 = vld [vmem:[#allocation2 + $0x110] sm:$0xff]
      %v2467 = vld [vmem:[#allocation2 + $0x118] sm:$0xff]
      %v2468 = vld [vmem:[#allocation2 + $0x120] sm:$0xff]
      %v2469 = vld [vmem:[#allocation2 + $0x128] sm:$0xff]
      %v2470 = vld [vmem:[#allocation2 + $0x130] sm:$0xff]
      %v2471 = vld [vmem:[#allocation2 + $0x138] sm:$0xff]
      %v2472 = vld [vmem:[#allocation2 + $0x140] sm:$0xff]
      %v2473 = vld [vmem:[#allocation2 + $0x148] sm:$0xff]
      %v2474 = vld [vmem:[#allocation2 + $0x150] sm:$0xff]
      %v2475 = vld [vmem:[#allocation2 + $0x158] sm:$0xff]
      %v2476 = vld [vmem:[#allocation2 + $0x160] sm:$0xff]
      %v2477 = vld [vmem:[#allocation2 + $0x168] sm:$0xff]
      %v2478 = vld [vmem:[#allocation2 + $0x170] sm:$0xff]
      %v2479 = vld [vmem:[#allocation2 + $0x178] sm:$0xff]
      %v2480 = vld [vmem:[%s3] sm:$0xf]
      %v2481 = vld [vmem:[%s3 + $0x4] sm:$0xf]
      %v2482 = vld [vmem:[%s3 + $0x8] sm:$0xf]
      %v2483 = vld [vmem:[%s3 + $0xc] sm:$0xf]
      %v2484 = vld [vmem:[%s3 + $0x10] sm:$0xf]
      %v2485 = vld [vmem:[%s3 + $0x14] sm:$0xf]
      %v2486 = vld [vmem:[%s3 + $0x18] sm:$0xf]
      %v2487 = vld [vmem:[%s3 + $0x1c] sm:$0xf]
      %v2488 = vld [vmem:[%s3 + $0x20] sm:$0xf]
      %v2489 = vld [vmem:[%s3 + $0x24] sm:$0xf]
      %v2490 = vld [vmem:[%s3 + $0x28] sm:$0xf]
      %v2491 = vld [vmem:[%s3 + $0x2c] sm:$0xf]
      %v2492 = vld [vmem:[%s3 + $0x30] sm:$0xf]
      %v2493 = vld [vmem:[%s3 + $0x34] sm:$0xf]
      %v2494 = vld [vmem:[%s3 + $0x38] sm:$0xf]
      %v2495 = vld [vmem:[%s3 + $0x3c] sm:$0xf]
      %v2496 = vld [vmem:[%s3 + $0x40] sm:$0xf]
      %v2497 = vld [vmem:[%s3 + $0x44] sm:$0xf]
      %v2498 = vld [vmem:[%s3 + $0x48] sm:$0xf]
      %v2499 = vld [vmem:[%s3 + $0x4c] sm:$0xf]
      %v2500 = vld [vmem:[%s3 + $0x50] sm:$0xf]
      %v2501 = vld [vmem:[%s3 + $0x54] sm:$0xf]
      %v2502 = vld [vmem:[%s3 + $0x58] sm:$0xf]
      %v2503 = vld [vmem:[%s3 + $0x5c] sm:$0xf]
      %v2504 = vld [vmem:[%s3 + $0x60] sm:$0xf]
      %v2505 = vld [vmem:[%s3 + $0x64] sm:$0xf]
      %v2506 = vld [vmem:[%s3 + $0x68] sm:$0xf]
      %v2507 = vld [vmem:[%s3 + $0x6c] sm:$0xf]
      %v2508 = vld [vmem:[%s3 + $0x70] sm:$0xf]
      %v2509 = vld [vmem:[%s3 + $0x74] sm:$0xf]
      %v2510 = vld [vmem:[%s3 + $0x78] sm:$0xf]
      %v2511 = vld [vmem:[%s3 + $0x7c] sm:$0xf]
      %v2512 = vld [vmem:[%s3 + $0x80] sm:$0xf]
      %v2513 = vld [vmem:[%s3 + $0x84] sm:$0xf]
      %v2514 = vld [vmem:[%s3 + $0x88] sm:$0xf]
      %v2515 = vld [vmem:[%s3 + $0x8c] sm:$0xf]
      %v2516 = vld [vmem:[%s3 + $0x90] sm:$0xf]
      %v2517 = vld [vmem:[%s3 + $0x94] sm:$0xf]
      %v2518 = vld [vmem:[%s3 + $0x98] sm:$0xf]
      %v2519 = vld [vmem:[%s3 + $0x9c] sm:$0xf]
      %v2520 = vld [vmem:[%s3 + $0xa0] sm:$0xf]
      %v2521 = vld [vmem:[%s3 + $0xa4] sm:$0xf]
      %v2522 = vld [vmem:[%s3 + $0xa8] sm:$0xf]
      %v2523 = vld [vmem:[%s3 + $0xac] sm:$0xf]
      %v2524 = vld [vmem:[%s3 + $0xb0] sm:$0xf]
      %v2525 = vld [vmem:[%s3 + $0xb4] sm:$0xf]
      %v2526 = vld [vmem:[%s3 + $0xb8] sm:$0xf]
      %v2527 = vld [vmem:[%s3 + $0xbc] sm:$0xf]
      %v2576 = vunpack.c.l.b16 %v2480
      %v2577 = vunpack.c.l.b16 %v2481
      %v2578 = vunpack.c.l.b16 %v2482
      %v2579 = vunpack.c.l.b16 %v2483
      %v2580 = vunpack.c.l.b16 %v2484
      %v2581 = vunpack.c.l.b16 %v2485
      %v2582 = vunpack.c.l.b16 %v2486
      %v2583 = vunpack.c.l.b16 %v2487
      %v2584 = vunpack.c.l.b16 %v2488
      %v2585 = vunpack.c.l.b16 %v2489
      %v2586 = vunpack.c.l.b16 %v2490
      %v2587 = vunpack.c.l.b16 %v2491
      %v2588 = vunpack.c.l.b16 %v2492
      %v2589 = vunpack.c.l.b16 %v2493
      %v2590 = vunpack.c.l.b16 %v2494
      %v2591 = vunpack.c.l.b16 %v2495
      %v2592 = vunpack.c.l.b16 %v2496
      %v2593 = vunpack.c.l.b16 %v2497
      %v2594 = vunpack.c.l.b16 %v2498
      %v2595 = vunpack.c.l.b16 %v2499
      %v2596 = vunpack.c.l.b16 %v2500
      %v2597 = vunpack.c.l.b16 %v2501
      %v2598 = vunpack.c.l.b16 %v2502
      %v2599 = vunpack.c.l.b16 %v2503
      %v2600 = vunpack.c.l.b16 %v2504
      %v2601 = vunpack.c.l.b16 %v2505
      %v2602 = vunpack.c.l.b16 %v2506
      %v2603 = vunpack.c.l.b16 %v2507
      %v2604 = vunpack.c.l.b16 %v2508
      %v2605 = vunpack.c.l.b16 %v2509
      %v2606 = vunpack.c.l.b16 %v2510
      %v2607 = vunpack.c.l.b16 %v2511
      %v2608 = vunpack.c.l.b16 %v2512
      %v2609 = vunpack.c.l.b16 %v2513
      %v2610 = vunpack.c.l.b16 %v2514
      %v2611 = vunpack.c.l.b16 %v2515
      %v2612 = vunpack.c.l.b16 %v2516
      %v2613 = vunpack.c.l.b16 %v2517
      %v2614 = vunpack.c.l.b16 %v2518
      %v2615 = vunpack.c.l.b16 %v2519
      %v2616 = vunpack.c.l.b16 %v2520
      %v2617 = vunpack.c.l.b16 %v2521
      %v2618 = vunpack.c.l.b16 %v2522
      %v2619 = vunpack.c.l.b16 %v2523
      %v2620 = vunpack.c.l.b16 %v2524
      %v2621 = vunpack.c.l.b16 %v2525
      %v2622 = vunpack.c.l.b16 %v2526
      %v2623 = vunpack.c.l.b16 %v2527
      %v2624 = vpack.c.b16 %v2577, %v2576
      %v2625 = vpack.c.b16 %v2579, %v2578
      %v2626 = vpack.c.b16 %v2581, %v2580
      %v2627 = vpack.c.b16 %v2583, %v2582
      %v2628 = vpack.c.b16 %v2585, %v2584
      %v2629 = vpack.c.b16 %v2587, %v2586
      %v2630 = vpack.c.b16 %v2589, %v2588
      %v2631 = vpack.c.b16 %v2591, %v2590
      %v2632 = vpack.c.b16 %v2593, %v2592
      %v2633 = vpack.c.b16 %v2595, %v2594
      %v2634 = vpack.c.b16 %v2597, %v2596
      %v2635 = vpack.c.b16 %v2599, %v2598
      %v2636 = vpack.c.b16 %v2601, %v2600
      %v2637 = vpack.c.b16 %v2603, %v2602
      %v2638 = vpack.c.b16 %v2605, %v2604
      %v2639 = vpack.c.b16 %v2607, %v2606
      %v2640 = vpack.c.b16 %v2609, %v2608
      %v2641 = vpack.c.b16 %v2611, %v2610
      %v2642 = vpack.c.b16 %v2613, %v2612
      %v2643 = vpack.c.b16 %v2615, %v2614
      %v2644 = vpack.c.b16 %v2617, %v2616
      %v2645 = vpack.c.b16 %v2619, %v2618
      %v2646 = vpack.c.b16 %v2621, %v2620
      %v2647 = vpack.c.b16 %v2623, %v2622
      %2672 = vmatprep.subr.bf16.mxu0 0
      %2673 = vmatpush1.bf16.msra.mxu0 %v2624
      %2674 = vmatprep.subr.bf16.mxu0 0
      %2675 = vmatpush1.bf16.msra.mxu0 %v2625
      %2676 = vmatprep.subr.bf16.mxu0 0
      %2677 = vmatpush1.bf16.msra.mxu0 %v2626
      %2678 = vmatprep.subr.bf16.mxu0 0
      %2679 = vmatpush1.bf16.msra.mxu0 %v2627
      %2680 = vmatprep.subr.bf16.mxu0 0
      %2681 = vmatpush1.bf16.msra.mxu0 %v2628
      %2682 = vmatprep.subr.bf16.mxu0 0
      %2683 = vmatpush1.bf16.msra.mxu0 %v2629
      %2684 = vmatprep.subr.bf16.mxu0 0
      %2685 = vmatpush1.bf16.msra.mxu0 %v2630
      %2686 = vmatprep.subr.bf16.mxu0 0
      %2687 = vmatpush1.bf16.msra.mxu0 %v2631
      %2688 = vmatprep.subr.bf16.mxu0 0
      %2689 = vmatpush1.bf16.msra.mxu0 %v2632
      %2690 = vmatprep.subr.bf16.mxu0 0
      %2691 = vmatpush1.bf16.msra.mxu0 %v2633
      %2692 = vmatprep.subr.bf16.mxu0 0
      %2693 = vmatpush1.bf16.msra.mxu0 %v2634
      %2694 = vmatprep.subr.bf16.mxu0 0
      %2695 = vmatpush1.bf16.msra.mxu0 %v2635
      %2696 = vmatprep.subr.bf16.mxu0 0
      %2697 = vmatpush1.bf16.msra.mxu0 %v2636
      %2698 = vmatprep.subr.bf16.mxu0 0
      %2699 = vmatpush1.bf16.msra.mxu0 %v2637
      %2700 = vmatprep.subr.bf16.mxu0 0
      %2701 = vmatpush1.bf16.msra.mxu0 %v2638
      %2702 = vmatprep.subr.bf16.mxu0 0
      %2703 = vmatpush1.bf16.msra.mxu0 %v2639
      %2704 = vmatprep.mubr.bf16.mxu0 %v2433
      %2705 = vmatmul.mubr.bf16.gmra.mrb[0].mxu0 %v2432
      %v2706 = vpop.f32.mrb[0].mxu0
      %v2707 = vadd.f32 0.0, %v2706
      %v2708 = vpop.f32.mrb[0].mxu0
      %v2709 = vpop.f32.mrb[0].mxu0
      %v2710 = vadd.f32 0.0, %v2709
      %v2711 = vpop.f32.mrb[0].mxu0
      %2712 = vmatprep.mubr.bf16.mxu0 %v2436
      %2713 = vmatmul.mubr.bf16.gmra.mrb[0].mxu0 %v2435
      %v2714 = vpop.f32.mrb[0].mxu0
      %v2715 = vadd.f32 0.0, %v2714
      %v2716 = vpop.f32.mrb[0].mxu0
      %v2717 = vpop.f32.mrb[0].mxu0
      %v2718 = vadd.f32 0.0, %v2717
      %v2719 = vpop.f32.mrb[0].mxu0
      %2720 = vmatprep.mubr.bf16.mxu0 %v2439
      %2721 = vmatmul.mubr.bf16.gmra.mrb[0].mxu0 %v2438
      %v2722 = vpop.f32.mrb[0].mxu0
      %v2723 = vadd.f32 0.0, %v2722
      %v2724 = vpop.f32.mrb[0].mxu0
      %v2725 = vpop.f32.mrb[0].mxu0
      %v2726 = vadd.f32 0.0, %v2725
      %v2727 = vpop.f32.mrb[0].mxu0
      %2728 = vmatprep.mubr.bf16.mxu0 %v2442
      %2729 = vmatmul.mubr.bf16.gmra.mrb[0].mxu0 %v2441
      %v2730 = vpop.f32.mrb[0].mxu0
      %v2731 = vadd.f32 0.0, %v2730
      %v2732 = vpop.f32.mrb[0].mxu0
      %v2733 = vpop.f32.mrb[0].mxu0
      %v2734 = vadd.f32 0.0, %v2733
      %v2735 = vpop.f32.mrb[0].mxu0
      %2736 = vmatprep.mubr.bf16.mxu0 %v2445
      %2737 = vmatmul.mubr.bf16.gmra.mrb[0].mxu0 %v2444
      %v2738 = vpop.f32.mrb[0].mxu0
      %v2739 = vadd.f32 0.0, %v2738
      %v2740 = vpop.f32.mrb[0].mxu0
      %v2741 = vpop.f32.mrb[0].mxu0
      %v2742 = vadd.f32 0.0, %v2741
      %v2743 = vpop.f32.mrb[0].mxu0
      %2744 = vmatprep.mubr.bf16.mxu0 %v2448
      %2745 = vmatmul.mubr.bf16.gmra.mrb[0].mxu0 %v2447
      %v2746 = vpop.f32.mrb[0].mxu0
      %v2747 = vadd.f32 0.0, %v2746
      %v2748 = vpop.f32.mrb[0].mxu0
      %v2749 = vpop.f32.mrb[0].mxu0
      %v2750 = vadd.f32 0.0, %v2749
      %v2751 = vpop.f32.mrb[0].mxu0
      %2752 = vmatprep.mubr.bf16.mxu0 %v2451
      %2753 = vmatmul.mubr.bf16.gmra.mrb[0].mxu0 %v2450
      %v2754 = vpop.f32.mrb[0].mxu0
      %v2755 = vadd.f32 0.0, %v2754
      %v2756 = vpop.f32.mrb[0].mxu0
      %v2757 = vpop.f32.mrb[0].mxu0
      %v2758 = vadd.f32 0.0, %v2757
      %v2759 = vpop.f32.mrb[0].mxu0
      %2760 = vmatprep.mubr.bf16.mxu0 %v2454
      %2761 = vmatmul.mubr.bf16.gmra.mrb[0].mxu0 %v2453
      %v2762 = vpop.f32.mrb[0].mxu0
      %v2763 = vadd.f32 0.0, %v2762
      %v2764 = vpop.f32.mrb[0].mxu0
      %v2765 = vpop.f32.mrb[0].mxu0
      %v2766 = vadd.f32 0.0, %v2765
      %v2767 = vpop.f32.mrb[0].mxu0
      %2768 = vmatprep.mubr.bf16.mxu0 %v2457
      %2769 = vmatmul.mubr.bf16.gmra.mrb[0].mxu0 %v2456
      %v2770 = vpop.f32.mrb[0].mxu0
      %v2771 = vadd.f32 0.0, %v2770
      %v2772 = vpop.f32.mrb[0].mxu0
      %v2773 = vpop.f32.mrb[0].mxu0
      %v2774 = vadd.f32 0.0, %v2773
      %v2775 = vpop.f32.mrb[0].mxu0
      %2776 = vmatprep.mubr.bf16.mxu0 %v2460
      %2777 = vmatmul.mubr.bf16.gmra.mrb[0].mxu0 %v2459
      %v2778 = vpop.f32.mrb[0].mxu0
      %v2779 = vadd.f32 0.0, %v2778
      %v2780 = vpop.f32.mrb[0].mxu0
      %v2781 = vpop.f32.mrb[0].mxu0
      %v2782 = vadd.f32 0.0, %v2781
      %v2783 = vpop.f32.mrb[0].mxu0
      %2784 = vmatprep.mubr.bf16.mxu0 %v2463
      %2785 = vmatmul.mubr.bf16.gmra.mrb[0].mxu0 %v2462
      %v2786 = vpop.f32.mrb[0].mxu0
      %v2787 = vadd.f32 0.0, %v2786
      %v2788 = vpop.f32.mrb[0].mxu0
      %v2789 = vpop.f32.mrb[0].mxu0
      %v2790 = vadd.f32 0.0, %v2789
      %v2791 = vpop.f32.mrb[0].mxu0
      %2792 = vmatprep.mubr.bf16.mxu0 %v2466
      %2793 = vmatmul.mubr.bf16.gmra.mrb[0].mxu0 %v2465
      %v2794 = vpop.f32.mrb[0].mxu0
      %v2795 = vadd.f32 0.0, %v2794
      %v2796 = vpop.f32.mrb[0].mxu0
      %v2797 = vpop.f32.mrb[0].mxu0
      %v2798 = vadd.f32 0.0, %v2797
      %v2799 = vpop.f32.mrb[0].mxu0
      %2800 = vmatprep.mubr.bf16.mxu0 %v2469
      %2801 = vmatmul.mubr.bf16.gmra.mrb[0].mxu0 %v2468
      %v2802 = vpop.f32.mrb[0].mxu0
      %v2803 = vadd.f32 0.0, %v2802
      %v2804 = vpop.f32.mrb[0].mxu0
      %v2805 = vpop.f32.mrb[0].mxu0
      %v2806 = vadd.f32 0.0, %v2805
      %v2807 = vpop.f32.mrb[0].mxu0
      %2808 = vmatprep.mubr.bf16.mxu0 %v2472
      %2809 = vmatmul.mubr.bf16.gmra.mrb[0].mxu0 %v2471
      %v2810 = vpop.f32.mrb[0].mxu0
      %v2811 = vadd.f32 0.0, %v2810
      %v2812 = vpop.f32.mrb[0].mxu0
      %v2813 = vpop.f32.mrb[0].mxu0
      %v2814 = vadd.f32 0.0, %v2813
      %v2815 = vpop.f32.mrb[0].mxu0
      %2816 = vmatprep.mubr.bf16.mxu0 %v2475
      %2817 = vmatmul.mubr.bf16.gmra.mrb[0].mxu0 %v2474
      %v2818 = vpop.f32.mrb[0].mxu0
      %v2819 = vadd.f32 0.0, %v2818
      %v2820 = vpop.f32.mrb[0].mxu0
      %v2821 = vpop.f32.mrb[0].mxu0
      %v2822 = vadd.f32 0.0, %v2821
      %v2823 = vpop.f32.mrb[0].mxu0
      %2824 = vmatprep.mubr.bf16.mxu0 %v2478
      %2825 = vmatmul.mubr.bf16.gmra.mrb[0].mxu0 %v2477
      %v2826 = vpop.f32.mrb[0].mxu0
      %v2827 = vadd.f32 0.0, %v2826
      %v2828 = vpop.f32.mrb[0].mxu0
      %v2829 = vpop.f32.mrb[0].mxu0
      %v2830 = vadd.f32 0.0, %v2829
      %v2831 = vpop.f32.mrb[0].mxu0
      %2832 = vdwg.mxu0
      %2833 = vmatprep.subr.bf16.mxu0 0
      %2834 = vmatpush1.bf16.msra.mxu0 %v2640
      %2835 = vmatprep.subr.bf16.mxu0 0
      %2836 = vmatpush1.bf16.msra.mxu0 %v2641
      %2837 = vmatprep.subr.bf16.mxu0 0
      %2838 = vmatpush1.bf16.msra.mxu0 %v2642
      %2839 = vmatprep.subr.bf16.mxu0 0
      %2840 = vmatpush1.bf16.msra.mxu0 %v2643
      %2841 = vmatprep.subr.bf16.mxu0 0
      %2842 = vmatpush1.bf16.msra.mxu0 %v2644
      %2843 = vmatprep.subr.bf16.mxu0 0
      %2844 = vmatpush1.bf16.msra.mxu0 %v2645
      %2845 = vmatprep.subr.bf16.mxu0 0
      %2846 = vmatpush1.bf16.msra.mxu0 %v2646
      %2847 = vmatprep.subr.bf16.mxu0 0
      %2848 = vmatpush1.bf16.msra.mxu0 %v2647
      %2849 = vmatprep.subr.bf16.mxu0 0
      %2850 = vmatpush1.bf16.msra.mxu0 0
      %2851 = vmatprep.subr.bf16.mxu0 0
      %2852 = vmatpush1.bf16.msra.mxu0 0
      %2853 = vmatprep.subr.bf16.mxu0 0
      %2854 = vmatpush1.bf16.msra.mxu0 0
      %2855 = vmatprep.subr.bf16.mxu0 0
      %2856 = vmatpush1.bf16.msra.mxu0 0
      %2857 = vmatprep.subr.bf16.mxu0 0
      %2858 = vmatpush1.bf16.msra.mxu0 0
      %2859 = vmatprep.subr.bf16.mxu0 0
      %2860 = vmatpush1.bf16.msra.mxu0 0
      %2861 = vmatprep.subr.bf16.mxu0 0
      %2862 = vmatpush1.bf16.msra.mxu0 0
      %2863 = vmatprep.subr.bf16.mxu0 0
      %2864 = vmatpush1.bf16.msra.mxu0 0
      %2865 = vmatprep.mubr.bf16.mxu0 0
      %2866 = vmatmul.mubr.bf16.gmra.mrb[0].mxu0 %v2434
      %v2867 = vpop.f32.mrb[0].mxu0
      %v2868 = vadd.f32 %v2707, %v2867
      %v2869 = vpop.f32.mrb[0].mxu0
      %v2870 = vpop.f32.mrb[0].mxu0
      %v2871 = vadd.f32 %v2710, %v2870
      %v2872 = vpop.f32.mrb[0].mxu0
      %2873 = vmatprep.mubr.bf16.mxu0 0
      %2874 = vmatmul.mubr.bf16.gmra.mrb[0].mxu0 %v2437
      %v2875 = vpop.f32.mrb[0].mxu0
      %v2876 = vadd.f32 %v2715, %v2875
      %v2877 = vpop.f32.mrb[0].mxu0
      %v2878 = vpop.f32.mrb[0].mxu0
      %v2879 = vadd.f32 %v2718, %v2878
      %v2880 = vpop.f32.mrb[0].mxu0
      %2881 = vmatprep.mubr.bf16.mxu0 0
      %2882 = vmatmul.mubr.bf16.gmra.mrb[0].mxu0 %v2440
      %v2883 = vpop.f32.mrb[0].mxu0
      %v2884 = vadd.f32 %v2723, %v2883
      %v2885 = vpop.f32.mrb[0].mxu0
      %v2886 = vpop.f32.mrb[0].mxu0
      %v2887 = vadd.f32 %v2726, %v2886
      %v2888 = vpop.f32.mrb[0].mxu0
      %2889 = vmatprep.mubr.bf16.mxu0 0
      %2890 = vmatmul.mubr.bf16.gmra.mrb[0].mxu0 %v2443
      %v2891 = vpop.f32.mrb[0].mxu0
      %v2892 = vadd.f32 %v2731, %v2891
      %v2893 = vpop.f32.mrb[0].mxu0
      %v2894 = vpop.f32.mrb[0].mxu0
      %v2895 = vadd.f32 %v2734, %v2894
      %v2896 = vpop.f32.mrb[0].mxu0
      %2897 = vmatprep.mubr.bf16.mxu0 0
      %2898 = vmatmul.mubr.bf16.gmra.mrb[0].mxu0 %v2446
      %v2899 = vpop.f32.mrb[0].mxu0
      %v2900 = vadd.f32 %v2739, %v2899
      %v2901 = vpop.f32.mrb[0].mxu0
      %v2902 = vpop.f32.mrb[0].mxu0
      %v2903 = vadd.f32 %v2742, %v2902
      %v2904 = vpop.f32.mrb[0].mxu0
      %2905 = vmatprep.mubr.bf16.mxu0 0
      %2906 = vmatmul.mubr.bf16.gmra.mrb[0].mxu0 %v2449
      %v2907 = vpop.f32.mrb[0].mxu0
      %v2908 = vadd.f32 %v2747, %v2907
      %v2909 = vpop.f32.mrb[0].mxu0
      %v2910 = vpop.f32.mrb[0].mxu0
      %v2911 = vadd.f32 %v2750, %v2910
      %v2912 = vpop.f32.mrb[0].mxu0
      %2913 = vmatprep.mubr.bf16.mxu0 0
      %2914 = vmatmul.mubr.bf16.gmra.mrb[0].mxu0 %v2452
      %v2915 = vpop.f32.mrb[0].mxu0
      %v2916 = vadd.f32 %v2755, %v2915
      %v2917 = vpop.f32.mrb[0].mxu0
      %v2918 = vpop.f32.mrb[0].mxu0
      %v2919 = vadd.f32 %v2758, %v2918
      %v2920 = vpop.f32.mrb[0].mxu0
      %2921 = vmatprep.mubr.bf16.mxu0 0
      %2922 = vmatmul.mubr.bf16.gmra.mrb[0].mxu0 %v2455
      %v2923 = vpop.f32.mrb[0].mxu0
      %v2924 = vadd.f32 %v2763, %v2923
      %v2925 = vpop.f32.mrb[0].mxu0
      %v2926 = vpop.f32.mrb[0].mxu0
      %v2927 = vadd.f32 %v2766, %v2926
      %v2928 = vpop.f32.mrb[0].mxu0
      %2929 = vmatprep.mubr.bf16.mxu0 0
      %2930 = vmatmul.mubr.bf16.gmra.mrb[0].mxu0 %v2458
      %v2931 = vpop.f32.mrb[0].mxu0
      %v2932 = vadd.f32 %v2771, %v2931
      %v2933 = vpop.f32.mrb[0].mxu0
      %v2934 = vpop.f32.mrb[0].mxu0
      %v2935 = vadd.f32 %v2774, %v2934
      %v2936 = vpop.f32.mrb[0].mxu0
      %2937 = vmatprep.mubr.bf16.mxu0 0
      %2938 = vmatmul.mubr.bf16.gmra.mrb[0].mxu0 %v2461
      %v2939 = vpop.f32.mrb[0].mxu0
      %v2940 = vadd.f32 %v2779, %v2939
      %v2941 = vpop.f32.mrb[0].mxu0
      %v2942 = vpop.f32.mrb[0].mxu0
      %v2943 = vadd.f32 %v2782, %v2942
      %v2944 = vpop.f32.mrb[0].mxu0
      %2945 = vmatprep.mubr.bf16.mxu0 0
      %2946 = vmatmul.mubr.bf16.gmra.mrb[0].mxu0 %v2464
      %v2947 = vpop.f32.mrb[0].mxu0
      %v2948 = vadd.f32 %v2787, %v2947
      %v2949 = vpop.f32.mrb[0].mxu0
      %v2950 = vpop.f32.mrb[0].mxu0
      %v2951 = vadd.f32 %v2790, %v2950
      %v2952 = vpop.f32.mrb[0].mxu0
      %2953 = vmatprep.mubr.bf16.mxu0 0
      %2954 = vmatmul.mubr.bf16.gmra.mrb[0].mxu0 %v2467
      %v2955 = vpop.f32.mrb[0].mxu0
      %v2956 = vadd.f32 %v2795, %v2955
      %v2957 = vpop.f32.mrb[0].mxu0
      %v2958 = vpop.f32.mrb[0].mxu0
      %v2959 = vadd.f32 %v2798, %v2958
      %v2960 = vpop.f32.mrb[0].mxu0
      %2961 = vmatprep.mubr.bf16.mxu0 0
      %2962 = vmatmul.mubr.bf16.gmra.mrb[0].mxu0 %v2470
      %v2963 = vpop.f32.mrb[0].mxu0
      %v2964 = vadd.f32 %v2803, %v2963
      %v2965 = vpop.f32.mrb[0].mxu0
      %v2966 = vpop.f32.mrb[0].mxu0
      %v2967 = vadd.f32 %v2806, %v2966
      %v2968 = vpop.f32.mrb[0].mxu0
      %2969 = vmatprep.mubr.bf16.mxu0 0
      %2970 = vmatmul.mubr.bf16.gmra.mrb[0].mxu0 %v2473
      %v2971 = vpop.f32.mrb[0].mxu0
      %v2972 = vadd.f32 %v2811, %v2971
      %v2973 = vpop.f32.mrb[0].mxu0
      %v2974 = vpop.f32.mrb[0].mxu0
      %v2975 = vadd.f32 %v2814, %v2974
      %v2976 = vpop.f32.mrb[0].mxu0
      %2977 = vmatprep.mubr.bf16.mxu0 0
      %2978 = vmatmul.mubr.bf16.gmra.mrb[0].mxu0 %v2476
      %v2979 = vpop.f32.mrb[0].mxu0
      %v2980 = vadd.f32 %v2819, %v2979
      %v2981 = vpop.f32.mrb[0].mxu0
      %v2982 = vpop.f32.mrb[0].mxu0
      %v2983 = vadd.f32 %v2822, %v2982
      %v2984 = vpop.f32.mrb[0].mxu0
      %2985 = vmatprep.mubr.bf16.mxu0 0
      %2986 = vmatmul.mubr.bf16.gmra.mrb[0].mxu0 %v2479
      %v2987 = vpop.f32.mrb[0].mxu0
      %v2988 = vadd.f32 %v2827, %v2987
      %v2989 = vpop.f32.mrb[0].mxu0
      %v2990 = vpop.f32.mrb[0].mxu0
      %v2991 = vadd.f32 %v2830, %v2990
      %v2992 = vpop.f32.mrb[0].mxu0
      %2993 = vdwg.mxu0
      %2994 = vst [vmem:[#allocation3] sm:$0xff] %v2868
      %2995 = vst [vmem:[#allocation3 + $0x8] sm:$0xff] %v2871
      %2996 = vst [vmem:[#allocation3 + $0x10] sm:$0xff] %v2876
      %2997 = vst [vmem:[#allocation3 + $0x18] sm:$0xff] %v2879
      %2998 = vst [vmem:[#allocation3 + $0x20] sm:$0xff] %v2884
      %2999 = vst [vmem:[#allocation3 + $0x28] sm:$0xff] %v2887
      %3000 = vst [vmem:[#allocation3 + $0x30] sm:$0xff] %v2892
      %3001 = vst [vmem:[#allocation3 + $0x38] sm:$0xff] %v2895
      %3002 = vst [vmem:[#allocation3 + $0x40] sm:$0xff] %v2900
      %3003 = vst [vmem:[#allocation3 + $0x48] sm:$0xff] %v2903
      %3004 = vst [vmem:[#allocation3 + $0x50] sm:$0xff] %v2908
      %3005 = vst [vmem:[#allocation3 + $0x58] sm:$0xff] %v2911
      %3006 = vst [vmem:[#allocation3 + $0x60] sm:$0xff] %v2916
      %3007 = vst [vmem:[#allocation3 + $0x68] sm:$0xff] %v2919
      %3008 = vst [vmem:[#allocation3 + $0x70] sm:$0xff] %v2924
      %3009 = vst [vmem:[#allocation3 + $0x78] sm:$0xff] %v2927
      %3010 = vst [vmem:[#allocation3 + $0x80] sm:$0xff] %v2932
      %3011 = vst [vmem:[#allocation3 + $0x88] sm:$0xff] %v2935
      %3012 = vst [vmem:[#allocation3 + $0x90] sm:$0xff] %v2940
      %3013 = vst [vmem:[#allocation3 + $0x98] sm:$0xff] %v2943
      %3014 = vst [vmem:[#allocation3 + $0xa0] sm:$0xff] %v2948
      %3015 = vst [vmem:[#allocation3 + $0xa8] sm:$0xff] %v2951
      %3016 = vst [vmem:[#allocation3 + $0xb0] sm:$0xff] %v2956
      %3017 = vst [vmem:[#allocation3 + $0xb8] sm:$0xff] %v2959
      %3018 = vst [vmem:[#allocation3 + $0xc0] sm:$0xff] %v2964
      %3019 = vst [vmem:[#allocation3 + $0xc8] sm:$0xff] %v2967
      %3020 = vst [vmem:[#allocation3 + $0xd0] sm:$0xff] %v2972
      %3021 = vst [vmem:[#allocation3 + $0xd8] sm:$0xff] %v2975
      %3022 = vst [vmem:[#allocation3 + $0xe0] sm:$0xff] %v2980
      %3023 = vst [vmem:[#allocation3 + $0xe8] sm:$0xff] %v2983
      %3024 = vst [vmem:[#allocation3 + $0xf0] sm:$0xff] %v2988
      %3025 = vst [vmem:[#allocation3 + $0xf8] sm:$0xff] %v2991
      %v3026 = vld [vmem:[%s998] sm:$0xf]
      %v3027 = vld [vmem:[%s998 + $0x4] sm:$0xf]
      %v3028 = vld [vmem:[%s998 + $0x8] sm:$0x1]
      %v3029 = vld [vmem:[%s998 + $0xc] sm:$0xf]
      %v3030 = vld [vmem:[%s998 + $0x10] sm:$0xf]
      %v3031 = vld [vmem:[%s998 + $0x14] sm:$0x1]
      %v3032 = vld [vmem:[%s998 + $0x18] sm:$0xf]
      %v3033 = vld [vmem:[%s998 + $0x1c] sm:$0xf]
      %v3034 = vld [vmem:[%s998 + $0x20] sm:$0x1]
      %v3035 = vld [vmem:[%s998 + $0x24] sm:$0xf]
      %v3036 = vld [vmem:[%s998 + $0x28] sm:$0xf]
      %v3037 = vld [vmem:[%s998 + $0x2c] sm:$0x1]
      %v3038 = vld [vmem:[%s998 + $0x30] sm:$0xf]
      %v3039 = vld [vmem:[%s998 + $0x34] sm:$0xf]
      %v3040 = vld [vmem:[%s998 + $0x38] sm:$0x1]
      %v3041 = vld [vmem:[%s998 + $0x3c] sm:$0xf]
      %v3042 = vld [vmem:[%s998 + $0x40] sm:$0xf]
      %v3043 = vld [vmem:[%s998 + $0x44] sm:$0x1]
      %v3044 = vld [vmem:[%s998 + $0x48] sm:$0xf]
      %v3045 = vld [vmem:[%s998 + $0x4c] sm:$0xf]
      %v3046 = vld [vmem:[%s998 + $0x50] sm:$0x1]
      %v3047 = vld [vmem:[%s998 + $0x54] sm:$0xf]
      %v3048 = vld [vmem:[%s998 + $0x58] sm:$0xf]
      %v3049 = vld [vmem:[%s998 + $0x5c] sm:$0x1]
      %v3050 = vld [vmem:[%s998 + $0x60] sm:$0xf]
      %v3051 = vld [vmem:[%s998 + $0x64] sm:$0xf]
      %v3052 = vld [vmem:[%s998 + $0x68] sm:$0x1]
      %v3053 = vld [vmem:[%s998 + $0x6c] sm:$0xf]
      %v3054 = vld [vmem:[%s998 + $0x70] sm:$0xf]
      %v3055 = vld [vmem:[%s998 + $0x74] sm:$0x1]
      %v3056 = vld [vmem:[%s998 + $0x78] sm:$0xf]
      %v3057 = vld [vmem:[%s998 + $0x7c] sm:$0xf]
      %v3058 = vld [vmem:[%s998 + $0x80] sm:$0x1]
      %v3059 = vld [vmem:[%s998 + $0x84] sm:$0xf]
      %v3060 = vld [vmem:[%s998 + $0x88] sm:$0xf]
      %v3061 = vld [vmem:[%s998 + $0x8c] sm:$0x1]
      %v3062 = vld [vmem:[%s998 + $0x90] sm:$0xf]
      %v3063 = vld [vmem:[%s998 + $0x94] sm:$0xf]
      %v3064 = vld [vmem:[%s998 + $0x98] sm:$0x1]
      %v3065 = vld [vmem:[%s998 + $0x9c] sm:$0xf]
      %v3066 = vld [vmem:[%s998 + $0xa0] sm:$0xf]
      %v3067 = vld [vmem:[%s998 + $0xa4] sm:$0x1]
      %v3068 = vld [vmem:[%s998 + $0xa8] sm:$0xf]
      %v3069 = vld [vmem:[%s998 + $0xac] sm:$0xf]
      %v3070 = vld [vmem:[%s998 + $0xb0] sm:$0x1]
      %v3071 = vld [vmem:[%s998 + $0xb4] sm:$0xf]
      %v3072 = vld [vmem:[%s998 + $0xb8] sm:$0xf]
      %v3073 = vld [vmem:[%s998 + $0xbc] sm:$0x1]
      %v3075 = vshrl.u32 %v3026, 16
      %v3077 = vrot.slane %v3075, 4
      %v3078 = vshll.u32 %v3026, 16
      %v3080 = vrot.slane %v3078, 5
      %v3081 = vor.u32 %v3077, %v3080
      %v3082 = vrot.slane %v3081, 4
      %v3084 = vshll.u32 %v3027, 16
      %v3086 = vrot.slane %v3084, 5
      %v3087 = vsel %vm1097, %v3082, %v3086
      %v3088 = vshrl.u32 %v3027, 16
      %v3090 = vrot.slane %v3088, 4
      %v3091 = vor.u32 %v3090, %v3086
      %v3092 = vrot.slane %v3091, 4
      %v3094 = vshll.u32 %v3028, 16
      %v3096 = vrot.slane %v3094, 5
      %v3097 = vsel %vm1097, %v3092, %v3096
      %v3099 = vshrl.u32 %v3029, 16
      %v3101 = vrot.slane %v3099, 4
      %v3102 = vshll.u32 %v3029, 16
      %v3104 = vrot.slane %v3102, 5
      %v3105 = vor.u32 %v3101, %v3104
      %v3106 = vrot.slane %v3105, 4
      %v3108 = vshll.u32 %v3030, 16
      %v3110 = vrot.slane %v3108, 5
      %v3111 = vsel %vm1097, %v3106, %v3110
      %v3112 = vshrl.u32 %v3030, 16
      %v3114 = vrot.slane %v3112, 4
      %v3115 = vor.u32 %v3114, %v3110
      %v3116 = vrot.slane %v3115, 4
      %v3118 = vshll.u32 %v3031, 16
      %v3120 = vrot.slane %v3118, 5
      %v3121 = vsel %vm1097, %v3116, %v3120
      %v3123 = vshrl.u32 %v3032, 16
      %v3125 = vrot.slane %v3123, 4
      %v3126 = vshll.u32 %v3032, 16
      %v3128 = vrot.slane %v3126, 5
      %v3129 = vor.u32 %v3125, %v3128
      %v3130 = vrot.slane %v3129, 4
      %v3132 = vshll.u32 %v3033, 16
      %v3134 = vrot.slane %v3132, 5
      %v3135 = vsel %vm1097, %v3130, %v3134
      %v3136 = vshrl.u32 %v3033, 16
      %v3138 = vrot.slane %v3136, 4
      %v3139 = vor.u32 %v3138, %v3134
      %v3140 = vrot.slane %v3139, 4
      %v3142 = vshll.u32 %v3034, 16
      %v3144 = vrot.slane %v3142, 5
      %v3145 = vsel %vm1097, %v3140, %v3144
      %v3147 = vshrl.u32 %v3035, 16
      %v3149 = vrot.slane %v3147, 4
      %v3150 = vshll.u32 %v3035, 16
      %v3152 = vrot.slane %v3150, 5
      %v3153 = vor.u32 %v3149, %v3152
      %v3154 = vrot.slane %v3153, 4
      %v3156 = vshll.u32 %v3036, 16
      %v3158 = vrot.slane %v3156, 5
      %v3159 = vsel %vm1097, %v3154, %v3158
      %v3160 = vshrl.u32 %v3036, 16
      %v3162 = vrot.slane %v3160, 4
      %v3163 = vor.u32 %v3162, %v3158
      %v3164 = vrot.slane %v3163, 4
      %v3166 = vshll.u32 %v3037, 16
      %v3168 = vrot.slane %v3166, 5
      %v3169 = vsel %vm1097, %v3164, %v3168
      %v3171 = vshrl.u32 %v3038, 16
      %v3173 = vrot.slane %v3171, 4
      %v3174 = vshll.u32 %v3038, 16
      %v3176 = vrot.slane %v3174, 5
      %v3177 = vor.u32 %v3173, %v3176
      %v3178 = vrot.slane %v3177, 4
      %v3180 = vshll.u32 %v3039, 16
      %v3182 = vrot.slane %v3180, 5
      %v3183 = vsel %vm1097, %v3178, %v3182
      %v3184 = vshrl.u32 %v3039, 16
      %v3186 = vrot.slane %v3184, 4
      %v3187 = vor.u32 %v3186, %v3182
      %v3188 = vrot.slane %v3187, 4
      %v3190 = vshll.u32 %v3040, 16
      %v3192 = vrot.slane %v3190, 5
      %v3193 = vsel %vm1097, %v3188, %v3192
      %v3195 = vshrl.u32 %v3041, 16
      %v3197 = vrot.slane %v3195, 4
      %v3198 = vshll.u32 %v3041, 16
      %v3200 = vrot.slane %v3198, 5
      %v3201 = vor.u32 %v3197, %v3200
      %v3202 = vrot.slane %v3201, 4
      %v3204 = vshll.u32 %v3042, 16
      %v3206 = vrot.slane %v3204, 5
      %v3207 = vsel %vm1097, %v3202, %v3206
      %v3208 = vshrl.u32 %v3042, 16
      %v3210 = vrot.slane %v3208, 4
      %v3211 = vor.u32 %v3210, %v3206
      %v3212 = vrot.slane %v3211, 4
      %v3214 = vshll.u32 %v3043, 16
      %v3216 = vrot.slane %v3214, 5
      %v3217 = vsel %vm1097, %v3212, %v3216
      %v3219 = vshrl.u32 %v3044, 16
      %v3221 = vrot.slane %v3219, 4
      %v3222 = vshll.u32 %v3044, 16
      %v3224 = vrot.slane %v3222, 5
      %v3225 = vor.u32 %v3221, %v3224
      %v3226 = vrot.slane %v3225, 4
      %v3228 = vshll.u32 %v3045, 16
      %v3230 = vrot.slane %v3228, 5
      %v3231 = vsel %vm1097, %v3226, %v3230
      %v3232 = vshrl.u32 %v3045, 16
      %v3234 = vrot.slane %v3232, 4
      %v3235 = vor.u32 %v3234, %v3230
      %v3236 = vrot.slane %v3235, 4
      %v3238 = vshll.u32 %v3046, 16
      %v3240 = vrot.slane %v3238, 5
      %v3241 = vsel %vm1097, %v3236, %v3240
      %v3243 = vshrl.u32 %v3047, 16
      %v3245 = vrot.slane %v3243, 4
      %v3246 = vshll.u32 %v3047, 16
      %v3248 = vrot.slane %v3246, 5
      %v3249 = vor.u32 %v3245, %v3248
      %v3250 = vrot.slane %v3249, 4
      %v3252 = vshll.u32 %v3048, 16
      %v3254 = vrot.slane %v3252, 5
      %v3255 = vsel %vm1097, %v3250, %v3254
      %v3256 = vshrl.u32 %v3048, 16
      %v3258 = vrot.slane %v3256, 4
      %v3259 = vor.u32 %v3258, %v3254
      %v3260 = vrot.slane %v3259, 4
      %v3262 = vshll.u32 %v3049, 16
      %v3264 = vrot.slane %v3262, 5
      %v3265 = vsel %vm1097, %v3260, %v3264
      %v3267 = vshrl.u32 %v3050, 16
      %v3269 = vrot.slane %v3267, 4
      %v3270 = vshll.u32 %v3050, 16
      %v3272 = vrot.slane %v3270, 5
      %v3273 = vor.u32 %v3269, %v3272
      %v3274 = vrot.slane %v3273, 4
      %v3276 = vshll.u32 %v3051, 16
      %v3278 = vrot.slane %v3276, 5
      %v3279 = vsel %vm1097, %v3274, %v3278
      %v3280 = vshrl.u32 %v3051, 16
      %v3282 = vrot.slane %v3280, 4
      %v3283 = vor.u32 %v3282, %v3278
      %v3284 = vrot.slane %v3283, 4
      %v3286 = vshll.u32 %v3052, 16
      %v3288 = vrot.slane %v3286, 5
      %v3289 = vsel %vm1097, %v3284, %v3288
      %v3291 = vshrl.u32 %v3053, 16
      %v3293 = vrot.slane %v3291, 4
      %v3294 = vshll.u32 %v3053, 16
      %v3296 = vrot.slane %v3294, 5
      %v3297 = vor.u32 %v3293, %v3296
      %v3298 = vrot.slane %v3297, 4
      %v3300 = vshll.u32 %v3054, 16
      %v3302 = vrot.slane %v3300, 5
      %v3303 = vsel %vm1097, %v3298, %v3302
      %v3304 = vshrl.u32 %v3054, 16
      %v3306 = vrot.slane %v3304, 4
      %v3307 = vor.u32 %v3306, %v3302
      %v3308 = vrot.slane %v3307, 4
      %v3310 = vshll.u32 %v3055, 16
      %v3312 = vrot.slane %v3310, 5
      %v3313 = vsel %vm1097, %v3308, %v3312
      %v3315 = vshrl.u32 %v3056, 16
      %v3317 = vrot.slane %v3315, 4
      %v3318 = vshll.u32 %v3056, 16
      %v3320 = vrot.slane %v3318, 5
      %v3321 = vor.u32 %v3317, %v3320
      %v3322 = vrot.slane %v3321, 4
      %v3324 = vshll.u32 %v3057, 16
      %v3326 = vrot.slane %v3324, 5
      %v3327 = vsel %vm1097, %v3322, %v3326
      %v3328 = vshrl.u32 %v3057, 16
      %v3330 = vrot.slane %v3328, 4
      %v3331 = vor.u32 %v3330, %v3326
      %v3332 = vrot.slane %v3331, 4
      %v3334 = vshll.u32 %v3058, 16
      %v3336 = vrot.slane %v3334, 5
      %v3337 = vsel %vm1097, %v3332, %v3336
      %v3339 = vshrl.u32 %v3059, 16
      %v3341 = vrot.slane %v3339, 4
      %v3342 = vshll.u32 %v3059, 16
      %v3344 = vrot.slane %v3342, 5
      %v3345 = vor.u32 %v3341, %v3344
      %v3346 = vrot.slane %v3345, 4
      %v3348 = vshll.u32 %v3060, 16
      %v3350 = vrot.slane %v3348, 5
      %v3351 = vsel %vm1097, %v3346, %v3350
      %v3352 = vshrl.u32 %v3060, 16
      %v3354 = vrot.slane %v3352, 4
      %v3355 = vor.u32 %v3354, %v3350
      %v3356 = vrot.slane %v3355, 4
      %v3358 = vshll.u32 %v3061, 16
      %v3360 = vrot.slane %v3358, 5
      %v3361 = vsel %vm1097, %v3356, %v3360
      %v3363 = vshrl.u32 %v3062, 16
      %v3365 = vrot.slane %v3363, 4
      %v3366 = vshll.u32 %v3062, 16
      %v3368 = vrot.slane %v3366, 5
      %v3369 = vor.u32 %v3365, %v3368
      %v3370 = vrot.slane %v3369, 4
      %v3372 = vshll.u32 %v3063, 16
      %v3374 = vrot.slane %v3372, 5
      %v3375 = vsel %vm1097, %v3370, %v3374
      %v3376 = vshrl.u32 %v3063, 16
      %v3378 = vrot.slane %v3376, 4
      %v3379 = vor.u32 %v3378, %v3374
      %v3380 = vrot.slane %v3379, 4
      %v3382 = vshll.u32 %v3064, 16
      %v3384 = vrot.slane %v3382, 5
      %v3385 = vsel %vm1097, %v3380, %v3384
      %v3387 = vshrl.u32 %v3065, 16
      %v3389 = vrot.slane %v3387, 4
      %v3390 = vshll.u32 %v3065, 16
      %v3392 = vrot.slane %v3390, 5
      %v3393 = vor.u32 %v3389, %v3392
      %v3394 = vrot.slane %v3393, 4
      %v3396 = vshll.u32 %v3066, 16
      %v3398 = vrot.slane %v3396, 5
      %v3399 = vsel %vm1097, %v3394, %v3398
      %v3400 = vshrl.u32 %v3066, 16
      %v3402 = vrot.slane %v3400, 4
      %v3403 = vor.u32 %v3402, %v3398
      %v3404 = vrot.slane %v3403, 4
      %v3406 = vshll.u32 %v3067, 16
      %v3408 = vrot.slane %v3406, 5
      %v3409 = vsel %vm1097, %v3404, %v3408
      %v3411 = vshrl.u32 %v3068, 16
      %v3413 = vrot.slane %v3411, 4
      %v3414 = vshll.u32 %v3068, 16
      %v3416 = vrot.slane %v3414, 5
      %v3417 = vor.u32 %v3413, %v3416
      %v3418 = vrot.slane %v3417, 4
      %v3420 = vshll.u32 %v3069, 16
      %v3422 = vrot.slane %v3420, 5
      %v3423 = vsel %vm1097, %v3418, %v3422
      %v3424 = vshrl.u32 %v3069, 16
      %v3426 = vrot.slane %v3424, 4
      %v3427 = vor.u32 %v3426, %v3422
      %v3428 = vrot.slane %v3427, 4
      %v3430 = vshll.u32 %v3070, 16
      %v3432 = vrot.slane %v3430, 5
      %v3433 = vsel %vm1097, %v3428, %v3432
      %v3435 = vshrl.u32 %v3071, 16
      %v3437 = vrot.slane %v3435, 4
      %v3438 = vshll.u32 %v3071, 16
      %v3440 = vrot.slane %v3438, 5
      %v3441 = vor.u32 %v3437, %v3440
      %v3442 = vrot.slane %v3441, 4
      %v3444 = vshll.u32 %v3072, 16
      %v3446 = vrot.slane %v3444, 5
      %v3447 = vsel %vm1097, %v3442, %v3446
      %v3448 = vshrl.u32 %v3072, 16
      %v3450 = vrot.slane %v3448, 4
      %v3451 = vor.u32 %v3450, %v3446
      %v3452 = vrot.slane %v3451, 4
      %v3454 = vshll.u32 %v3073, 16
      %v3456 = vrot.slane %v3454, 5
      %v3457 = vsel %vm1097, %v3452, %v3456
      %v3458 = vunpack.c.l.b16 %v3087
      %v3459 = vunpack.c.l.b16 %v3097
      %v3460 = vunpack.c.l.b16 %v3111
      %v3461 = vunpack.c.l.b16 %v3121
      %v3462 = vunpack.c.l.b16 %v3135
      %v3463 = vunpack.c.l.b16 %v3145
      %v3464 = vunpack.c.l.b16 %v3159
      %v3465 = vunpack.c.l.b16 %v3169
      %v3466 = vunpack.c.l.b16 %v3183
      %v3467 = vunpack.c.l.b16 %v3193
      %v3468 = vunpack.c.l.b16 %v3207
      %v3469 = vunpack.c.l.b16 %v3217
      %v3470 = vunpack.c.l.b16 %v3231
      %v3471 = vunpack.c.l.b16 %v3241
      %v3472 = vunpack.c.l.b16 %v3255
      %v3473 = vunpack.c.l.b16 %v3265
      %v3474 = vunpack.c.l.b16 %v3279
      %v3475 = vunpack.c.l.b16 %v3289
      %v3476 = vunpack.c.l.b16 %v3303
      %v3477 = vunpack.c.l.b16 %v3313
      %v3478 = vunpack.c.l.b16 %v3327
      %v3479 = vunpack.c.l.b16 %v3337
      %v3480 = vunpack.c.l.b16 %v3351
      %v3481 = vunpack.c.l.b16 %v3361
      %v3482 = vunpack.c.l.b16 %v3375
      %v3483 = vunpack.c.l.b16 %v3385
      %v3484 = vunpack.c.l.b16 %v3399
      %v3485 = vunpack.c.l.b16 %v3409
      %v3486 = vunpack.c.l.b16 %v3423
      %v3487 = vunpack.c.l.b16 %v3433
      %v3488 = vunpack.c.l.b16 %v3447
      %v3489 = vunpack.c.l.b16 %v3457
      %v3490 = vpack.c.b16 %v3459, %v3458
      %v3491 = vpack.c.b16 %v3461, %v3460
      %v3492 = vpack.c.b16 %v3463, %v3462
      %v3493 = vpack.c.b16 %v3465, %v3464
      %v3494 = vpack.c.b16 %v3467, %v3466
      %v3495 = vpack.c.b16 %v3469, %v3468
      %v3496 = vpack.c.b16 %v3471, %v3470
      %v3497 = vpack.c.b16 %v3473, %v3472
      %v3498 = vpack.c.b16 %v3475, %v3474
      %v3499 = vpack.c.b16 %v3477, %v3476
      %v3500 = vpack.c.b16 %v3479, %v3478
      %v3501 = vpack.c.b16 %v3481, %v3480
      %v3502 = vpack.c.b16 %v3483, %v3482
      %v3503 = vpack.c.b16 %v3485, %v3484
      %v3504 = vpack.c.b16 %v3487, %v3486
      %v3505 = vpack.c.b16 %v3489, %v3488
      %3522 = vst [vmem:[#allocation2] sm:$0xff] %v3490
      %3523 = vst [vmem:[#allocation2 + $0x18] sm:$0xff] %v3491
      %3524 = vst [vmem:[#allocation2 + $0x30] sm:$0xff] %v3492
      %3525 = vst [vmem:[#allocation2 + $0x48] sm:$0xff] %v3493
      %3526 = vst [vmem:[#allocation2 + $0x60] sm:$0xff] %v3494
      %3527 = vst [vmem:[#allocation2 + $0x78] sm:$0xff] %v3495
      %3528 = vst [vmem:[#allocation2 + $0x90] sm:$0xff] %v3496
      %3529 = vst [vmem:[#allocation2 + $0xa8] sm:$0xff] %v3497
      %3530 = vst [vmem:[#allocation2 + $0xc0] sm:$0xff] %v3498
      %3531 = vst [vmem:[#allocation2 + $0xd8] sm:$0xff] %v3499
      %3532 = vst [vmem:[#allocation2 + $0xf0] sm:$0xff] %v3500
      %3533 = vst [vmem:[#allocation2 + $0x108] sm:$0xff] %v3501
      %3534 = vst [vmem:[#allocation2 + $0x120] sm:$0xff] %v3502
      %3535 = vst [vmem:[#allocation2 + $0x138] sm:$0xff] %v3503
      %3536 = vst [vmem:[#allocation2 + $0x150] sm:$0xff] %v3504
      %3537 = vst [vmem:[#allocation2 + $0x168] sm:$0xff] %v3505
      %v3538 = vld [vmem:[%s998] sm:$0xe]
      %v3539 = vld [vmem:[%s998 + $0x4] sm:$0xf]
      %v3540 = vld [vmem:[%s998 + $0x8] sm:$0x1]
      %v3541 = vld [vmem:[%s998 + $0xc] sm:$0xe]
      %v3542 = vld [vmem:[%s998 + $0x10] sm:$0xf]
      %v3543 = vld [vmem:[%s998 + $0x14] sm:$0x1]
      %v3544 = vld [vmem:[%s998 + $0x18] sm:$0xe]
      %v3545 = vld [vmem:[%s998 + $0x1c] sm:$0xf]
      %v3546 = vld [vmem:[%s998 + $0x20] sm:$0x1]
      %v3547 = vld [vmem:[%s998 + $0x24] sm:$0xe]
      %v3548 = vld [vmem:[%s998 + $0x28] sm:$0xf]
      %v3549 = vld [vmem:[%s998 + $0x2c] sm:$0x1]
      %v3550 = vld [vmem:[%s998 + $0x30] sm:$0xe]
      %v3551 = vld [vmem:[%s998 + $0x34] sm:$0xf]
      %v3552 = vld [vmem:[%s998 + $0x38] sm:$0x1]
      %v3553 = vld [vmem:[%s998 + $0x3c] sm:$0xe]
      %v3554 = vld [vmem:[%s998 + $0x40] sm:$0xf]
      %v3555 = vld [vmem:[%s998 + $0x44] sm:$0x1]
      %v3556 = vld [vmem:[%s998 + $0x48] sm:$0xe]
      %v3557 = vld [vmem:[%s998 + $0x4c] sm:$0xf]
      %v3558 = vld [vmem:[%s998 + $0x50] sm:$0x1]
      %v3559 = vld [vmem:[%s998 + $0x54] sm:$0xe]
      %v3560 = vld [vmem:[%s998 + $0x58] sm:$0xf]
      %v3561 = vld [vmem:[%s998 + $0x5c] sm:$0x1]
      %v3562 = vld [vmem:[%s998 + $0x60] sm:$0xe]
      %v3563 = vld [vmem:[%s998 + $0x64] sm:$0xf]
      %v3564 = vld [vmem:[%s998 + $0x68] sm:$0x1]
      %v3565 = vld [vmem:[%s998 + $0x6c] sm:$0xe]
      %v3566 = vld [vmem:[%s998 + $0x70] sm:$0xf]
      %v3567 = vld [vmem:[%s998 + $0x74] sm:$0x1]
      %v3568 = vld [vmem:[%s998 + $0x78] sm:$0xe]
      %v3569 = vld [vmem:[%s998 + $0x7c] sm:$0xf]
      %v3570 = vld [vmem:[%s998 + $0x80] sm:$0x1]
      %v3571 = vld [vmem:[%s998 + $0x84] sm:$0xe]
      %v3572 = vld [vmem:[%s998 + $0x88] sm:$0xf]
      %v3573 = vld [vmem:[%s998 + $0x8c] sm:$0x1]
      %v3574 = vld [vmem:[%s998 + $0x90] sm:$0xe]
      %v3575 = vld [vmem:[%s998 + $0x94] sm:$0xf]
      %v3576 = vld [vmem:[%s998 + $0x98] sm:$0x1]
      %v3577 = vld [vmem:[%s998 + $0x9c] sm:$0xe]
      %v3578 = vld [vmem:[%s998 + $0xa0] sm:$0xf]
      %v3579 = vld [vmem:[%s998 + $0xa4] sm:$0x1]
      %v3580 = vld [vmem:[%s998 + $0xa8] sm:$0xe]
      %v3581 = vld [vmem:[%s998 + $0xac] sm:$0xf]
      %v3582 = vld [vmem:[%s998 + $0xb0] sm:$0x1]
      %v3583 = vld [vmem:[%s998 + $0xb4] sm:$0xe]
      %v3584 = vld [vmem:[%s998 + $0xb8] sm:$0xf]
      %v3585 = vld [vmem:[%s998 + $0xbc] sm:$0x1]
      %v3634 = vrot.slane %v3538, 5
      %v3635 = vrot.slane %v3634, 4
      %v3636 = vrot.slane %v3539, 5
      %v3637 = vsel %vm1660, %v3635, %v3636
      %v3638 = vrot.slane %v3636, 4
      %v3639 = vrot.slane %v3540, 5
      %v3640 = vsel %vm1660, %v3638, %v3639
      %v3641 = vrot.slane %v3541, 5
      %v3642 = vrot.slane %v3641, 4
      %v3643 = vrot.slane %v3542, 5
      %v3644 = vsel %vm1660, %v3642, %v3643
      %v3645 = vrot.slane %v3643, 4
      %v3646 = vrot.slane %v3543, 5
      %v3647 = vsel %vm1660, %v3645, %v3646
      %v3648 = vrot.slane %v3544, 5
      %v3649 = vrot.slane %v3648, 4
      %v3650 = vrot.slane %v3545, 5
      %v3651 = vsel %vm1660, %v3649, %v3650
      %v3652 = vrot.slane %v3650, 4
      %v3653 = vrot.slane %v3546, 5
      %v3654 = vsel %vm1660, %v3652, %v3653
      %v3655 = vrot.slane %v3547, 5
      %v3656 = vrot.slane %v3655, 4
      %v3657 = vrot.slane %v3548, 5
      %v3658 = vsel %vm1660, %v3656, %v3657
      %v3659 = vrot.slane %v3657, 4
      %v3660 = vrot.slane %v3549, 5
      %v3661 = vsel %vm1660, %v3659, %v3660
      %v3662 = vrot.slane %v3550, 5
      %v3663 = vrot.slane %v3662, 4
      %v3664 = vrot.slane %v3551, 5
      %v3665 = vsel %vm1660, %v3663, %v3664
      %v3666 = vrot.slane %v3664, 4
      %v3667 = vrot.slane %v3552, 5
      %v3668 = vsel %vm1660, %v3666, %v3667
      %v3669 = vrot.slane %v3553, 5
      %v3670 = vrot.slane %v3669, 4
      %v3671 = vrot.slane %v3554, 5
      %v3672 = vsel %vm1660, %v3670, %v3671
      %v3673 = vrot.slane %v3671, 4
      %v3674 = vrot.slane %v3555, 5
      %v3675 = vsel %vm1660, %v3673, %v3674
      %v3676 = vrot.slane %v3556, 5
      %v3677 = vrot.slane %v3676, 4
      %v3678 = vrot.slane %v3557, 5
      %v3679 = vsel %vm1660, %v3677, %v3678
      %v3680 = vrot.slane %v3678, 4
      %v3681 = vrot.slane %v3558, 5
      %v3682 = vsel %vm1660, %v3680, %v3681
      %v3683 = vrot.slane %v3559, 5
      %v3684 = vrot.slane %v3683, 4
      %v3685 = vrot.slane %v3560, 5
      %v3686 = vsel %vm1660, %v3684, %v3685
      %v3687 = vrot.slane %v3685, 4
      %v3688 = vrot.slane %v3561, 5
      %v3689 = vsel %vm1660, %v3687, %v3688
      %v3690 = vrot.slane %v3562, 5
      %v3691 = vrot.slane %v3690, 4
      %v3692 = vrot.slane %v3563, 5
      %v3693 = vsel %vm1660, %v3691, %v3692
      %v3694 = vrot.slane %v3692, 4
      %v3695 = vrot.slane %v3564, 5
      %v3696 = vsel %vm1660, %v3694, %v3695
      %v3697 = vrot.slane %v3565, 5
      %v3698 = vrot.slane %v3697, 4
      %v3699 = vrot.slane %v3566, 5
      %v3700 = vsel %vm1660, %v3698, %v3699
      %v3701 = vrot.slane %v3699, 4
      %v3702 = vrot.slane %v3567, 5
      %v3703 = vsel %vm1660, %v3701, %v3702
      %v3704 = vrot.slane %v3568, 5
      %v3705 = vrot.slane %v3704, 4
      %v3706 = vrot.slane %v3569, 5
      %v3707 = vsel %vm1660, %v3705, %v3706
      %v3708 = vrot.slane %v3706, 4
      %v3709 = vrot.slane %v3570, 5
      %v3710 = vsel %vm1660, %v3708, %v3709
      %v3711 = vrot.slane %v3571, 5
      %v3712 = vrot.slane %v3711, 4
      %v3713 = vrot.slane %v3572, 5
      %v3714 = vsel %vm1660, %v3712, %v3713
      %v3715 = vrot.slane %v3713, 4
      %v3716 = vrot.slane %v3573, 5
      %v3717 = vsel %vm1660, %v3715, %v3716
      %v3718 = vrot.slane %v3574, 5
      %v3719 = vrot.slane %v3718, 4
      %v3720 = vrot.slane %v3575, 5
      %v3721 = vsel %vm1660, %v3719, %v3720
      %v3722 = vrot.slane %v3720, 4
      %v3723 = vrot.slane %v3576, 5
      %v3724 = vsel %vm1660, %v3722, %v3723
      %v3725 = vrot.slane %v3577, 5
      %v3726 = vrot.slane %v3725, 4
      %v3727 = vrot.slane %v3578, 5
      %v3728 = vsel %vm1660, %v3726, %v3727
      %v3729 = vrot.slane %v3727, 4
      %v3730 = vrot.slane %v3579, 5
      %v3731 = vsel %vm1660, %v3729, %v3730
      %v3732 = vrot.slane %v3580, 5
      %v3733 = vrot.slane %v3732, 4
      %v3734 = vrot.slane %v3581, 5
      %v3735 = vsel %vm1660, %v3733, %v3734
      %v3736 = vrot.slane %v3734, 4
      %v3737 = vrot.slane %v3582, 5
      %v3738 = vsel %vm1660, %v3736, %v3737
      %v3739 = vrot.slane %v3583, 5
      %v3740 = vrot.slane %v3739, 4
      %v3741 = vrot.slane %v3584, 5
      %v3742 = vsel %vm1660, %v3740, %v3741
      %v3743 = vrot.slane %v3741, 4
      %v3744 = vrot.slane %v3585, 5
      %v3745 = vsel %vm1660, %v3743, %v3744
      %v3746 = vunpack.c.l.b16 %v3637
      %v3747 = vunpack.c.l.b16 %v3640
      %v3748 = vunpack.c.l.b16 %v3644
      %v3749 = vunpack.c.l.b16 %v3647
      %v3750 = vunpack.c.l.b16 %v3651
      %v3751 = vunpack.c.l.b16 %v3654
      %v3752 = vunpack.c.l.b16 %v3658
      %v3753 = vunpack.c.l.b16 %v3661
      %v3754 = vunpack.c.l.b16 %v3665
      %v3755 = vunpack.c.l.b16 %v3668
      %v3756 = vunpack.c.l.b16 %v3672
      %v3757 = vunpack.c.l.b16 %v3675
      %v3758 = vunpack.c.l.b16 %v3679
      %v3759 = vunpack.c.l.b16 %v3682
      %v3760 = vunpack.c.l.b16 %v3686
      %v3761 = vunpack.c.l.b16 %v3689
      %v3762 = vunpack.c.l.b16 %v3693
      %v3763 = vunpack.c.l.b16 %v3696
      %v3764 = vunpack.c.l.b16 %v3700
      %v3765 = vunpack.c.l.b16 %v3703
      %v3766 = vunpack.c.l.b16 %v3707
      %v3767 = vunpack.c.l.b16 %v3710
      %v3768 = vunpack.c.l.b16 %v3714
      %v3769 = vunpack.c.l.b16 %v3717
      %v3770 = vunpack.c.l.b16 %v3721
      %v3771 = vunpack.c.l.b16 %v3724
      %v3772 = vunpack.c.l.b16 %v3728
      %v3773 = vunpack.c.l.b16 %v3731
      %v3774 = vunpack.c.l.b16 %v3735
      %v3775 = vunpack.c.l.b16 %v3738
      %v3776 = vunpack.c.l.b16 %v3742
      %v3777 = vunpack.c.l.b16 %v3745
      %v3778 = vpack.c.b16 %v3747, %v3746
      %v3779 = vpack.c.b16 %v3749, %v3748
      %v3780 = vpack.c.b16 %v3751, %v3750
      %v3781 = vpack.c.b16 %v3753, %v3752
      %v3782 = vpack.c.b16 %v3755, %v3754
      %v3783 = vpack.c.b16 %v3757, %v3756
      %v3784 = vpack.c.b16 %v3759, %v3758
      %v3785 = vpack.c.b16 %v3761, %v3760
      %v3786 = vpack.c.b16 %v3763, %v3762
      %v3787 = vpack.c.b16 %v3765, %v3764
      %v3788 = vpack.c.b16 %v3767, %v3766
      %v3789 = vpack.c.b16 %v3769, %v3768
      %v3790 = vpack.c.b16 %v3771, %v3770
      %v3791 = vpack.c.b16 %v3773, %v3772
      %v3792 = vpack.c.b16 %v3775, %v3774
      %v3793 = vpack.c.b16 %v3777, %v3776
      %3810 = vst [vmem:[#allocation2 + $0x8] sm:$0xff] %v3778
      %3811 = vst [vmem:[#allocation2 + $0x20] sm:$0xff] %v3779
      %3812 = vst [vmem:[#allocation2 + $0x38] sm:$0xff] %v3780
      %3813 = vst [vmem:[#allocation2 + $0x50] sm:$0xff] %v3781
      %3814 = vst [vmem:[#allocation2 + $0x68] sm:$0xff] %v3782
      %3815 = vst [vmem:[#allocation2 + $0x80] sm:$0xff] %v3783
      %3816 = vst [vmem:[#allocation2 + $0x98] sm:$0xff] %v3784
      %3817 = vst [vmem:[#allocation2 + $0xb0] sm:$0xff] %v3785
      %3818 = vst [vmem:[#allocation2 + $0xc8] sm:$0xff] %v3786
      %3819 = vst [vmem:[#allocation2 + $0xe0] sm:$0xff] %v3787
      %3820 = vst [vmem:[#allocation2 + $0xf8] sm:$0xff] %v3788
      %3821 = vst [vmem:[#allocation2 + $0x110] sm:$0xff] %v3789
      %3822 = vst [vmem:[#allocation2 + $0x128] sm:$0xff] %v3790
      %3823 = vst [vmem:[#allocation2 + $0x140] sm:$0xff] %v3791
      %3824 = vst [vmem:[#allocation2 + $0x158] sm:$0xff] %v3792
      %3825 = vst [vmem:[#allocation2 + $0x170] sm:$0xff] %v3793
      %v3826 = vld [vmem:[%s998] sm:$0xe]
      %v3827 = vld [vmem:[%s998 + $0x4] sm:$0xf]
      %v3828 = vld [vmem:[%s998 + $0x8] sm:$0x3]
      %v3829 = vld [vmem:[%s998 + $0xc] sm:$0xe]
      %v3830 = vld [vmem:[%s998 + $0x10] sm:$0xf]
      %v3831 = vld [vmem:[%s998 + $0x14] sm:$0x3]
      %v3832 = vld [vmem:[%s998 + $0x18] sm:$0xe]
      %v3833 = vld [vmem:[%s998 + $0x1c] sm:$0xf]
      %v3834 = vld [vmem:[%s998 + $0x20] sm:$0x3]
      %v3835 = vld [vmem:[%s998 + $0x24] sm:$0xe]
      %v3836 = vld [vmem:[%s998 + $0x28] sm:$0xf]
      %v3837 = vld [vmem:[%s998 + $0x2c] sm:$0x3]
      %v3838 = vld [vmem:[%s998 + $0x30] sm:$0xe]
      %v3839 = vld [vmem:[%s998 + $0x34] sm:$0xf]
      %v3840 = vld [vmem:[%s998 + $0x38] sm:$0x3]
      %v3841 = vld [vmem:[%s998 + $0x3c] sm:$0xe]
      %v3842 = vld [vmem:[%s998 + $0x40] sm:$0xf]
      %v3843 = vld [vmem:[%s998 + $0x44] sm:$0x3]
      %v3844 = vld [vmem:[%s998 + $0x48] sm:$0xe]
      %v3845 = vld [vmem:[%s998 + $0x4c] sm:$0xf]
      %v3846 = vld [vmem:[%s998 + $0x50] sm:$0x3]
      %v3847 = vld [vmem:[%s998 + $0x54] sm:$0xe]
      %v3848 = vld [vmem:[%s998 + $0x58] sm:$0xf]
      %v3849 = vld [vmem:[%s998 + $0x5c] sm:$0x3]
      %v3850 = vld [vmem:[%s998 + $0x60] sm:$0xe]
      %v3851 = vld [vmem:[%s998 + $0x64] sm:$0xf]
      %v3852 = vld [vmem:[%s998 + $0x68] sm:$0x3]
      %v3853 = vld [vmem:[%s998 + $0x6c] sm:$0xe]
      %v3854 = vld [vmem:[%s998 + $0x70] sm:$0xf]
      %v3855 = vld [vmem:[%s998 + $0x74] sm:$0x3]
      %v3856 = vld [vmem:[%s998 + $0x78] sm:$0xe]
      %v3857 = vld [vmem:[%s998 + $0x7c] sm:$0xf]
      %v3858 = vld [vmem:[%s998 + $0x80] sm:$0x3]
      %v3859 = vld [vmem:[%s998 + $0x84] sm:$0xe]
      %v3860 = vld [vmem:[%s998 + $0x88] sm:$0xf]
      %v3861 = vld [vmem:[%s998 + $0x8c] sm:$0x3]
      %v3862 = vld [vmem:[%s998 + $0x90] sm:$0xe]
      %v3863 = vld [vmem:[%s998 + $0x94] sm:$0xf]
      %v3864 = vld [vmem:[%s998 + $0x98] sm:$0x3]
      %v3865 = vld [vmem:[%s998 + $0x9c] sm:$0xe]
      %v3866 = vld [vmem:[%s998 + $0xa0] sm:$0xf]
      %v3867 = vld [vmem:[%s998 + $0xa4] sm:$0x3]
      %v3868 = vld [vmem:[%s998 + $0xa8] sm:$0xe]
      %v3869 = vld [vmem:[%s998 + $0xac] sm:$0xf]
      %v3870 = vld [vmem:[%s998 + $0xb0] sm:$0x3]
      %v3871 = vld [vmem:[%s998 + $0xb4] sm:$0xe]
      %v3872 = vld [vmem:[%s998 + $0xb8] sm:$0xf]
      %v3873 = vld [vmem:[%s998 + $0xbc] sm:$0x3]
      %v3875 = vshrl.u32 %v3826, 16
      %v3877 = vrot.slane %v3875, 5
      %v3878 = vshll.u32 %v3826, 16
      %v3880 = vrot.slane %v3878, 6
      %v3881 = vor.u32 %v3877, %v3880
      %v3882 = vrot.slane %v3881, 4
      %v3884 = vshrl.u32 %v3827, 16
      %v3886 = vrot.slane %v3884, 5
      %v3887 = vshll.u32 %v3827, 16
      %v3889 = vrot.slane %v3887, 6
      %v3890 = vor.u32 %v3886, %v3889
      %v3891 = vsel %vm1903, %v3882, %v3890
      %v3892 = vrot.slane %v3890, 4
      %v3894 = vshrl.u32 %v3828, 16
      %v3896 = vrot.slane %v3894, 5
      %v3897 = vshll.u32 %v3828, 16
      %v3899 = vrot.slane %v3897, 6
      %v3900 = vor.u32 %v3896, %v3899
      %v3901 = vsel %vm1903, %v3892, %v3900
      %v3903 = vshrl.u32 %v3829, 16
      %v3905 = vrot.slane %v3903, 5
      %v3906 = vshll.u32 %v3829, 16
      %v3908 = vrot.slane %v3906, 6
      %v3909 = vor.u32 %v3905, %v3908
      %v3910 = vrot.slane %v3909, 4
      %v3912 = vshrl.u32 %v3830, 16
      %v3914 = vrot.slane %v3912, 5
      %v3915 = vshll.u32 %v3830, 16
      %v3917 = vrot.slane %v3915, 6
      %v3918 = vor.u32 %v3914, %v3917
      %v3919 = vsel %vm1903, %v3910, %v3918
      %v3920 = vrot.slane %v3918, 4
      %v3922 = vshrl.u32 %v3831, 16
      %v3924 = vrot.slane %v3922, 5
      %v3925 = vshll.u32 %v3831, 16
      %v3927 = vrot.slane %v3925, 6
      %v3928 = vor.u32 %v3924, %v3927
      %v3929 = vsel %vm1903, %v3920, %v3928
      %v3931 = vshrl.u32 %v3832, 16
      %v3933 = vrot.slane %v3931, 5
      %v3934 = vshll.u32 %v3832, 16
      %v3936 = vrot.slane %v3934, 6
      %v3937 = vor.u32 %v3933, %v3936
      %v3938 = vrot.slane %v3937, 4
      %v3940 = vshrl.u32 %v3833, 16
      %v3942 = vrot.slane %v3940, 5
      %v3943 = vshll.u32 %v3833, 16
      %v3945 = vrot.slane %v3943, 6
      %v3946 = vor.u32 %v3942, %v3945
      %v3947 = vsel %vm1903, %v3938, %v3946
      %v3948 = vrot.slane %v3946, 4
      %v3950 = vshrl.u32 %v3834, 16
      %v3952 = vrot.slane %v3950, 5
      %v3953 = vshll.u32 %v3834, 16
      %v3955 = vrot.slane %v3953, 6
      %v3956 = vor.u32 %v3952, %v3955
      %v3957 = vsel %vm1903, %v3948, %v3956
      %v3959 = vshrl.u32 %v3835, 16
      %v3961 = vrot.slane %v3959, 5
      %v3962 = vshll.u32 %v3835, 16
      %v3964 = vrot.slane %v3962, 6
      %v3965 = vor.u32 %v3961, %v3964
      %v3966 = vrot.slane %v3965, 4
      %v3968 = vshrl.u32 %v3836, 16
      %v3970 = vrot.slane %v3968, 5
      %v3971 = vshll.u32 %v3836, 16
      %v3973 = vrot.slane %v3971, 6
      %v3974 = vor.u32 %v3970, %v3973
      %v3975 = vsel %vm1903, %v3966, %v3974
      %v3976 = vrot.slane %v3974, 4
      %v3978 = vshrl.u32 %v3837, 16
      %v3980 = vrot.slane %v3978, 5
      %v3981 = vshll.u32 %v3837, 16
      %v3983 = vrot.slane %v3981, 6
      %v3984 = vor.u32 %v3980, %v3983
      %v3985 = vsel %vm1903, %v3976, %v3984
      %v3987 = vshrl.u32 %v3838, 16
      %v3989 = vrot.slane %v3987, 5
      %v3990 = vshll.u32 %v3838, 16
      %v3992 = vrot.slane %v3990, 6
      %v3993 = vor.u32 %v3989, %v3992
      %v3994 = vrot.slane %v3993, 4
      %v3996 = vshrl.u32 %v3839, 16
      %v3998 = vrot.slane %v3996, 5
      %v3999 = vshll.u32 %v3839, 16
      %v4001 = vrot.slane %v3999, 6
      %v4002 = vor.u32 %v3998, %v4001
      %v4003 = vsel %vm1903, %v3994, %v4002
      %v4004 = vrot.slane %v4002, 4
      %v4006 = vshrl.u32 %v3840, 16
      %v4008 = vrot.slane %v4006, 5
      %v4009 = vshll.u32 %v3840, 16
      %v4011 = vrot.slane %v4009, 6
      %v4012 = vor.u32 %v4008, %v4011
      %v4013 = vsel %vm1903, %v4004, %v4012
      %v4015 = vshrl.u32 %v3841, 16
      %v4017 = vrot.slane %v4015, 5
      %v4018 = vshll.u32 %v3841, 16
      %v4020 = vrot.slane %v4018, 6
      %v4021 = vor.u32 %v4017, %v4020
      %v4022 = vrot.slane %v4021, 4
      %v4024 = vshrl.u32 %v3842, 16
      %v4026 = vrot.slane %v4024, 5
      %v4027 = vshll.u32 %v3842, 16
      %v4029 = vrot.slane %v4027, 6
      %v4030 = vor.u32 %v4026, %v4029
      %v4031 = vsel %vm1903, %v4022, %v4030
      %v4032 = vrot.slane %v4030, 4
      %v4034 = vshrl.u32 %v3843, 16
      %v4036 = vrot.slane %v4034, 5
      %v4037 = vshll.u32 %v3843, 16
      %v4039 = vrot.slane %v4037, 6
      %v4040 = vor.u32 %v4036, %v4039
      %v4041 = vsel %vm1903, %v4032, %v4040
      %v4043 = vshrl.u32 %v3844, 16
      %v4045 = vrot.slane %v4043, 5
      %v4046 = vshll.u32 %v3844, 16
      %v4048 = vrot.slane %v4046, 6
      %v4049 = vor.u32 %v4045, %v4048
      %v4050 = vrot.slane %v4049, 4
      %v4052 = vshrl.u32 %v3845, 16
      %v4054 = vrot.slane %v4052, 5
      %v4055 = vshll.u32 %v3845, 16
      %v4057 = vrot.slane %v4055, 6
      %v4058 = vor.u32 %v4054, %v4057
      %v4059 = vsel %vm1903, %v4050, %v4058
      %v4060 = vrot.slane %v4058, 4
      %v4062 = vshrl.u32 %v3846, 16
      %v4064 = vrot.slane %v4062, 5
      %v4065 = vshll.u32 %v3846, 16
      %v4067 = vrot.slane %v4065, 6
      %v4068 = vor.u32 %v4064, %v4067
      %v4069 = vsel %vm1903, %v4060, %v4068
      %v4071 = vshrl.u32 %v3847, 16
      %v4073 = vrot.slane %v4071, 5
      %v4074 = vshll.u32 %v3847, 16
      %v4076 = vrot.slane %v4074, 6
      %v4077 = vor.u32 %v4073, %v4076
      %v4078 = vrot.slane %v4077, 4
      %v4080 = vshrl.u32 %v3848, 16
      %v4082 = vrot.slane %v4080, 5
      %v4083 = vshll.u32 %v3848, 16
      %v4085 = vrot.slane %v4083, 6
      %v4086 = vor.u32 %v4082, %v4085
      %v4087 = vsel %vm1903, %v4078, %v4086
      %v4088 = vrot.slane %v4086, 4
      %v4090 = vshrl.u32 %v3849, 16
      %v4092 = vrot.slane %v4090, 5
      %v4093 = vshll.u32 %v3849, 16
      %v4095 = vrot.slane %v4093, 6
      %v4096 = vor.u32 %v4092, %v4095
      %v4097 = vsel %vm1903, %v4088, %v4096
      %v4099 = vshrl.u32 %v3850, 16
      %v4101 = vrot.slane %v4099, 5
      %v4102 = vshll.u32 %v3850, 16
      %v4104 = vrot.slane %v4102, 6
      %v4105 = vor.u32 %v4101, %v4104
      %v4106 = vrot.slane %v4105, 4
      %v4108 = vshrl.u32 %v3851, 16
      %v4110 = vrot.slane %v4108, 5
      %v4111 = vshll.u32 %v3851, 16
      %v4113 = vrot.slane %v4111, 6
      %v4114 = vor.u32 %v4110, %v4113
      %v4115 = vsel %vm1903, %v4106, %v4114
      %v4116 = vrot.slane %v4114, 4
      %v4118 = vshrl.u32 %v3852, 16
      %v4120 = vrot.slane %v4118, 5
      %v4121 = vshll.u32 %v3852, 16
      %v4123 = vrot.slane %v4121, 6
      %v4124 = vor.u32 %v4120, %v4123
      %v4125 = vsel %vm1903, %v4116, %v4124
      %v4127 = vshrl.u32 %v3853, 16
      %v4129 = vrot.slane %v4127, 5
      %v4130 = vshll.u32 %v3853, 16
      %v4132 = vrot.slane %v4130, 6
      %v4133 = vor.u32 %v4129, %v4132
      %v4134 = vrot.slane %v4133, 4
      %v4136 = vshrl.u32 %v3854, 16
      %v4138 = vrot.slane %v4136, 5
      %v4139 = vshll.u32 %v3854, 16
      %v4141 = vrot.slane %v4139, 6
      %v4142 = vor.u32 %v4138, %v4141
      %v4143 = vsel %vm1903, %v4134, %v4142
      %v4144 = vrot.slane %v4142, 4
      %v4146 = vshrl.u32 %v3855, 16
      %v4148 = vrot.slane %v4146, 5
      %v4149 = vshll.u32 %v3855, 16
      %v4151 = vrot.slane %v4149, 6
      %v4152 = vor.u32 %v4148, %v4151
      %v4153 = vsel %vm1903, %v4144, %v4152
      %v4155 = vshrl.u32 %v3856, 16
      %v4157 = vrot.slane %v4155, 5
      %v4158 = vshll.u32 %v3856, 16
      %v4160 = vrot.slane %v4158, 6
      %v4161 = vor.u32 %v4157, %v4160
      %v4162 = vrot.slane %v4161, 4
      %v4164 = vshrl.u32 %v3857, 16
      %v4166 = vrot.slane %v4164, 5
      %v4167 = vshll.u32 %v3857, 16
      %v4169 = vrot.slane %v4167, 6
      %v4170 = vor.u32 %v4166, %v4169
      %v4171 = vsel %vm1903, %v4162, %v4170
      %v4172 = vrot.slane %v4170, 4
      %v4174 = vshrl.u32 %v3858, 16
      %v4176 = vrot.slane %v4174, 5
      %v4177 = vshll.u32 %v3858, 16
      %v4179 = vrot.slane %v4177, 6
      %v4180 = vor.u32 %v4176, %v4179
      %v4181 = vsel %vm1903, %v4172, %v4180
      %v4183 = vshrl.u32 %v3859, 16
      %v4185 = vrot.slane %v4183, 5
      %v4186 = vshll.u32 %v3859, 16
      %v4188 = vrot.slane %v4186, 6
      %v4189 = vor.u32 %v4185, %v4188
      %v4190 = vrot.slane %v4189, 4
      %v4192 = vshrl.u32 %v3860, 16
      %v4194 = vrot.slane %v4192, 5
      %v4195 = vshll.u32 %v3860, 16
      %v4197 = vrot.slane %v4195, 6
      %v4198 = vor.u32 %v4194, %v4197
      %v4199 = vsel %vm1903, %v4190, %v4198
      %v4200 = vrot.slane %v4198, 4
      %v4202 = vshrl.u32 %v3861, 16
      %v4204 = vrot.slane %v4202, 5
      %v4205 = vshll.u32 %v3861, 16
      %v4207 = vrot.slane %v4205, 6
      %v4208 = vor.u32 %v4204, %v4207
      %v4209 = vsel %vm1903, %v4200, %v4208
      %v4211 = vshrl.u32 %v3862, 16
      %v4213 = vrot.slane %v4211, 5
      %v4214 = vshll.u32 %v3862, 16
      %v4216 = vrot.slane %v4214, 6
      %v4217 = vor.u32 %v4213, %v4216
      %v4218 = vrot.slane %v4217, 4
      %v4220 = vshrl.u32 %v3863, 16
      %v4222 = vrot.slane %v4220, 5
      %v4223 = vshll.u32 %v3863, 16
      %v4225 = vrot.slane %v4223, 6
      %v4226 = vor.u32 %v4222, %v4225
      %v4227 = vsel %vm1903, %v4218, %v4226
      %v4228 = vrot.slane %v4226, 4
      %v4230 = vshrl.u32 %v3864, 16
      %v4232 = vrot.slane %v4230, 5
      %v4233 = vshll.u32 %v3864, 16
      %v4235 = vrot.slane %v4233, 6
      %v4236 = vor.u32 %v4232, %v4235
      %v4237 = vsel %vm1903, %v4228, %v4236
      %v4239 = vshrl.u32 %v3865, 16
      %v4241 = vrot.slane %v4239, 5
      %v4242 = vshll.u32 %v3865, 16
      %v4244 = vrot.slane %v4242, 6
      %v4245 = vor.u32 %v4241, %v4244
      %v4246 = vrot.slane %v4245, 4
      %v4248 = vshrl.u32 %v3866, 16
      %v4250 = vrot.slane %v4248, 5
      %v4251 = vshll.u32 %v3866, 16
      %v4253 = vrot.slane %v4251, 6
      %v4254 = vor.u32 %v4250, %v4253
      %v4255 = vsel %vm1903, %v4246, %v4254
      %v4256 = vrot.slane %v4254, 4
      %v4258 = vshrl.u32 %v3867, 16
      %v4260 = vrot.slane %v4258, 5
      %v4261 = vshll.u32 %v3867, 16
      %v4263 = vrot.slane %v4261, 6
      %v4264 = vor.u32 %v4260, %v4263
      %v4265 = vsel %vm1903, %v4256, %v4264
      %v4267 = vshrl.u32 %v3868, 16
      %v4269 = vrot.slane %v4267, 5
      %v4270 = vshll.u32 %v3868, 16
      %v4272 = vrot.slane %v4270, 6
      %v4273 = vor.u32 %v4269, %v4272
      %v4274 = vrot.slane %v4273, 4
      %v4276 = vshrl.u32 %v3869, 16
      %v4278 = vrot.slane %v4276, 5
      %v4279 = vshll.u32 %v3869, 16
      %v4281 = vrot.slane %v4279, 6
      %v4282 = vor.u32 %v4278, %v4281
      %v4283 = vsel %vm1903, %v4274, %v4282
      %v4284 = vrot.slane %v4282, 4
      %v4286 = vshrl.u32 %v3870, 16
      %v4288 = vrot.slane %v4286, 5
      %v4289 = vshll.u32 %v3870, 16
      %v4291 = vrot.slane %v4289, 6
      %v4292 = vor.u32 %v4288, %v4291
      %v4293 = vsel %vm1903, %v4284, %v4292
      %v4295 = vshrl.u32 %v3871, 16
      %v4297 = vrot.slane %v4295, 5
      %v4298 = vshll.u32 %v3871, 16
      %v4300 = vrot.slane %v4298, 6
      %v4301 = vor.u32 %v4297, %v4300
      %v4302 = vrot.slane %v4301, 4
      %v4304 = vshrl.u32 %v3872, 16
      %v4306 = vrot.slane %v4304, 5
      %v4307 = vshll.u32 %v3872, 16
      %v4309 = vrot.slane %v4307, 6
      %v4310 = vor.u32 %v4306, %v4309
      %v4311 = vsel %vm1903, %v4302, %v4310
      %v4312 = vrot.slane %v4310, 4
      %v4314 = vshrl.u32 %v3873, 16
      %v4316 = vrot.slane %v4314, 5
      %v4317 = vshll.u32 %v3873, 16
      %v4319 = vrot.slane %v4317, 6
      %v4320 = vor.u32 %v4316, %v4319
      %v4321 = vsel %vm1903, %v4312, %v4320
      %v4322 = vunpack.c.l.b16 %v3891
      %v4323 = vunpack.c.l.b16 %v3901
      %v4324 = vunpack.c.l.b16 %v3919
      %v4325 = vunpack.c.l.b16 %v3929
      %v4326 = vunpack.c.l.b16 %v3947
      %v4327 = vunpack.c.l.b16 %v3957
      %v4328 = vunpack.c.l.b16 %v3975
      %v4329 = vunpack.c.l.b16 %v3985
      %v4330 = vunpack.c.l.b16 %v4003
      %v4331 = vunpack.c.l.b16 %v4013
      %v4332 = vunpack.c.l.b16 %v4031
      %v4333 = vunpack.c.l.b16 %v4041
      %v4334 = vunpack.c.l.b16 %v4059
      %v4335 = vunpack.c.l.b16 %v4069
      %v4336 = vunpack.c.l.b16 %v4087
      %v4337 = vunpack.c.l.b16 %v4097
      %v4338 = vunpack.c.l.b16 %v4115
      %v4339 = vunpack.c.l.b16 %v4125
      %v4340 = vunpack.c.l.b16 %v4143
      %v4341 = vunpack.c.l.b16 %v4153
      %v4342 = vunpack.c.l.b16 %v4171
      %v4343 = vunpack.c.l.b16 %v4181
      %v4344 = vunpack.c.l.b16 %v4199
      %v4345 = vunpack.c.l.b16 %v4209
      %v4346 = vunpack.c.l.b16 %v4227
      %v4347 = vunpack.c.l.b16 %v4237
      %v4348 = vunpack.c.l.b16 %v4255
      %v4349 = vunpack.c.l.b16 %v4265
      %v4350 = vunpack.c.l.b16 %v4283
      %v4351 = vunpack.c.l.b16 %v4293
      %v4352 = vunpack.c.l.b16 %v4311
      %v4353 = vunpack.c.l.b16 %v4321
      %v4354 = vpack.c.b16 %v4323, %v4322
      %v4355 = vpack.c.b16 %v4325, %v4324
      %v4356 = vpack.c.b16 %v4327, %v4326
      %v4357 = vpack.c.b16 %v4329, %v4328
      %v4358 = vpack.c.b16 %v4331, %v4330
      %v4359 = vpack.c.b16 %v4333, %v4332
      %v4360 = vpack.c.b16 %v4335, %v4334
      %v4361 = vpack.c.b16 %v4337, %v4336
      %v4362 = vpack.c.b16 %v4339, %v4338
      %v4363 = vpack.c.b16 %v4341, %v4340
      %v4364 = vpack.c.b16 %v4343, %v4342
      %v4365 = vpack.c.b16 %v4345, %v4344
      %v4366 = vpack.c.b16 %v4347, %v4346
      %v4367 = vpack.c.b16 %v4349, %v4348
      %v4368 = vpack.c.b16 %v4351, %v4350
      %v4369 = vpack.c.b16 %v4353, %v4352
      %4386 = vst [vmem:[#allocation2 + $0x10] sm:$0xff] %v4354
      %4387 = vst [vmem:[#allocation2 + $0x28] sm:$0xff] %v4355
      %4388 = vst [vmem:[#allocation2 + $0x40] sm:$0xff] %v4356
      %4389 = vst [vmem:[#allocation2 + $0x58] sm:$0xff] %v4357
      %4390 = vst [vmem:[#allocation2 + $0x70] sm:$0xff] %v4358
      %4391 = vst [vmem:[#allocation2 + $0x88] sm:$0xff] %v4359
      %4392 = vst [vmem:[#allocation2 + $0xa0] sm:$0xff] %v4360
      %4393 = vst [vmem:[#allocation2 + $0xb8] sm:$0xff] %v4361
      %4394 = vst [vmem:[#allocation2 + $0xd0] sm:$0xff] %v4362
      %4395 = vst [vmem:[#allocation2 + $0xe8] sm:$0xff] %v4363
      %4396 = vst [vmem:[#allocation2 + $0x100] sm:$0xff] %v4364
      %4397 = vst [vmem:[#allocation2 + $0x118] sm:$0xff] %v4365
      %4398 = vst [vmem:[#allocation2 + $0x130] sm:$0xff] %v4366
      %4399 = vst [vmem:[#allocation2 + $0x148] sm:$0xff] %v4367
      %4400 = vst [vmem:[#allocation2 + $0x160] sm:$0xff] %v4368
      %4401 = vst [vmem:[#allocation2 + $0x178] sm:$0xff] %v4369
      %v4402 = vld [vmem:[#allocation2] sm:$0xff]
      %v4403 = vld [vmem:[#allocation2 + $0x8] sm:$0xff]
      %v4404 = vld [vmem:[#allocation2 + $0x10] sm:$0xff]
      %v4405 = vld [vmem:[#allocation2 + $0x18] sm:$0xff]
      %v4406 = vld [vmem:[#allocation2 + $0x20] sm:$0xff]
      %v4407 = vld [vmem:[#allocation2 + $0x28] sm:$0xff]
      %v4408 = vld [vmem:[#allocation2 + $0x30] sm:$0xff]
      %v4409 = vld [vmem:[#allocation2 + $0x38] sm:$0xff]
      %v4410 = vld [vmem:[#allocation2 + $0x40] sm:$0xff]
      %v4411 = vld [vmem:[#allocation2 + $0x48] sm:$0xff]
      %v4412 = vld [vmem:[#allocation2 + $0x50] sm:$0xff]
      %v4413 = vld [vmem:[#allocation2 + $0x58] sm:$0xff]
      %v4414 = vld [vmem:[#allocation2 + $0x60] sm:$0xff]
      %v4415 = vld [vmem:[#allocation2 + $0x68] sm:$0xff]
      %v4416 = vld [vmem:[#allocation2 + $0x70] sm:$0xff]
      %v4417 = vld [vmem:[#allocation2 + $0x78] sm:$0xff]
      %v4418 = vld [vmem:[#allocation2 + $0x80] sm:$0xff]
      %v4419 = vld [vmem:[#allocation2 + $0x88] sm:$0xff]
      %v4420 = vld [vmem:[#allocation2 + $0x90] sm:$0xff]
      %v4421 = vld [vmem:[#allocation2 + $0x98] sm:$0xff]
      %v4422 = vld [vmem:[#allocation2 + $0xa0] sm:$0xff]
      %v4423 = vld [vmem:[#allocation2 + $0xa8] sm:$0xff]
      %v4424 = vld [vmem:[#allocation2 + $0xb0] sm:$0xff]
      %v4425 = vld [vmem:[#allocation2 + $0xb8] sm:$0xff]
      %v4426 = vld [vmem:[#allocation2 + $0xc0] sm:$0xff]
      %v4427 = vld [vmem:[#allocation2 + $0xc8] sm:$0xff]
      %v4428 = vld [vmem:[#allocation2 + $0xd0] sm:$0xff]
      %v4429 = vld [vmem:[#allocation2 + $0xd8] sm:$0xff]
      %v4430 = vld [vmem:[#allocation2 + $0xe0] sm:$0xff]
      %v4431 = vld [vmem:[#allocation2 + $0xe8] sm:$0xff]
      %v4432 = vld [vmem:[#allocation2 + $0xf0] sm:$0xff]
      %v4433 = vld [vmem:[#allocation2 + $0xf8] sm:$0xff]
      %v4434 = vld [vmem:[#allocation2 + $0x100] sm:$0xff]
      %v4435 = vld [vmem:[#allocation2 + $0x108] sm:$0xff]
      %v4436 = vld [vmem:[#allocation2 + $0x110] sm:$0xff]
      %v4437 = vld [vmem:[#allocation2 + $0x118] sm:$0xff]
      %v4438 = vld [vmem:[#allocation2 + $0x120] sm:$0xff]
      %v4439 = vld [vmem:[#allocation2 + $0x128] sm:$0xff]
      %v4440 = vld [vmem:[#allocation2 + $0x130] sm:$0xff]
      %v4441 = vld [vmem:[#allocation2 + $0x138] sm:$0xff]
      %v4442 = vld [vmem:[#allocation2 + $0x140] sm:$0xff]
      %v4443 = vld [vmem:[#allocation2 + $0x148] sm:$0xff]
      %v4444 = vld [vmem:[#allocation2 + $0x150] sm:$0xff]
      %v4445 = vld [vmem:[#allocation2 + $0x158] sm:$0xff]
      %v4446 = vld [vmem:[#allocation2 + $0x160] sm:$0xff]
      %v4447 = vld [vmem:[#allocation2 + $0x168] sm:$0xff]
      %v4448 = vld [vmem:[#allocation2 + $0x170] sm:$0xff]
      %v4449 = vld [vmem:[#allocation2 + $0x178] sm:$0xff]
      %s4450 = scalar_lea.vmem %s3, 192
      %v4451 = vld [vmem:[%s4450] sm:$0xf]
      %v4452 = vld [vmem:[%s4450 + $0x4] sm:$0xf]
      %v4453 = vld [vmem:[%s4450 + $0x8] sm:$0xf]
      %v4454 = vld [vmem:[%s4450 + $0xc] sm:$0xf]
      %v4455 = vld [vmem:[%s4450 + $0x10] sm:$0xf]
      %v4456 = vld [vmem:[%s4450 + $0x14] sm:$0xf]
      %v4457 = vld [vmem:[%s4450 + $0x18] sm:$0xf]
      %v4458 = vld [vmem:[%s4450 + $0x1c] sm:$0xf]
      %v4459 = vld [vmem:[%s4450 + $0x20] sm:$0xf]
      %v4460 = vld [vmem:[%s4450 + $0x24] sm:$0xf]
      %v4461 = vld [vmem:[%s4450 + $0x28] sm:$0xf]
      %v4462 = vld [vmem:[%s4450 + $0x2c] sm:$0xf]
      %v4463 = vld [vmem:[%s4450 + $0x30] sm:$0xf]
      %v4464 = vld [vmem:[%s4450 + $0x34] sm:$0xf]
      %v4465 = vld [vmem:[%s4450 + $0x38] sm:$0xf]
      %v4466 = vld [vmem:[%s4450 + $0x3c] sm:$0xf]
      %v4467 = vld [vmem:[%s4450 + $0x40] sm:$0xf]
      %v4468 = vld [vmem:[%s4450 + $0x44] sm:$0xf]
      %v4469 = vld [vmem:[%s4450 + $0x48] sm:$0xf]
      %v4470 = vld [vmem:[%s4450 + $0x4c] sm:$0xf]
      %v4471 = vld [vmem:[%s4450 + $0x50] sm:$0xf]
      %v4472 = vld [vmem:[%s4450 + $0x54] sm:$0xf]
      %v4473 = vld [vmem:[%s4450 + $0x58] sm:$0xf]
      %v4474 = vld [vmem:[%s4450 + $0x5c] sm:$0xf]
      %v4475 = vld [vmem:[%s4450 + $0x60] sm:$0xf]
      %v4476 = vld [vmem:[%s4450 + $0x64] sm:$0xf]
      %v4477 = vld [vmem:[%s4450 + $0x68] sm:$0xf]
      %v4478 = vld [vmem:[%s4450 + $0x6c] sm:$0xf]
      %v4479 = vld [vmem:[%s4450 + $0x70] sm:$0xf]
      %v4480 = vld [vmem:[%s4450 + $0x74] sm:$0xf]
      %v4481 = vld [vmem:[%s4450 + $0x78] sm:$0xf]
      %v4482 = vld [vmem:[%s4450 + $0x7c] sm:$0xf]
      %v4483 = vld [vmem:[%s4450 + $0x80] sm:$0xf]
      %v4484 = vld [vmem:[%s4450 + $0x84] sm:$0xf]
      %v4485 = vld [vmem:[%s4450 + $0x88] sm:$0xf]
      %v4486 = vld [vmem:[%s4450 + $0x8c] sm:$0xf]
      %v4487 = vld [vmem:[%s4450 + $0x90] sm:$0xf]
      %v4488 = vld [vmem:[%s4450 + $0x94] sm:$0xf]
      %v4489 = vld [vmem:[%s4450 + $0x98] sm:$0xf]
      %v4490 = vld [vmem:[%s4450 + $0x9c] sm:$0xf]
      %v4491 = vld [vmem:[%s4450 + $0xa0] sm:$0xf]
      %v4492 = vld [vmem:[%s4450 + $0xa4] sm:$0xf]
      %v4493 = vld [vmem:[%s4450 + $0xa8] sm:$0xf]
      %v4494 = vld [vmem:[%s4450 + $0xac] sm:$0xf]
      %v4495 = vld [vmem:[%s4450 + $0xb0] sm:$0xf]
      %v4496 = vld [vmem:[%s4450 + $0xb4] sm:$0xf]
      %v4497 = vld [vmem:[%s4450 + $0xb8] sm:$0xf]
      %v4498 = vld [vmem:[%s4450 + $0xbc] sm:$0xf]
      %v4547 = vunpack.c.l.b16 %v4451
      %v4548 = vunpack.c.l.b16 %v4452
      %v4549 = vunpack.c.l.b16 %v4453
      %v4550 = vunpack.c.l.b16 %v4454
      %v4551 = vunpack.c.l.b16 %v4455
      %v4552 = vunpack.c.l.b16 %v4456
      %v4553 = vunpack.c.l.b16 %v4457
      %v4554 = vunpack.c.l.b16 %v4458
      %v4555 = vunpack.c.l.b16 %v4459
      %v4556 = vunpack.c.l.b16 %v4460
      %v4557 = vunpack.c.l.b16 %v4461
      %v4558 = vunpack.c.l.b16 %v4462
      %v4559 = vunpack.c.l.b16 %v4463
      %v4560 = vunpack.c.l.b16 %v4464
      %v4561 = vunpack.c.l.b16 %v4465
      %v4562 = vunpack.c.l.b16 %v4466
      %v4563 = vunpack.c.l.b16 %v4467
      %v4564 = vunpack.c.l.b16 %v4468
      %v4565 = vunpack.c.l.b16 %v4469
      %v4566 = vunpack.c.l.b16 %v4470
      %v4567 = vunpack.c.l.b16 %v4471
      %v4568 = vunpack.c.l.b16 %v4472
      %v4569 = vunpack.c.l.b16 %v4473
      %v4570 = vunpack.c.l.b16 %v4474
      %v4571 = vunpack.c.l.b16 %v4475
      %v4572 = vunpack.c.l.b16 %v4476
      %v4573 = vunpack.c.l.b16 %v4477
      %v4574 = vunpack.c.l.b16 %v4478
      %v4575 = vunpack.c.l.b16 %v4479
      %v4576 = vunpack.c.l.b16 %v4480
      %v4577 = vunpack.c.l.b16 %v4481
      %v4578 = vunpack.c.l.b16 %v4482
      %v4579 = vunpack.c.l.b16 %v4483
      %v4580 = vunpack.c.l.b16 %v4484
      %v4581 = vunpack.c.l.b16 %v4485
      %v4582 = vunpack.c.l.b16 %v4486
      %v4583 = vunpack.c.l.b16 %v4487
      %v4584 = vunpack.c.l.b16 %v4488
      %v4585 = vunpack.c.l.b16 %v4489
      %v4586 = vunpack.c.l.b16 %v4490
      %v4587 = vunpack.c.l.b16 %v4491
      %v4588 = vunpack.c.l.b16 %v4492
      %v4589 = vunpack.c.l.b16 %v4493
      %v4590 = vunpack.c.l.b16 %v4494
      %v4591 = vunpack.c.l.b16 %v4495
      %v4592 = vunpack.c.l.b16 %v4496
      %v4593 = vunpack.c.l.b16 %v4497
      %v4594 = vunpack.c.l.b16 %v4498
      %v4595 = vpack.c.b16 %v4548, %v4547
      %v4596 = vpack.c.b16 %v4550, %v4549
      %v4597 = vpack.c.b16 %v4552, %v4551
      %v4598 = vpack.c.b16 %v4554, %v4553
      %v4599 = vpack.c.b16 %v4556, %v4555
      %v4600 = vpack.c.b16 %v4558, %v4557
      %v4601 = vpack.c.b16 %v4560, %v4559
      %v4602 = vpack.c.b16 %v4562, %v4561
      %v4603 = vpack.c.b16 %v4564, %v4563
      %v4604 = vpack.c.b16 %v4566, %v4565
      %v4605 = vpack.c.b16 %v4568, %v4567
      %v4606 = vpack.c.b16 %v4570, %v4569
      %v4607 = vpack.c.b16 %v4572, %v4571
      %v4608 = vpack.c.b16 %v4574, %v4573
      %v4609 = vpack.c.b16 %v4576, %v4575
      %v4610 = vpack.c.b16 %v4578, %v4577
      %v4611 = vpack.c.b16 %v4580, %v4579
      %v4612 = vpack.c.b16 %v4582, %v4581
      %v4613 = vpack.c.b16 %v4584, %v4583
      %v4614 = vpack.c.b16 %v4586, %v4585
      %v4615 = vpack.c.b16 %v4588, %v4587
      %v4616 = vpack.c.b16 %v4590, %v4589
      %v4617 = vpack.c.b16 %v4592, %v4591
      %v4618 = vpack.c.b16 %v4594, %v4593
      %4643 = vmatprep.subr.bf16.mxu0 0
      %4644 = vmatpush1.bf16.msra.mxu0 %v4595
      %4645 = vmatprep.subr.bf16.mxu0 0
      %4646 = vmatpush1.bf16.msra.mxu0 %v4596
      %4647 = vmatprep.subr.bf16.mxu0 0
      %4648 = vmatpush1.bf16.msra.mxu0 %v4597
      %4649 = vmatprep.subr.bf16.mxu0 0
      %4650 = vmatpush1.bf16.msra.mxu0 %v4598
      %4651 = vmatprep.subr.bf16.mxu0 0
      %4652 = vmatpush1.bf16.msra.mxu0 %v4599
      %4653 = vmatprep.subr.bf16.mxu0 0
      %4654 = vmatpush1.bf16.msra.mxu0 %v4600
      %4655 = vmatprep.subr.bf16.mxu0 0
      %4656 = vmatpush1.bf16.msra.mxu0 %v4601
      %4657 = vmatprep.subr.bf16.mxu0 0
      %4658 = vmatpush1.bf16.msra.mxu0 %v4602
      %4659 = vmatprep.subr.bf16.mxu0 0
      %4660 = vmatpush1.bf16.msra.mxu0 %v4603
      %4661 = vmatprep.subr.bf16.mxu0 0
      %4662 = vmatpush1.bf16.msra.mxu0 %v4604
      %4663 = vmatprep.subr.bf16.mxu0 0
      %4664 = vmatpush1.bf16.msra.mxu0 %v4605
      %4665 = vmatprep.subr.bf16.mxu0 0
      %4666 = vmatpush1.bf16.msra.mxu0 %v4606
      %4667 = vmatprep.subr.bf16.mxu0 0
      %4668 = vmatpush1.bf16.msra.mxu0 %v4607
      %4669 = vmatprep.subr.bf16.mxu0 0
      %4670 = vmatpush1.bf16.msra.mxu0 %v4608
      %4671 = vmatprep.subr.bf16.mxu0 0
      %4672 = vmatpush1.bf16.msra.mxu0 %v4609
      %4673 = vmatprep.subr.bf16.mxu0 0
      %4674 = vmatpush1.bf16.msra.mxu0 %v4610
      %4675 = vmatprep.mubr.bf16.mxu0 %v4403
      %4676 = vmatmul.mubr.bf16.gmra.mrb[0].mxu0 %v4402
      %v4677 = vpop.f32.mrb[0].mxu0
      %v4678 = vadd.f32 0.0, %v4677
      %v4679 = vpop.f32.mrb[0].mxu0
      %v4680 = vpop.f32.mrb[0].mxu0
      %v4681 = vadd.f32 0.0, %v4680
      %v4682 = vpop.f32.mrb[0].mxu0
      %4683 = vmatprep.mubr.bf16.mxu0 %v4406
      %4684 = vmatmul.mubr.bf16.gmra.mrb[0].mxu0 %v4405
      %v4685 = vpop.f32.mrb[0].mxu0
      %v4686 = vadd.f32 0.0, %v4685
      %v4687 = vpop.f32.mrb[0].mxu0
      %v4688 = vpop.f32.mrb[0].mxu0
      %v4689 = vadd.f32 0.0, %v4688
      %v4690 = vpop.f32.mrb[0].mxu0
      %4691 = vmatprep.mubr.bf16.mxu0 %v4409
      %4692 = vmatmul.mubr.bf16.gmra.mrb[0].mxu0 %v4408
      %v4693 = vpop.f32.mrb[0].mxu0
      %v4694 = vadd.f32 0.0, %v4693
      %v4695 = vpop.f32.mrb[0].mxu0
      %v4696 = vpop.f32.mrb[0].mxu0
      %v4697 = vadd.f32 0.0, %v4696
      %v4698 = vpop.f32.mrb[0].mxu0
      %4699 = vmatprep.mubr.bf16.mxu0 %v4412
      %4700 = vmatmul.mubr.bf16.gmra.mrb[0].mxu0 %v4411
      %v4701 = vpop.f32.mrb[0].mxu0
      %v4702 = vadd.f32 0.0, %v4701
      %v4703 = vpop.f32.mrb[0].mxu0
      %v4704 = vpop.f32.mrb[0].mxu0
      %v4705 = vadd.f32 0.0, %v4704
      %v4706 = vpop.f32.mrb[0].mxu0
      %4707 = vmatprep.mubr.bf16.mxu0 %v4415
      %4708 = vmatmul.mubr.bf16.gmra.mrb[0].mxu0 %v4414
      %v4709 = vpop.f32.mrb[0].mxu0
      %v4710 = vadd.f32 0.0, %v4709
      %v4711 = vpop.f32.mrb[0].mxu0
      %v4712 = vpop.f32.mrb[0].mxu0
      %v4713 = vadd.f32 0.0, %v4712
      %v4714 = vpop.f32.mrb[0].mxu0
      %4715 = vmatprep.mubr.bf16.mxu0 %v4418
      %4716 = vmatmul.mubr.bf16.gmra.mrb[0].mxu0 %v4417
      %v4717 = vpop.f32.mrb[0].mxu0
      %v4718 = vadd.f32 0.0, %v4717
      %v4719 = vpop.f32.mrb[0].mxu0
      %v4720 = vpop.f32.mrb[0].mxu0
      %v4721 = vadd.f32 0.0, %v4720
      %v4722 = vpop.f32.mrb[0].mxu0
      %4723 = vmatprep.mubr.bf16.mxu0 %v4421
      %4724 = vmatmul.mubr.bf16.gmra.mrb[0].mxu0 %v4420
      %v4725 = vpop.f32.mrb[0].mxu0
      %v4726 = vadd.f32 0.0, %v4725
      %v4727 = vpop.f32.mrb[0].mxu0
      %v4728 = vpop.f32.mrb[0].mxu0
      %v4729 = vadd.f32 0.0, %v4728
      %v4730 = vpop.f32.mrb[0].mxu0
      %4731 = vmatprep.mubr.bf16.mxu0 %v4424
      %4732 = vmatmul.mubr.bf16.gmra.mrb[0].mxu0 %v4423
      %v4733 = vpop.f32.mrb[0].mxu0
      %v4734 = vadd.f32 0.0, %v4733
      %v4735 = vpop.f32.mrb[0].mxu0
      %v4736 = vpop.f32.mrb[0].mxu0
      %v4737 = vadd.f32 0.0, %v4736
      %v4738 = vpop.f32.mrb[0].mxu0
      %4739 = vmatprep.mubr.bf16.mxu0 %v4427
      %4740 = vmatmul.mubr.bf16.gmra.mrb[0].mxu0 %v4426
      %v4741 = vpop.f32.mrb[0].mxu0
      %v4742 = vadd.f32 0.0, %v4741
      %v4743 = vpop.f32.mrb[0].mxu0
      %v4744 = vpop.f32.mrb[0].mxu0
      %v4745 = vadd.f32 0.0, %v4744
      %v4746 = vpop.f32.mrb[0].mxu0
      %4747 = vmatprep.mubr.bf16.mxu0 %v4430
      %4748 = vmatmul.mubr.bf16.gmra.mrb[0].mxu0 %v4429
      %v4749 = vpop.f32.mrb[0].mxu0
      %v4750 = vadd.f32 0.0, %v4749
      %v4751 = vpop.f32.mrb[0].mxu0
      %v4752 = vpop.f32.mrb[0].mxu0
      %v4753 = vadd.f32 0.0, %v4752
      %v4754 = vpop.f32.mrb[0].mxu0
      %4755 = vmatprep.mubr.bf16.mxu0 %v4433
      %4756 = vmatmul.mubr.bf16.gmra.mrb[0].mxu0 %v4432
      %v4757 = vpop.f32.mrb[0].mxu0
      %v4758 = vadd.f32 0.0, %v4757
      %v4759 = vpop.f32.mrb[0].mxu0
      %v4760 = vpop.f32.mrb[0].mxu0
      %v4761 = vadd.f32 0.0, %v4760
      %v4762 = vpop.f32.mrb[0].mxu0
      %4763 = vmatprep.mubr.bf16.mxu0 %v4436
      %4764 = vmatmul.mubr.bf16.gmra.mrb[0].mxu0 %v4435
      %v4765 = vpop.f32.mrb[0].mxu0
      %v4766 = vadd.f32 0.0, %v4765
      %v4767 = vpop.f32.mrb[0].mxu0
      %v4768 = vpop.f32.mrb[0].mxu0
      %v4769 = vadd.f32 0.0, %v4768
      %v4770 = vpop.f32.mrb[0].mxu0
      %4771 = vmatprep.mubr.bf16.mxu0 %v4439
      %4772 = vmatmul.mubr.bf16.gmra.mrb[0].mxu0 %v4438
      %v4773 = vpop.f32.mrb[0].mxu0
      %v4774 = vadd.f32 0.0, %v4773
      %v4775 = vpop.f32.mrb[0].mxu0
      %v4776 = vpop.f32.mrb[0].mxu0
      %v4777 = vadd.f32 0.0, %v4776
      %v4778 = vpop.f32.mrb[0].mxu0
      %4779 = vmatprep.mubr.bf16.mxu0 %v4442
      %4780 = vmatmul.mubr.bf16.gmra.mrb[0].mxu0 %v4441
      %v4781 = vpop.f32.mrb[0].mxu0
      %v4782 = vadd.f32 0.0, %v4781
      %v4783 = vpop.f32.mrb[0].mxu0
      %v4784 = vpop.f32.mrb[0].mxu0
      %v4785 = vadd.f32 0.0, %v4784
      %v4786 = vpop.f32.mrb[0].mxu0
      %4787 = vmatprep.mubr.bf16.mxu0 %v4445
      %4788 = vmatmul.mubr.bf16.gmra.mrb[0].mxu0 %v4444
      %v4789 = vpop.f32.mrb[0].mxu0
      %v4790 = vadd.f32 0.0, %v4789
      %v4791 = vpop.f32.mrb[0].mxu0
      %v4792 = vpop.f32.mrb[0].mxu0
      %v4793 = vadd.f32 0.0, %v4792
      %v4794 = vpop.f32.mrb[0].mxu0
      %4795 = vmatprep.mubr.bf16.mxu0 %v4448
      %4796 = vmatmul.mubr.bf16.gmra.mrb[0].mxu0 %v4447
      %v4797 = vpop.f32.mrb[0].mxu0
      %v4798 = vadd.f32 0.0, %v4797
      %v4799 = vpop.f32.mrb[0].mxu0
      %v4800 = vpop.f32.mrb[0].mxu0
      %v4801 = vadd.f32 0.0, %v4800
      %v4802 = vpop.f32.mrb[0].mxu0
      %4803 = vdwg.mxu0
      %4804 = vmatprep.subr.bf16.mxu0 0
      %4805 = vmatpush1.bf16.msra.mxu0 %v4611
      %4806 = vmatprep.subr.bf16.mxu0 0
      %4807 = vmatpush1.bf16.msra.mxu0 %v4612
      %4808 = vmatprep.subr.bf16.mxu0 0
      %4809 = vmatpush1.bf16.msra.mxu0 %v4613
      %4810 = vmatprep.subr.bf16.mxu0 0
      %4811 = vmatpush1.bf16.msra.mxu0 %v4614
      %4812 = vmatprep.subr.bf16.mxu0 0
      %4813 = vmatpush1.bf16.msra.mxu0 %v4615
      %4814 = vmatprep.subr.bf16.mxu0 0
      %4815 = vmatpush1.bf16.msra.mxu0 %v4616
      %4816 = vmatprep.subr.bf16.mxu0 0
      %4817 = vmatpush1.bf16.msra.mxu0 %v4617
      %4818 = vmatprep.subr.bf16.mxu0 0
      %4819 = vmatpush1.bf16.msra.mxu0 %v4618
      %4820 = vmatprep.subr.bf16.mxu0 0
      %4821 = vmatpush1.bf16.msra.mxu0 0
      %4822 = vmatprep.subr.bf16.mxu0 0
      %4823 = vmatpush1.bf16.msra.mxu0 0
      %4824 = vmatprep.subr.bf16.mxu0 0
      %4825 = vmatpush1.bf16.msra.mxu0 0
      %4826 = vmatprep.subr.bf16.mxu0 0
      %4827 = vmatpush1.bf16.msra.mxu0 0
      %4828 = vmatprep.subr.bf16.mxu0 0
      %4829 = vmatpush1.bf16.msra.mxu0 0
      %4830 = vmatprep.subr.bf16.mxu0 0
      %4831 = vmatpush1.bf16.msra.mxu0 0
      %4832 = vmatprep.subr.bf16.mxu0 0
      %4833 = vmatpush1.bf16.msra.mxu0 0
      %4834 = vmatprep.subr.bf16.mxu0 0
      %4835 = vmatpush1.bf16.msra.mxu0 0
      %4836 = vmatprep.mubr.bf16.mxu0 0
      %4837 = vmatmul.mubr.bf16.gmra.mrb[0].mxu0 %v4404
      %v4838 = vpop.f32.mrb[0].mxu0
      %v4839 = vadd.f32 %v4678, %v4838
      %v4840 = vpop.f32.mrb[0].mxu0
      %v4841 = vpop.f32.mrb[0].mxu0
      %v4842 = vadd.f32 %v4681, %v4841
      %v4843 = vpop.f32.mrb[0].mxu0
      %4844 = vmatprep.mubr.bf16.mxu0 0
      %4845 = vmatmul.mubr.bf16.gmra.mrb[0].mxu0 %v4407
      %v4846 = vpop.f32.mrb[0].mxu0
      %v4847 = vadd.f32 %v4686, %v4846
      %v4848 = vpop.f32.mrb[0].mxu0
      %v4849 = vpop.f32.mrb[0].mxu0
      %v4850 = vadd.f32 %v4689, %v4849
      %v4851 = vpop.f32.mrb[0].mxu0
      %4852 = vmatprep.mubr.bf16.mxu0 0
      %4853 = vmatmul.mubr.bf16.gmra.mrb[0].mxu0 %v4410
      %v4854 = vpop.f32.mrb[0].mxu0
      %v4855 = vadd.f32 %v4694, %v4854
      %v4856 = vpop.f32.mrb[0].mxu0
      %v4857 = vpop.f32.mrb[0].mxu0
      %v4858 = vadd.f32 %v4697, %v4857
      %v4859 = vpop.f32.mrb[0].mxu0
      %4860 = vmatprep.mubr.bf16.mxu0 0
      %4861 = vmatmul.mubr.bf16.gmra.mrb[0].mxu0 %v4413
      %v4862 = vpop.f32.mrb[0].mxu0
      %v4863 = vadd.f32 %v4702, %v4862
      %v4864 = vpop.f32.mrb[0].mxu0
      %v4865 = vpop.f32.mrb[0].mxu0
      %v4866 = vadd.f32 %v4705, %v4865
      %v4867 = vpop.f32.mrb[0].mxu0
      %4868 = vmatprep.mubr.bf16.mxu0 0
      %4869 = vmatmul.mubr.bf16.gmra.mrb[0].mxu0 %v4416
      %v4870 = vpop.f32.mrb[0].mxu0
      %v4871 = vadd.f32 %v4710, %v4870
      %v4872 = vpop.f32.mrb[0].mxu0
      %v4873 = vpop.f32.mrb[0].mxu0
      %v4874 = vadd.f32 %v4713, %v4873
      %v4875 = vpop.f32.mrb[0].mxu0
      %4876 = vmatprep.mubr.bf16.mxu0 0
      %4877 = vmatmul.mubr.bf16.gmra.mrb[0].mxu0 %v4419
      %v4878 = vpop.f32.mrb[0].mxu0
      %v4879 = vadd.f32 %v4718, %v4878
      %v4880 = vpop.f32.mrb[0].mxu0
      %v4881 = vpop.f32.mrb[0].mxu0
      %v4882 = vadd.f32 %v4721, %v4881
      %v4883 = vpop.f32.mrb[0].mxu0
      %4884 = vmatprep.mubr.bf16.mxu0 0
      %4885 = vmatmul.mubr.bf16.gmra.mrb[0].mxu0 %v4422
      %v4886 = vpop.f32.mrb[0].mxu0
      %v4887 = vadd.f32 %v4726, %v4886
      %v4888 = vpop.f32.mrb[0].mxu0
      %v4889 = vpop.f32.mrb[0].mxu0
      %v4890 = vadd.f32 %v4729, %v4889
      %v4891 = vpop.f32.mrb[0].mxu0
      %4892 = vmatprep.mubr.bf16.mxu0 0
      %4893 = vmatmul.mubr.bf16.gmra.mrb[0].mxu0 %v4425
      %v4894 = vpop.f32.mrb[0].mxu0
      %v4895 = vadd.f32 %v4734, %v4894
      %v4896 = vpop.f32.mrb[0].mxu0
      %v4897 = vpop.f32.mrb[0].mxu0
      %v4898 = vadd.f32 %v4737, %v4897
      %v4899 = vpop.f32.mrb[0].mxu0
      %4900 = vmatprep.mubr.bf16.mxu0 0
      %4901 = vmatmul.mubr.bf16.gmra.mrb[0].mxu0 %v4428
      %v4902 = vpop.f32.mrb[0].mxu0
      %v4903 = vadd.f32 %v4742, %v4902
      %v4904 = vpop.f32.mrb[0].mxu0
      %v4905 = vpop.f32.mrb[0].mxu0
      %v4906 = vadd.f32 %v4745, %v4905
      %v4907 = vpop.f32.mrb[0].mxu0
      %4908 = vmatprep.mubr.bf16.mxu0 0
      %4909 = vmatmul.mubr.bf16.gmra.mrb[0].mxu0 %v4431
      %v4910 = vpop.f32.mrb[0].mxu0
      %v4911 = vadd.f32 %v4750, %v4910
      %v4912 = vpop.f32.mrb[0].mxu0
      %v4913 = vpop.f32.mrb[0].mxu0
      %v4914 = vadd.f32 %v4753, %v4913
      %v4915 = vpop.f32.mrb[0].mxu0
      %4916 = vmatprep.mubr.bf16.mxu0 0
      %4917 = vmatmul.mubr.bf16.gmra.mrb[0].mxu0 %v4434
      %v4918 = vpop.f32.mrb[0].mxu0
      %v4919 = vadd.f32 %v4758, %v4918
      %v4920 = vpop.f32.mrb[0].mxu0
      %v4921 = vpop.f32.mrb[0].mxu0
      %v4922 = vadd.f32 %v4761, %v4921
      %v4923 = vpop.f32.mrb[0].mxu0
      %4924 = vmatprep.mubr.bf16.mxu0 0
      %4925 = vmatmul.mubr.bf16.gmra.mrb[0].mxu0 %v4437
      %v4926 = vpop.f32.mrb[0].mxu0
      %v4927 = vadd.f32 %v4766, %v4926
      %v4928 = vpop.f32.mrb[0].mxu0
      %v4929 = vpop.f32.mrb[0].mxu0
      %v4930 = vadd.f32 %v4769, %v4929
      %v4931 = vpop.f32.mrb[0].mxu0
      %4932 = vmatprep.mubr.bf16.mxu0 0
      %4933 = vmatmul.mubr.bf16.gmra.mrb[0].mxu0 %v4440
      %v4934 = vpop.f32.mrb[0].mxu0
      %v4935 = vadd.f32 %v4774, %v4934
      %v4936 = vpop.f32.mrb[0].mxu0
      %v4937 = vpop.f32.mrb[0].mxu0
      %v4938 = vadd.f32 %v4777, %v4937
      %v4939 = vpop.f32.mrb[0].mxu0
      %4940 = vmatprep.mubr.bf16.mxu0 0
      %4941 = vmatmul.mubr.bf16.gmra.mrb[0].mxu0 %v4443
      %v4942 = vpop.f32.mrb[0].mxu0
      %v4943 = vadd.f32 %v4782, %v4942
      %v4944 = vpop.f32.mrb[0].mxu0
      %v4945 = vpop.f32.mrb[0].mxu0
      %v4946 = vadd.f32 %v4785, %v4945
      %v4947 = vpop.f32.mrb[0].mxu0
      %4948 = vmatprep.mubr.bf16.mxu0 0
      %4949 = vmatmul.mubr.bf16.gmra.mrb[0].mxu0 %v4446
      %v4950 = vpop.f32.mrb[0].mxu0
      %v4951 = vadd.f32 %v4790, %v4950
      %v4952 = vpop.f32.mrb[0].mxu0
      %v4953 = vpop.f32.mrb[0].mxu0
      %v4954 = vadd.f32 %v4793, %v4953
      %v4955 = vpop.f32.mrb[0].mxu0
      %4956 = vmatprep.mubr.bf16.mxu0 0
      %4957 = vmatmul.mubr.bf16.gmra.mrb[0].mxu0 %v4449
      %v4958 = vpop.f32.mrb[0].mxu0
      %v4959 = vadd.f32 %v4798, %v4958
      %v4960 = vpop.f32.mrb[0].mxu0
      %v4961 = vpop.f32.mrb[0].mxu0
      %v4962 = vadd.f32 %v4801, %v4961
      %v4963 = vpop.f32.mrb[0].mxu0
      %4964 = vdwg.mxu0
      %v4965 = vld [vmem:[#allocation3] sm:$0xff]
      %v4966 = vld [vmem:[#allocation3 + $0x8] sm:$0xff]
      %v4967 = vld [vmem:[#allocation3 + $0x10] sm:$0xff]
      %v4968 = vld [vmem:[#allocation3 + $0x18] sm:$0xff]
      %v4969 = vld [vmem:[#allocation3 + $0x20] sm:$0xff]
      %v4970 = vld [vmem:[#allocation3 + $0x28] sm:$0xff]
      %v4971 = vld [vmem:[#allocation3 + $0x30] sm:$0xff]
      %v4972 = vld [vmem:[#allocation3 + $0x38] sm:$0xff]
      %v4973 = vld [vmem:[#allocation3 + $0x40] sm:$0xff]
      %v4974 = vld [vmem:[#allocation3 + $0x48] sm:$0xff]
      %v4975 = vld [vmem:[#allocation3 + $0x50] sm:$0xff]
      %v4976 = vld [vmem:[#allocation3 + $0x58] sm:$0xff]
      %v4977 = vld [vmem:[#allocation3 + $0x60] sm:$0xff]
      %v4978 = vld [vmem:[#allocation3 + $0x68] sm:$0xff]
      %v4979 = vld [vmem:[#allocation3 + $0x70] sm:$0xff]
      %v4980 = vld [vmem:[#allocation3 + $0x78] sm:$0xff]
      %v4981 = vld [vmem:[#allocation3 + $0x80] sm:$0xff]
      %v4982 = vld [vmem:[#allocation3 + $0x88] sm:$0xff]
      %v4983 = vld [vmem:[#allocation3 + $0x90] sm:$0xff]
      %v4984 = vld [vmem:[#allocation3 + $0x98] sm:$0xff]
      %v4985 = vld [vmem:[#allocation3 + $0xa0] sm:$0xff]
      %v4986 = vld [vmem:[#allocation3 + $0xa8] sm:$0xff]
      %v4987 = vld [vmem:[#allocation3 + $0xb0] sm:$0xff]
      %v4988 = vld [vmem:[#allocation3 + $0xb8] sm:$0xff]
      %v4989 = vld [vmem:[#allocation3 + $0xc0] sm:$0xff]
      %v4990 = vld [vmem:[#allocation3 + $0xc8] sm:$0xff]
      %v4991 = vld [vmem:[#allocation3 + $0xd0] sm:$0xff]
      %v4992 = vld [vmem:[#allocation3 + $0xd8] sm:$0xff]
      %v4993 = vld [vmem:[#allocation3 + $0xe0] sm:$0xff]
      %v4994 = vld [vmem:[#allocation3 + $0xe8] sm:$0xff]
      %v4995 = vld [vmem:[#allocation3 + $0xf0] sm:$0xff]
      %v4996 = vld [vmem:[#allocation3 + $0xf8] sm:$0xff]
      %v4997 = vadd.f32 %v4965, %v4839
      %v4998 = vadd.f32 %v4966, %v4842
      %v4999 = vadd.f32 %v4967, %v4847
      %v5000 = vadd.f32 %v4968, %v4850
      %v5001 = vadd.f32 %v4969, %v4855
      %v5002 = vadd.f32 %v4970, %v4858
      %v5003 = vadd.f32 %v4971, %v4863
      %v5004 = vadd.f32 %v4972, %v4866
      %v5005 = vadd.f32 %v4973, %v4871
      %v5006 = vadd.f32 %v4974, %v4874
      %v5007 = vadd.f32 %v4975, %v4879
      %v5008 = vadd.f32 %v4976, %v4882
      %v5009 = vadd.f32 %v4977, %v4887
      %v5010 = vadd.f32 %v4978, %v4890
      %v5011 = vadd.f32 %v4979, %v4895
      %v5012 = vadd.f32 %v4980, %v4898
      %v5013 = vadd.f32 %v4981, %v4903
      %v5014 = vadd.f32 %v4982, %v4906
      %v5015 = vadd.f32 %v4983, %v4911
      %v5016 = vadd.f32 %v4984, %v4914
      %v5017 = vadd.f32 %v4985, %v4919
      %v5018 = vadd.f32 %v4986, %v4922
      %v5019 = vadd.f32 %v4987, %v4927
      %v5020 = vadd.f32 %v4988, %v4930
      %v5021 = vadd.f32 %v4989, %v4935
      %v5022 = vadd.f32 %v4990, %v4938
      %v5023 = vadd.f32 %v4991, %v4943
      %v5024 = vadd.f32 %v4992, %v4946
      %v5025 = vadd.f32 %v4993, %v4951
      %v5026 = vadd.f32 %v4994, %v4954
      %v5027 = vadd.f32 %v4995, %v4959
      %v5028 = vadd.f32 %v4996, %v4962
      %5029 = vst [vmem:[#allocation3] sm:$0xff] %v4997
      %5030 = vst [vmem:[#allocation3 + $0x8] sm:$0xff] %v4998
      %5031 = vst [vmem:[#allocation3 + $0x10] sm:$0xff] %v4999
      %5032 = vst [vmem:[#allocation3 + $0x18] sm:$0xff] %v5000
      %5033 = vst [vmem:[#allocation3 + $0x20] sm:$0xff] %v5001
      %5034 = vst [vmem:[#allocation3 + $0x28] sm:$0xff] %v5002
      %5035 = vst [vmem:[#allocation3 + $0x30] sm:$0xff] %v5003
      %5036 = vst [vmem:[#allocation3 + $0x38] sm:$0xff] %v5004
      %5037 = vst [vmem:[#allocation3 + $0x40] sm:$0xff] %v5005
      %5038 = vst [vmem:[#allocation3 + $0x48] sm:$0xff] %v5006
      %5039 = vst [vmem:[#allocation3 + $0x50] sm:$0xff] %v5007
      %5040 = vst [vmem:[#allocation3 + $0x58] sm:$0xff] %v5008
      %5041 = vst [vmem:[#allocation3 + $0x60] sm:$0xff] %v5009
      %5042 = vst [vmem:[#allocation3 + $0x68] sm:$0xff] %v5010
      %5043 = vst [vmem:[#allocation3 + $0x70] sm:$0xff] %v5011
      %5044 = vst [vmem:[#allocation3 + $0x78] sm:$0xff] %v5012
      %5045 = vst [vmem:[#allocation3 + $0x80] sm:$0xff] %v5013
      %5046 = vst [vmem:[#allocation3 + $0x88] sm:$0xff] %v5014
      %5047 = vst [vmem:[#allocation3 + $0x90] sm:$0xff] %v5015
      %5048 = vst [vmem:[#allocation3 + $0x98] sm:$0xff] %v5016
      %5049 = vst [vmem:[#allocation3 + $0xa0] sm:$0xff] %v5017
      %5050 = vst [vmem:[#allocation3 + $0xa8] sm:$0xff] %v5018
      %5051 = vst [vmem:[#allocation3 + $0xb0] sm:$0xff] %v5019
      %5052 = vst [vmem:[#allocation3 + $0xb8] sm:$0xff] %v5020
      %5053 = vst [vmem:[#allocation3 + $0xc0] sm:$0xff] %v5021
      %5054 = vst [vmem:[#allocation3 + $0xc8] sm:$0xff] %v5022
      %5055 = vst [vmem:[#allocation3 + $0xd0] sm:$0xff] %v5023
      %5056 = vst [vmem:[#allocation3 + $0xd8] sm:$0xff] %v5024
      %5057 = vst [vmem:[#allocation3 + $0xe0] sm:$0xff] %v5025
      %5058 = vst [vmem:[#allocation3 + $0xe8] sm:$0xff] %v5026
      %5059 = vst [vmem:[#allocation3 + $0xf0] sm:$0xff] %v5027
      %5060 = vst [vmem:[#allocation3 + $0xf8] sm:$0xff] %v5028
      %s5061 = scalar_lea.vmem %s313, 24
      %v5062 = vld [vmem:[%s5061] sm:$0xf]
      %v5063 = vld [vmem:[%s5061 + $0x4] sm:$0xf]
      %v5064 = vld [vmem:[%s5061 + $0x8] sm:$0x1]
      %v5065 = vld [vmem:[%s5061 + $0xc] sm:$0xf]
      %v5066 = vld [vmem:[%s5061 + $0x10] sm:$0xf]
      %v5067 = vld [vmem:[%s5061 + $0x14] sm:$0x1]
      %v5068 = vld [vmem:[%s5061 + $0x18] sm:$0xf]
      %v5069 = vld [vmem:[%s5061 + $0x1c] sm:$0xf]
      %v5070 = vld [vmem:[%s5061 + $0x20] sm:$0x1]
      %v5071 = vld [vmem:[%s5061 + $0x24] sm:$0xf]
      %v5072 = vld [vmem:[%s5061 + $0x28] sm:$0xf]
      %v5073 = vld [vmem:[%s5061 + $0x2c] sm:$0x1]
      %v5074 = vld [vmem:[%s5061 + $0x30] sm:$0xf]
      %v5075 = vld [vmem:[%s5061 + $0x34] sm:$0xf]
      %v5076 = vld [vmem:[%s5061 + $0x38] sm:$0x1]
      %v5077 = vld [vmem:[%s5061 + $0x3c] sm:$0xf]
      %v5078 = vld [vmem:[%s5061 + $0x40] sm:$0xf]
      %v5079 = vld [vmem:[%s5061 + $0x44] sm:$0x1]
      %v5080 = vld [vmem:[%s5061 + $0x48] sm:$0xf]
      %v5081 = vld [vmem:[%s5061 + $0x4c] sm:$0xf]
      %v5082 = vld [vmem:[%s5061 + $0x50] sm:$0x1]
      %v5083 = vld [vmem:[%s5061 + $0x54] sm:$0xf]
      %v5084 = vld [vmem:[%s5061 + $0x58] sm:$0xf]
      %v5085 = vld [vmem:[%s5061 + $0x5c] sm:$0x1]
      %v5086 = vld [vmem:[%s5061 + $0x60] sm:$0xf]
      %v5087 = vld [vmem:[%s5061 + $0x64] sm:$0xf]
      %v5088 = vld [vmem:[%s5061 + $0x68] sm:$0x1]
      %v5089 = vld [vmem:[%s5061 + $0x6c] sm:$0xf]
      %v5090 = vld [vmem:[%s5061 + $0x70] sm:$0xf]
      %v5091 = vld [vmem:[%s5061 + $0x74] sm:$0x1]
      %v5092 = vld [vmem:[%s5061 + $0x78] sm:$0xf]
      %v5093 = vld [vmem:[%s5061 + $0x7c] sm:$0xf]
      %v5094 = vld [vmem:[%s5061 + $0x80] sm:$0x1]
      %v5095 = vld [vmem:[%s5061 + $0x84] sm:$0xf]
      %v5096 = vld [vmem:[%s5061 + $0x88] sm:$0xf]
      %v5097 = vld [vmem:[%s5061 + $0x8c] sm:$0x1]
      %v5098 = vld [vmem:[%s5061 + $0x90] sm:$0xf]
      %v5099 = vld [vmem:[%s5061 + $0x94] sm:$0xf]
      %v5100 = vld [vmem:[%s5061 + $0x98] sm:$0x1]
      %v5101 = vld [vmem:[%s5061 + $0x9c] sm:$0xf]
      %v5102 = vld [vmem:[%s5061 + $0xa0] sm:$0xf]
      %v5103 = vld [vmem:[%s5061 + $0xa4] sm:$0x1]
      %v5104 = vld [vmem:[%s5061 + $0xa8] sm:$0xf]
      %v5105 = vld [vmem:[%s5061 + $0xac] sm:$0xf]
      %v5106 = vld [vmem:[%s5061 + $0xb0] sm:$0x1]
      %v5107 = vld [vmem:[%s5061 + $0xb4] sm:$0xf]
      %v5108 = vld [vmem:[%s5061 + $0xb8] sm:$0xf]
      %v5109 = vld [vmem:[%s5061 + $0xbc] sm:$0x1]
      %v5111 = vshrl.u32 %v5062, 16
      %v5113 = vrot.slane %v5111, 4
      %v5114 = vshll.u32 %v5062, 16
      %v5116 = vrot.slane %v5114, 5
      %v5117 = vor.u32 %v5113, %v5116
      %v5118 = vrot.slane %v5117, 4
      %v5120 = vshll.u32 %v5063, 16
      %v5122 = vrot.slane %v5120, 5
      %v5123 = vsel %vm1097, %v5118, %v5122
      %v5124 = vshrl.u32 %v5063, 16
      %v5126 = vrot.slane %v5124, 4
      %v5127 = vor.u32 %v5126, %v5122
      %v5128 = vrot.slane %v5127, 4
      %v5130 = vshll.u32 %v5064, 16
      %v5132 = vrot.slane %v5130, 5
      %v5133 = vsel %vm1097, %v5128, %v5132
      %v5135 = vshrl.u32 %v5065, 16
      %v5137 = vrot.slane %v5135, 4
      %v5138 = vshll.u32 %v5065, 16
      %v5140 = vrot.slane %v5138, 5
      %v5141 = vor.u32 %v5137, %v5140
      %v5142 = vrot.slane %v5141, 4
      %v5144 = vshll.u32 %v5066, 16
      %v5146 = vrot.slane %v5144, 5
      %v5147 = vsel %vm1097, %v5142, %v5146
      %v5148 = vshrl.u32 %v5066, 16
      %v5150 = vrot.slane %v5148, 4
      %v5151 = vor.u32 %v5150, %v5146
      %v5152 = vrot.slane %v5151, 4
      %v5154 = vshll.u32 %v5067, 16
      %v5156 = vrot.slane %v5154, 5
      %v5157 = vsel %vm1097, %v5152, %v5156
      %v5159 = vshrl.u32 %v5068, 16
      %v5161 = vrot.slane %v5159, 4
      %v5162 = vshll.u32 %v5068, 16
      %v5164 = vrot.slane %v5162, 5
      %v5165 = vor.u32 %v5161, %v5164
      %v5166 = vrot.slane %v5165, 4
      %v5168 = vshll.u32 %v5069, 16
      %v5170 = vrot.slane %v5168, 5
      %v5171 = vsel %vm1097, %v5166, %v5170
      %v5172 = vshrl.u32 %v5069, 16
      %v5174 = vrot.slane %v5172, 4
      %v5175 = vor.u32 %v5174, %v5170
      %v5176 = vrot.slane %v5175, 4
      %v5178 = vshll.u32 %v5070, 16
      %v5180 = vrot.slane %v5178, 5
      %v5181 = vsel %vm1097, %v5176, %v5180
      %v5183 = vshrl.u32 %v5071, 16
      %v5185 = vrot.slane %v5183, 4
      %v5186 = vshll.u32 %v5071, 16
      %v5188 = vrot.slane %v5186, 5
      %v5189 = vor.u32 %v5185, %v5188
      %v5190 = vrot.slane %v5189, 4
      %v5192 = vshll.u32 %v5072, 16
      %v5194 = vrot.slane %v5192, 5
      %v5195 = vsel %vm1097, %v5190, %v5194
      %v5196 = vshrl.u32 %v5072, 16
      %v5198 = vrot.slane %v5196, 4
      %v5199 = vor.u32 %v5198, %v5194
      %v5200 = vrot.slane %v5199, 4
      %v5202 = vshll.u32 %v5073, 16
      %v5204 = vrot.slane %v5202, 5
      %v5205 = vsel %vm1097, %v5200, %v5204
      %v5207 = vshrl.u32 %v5074, 16
      %v5209 = vrot.slane %v5207, 4
      %v5210 = vshll.u32 %v5074, 16
      %v5212 = vrot.slane %v5210, 5
      %v5213 = vor.u32 %v5209, %v5212
      %v5214 = vrot.slane %v5213, 4
      %v5216 = vshll.u32 %v5075, 16
      %v5218 = vrot.slane %v5216, 5
      %v5219 = vsel %vm1097, %v5214, %v5218
      %v5220 = vshrl.u32 %v5075, 16
      %v5222 = vrot.slane %v5220, 4
      %v5223 = vor.u32 %v5222, %v5218
      %v5224 = vrot.slane %v5223, 4
      %v5226 = vshll.u32 %v5076, 16
      %v5228 = vrot.slane %v5226, 5
      %v5229 = vsel %vm1097, %v5224, %v5228
      %v5231 = vshrl.u32 %v5077, 16
      %v5233 = vrot.slane %v5231, 4
      %v5234 = vshll.u32 %v5077, 16
      %v5236 = vrot.slane %v5234, 5
      %v5237 = vor.u32 %v5233, %v5236
      %v5238 = vrot.slane %v5237, 4
      %v5240 = vshll.u32 %v5078, 16
      %v5242 = vrot.slane %v5240, 5
      %v5243 = vsel %vm1097, %v5238, %v5242
      %v5244 = vshrl.u32 %v5078, 16
      %v5246 = vrot.slane %v5244, 4
      %v5247 = vor.u32 %v5246, %v5242
      %v5248 = vrot.slane %v5247, 4
      %v5250 = vshll.u32 %v5079, 16
      %v5252 = vrot.slane %v5250, 5
      %v5253 = vsel %vm1097, %v5248, %v5252
      %v5255 = vshrl.u32 %v5080, 16
      %v5257 = vrot.slane %v5255, 4
      %v5258 = vshll.u32 %v5080, 16
      %v5260 = vrot.slane %v5258, 5
      %v5261 = vor.u32 %v5257, %v5260
      %v5262 = vrot.slane %v5261, 4
      %v5264 = vshll.u32 %v5081, 16
      %v5266 = vrot.slane %v5264, 5
      %v5267 = vsel %vm1097, %v5262, %v5266
      %v5268 = vshrl.u32 %v5081, 16
      %v5270 = vrot.slane %v5268, 4
      %v5271 = vor.u32 %v5270, %v5266
      %v5272 = vrot.slane %v5271, 4
      %v5274 = vshll.u32 %v5082, 16
      %v5276 = vrot.slane %v5274, 5
      %v5277 = vsel %vm1097, %v5272, %v5276
      %v5279 = vshrl.u32 %v5083, 16
      %v5281 = vrot.slane %v5279, 4
      %v5282 = vshll.u32 %v5083, 16
      %v5284 = vrot.slane %v5282, 5
      %v5285 = vor.u32 %v5281, %v5284
      %v5286 = vrot.slane %v5285, 4
      %v5288 = vshll.u32 %v5084, 16
      %v5290 = vrot.slane %v5288, 5
      %v5291 = vsel %vm1097, %v5286, %v5290
      %v5292 = vshrl.u32 %v5084, 16
      %v5294 = vrot.slane %v5292, 4
      %v5295 = vor.u32 %v5294, %v5290
      %v5296 = vrot.slane %v5295, 4
      %v5298 = vshll.u32 %v5085, 16
      %v5300 = vrot.slane %v5298, 5
      %v5301 = vsel %vm1097, %v5296, %v5300
      %v5303 = vshrl.u32 %v5086, 16
      %v5305 = vrot.slane %v5303, 4
      %v5306 = vshll.u32 %v5086, 16
      %v5308 = vrot.slane %v5306, 5
      %v5309 = vor.u32 %v5305, %v5308
      %v5310 = vrot.slane %v5309, 4
      %v5312 = vshll.u32 %v5087, 16
      %v5314 = vrot.slane %v5312, 5
      %v5315 = vsel %vm1097, %v5310, %v5314
      %v5316 = vshrl.u32 %v5087, 16
      %v5318 = vrot.slane %v5316, 4
      %v5319 = vor.u32 %v5318, %v5314
      %v5320 = vrot.slane %v5319, 4
      %v5322 = vshll.u32 %v5088, 16
      %v5324 = vrot.slane %v5322, 5
      %v5325 = vsel %vm1097, %v5320, %v5324
      %v5327 = vshrl.u32 %v5089, 16
      %v5329 = vrot.slane %v5327, 4
      %v5330 = vshll.u32 %v5089, 16
      %v5332 = vrot.slane %v5330, 5
      %v5333 = vor.u32 %v5329, %v5332
      %v5334 = vrot.slane %v5333, 4
      %v5336 = vshll.u32 %v5090, 16
      %v5338 = vrot.slane %v5336, 5
      %v5339 = vsel %vm1097, %v5334, %v5338
      %v5340 = vshrl.u32 %v5090, 16
      %v5342 = vrot.slane %v5340, 4
      %v5343 = vor.u32 %v5342, %v5338
      %v5344 = vrot.slane %v5343, 4
      %v5346 = vshll.u32 %v5091, 16
      %v5348 = vrot.slane %v5346, 5
      %v5349 = vsel %vm1097, %v5344, %v5348
      %v5351 = vshrl.u32 %v5092, 16
      %v5353 = vrot.slane %v5351, 4
      %v5354 = vshll.u32 %v5092, 16
      %v5356 = vrot.slane %v5354, 5
      %v5357 = vor.u32 %v5353, %v5356
      %v5358 = vrot.slane %v5357, 4
      %v5360 = vshll.u32 %v5093, 16
      %v5362 = vrot.slane %v5360, 5
      %v5363 = vsel %vm1097, %v5358, %v5362
      %v5364 = vshrl.u32 %v5093, 16
      %v5366 = vrot.slane %v5364, 4
      %v5367 = vor.u32 %v5366, %v5362
      %v5368 = vrot.slane %v5367, 4
      %v5370 = vshll.u32 %v5094, 16
      %v5372 = vrot.slane %v5370, 5
      %v5373 = vsel %vm1097, %v5368, %v5372
      %v5375 = vshrl.u32 %v5095, 16
      %v5377 = vrot.slane %v5375, 4
      %v5378 = vshll.u32 %v5095, 16
      %v5380 = vrot.slane %v5378, 5
      %v5381 = vor.u32 %v5377, %v5380
      %v5382 = vrot.slane %v5381, 4
      %v5384 = vshll.u32 %v5096, 16
      %v5386 = vrot.slane %v5384, 5
      %v5387 = vsel %vm1097, %v5382, %v5386
      %v5388 = vshrl.u32 %v5096, 16
      %v5390 = vrot.slane %v5388, 4
      %v5391 = vor.u32 %v5390, %v5386
      %v5392 = vrot.slane %v5391, 4
      %v5394 = vshll.u32 %v5097, 16
      %v5396 = vrot.slane %v5394, 5
      %v5397 = vsel %vm1097, %v5392, %v5396
      %v5399 = vshrl.u32 %v5098, 16
      %v5401 = vrot.slane %v5399, 4
      %v5402 = vshll.u32 %v5098, 16
      %v5404 = vrot.slane %v5402, 5
      %v5405 = vor.u32 %v5401, %v5404
      %v5406 = vrot.slane %v5405, 4
      %v5408 = vshll.u32 %v5099, 16
      %v5410 = vrot.slane %v5408, 5
      %v5411 = vsel %vm1097, %v5406, %v5410
      %v5412 = vshrl.u32 %v5099, 16
      %v5414 = vrot.slane %v5412, 4
      %v5415 = vor.u32 %v5414, %v5410
      %v5416 = vrot.slane %v5415, 4
      %v5418 = vshll.u32 %v5100, 16
      %v5420 = vrot.slane %v5418, 5
      %v5421 = vsel %vm1097, %v5416, %v5420
      %v5423 = vshrl.u32 %v5101, 16
      %v5425 = vrot.slane %v5423, 4
      %v5426 = vshll.u32 %v5101, 16
      %v5428 = vrot.slane %v5426, 5
      %v5429 = vor.u32 %v5425, %v5428
      %v5430 = vrot.slane %v5429, 4
      %v5432 = vshll.u32 %v5102, 16
      %v5434 = vrot.slane %v5432, 5
      %v5435 = vsel %vm1097, %v5430, %v5434
      %v5436 = vshrl.u32 %v5102, 16
      %v5438 = vrot.slane %v5436, 4
      %v5439 = vor.u32 %v5438, %v5434
      %v5440 = vrot.slane %v5439, 4
      %v5442 = vshll.u32 %v5103, 16
      %v5444 = vrot.slane %v5442, 5
      %v5445 = vsel %vm1097, %v5440, %v5444
      %v5447 = vshrl.u32 %v5104, 16
      %v5449 = vrot.slane %v5447, 4
      %v5450 = vshll.u32 %v5104, 16
      %v5452 = vrot.slane %v5450, 5
      %v5453 = vor.u32 %v5449, %v5452
      %v5454 = vrot.slane %v5453, 4
      %v5456 = vshll.u32 %v5105, 16
      %v5458 = vrot.slane %v5456, 5
      %v5459 = vsel %vm1097, %v5454, %v5458
      %v5460 = vshrl.u32 %v5105, 16
      %v5462 = vrot.slane %v5460, 4
      %v5463 = vor.u32 %v5462, %v5458
      %v5464 = vrot.slane %v5463, 4
      %v5466 = vshll.u32 %v5106, 16
      %v5468 = vrot.slane %v5466, 5
      %v5469 = vsel %vm1097, %v5464, %v5468
      %v5471 = vshrl.u32 %v5107, 16
      %v5473 = vrot.slane %v5471, 4
      %v5474 = vshll.u32 %v5107, 16
      %v5476 = vrot.slane %v5474, 5
      %v5477 = vor.u32 %v5473, %v5476
      %v5478 = vrot.slane %v5477, 4
      %v5480 = vshll.u32 %v5108, 16
      %v5482 = vrot.slane %v5480, 5
      %v5483 = vsel %vm1097, %v5478, %v5482
      %v5484 = vshrl.u32 %v5108, 16
      %v5486 = vrot.slane %v5484, 4
      %v5487 = vor.u32 %v5486, %v5482
      %v5488 = vrot.slane %v5487, 4
      %v5490 = vshll.u32 %v5109, 16
      %v5492 = vrot.slane %v5490, 5
      %v5493 = vsel %vm1097, %v5488, %v5492
      %v5494 = vunpack.c.l.b16 %v5123
      %v5495 = vunpack.c.l.b16 %v5133
      %v5496 = vunpack.c.l.b16 %v5147
      %v5497 = vunpack.c.l.b16 %v5157
      %v5498 = vunpack.c.l.b16 %v5171
      %v5499 = vunpack.c.l.b16 %v5181
      %v5500 = vunpack.c.l.b16 %v5195
      %v5501 = vunpack.c.l.b16 %v5205
      %v5502 = vunpack.c.l.b16 %v5219
      %v5503 = vunpack.c.l.b16 %v5229
      %v5504 = vunpack.c.l.b16 %v5243
      %v5505 = vunpack.c.l.b16 %v5253
      %v5506 = vunpack.c.l.b16 %v5267
      %v5507 = vunpack.c.l.b16 %v5277
      %v5508 = vunpack.c.l.b16 %v5291
      %v5509 = vunpack.c.l.b16 %v5301
      %v5510 = vunpack.c.l.b16 %v5315
      %v5511 = vunpack.c.l.b16 %v5325
      %v5512 = vunpack.c.l.b16 %v5339
      %v5513 = vunpack.c.l.b16 %v5349
      %v5514 = vunpack.c.l.b16 %v5363
      %v5515 = vunpack.c.l.b16 %v5373
      %v5516 = vunpack.c.l.b16 %v5387
      %v5517 = vunpack.c.l.b16 %v5397
      %v5518 = vunpack.c.l.b16 %v5411
      %v5519 = vunpack.c.l.b16 %v5421
      %v5520 = vunpack.c.l.b16 %v5435
      %v5521 = vunpack.c.l.b16 %v5445
      %v5522 = vunpack.c.l.b16 %v5459
      %v5523 = vunpack.c.l.b16 %v5469
      %v5524 = vunpack.c.l.b16 %v5483
      %v5525 = vunpack.c.l.b16 %v5493
      %v5526 = vpack.c.b16 %v5495, %v5494
      %v5527 = vpack.c.b16 %v5497, %v5496
      %v5528 = vpack.c.b16 %v5499, %v5498
      %v5529 = vpack.c.b16 %v5501, %v5500
      %v5530 = vpack.c.b16 %v5503, %v5502
      %v5531 = vpack.c.b16 %v5505, %v5504
      %v5532 = vpack.c.b16 %v5507, %v5506
      %v5533 = vpack.c.b16 %v5509, %v5508
      %v5534 = vpack.c.b16 %v5511, %v5510
      %v5535 = vpack.c.b16 %v5513, %v5512
      %v5536 = vpack.c.b16 %v5515, %v5514
      %v5537 = vpack.c.b16 %v5517, %v5516
      %v5538 = vpack.c.b16 %v5519, %v5518
      %v5539 = vpack.c.b16 %v5521, %v5520
      %v5540 = vpack.c.b16 %v5523, %v5522
      %v5541 = vpack.c.b16 %v5525, %v5524
      %5558 = vst [vmem:[#allocation2] sm:$0xff] %v5526
      %5559 = vst [vmem:[#allocation2 + $0x18] sm:$0xff] %v5527
      %5560 = vst [vmem:[#allocation2 + $0x30] sm:$0xff] %v5528
      %5561 = vst [vmem:[#allocation2 + $0x48] sm:$0xff] %v5529
      %5562 = vst [vmem:[#allocation2 + $0x60] sm:$0xff] %v5530
      %5563 = vst [vmem:[#allocation2 + $0x78] sm:$0xff] %v5531
      %5564 = vst [vmem:[#allocation2 + $0x90] sm:$0xff] %v5532
      %5565 = vst [vmem:[#allocation2 + $0xa8] sm:$0xff] %v5533
      %5566 = vst [vmem:[#allocation2 + $0xc0] sm:$0xff] %v5534
      %5567 = vst [vmem:[#allocation2 + $0xd8] sm:$0xff] %v5535
      %5568 = vst [vmem:[#allocation2 + $0xf0] sm:$0xff] %v5536
      %5569 = vst [vmem:[#allocation2 + $0x108] sm:$0xff] %v5537
      %5570 = vst [vmem:[#allocation2 + $0x120] sm:$0xff] %v5538
      %5571 = vst [vmem:[#allocation2 + $0x138] sm:$0xff] %v5539
      %5572 = vst [vmem:[#allocation2 + $0x150] sm:$0xff] %v5540
      %5573 = vst [vmem:[#allocation2 + $0x168] sm:$0xff] %v5541
      %v5574 = vld [vmem:[%s5061] sm:$0xe]
      %v5575 = vld [vmem:[%s5061 + $0x4] sm:$0xf]
      %v5576 = vld [vmem:[%s5061 + $0x8] sm:$0x1]
      %v5577 = vld [vmem:[%s5061 + $0xc] sm:$0xe]
      %v5578 = vld [vmem:[%s5061 + $0x10] sm:$0xf]
      %v5579 = vld [vmem:[%s5061 + $0x14] sm:$0x1]
      %v5580 = vld [vmem:[%s5061 + $0x18] sm:$0xe]
      %v5581 = vld [vmem:[%s5061 + $0x1c] sm:$0xf]
      %v5582 = vld [vmem:[%s5061 + $0x20] sm:$0x1]
      %v5583 = vld [vmem:[%s5061 + $0x24] sm:$0xe]
      %v5584 = vld [vmem:[%s5061 + $0x28] sm:$0xf]
      %v5585 = vld [vmem:[%s5061 + $0x2c] sm:$0x1]
      %v5586 = vld [vmem:[%s5061 + $0x30] sm:$0xe]
      %v5587 = vld [vmem:[%s5061 + $0x34] sm:$0xf]
      %v5588 = vld [vmem:[%s5061 + $0x38] sm:$0x1]
      %v5589 = vld [vmem:[%s5061 + $0x3c] sm:$0xe]
      %v5590 = vld [vmem:[%s5061 + $0x40] sm:$0xf]
      %v5591 = vld [vmem:[%s5061 + $0x44] sm:$0x1]
      %v5592 = vld [vmem:[%s5061 + $0x48] sm:$0xe]
      %v5593 = vld [vmem:[%s5061 + $0x4c] sm:$0xf]
      %v5594 = vld [vmem:[%s5061 + $0x50] sm:$0x1]
      %v5595 = vld [vmem:[%s5061 + $0x54] sm:$0xe]
      %v5596 = vld [vmem:[%s5061 + $0x58] sm:$0xf]
      %v5597 = vld [vmem:[%s5061 + $0x5c] sm:$0x1]
      %v5598 = vld [vmem:[%s5061 + $0x60] sm:$0xe]
      %v5599 = vld [vmem:[%s5061 + $0x64] sm:$0xf]
      %v5600 = vld [vmem:[%s5061 + $0x68] sm:$0x1]
      %v5601 = vld [vmem:[%s5061 + $0x6c] sm:$0xe]
      %v5602 = vld [vmem:[%s5061 + $0x70] sm:$0xf]
      %v5603 = vld [vmem:[%s5061 + $0x74] sm:$0x1]
      %v5604 = vld [vmem:[%s5061 + $0x78] sm:$0xe]
      %v5605 = vld [vmem:[%s5061 + $0x7c] sm:$0xf]
      %v5606 = vld [vmem:[%s5061 + $0x80] sm:$0x1]
      %v5607 = vld [vmem:[%s5061 + $0x84] sm:$0xe]
      %v5608 = vld [vmem:[%s5061 + $0x88] sm:$0xf]
      %v5609 = vld [vmem:[%s5061 + $0x8c] sm:$0x1]
      %v5610 = vld [vmem:[%s5061 + $0x90] sm:$0xe]
      %v5611 = vld [vmem:[%s5061 + $0x94] sm:$0xf]
      %v5612 = vld [vmem:[%s5061 + $0x98] sm:$0x1]
      %v5613 = vld [vmem:[%s5061 + $0x9c] sm:$0xe]
      %v5614 = vld [vmem:[%s5061 + $0xa0] sm:$0xf]
      %v5615 = vld [vmem:[%s5061 + $0xa4] sm:$0x1]
      %v5616 = vld [vmem:[%s5061 + $0xa8] sm:$0xe]
      %v5617 = vld [vmem:[%s5061 + $0xac] sm:$0xf]
      %v5618 = vld [vmem:[%s5061 + $0xb0] sm:$0x1]
      %v5619 = vld [vmem:[%s5061 + $0xb4] sm:$0xe]
      %v5620 = vld [vmem:[%s5061 + $0xb8] sm:$0xf]
      %v5621 = vld [vmem:[%s5061 + $0xbc] sm:$0x1]
      %v5670 = vrot.slane %v5574, 5
      %v5671 = vrot.slane %v5670, 4
      %v5672 = vrot.slane %v5575, 5
      %v5673 = vsel %vm1660, %v5671, %v5672
      %v5674 = vrot.slane %v5672, 4
      %v5675 = vrot.slane %v5576, 5
      %v5676 = vsel %vm1660, %v5674, %v5675
      %v5677 = vrot.slane %v5577, 5
      %v5678 = vrot.slane %v5677, 4
      %v5679 = vrot.slane %v5578, 5
      %v5680 = vsel %vm1660, %v5678, %v5679
      %v5681 = vrot.slane %v5679, 4
      %v5682 = vrot.slane %v5579, 5
      %v5683 = vsel %vm1660, %v5681, %v5682
      %v5684 = vrot.slane %v5580, 5
      %v5685 = vrot.slane %v5684, 4
      %v5686 = vrot.slane %v5581, 5
      %v5687 = vsel %vm1660, %v5685, %v5686
      %v5688 = vrot.slane %v5686, 4
      %v5689 = vrot.slane %v5582, 5
      %v5690 = vsel %vm1660, %v5688, %v5689
      %v5691 = vrot.slane %v5583, 5
      %v5692 = vrot.slane %v5691, 4
      %v5693 = vrot.slane %v5584, 5
      %v5694 = vsel %vm1660, %v5692, %v5693
      %v5695 = vrot.slane %v5693, 4
      %v5696 = vrot.slane %v5585, 5
      %v5697 = vsel %vm1660, %v5695, %v5696
      %v5698 = vrot.slane %v5586, 5
      %v5699 = vrot.slane %v5698, 4
      %v5700 = vrot.slane %v5587, 5
      %v5701 = vsel %vm1660, %v5699, %v5700
      %v5702 = vrot.slane %v5700, 4
      %v5703 = vrot.slane %v5588, 5
      %v5704 = vsel %vm1660, %v5702, %v5703
      %v5705 = vrot.slane %v5589, 5
      %v5706 = vrot.slane %v5705, 4
      %v5707 = vrot.slane %v5590, 5
      %v5708 = vsel %vm1660, %v5706, %v5707
      %v5709 = vrot.slane %v5707, 4
      %v5710 = vrot.slane %v5591, 5
      %v5711 = vsel %vm1660, %v5709, %v5710
      %v5712 = vrot.slane %v5592, 5
      %v5713 = vrot.slane %v5712, 4
      %v5714 = vrot.slane %v5593, 5
      %v5715 = vsel %vm1660, %v5713, %v5714
      %v5716 = vrot.slane %v5714, 4
      %v5717 = vrot.slane %v5594, 5
      %v5718 = vsel %vm1660, %v5716, %v5717
      %v5719 = vrot.slane %v5595, 5
      %v5720 = vrot.slane %v5719, 4
      %v5721 = vrot.slane %v5596, 5
      %v5722 = vsel %vm1660, %v5720, %v5721
      %v5723 = vrot.slane %v5721, 4
      %v5724 = vrot.slane %v5597, 5
      %v5725 = vsel %vm1660, %v5723, %v5724
      %v5726 = vrot.slane %v5598, 5
      %v5727 = vrot.slane %v5726, 4
      %v5728 = vrot.slane %v5599, 5
      %v5729 = vsel %vm1660, %v5727, %v5728
      %v5730 = vrot.slane %v5728, 4
      %v5731 = vrot.slane %v5600, 5
      %v5732 = vsel %vm1660, %v5730, %v5731
      %v5733 = vrot.slane %v5601, 5
      %v5734 = vrot.slane %v5733, 4
      %v5735 = vrot.slane %v5602, 5
      %v5736 = vsel %vm1660, %v5734, %v5735
      %v5737 = vrot.slane %v5735, 4
      %v5738 = vrot.slane %v5603, 5
      %v5739 = vsel %vm1660, %v5737, %v5738
      %v5740 = vrot.slane %v5604, 5
      %v5741 = vrot.slane %v5740, 4
      %v5742 = vrot.slane %v5605, 5
      %v5743 = vsel %vm1660, %v5741, %v5742
      %v5744 = vrot.slane %v5742, 4
      %v5745 = vrot.slane %v5606, 5
      %v5746 = vsel %vm1660, %v5744, %v5745
      %v5747 = vrot.slane %v5607, 5
      %v5748 = vrot.slane %v5747, 4
      %v5749 = vrot.slane %v5608, 5
      %v5750 = vsel %vm1660, %v5748, %v5749
      %v5751 = vrot.slane %v5749, 4
      %v5752 = vrot.slane %v5609, 5
      %v5753 = vsel %vm1660, %v5751, %v5752
      %v5754 = vrot.slane %v5610, 5
      %v5755 = vrot.slane %v5754, 4
      %v5756 = vrot.slane %v5611, 5
      %v5757 = vsel %vm1660, %v5755, %v5756
      %v5758 = vrot.slane %v5756, 4
      %v5759 = vrot.slane %v5612, 5
      %v5760 = vsel %vm1660, %v5758, %v5759
      %v5761 = vrot.slane %v5613, 5
      %v5762 = vrot.slane %v5761, 4
      %v5763 = vrot.slane %v5614, 5
      %v5764 = vsel %vm1660, %v5762, %v5763
      %v5765 = vrot.slane %v5763, 4
      %v5766 = vrot.slane %v5615, 5
      %v5767 = vsel %vm1660, %v5765, %v5766
      %v5768 = vrot.slane %v5616, 5
      %v5769 = vrot.slane %v5768, 4
      %v5770 = vrot.slane %v5617, 5
      %v5771 = vsel %vm1660, %v5769, %v5770
      %v5772 = vrot.slane %v5770, 4
      %v5773 = vrot.slane %v5618, 5
      %v5774 = vsel %vm1660, %v5772, %v5773
      %v5775 = vrot.slane %v5619, 5
      %v5776 = vrot.slane %v5775, 4
      %v5777 = vrot.slane %v5620, 5
      %v5778 = vsel %vm1660, %v5776, %v5777
      %v5779 = vrot.slane %v5777, 4
      %v5780 = vrot.slane %v5621, 5
      %v5781 = vsel %vm1660, %v5779, %v5780
      %v5782 = vunpack.c.l.b16 %v5673
      %v5783 = vunpack.c.l.b16 %v5676
      %v5784 = vunpack.c.l.b16 %v5680
      %v5785 = vunpack.c.l.b16 %v5683
      %v5786 = vunpack.c.l.b16 %v5687
      %v5787 = vunpack.c.l.b16 %v5690
      %v5788 = vunpack.c.l.b16 %v5694
      %v5789 = vunpack.c.l.b16 %v5697
      %v5790 = vunpack.c.l.b16 %v5701
      %v5791 = vunpack.c.l.b16 %v5704
      %v5792 = vunpack.c.l.b16 %v5708
      %v5793 = vunpack.c.l.b16 %v5711
      %v5794 = vunpack.c.l.b16 %v5715
      %v5795 = vunpack.c.l.b16 %v5718
      %v5796 = vunpack.c.l.b16 %v5722
      %v5797 = vunpack.c.l.b16 %v5725
      %v5798 = vunpack.c.l.b16 %v5729
      %v5799 = vunpack.c.l.b16 %v5732
      %v5800 = vunpack.c.l.b16 %v5736
      %v5801 = vunpack.c.l.b16 %v5739
      %v5802 = vunpack.c.l.b16 %v5743
      %v5803 = vunpack.c.l.b16 %v5746
      %v5804 = vunpack.c.l.b16 %v5750
      %v5805 = vunpack.c.l.b16 %v5753
      %v5806 = vunpack.c.l.b16 %v5757
      %v5807 = vunpack.c.l.b16 %v5760
      %v5808 = vunpack.c.l.b16 %v5764
      %v5809 = vunpack.c.l.b16 %v5767
      %v5810 = vunpack.c.l.b16 %v5771
      %v5811 = vunpack.c.l.b16 %v5774
      %v5812 = vunpack.c.l.b16 %v5778
      %v5813 = vunpack.c.l.b16 %v5781
      %v5814 = vpack.c.b16 %v5783, %v5782
      %v5815 = vpack.c.b16 %v5785, %v5784
      %v5816 = vpack.c.b16 %v5787, %v5786
      %v5817 = vpack.c.b16 %v5789, %v5788
      %v5818 = vpack.c.b16 %v5791, %v5790
      %v5819 = vpack.c.b16 %v5793, %v5792
      %v5820 = vpack.c.b16 %v5795, %v5794
      %v5821 = vpack.c.b16 %v5797, %v5796
      %v5822 = vpack.c.b16 %v5799, %v5798
      %v5823 = vpack.c.b16 %v5801, %v5800
      %v5824 = vpack.c.b16 %v5803, %v5802
      %v5825 = vpack.c.b16 %v5805, %v5804
      %v5826 = vpack.c.b16 %v5807, %v5806
      %v5827 = vpack.c.b16 %v5809, %v5808
      %v5828 = vpack.c.b16 %v5811, %v5810
      %v5829 = vpack.c.b16 %v5813, %v5812
      %5846 = vst [vmem:[#allocation2 + $0x8] sm:$0xff] %v5814
      %5847 = vst [vmem:[#allocation2 + $0x20] sm:$0xff] %v5815
      %5848 = vst [vmem:[#allocation2 + $0x38] sm:$0xff] %v5816
      %5849 = vst [vmem:[#allocation2 + $0x50] sm:$0xff] %v5817
      %5850 = vst [vmem:[#allocation2 + $0x68] sm:$0xff] %v5818
      %5851 = vst [vmem:[#allocation2 + $0x80] sm:$0xff] %v5819
      %5852 = vst [vmem:[#allocation2 + $0x98] sm:$0xff] %v5820
      %5853 = vst [vmem:[#allocation2 + $0xb0] sm:$0xff] %v5821
      %5854 = vst [vmem:[#allocation2 + $0xc8] sm:$0xff] %v5822
      %5855 = vst [vmem:[#allocation2 + $0xe0] sm:$0xff] %v5823
      %5856 = vst [vmem:[#allocation2 + $0xf8] sm:$0xff] %v5824
      %5857 = vst [vmem:[#allocation2 + $0x110] sm:$0xff] %v5825
      %5858 = vst [vmem:[#allocation2 + $0x128] sm:$0xff] %v5826
      %5859 = vst [vmem:[#allocation2 + $0x140] sm:$0xff] %v5827
      %5860 = vst [vmem:[#allocation2 + $0x158] sm:$0xff] %v5828
      %5861 = vst [vmem:[#allocation2 + $0x170] sm:$0xff] %v5829
      %v5862 = vld [vmem:[%s5061] sm:$0xe]
      %v5863 = vld [vmem:[%s5061 + $0x4] sm:$0xf]
      %v5864 = vld [vmem:[%s5061 + $0x8] sm:$0x3]
      %v5865 = vld [vmem:[%s5061 + $0xc] sm:$0xe]
      %v5866 = vld [vmem:[%s5061 + $0x10] sm:$0xf]
      %v5867 = vld [vmem:[%s5061 + $0x14] sm:$0x3]
      %v5868 = vld [vmem:[%s5061 + $0x18] sm:$0xe]
      %v5869 = vld [vmem:[%s5061 + $0x1c] sm:$0xf]
      %v5870 = vld [vmem:[%s5061 + $0x20] sm:$0x3]
      %v5871 = vld [vmem:[%s5061 + $0x24] sm:$0xe]
      %v5872 = vld [vmem:[%s5061 + $0x28] sm:$0xf]
      %v5873 = vld [vmem:[%s5061 + $0x2c] sm:$0x3]
      %v5874 = vld [vmem:[%s5061 + $0x30] sm:$0xe]
      %v5875 = vld [vmem:[%s5061 + $0x34] sm:$0xf]
      %v5876 = vld [vmem:[%s5061 + $0x38] sm:$0x3]
      %v5877 = vld [vmem:[%s5061 + $0x3c] sm:$0xe]
      %v5878 = vld [vmem:[%s5061 + $0x40] sm:$0xf]
      %v5879 = vld [vmem:[%s5061 + $0x44] sm:$0x3]
      %v5880 = vld [vmem:[%s5061 + $0x48] sm:$0xe]
      %v5881 = vld [vmem:[%s5061 + $0x4c] sm:$0xf]
      %v5882 = vld [vmem:[%s5061 + $0x50] sm:$0x3]
      %v5883 = vld [vmem:[%s5061 + $0x54] sm:$0xe]
      %v5884 = vld [vmem:[%s5061 + $0x58] sm:$0xf]
      %v5885 = vld [vmem:[%s5061 + $0x5c] sm:$0x3]
      %v5886 = vld [vmem:[%s5061 + $0x60] sm:$0xe]
      %v5887 = vld [vmem:[%s5061 + $0x64] sm:$0xf]
      %v5888 = vld [vmem:[%s5061 + $0x68] sm:$0x3]
      %v5889 = vld [vmem:[%s5061 + $0x6c] sm:$0xe]
      %v5890 = vld [vmem:[%s5061 + $0x70] sm:$0xf]
      %v5891 = vld [vmem:[%s5061 + $0x74] sm:$0x3]
      %v5892 = vld [vmem:[%s5061 + $0x78] sm:$0xe]
      %v5893 = vld [vmem:[%s5061 + $0x7c] sm:$0xf]
      %v5894 = vld [vmem:[%s5061 + $0x80] sm:$0x3]
      %v5895 = vld [vmem:[%s5061 + $0x84] sm:$0xe]
      %v5896 = vld [vmem:[%s5061 + $0x88] sm:$0xf]
      %v5897 = vld [vmem:[%s5061 + $0x8c] sm:$0x3]
      %v5898 = vld [vmem:[%s5061 + $0x90] sm:$0xe]
      %v5899 = vld [vmem:[%s5061 + $0x94] sm:$0xf]
      %v5900 = vld [vmem:[%s5061 + $0x98] sm:$0x3]
      %v5901 = vld [vmem:[%s5061 + $0x9c] sm:$0xe]
      %v5902 = vld [vmem:[%s5061 + $0xa0] sm:$0xf]
      %v5903 = vld [vmem:[%s5061 + $0xa4] sm:$0x3]
      %v5904 = vld [vmem:[%s5061 + $0xa8] sm:$0xe]
      %v5905 = vld [vmem:[%s5061 + $0xac] sm:$0xf]
      %v5906 = vld [vmem:[%s5061 + $0xb0] sm:$0x3]
      %v5907 = vld [vmem:[%s5061 + $0xb4] sm:$0xe]
      %v5908 = vld [vmem:[%s5061 + $0xb8] sm:$0xf]
      %v5909 = vld [vmem:[%s5061 + $0xbc] sm:$0x3]
      %v5911 = vshrl.u32 %v5862, 16
      %v5913 = vrot.slane %v5911, 5
      %v5914 = vshll.u32 %v5862, 16
      %v5916 = vrot.slane %v5914, 6
      %v5917 = vor.u32 %v5913, %v5916
      %v5918 = vrot.slane %v5917, 4
      %v5920 = vshrl.u32 %v5863, 16
      %v5922 = vrot.slane %v5920, 5
      %v5923 = vshll.u32 %v5863, 16
      %v5925 = vrot.slane %v5923, 6
      %v5926 = vor.u32 %v5922, %v5925
      %v5927 = vsel %vm1903, %v5918, %v5926
      %v5928 = vrot.slane %v5926, 4
      %v5930 = vshrl.u32 %v5864, 16
      %v5932 = vrot.slane %v5930, 5
      %v5933 = vshll.u32 %v5864, 16
      %v5935 = vrot.slane %v5933, 6
      %v5936 = vor.u32 %v5932, %v5935
      %v5937 = vsel %vm1903, %v5928, %v5936
      %v5939 = vshrl.u32 %v5865, 16
      %v5941 = vrot.slane %v5939, 5
      %v5942 = vshll.u32 %v5865, 16
      %v5944 = vrot.slane %v5942, 6
      %v5945 = vor.u32 %v5941, %v5944
      %v5946 = vrot.slane %v5945, 4
      %v5948 = vshrl.u32 %v5866, 16
      %v5950 = vrot.slane %v5948, 5
      %v5951 = vshll.u32 %v5866, 16
      %v5953 = vrot.slane %v5951, 6
      %v5954 = vor.u32 %v5950, %v5953
      %v5955 = vsel %vm1903, %v5946, %v5954
      %v5956 = vrot.slane %v5954, 4
      %v5958 = vshrl.u32 %v5867, 16
      %v5960 = vrot.slane %v5958, 5
      %v5961 = vshll.u32 %v5867, 16
      %v5963 = vrot.slane %v5961, 6
      %v5964 = vor.u32 %v5960, %v5963
      %v5965 = vsel %vm1903, %v5956, %v5964
      %v5967 = vshrl.u32 %v5868, 16
      %v5969 = vrot.slane %v5967, 5
      %v5970 = vshll.u32 %v5868, 16
      %v5972 = vrot.slane %v5970, 6
      %v5973 = vor.u32 %v5969, %v5972
      %v5974 = vrot.slane %v5973, 4
      %v5976 = vshrl.u32 %v5869, 16
      %v5978 = vrot.slane %v5976, 5
      %v5979 = vshll.u32 %v5869, 16
      %v5981 = vrot.slane %v5979, 6
      %v5982 = vor.u32 %v5978, %v5981
      %v5983 = vsel %vm1903, %v5974, %v5982
      %v5984 = vrot.slane %v5982, 4
      %v5986 = vshrl.u32 %v5870, 16
      %v5988 = vrot.slane %v5986, 5
      %v5989 = vshll.u32 %v5870, 16
      %v5991 = vrot.slane %v5989, 6
      %v5992 = vor.u32 %v5988, %v5991
      %v5993 = vsel %vm1903, %v5984, %v5992
      %v5995 = vshrl.u32 %v5871, 16
      %v5997 = vrot.slane %v5995, 5
      %v5998 = vshll.u32 %v5871, 16
      %v6000 = vrot.slane %v5998, 6
      %v6001 = vor.u32 %v5997, %v6000
      %v6002 = vrot.slane %v6001, 4
      %v6004 = vshrl.u32 %v5872, 16
      %v6006 = vrot.slane %v6004, 5
      %v6007 = vshll.u32 %v5872, 16
      %v6009 = vrot.slane %v6007, 6
      %v6010 = vor.u32 %v6006, %v6009
      %v6011 = vsel %vm1903, %v6002, %v6010
      %v6012 = vrot.slane %v6010, 4
      %v6014 = vshrl.u32 %v5873, 16
      %v6016 = vrot.slane %v6014, 5
      %v6017 = vshll.u32 %v5873, 16
      %v6019 = vrot.slane %v6017, 6
      %v6020 = vor.u32 %v6016, %v6019
      %v6021 = vsel %vm1903, %v6012, %v6020
      %v6023 = vshrl.u32 %v5874, 16
      %v6025 = vrot.slane %v6023, 5
      %v6026 = vshll.u32 %v5874, 16
      %v6028 = vrot.slane %v6026, 6
      %v6029 = vor.u32 %v6025, %v6028
      %v6030 = vrot.slane %v6029, 4
      %v6032 = vshrl.u32 %v5875, 16
      %v6034 = vrot.slane %v6032, 5
      %v6035 = vshll.u32 %v5875, 16
      %v6037 = vrot.slane %v6035, 6
      %v6038 = vor.u32 %v6034, %v6037
      %v6039 = vsel %vm1903, %v6030, %v6038
      %v6040 = vrot.slane %v6038, 4
      %v6042 = vshrl.u32 %v5876, 16
      %v6044 = vrot.slane %v6042, 5
      %v6045 = vshll.u32 %v5876, 16
      %v6047 = vrot.slane %v6045, 6
      %v6048 = vor.u32 %v6044, %v6047
      %v6049 = vsel %vm1903, %v6040, %v6048
      %v6051 = vshrl.u32 %v5877, 16
      %v6053 = vrot.slane %v6051, 5
      %v6054 = vshll.u32 %v5877, 16
      %v6056 = vrot.slane %v6054, 6
      %v6057 = vor.u32 %v6053, %v6056
      %v6058 = vrot.slane %v6057, 4
      %v6060 = vshrl.u32 %v5878, 16
      %v6062 = vrot.slane %v6060, 5
      %v6063 = vshll.u32 %v5878, 16
      %v6065 = vrot.slane %v6063, 6
      %v6066 = vor.u32 %v6062, %v6065
      %v6067 = vsel %vm1903, %v6058, %v6066
      %v6068 = vrot.slane %v6066, 4
      %v6070 = vshrl.u32 %v5879, 16
      %v6072 = vrot.slane %v6070, 5
      %v6073 = vshll.u32 %v5879, 16
      %v6075 = vrot.slane %v6073, 6
      %v6076 = vor.u32 %v6072, %v6075
      %v6077 = vsel %vm1903, %v6068, %v6076
      %v6079 = vshrl.u32 %v5880, 16
      %v6081 = vrot.slane %v6079, 5
      %v6082 = vshll.u32 %v5880, 16
      %v6084 = vrot.slane %v6082, 6
      %v6085 = vor.u32 %v6081, %v6084
      %v6086 = vrot.slane %v6085, 4
      %v6088 = vshrl.u32 %v5881, 16
      %v6090 = vrot.slane %v6088, 5
      %v6091 = vshll.u32 %v5881, 16
      %v6093 = vrot.slane %v6091, 6
      %v6094 = vor.u32 %v6090, %v6093
      %v6095 = vsel %vm1903, %v6086, %v6094
      %v6096 = vrot.slane %v6094, 4
      %v6098 = vshrl.u32 %v5882, 16
      %v6100 = vrot.slane %v6098, 5
      %v6101 = vshll.u32 %v5882, 16
      %v6103 = vrot.slane %v6101, 6
      %v6104 = vor.u32 %v6100, %v6103
      %v6105 = vsel %vm1903, %v6096, %v6104
      %v6107 = vshrl.u32 %v5883, 16
      %v6109 = vrot.slane %v6107, 5
      %v6110 = vshll.u32 %v5883, 16
      %v6112 = vrot.slane %v6110, 6
      %v6113 = vor.u32 %v6109, %v6112
      %v6114 = vrot.slane %v6113, 4
      %v6116 = vshrl.u32 %v5884, 16
      %v6118 = vrot.slane %v6116, 5
      %v6119 = vshll.u32 %v5884, 16
      %v6121 = vrot.slane %v6119, 6
      %v6122 = vor.u32 %v6118, %v6121
      %v6123 = vsel %vm1903, %v6114, %v6122
      %v6124 = vrot.slane %v6122, 4
      %v6126 = vshrl.u32 %v5885, 16
      %v6128 = vrot.slane %v6126, 5
      %v6129 = vshll.u32 %v5885, 16
      %v6131 = vrot.slane %v6129, 6
      %v6132 = vor.u32 %v6128, %v6131
      %v6133 = vsel %vm1903, %v6124, %v6132
      %v6135 = vshrl.u32 %v5886, 16
      %v6137 = vrot.slane %v6135, 5
      %v6138 = vshll.u32 %v5886, 16
      %v6140 = vrot.slane %v6138, 6
      %v6141 = vor.u32 %v6137, %v6140
      %v6142 = vrot.slane %v6141, 4
      %v6144 = vshrl.u32 %v5887, 16
      %v6146 = vrot.slane %v6144, 5
      %v6147 = vshll.u32 %v5887, 16
      %v6149 = vrot.slane %v6147, 6
      %v6150 = vor.u32 %v6146, %v6149
      %v6151 = vsel %vm1903, %v6142, %v6150
      %v6152 = vrot.slane %v6150, 4
      %v6154 = vshrl.u32 %v5888, 16
      %v6156 = vrot.slane %v6154, 5
      %v6157 = vshll.u32 %v5888, 16
      %v6159 = vrot.slane %v6157, 6
      %v6160 = vor.u32 %v6156, %v6159
      %v6161 = vsel %vm1903, %v6152, %v6160
      %v6163 = vshrl.u32 %v5889, 16
      %v6165 = vrot.slane %v6163, 5
      %v6166 = vshll.u32 %v5889, 16
      %v6168 = vrot.slane %v6166, 6
      %v6169 = vor.u32 %v6165, %v6168
      %v6170 = vrot.slane %v6169, 4
      %v6172 = vshrl.u32 %v5890, 16
      %v6174 = vrot.slane %v6172, 5
      %v6175 = vshll.u32 %v5890, 16
      %v6177 = vrot.slane %v6175, 6
      %v6178 = vor.u32 %v6174, %v6177
      %v6179 = vsel %vm1903, %v6170, %v6178
      %v6180 = vrot.slane %v6178, 4
      %v6182 = vshrl.u32 %v5891, 16
      %v6184 = vrot.slane %v6182, 5
      %v6185 = vshll.u32 %v5891, 16
      %v6187 = vrot.slane %v6185, 6
      %v6188 = vor.u32 %v6184, %v6187
      %v6189 = vsel %vm1903, %v6180, %v6188
      %v6191 = vshrl.u32 %v5892, 16
      %v6193 = vrot.slane %v6191, 5
      %v6194 = vshll.u32 %v5892, 16
      %v6196 = vrot.slane %v6194, 6
      %v6197 = vor.u32 %v6193, %v6196
      %v6198 = vrot.slane %v6197, 4
      %v6200 = vshrl.u32 %v5893, 16
      %v6202 = vrot.slane %v6200, 5
      %v6203 = vshll.u32 %v5893, 16
      %v6205 = vrot.slane %v6203, 6
      %v6206 = vor.u32 %v6202, %v6205
      %v6207 = vsel %vm1903, %v6198, %v6206
      %v6208 = vrot.slane %v6206, 4
      %v6210 = vshrl.u32 %v5894, 16
      %v6212 = vrot.slane %v6210, 5
      %v6213 = vshll.u32 %v5894, 16
      %v6215 = vrot.slane %v6213, 6
      %v6216 = vor.u32 %v6212, %v6215
      %v6217 = vsel %vm1903, %v6208, %v6216
      %v6219 = vshrl.u32 %v5895, 16
      %v6221 = vrot.slane %v6219, 5
      %v6222 = vshll.u32 %v5895, 16
      %v6224 = vrot.slane %v6222, 6
      %v6225 = vor.u32 %v6221, %v6224
      %v6226 = vrot.slane %v6225, 4
      %v6228 = vshrl.u32 %v5896, 16
      %v6230 = vrot.slane %v6228, 5
      %v6231 = vshll.u32 %v5896, 16
      %v6233 = vrot.slane %v6231, 6
      %v6234 = vor.u32 %v6230, %v6233
      %v6235 = vsel %vm1903, %v6226, %v6234
      %v6236 = vrot.slane %v6234, 4
      %v6238 = vshrl.u32 %v5897, 16
      %v6240 = vrot.slane %v6238, 5
      %v6241 = vshll.u32 %v5897, 16
      %v6243 = vrot.slane %v6241, 6
      %v6244 = vor.u32 %v6240, %v6243
      %v6245 = vsel %vm1903, %v6236, %v6244
      %v6247 = vshrl.u32 %v5898, 16
      %v6249 = vrot.slane %v6247, 5
      %v6250 = vshll.u32 %v5898, 16
      %v6252 = vrot.slane %v6250, 6
      %v6253 = vor.u32 %v6249, %v6252
      %v6254 = vrot.slane %v6253, 4
      %v6256 = vshrl.u32 %v5899, 16
      %v6258 = vrot.slane %v6256, 5
      %v6259 = vshll.u32 %v5899, 16
      %v6261 = vrot.slane %v6259, 6
      %v6262 = vor.u32 %v6258, %v6261
      %v6263 = vsel %vm1903, %v6254, %v6262
      %v6264 = vrot.slane %v6262, 4
      %v6266 = vshrl.u32 %v5900, 16
      %v6268 = vrot.slane %v6266, 5
      %v6269 = vshll.u32 %v5900, 16
      %v6271 = vrot.slane %v6269, 6
      %v6272 = vor.u32 %v6268, %v6271
      %v6273 = vsel %vm1903, %v6264, %v6272
      %v6275 = vshrl.u32 %v5901, 16
      %v6277 = vrot.slane %v6275, 5
      %v6278 = vshll.u32 %v5901, 16
      %v6280 = vrot.slane %v6278, 6
      %v6281 = vor.u32 %v6277, %v6280
      %v6282 = vrot.slane %v6281, 4
      %v6284 = vshrl.u32 %v5902, 16
      %v6286 = vrot.slane %v6284, 5
      %v6287 = vshll.u32 %v5902, 16
      %v6289 = vrot.slane %v6287, 6
      %v6290 = vor.u32 %v6286, %v6289
      %v6291 = vsel %vm1903, %v6282, %v6290
      %v6292 = vrot.slane %v6290, 4
      %v6294 = vshrl.u32 %v5903, 16
      %v6296 = vrot.slane %v6294, 5
      %v6297 = vshll.u32 %v5903, 16
      %v6299 = vrot.slane %v6297, 6
      %v6300 = vor.u32 %v6296, %v6299
      %v6301 = vsel %vm1903, %v6292, %v6300
      %v6303 = vshrl.u32 %v5904, 16
      %v6305 = vrot.slane %v6303, 5
      %v6306 = vshll.u32 %v5904, 16
      %v6308 = vrot.slane %v6306, 6
      %v6309 = vor.u32 %v6305, %v6308
      %v6310 = vrot.slane %v6309, 4
      %v6312 = vshrl.u32 %v5905, 16
      %v6314 = vrot.slane %v6312, 5
      %v6315 = vshll.u32 %v5905, 16
      %v6317 = vrot.slane %v6315, 6
      %v6318 = vor.u32 %v6314, %v6317
      %v6319 = vsel %vm1903, %v6310, %v6318
      %v6320 = vrot.slane %v6318, 4
      %v6322 = vshrl.u32 %v5906, 16
      %v6324 = vrot.slane %v6322, 5
      %v6325 = vshll.u32 %v5906, 16
      %v6327 = vrot.slane %v6325, 6
      %v6328 = vor.u32 %v6324, %v6327
      %v6329 = vsel %vm1903, %v6320, %v6328
      %v6331 = vshrl.u32 %v5907, 16
      %v6333 = vrot.slane %v6331, 5
      %v6334 = vshll.u32 %v5907, 16
      %v6336 = vrot.slane %v6334, 6
      %v6337 = vor.u32 %v6333, %v6336
      %v6338 = vrot.slane %v6337, 4
      %v6340 = vshrl.u32 %v5908, 16
      %v6342 = vrot.slane %v6340, 5
      %v6343 = vshll.u32 %v5908, 16
      %v6345 = vrot.slane %v6343, 6
      %v6346 = vor.u32 %v6342, %v6345
      %v6347 = vsel %vm1903, %v6338, %v6346
      %v6348 = vrot.slane %v6346, 4
      %v6350 = vshrl.u32 %v5909, 16
      %v6352 = vrot.slane %v6350, 5
      %v6353 = vshll.u32 %v5909, 16
      %v6355 = vrot.slane %v6353, 6
      %v6356 = vor.u32 %v6352, %v6355
      %v6357 = vsel %vm1903, %v6348, %v6356
      %v6358 = vunpack.c.l.b16 %v5927
      %v6359 = vunpack.c.l.b16 %v5937
      %v6360 = vunpack.c.l.b16 %v5955
      %v6361 = vunpack.c.l.b16 %v5965
      %v6362 = vunpack.c.l.b16 %v5983
      %v6363 = vunpack.c.l.b16 %v5993
      %v6364 = vunpack.c.l.b16 %v6011
      %v6365 = vunpack.c.l.b16 %v6021
      %v6366 = vunpack.c.l.b16 %v6039
      %v6367 = vunpack.c.l.b16 %v6049
      %v6368 = vunpack.c.l.b16 %v6067
      %v6369 = vunpack.c.l.b16 %v6077
      %v6370 = vunpack.c.l.b16 %v6095
      %v6371 = vunpack.c.l.b16 %v6105
      %v6372 = vunpack.c.l.b16 %v6123
      %v6373 = vunpack.c.l.b16 %v6133
      %v6374 = vunpack.c.l.b16 %v6151
      %v6375 = vunpack.c.l.b16 %v6161
      %v6376 = vunpack.c.l.b16 %v6179
      %v6377 = vunpack.c.l.b16 %v6189
      %v6378 = vunpack.c.l.b16 %v6207
      %v6379 = vunpack.c.l.b16 %v6217
      %v6380 = vunpack.c.l.b16 %v6235
      %v6381 = vunpack.c.l.b16 %v6245
      %v6382 = vunpack.c.l.b16 %v6263
      %v6383 = vunpack.c.l.b16 %v6273
      %v6384 = vunpack.c.l.b16 %v6291
      %v6385 = vunpack.c.l.b16 %v6301
      %v6386 = vunpack.c.l.b16 %v6319
      %v6387 = vunpack.c.l.b16 %v6329
      %v6388 = vunpack.c.l.b16 %v6347
      %v6389 = vunpack.c.l.b16 %v6357
      %v6390 = vpack.c.b16 %v6359, %v6358
      %v6391 = vpack.c.b16 %v6361, %v6360
      %v6392 = vpack.c.b16 %v6363, %v6362
      %v6393 = vpack.c.b16 %v6365, %v6364
      %v6394 = vpack.c.b16 %v6367, %v6366
      %v6395 = vpack.c.b16 %v6369, %v6368
      %v6396 = vpack.c.b16 %v6371, %v6370
      %v6397 = vpack.c.b16 %v6373, %v6372
      %v6398 = vpack.c.b16 %v6375, %v6374
      %v6399 = vpack.c.b16 %v6377, %v6376
      %v6400 = vpack.c.b16 %v6379, %v6378
      %v6401 = vpack.c.b16 %v6381, %v6380
      %v6402 = vpack.c.b16 %v6383, %v6382
      %v6403 = vpack.c.b16 %v6385, %v6384
      %v6404 = vpack.c.b16 %v6387, %v6386
      %v6405 = vpack.c.b16 %v6389, %v6388
      %6422 = vst [vmem:[#allocation2 + $0x10] sm:$0xff] %v6390
      %6423 = vst [vmem:[#allocation2 + $0x28] sm:$0xff] %v6391
      %6424 = vst [vmem:[#allocation2 + $0x40] sm:$0xff] %v6392
      %6425 = vst [vmem:[#allocation2 + $0x58] sm:$0xff] %v6393
      %6426 = vst [vmem:[#allocation2 + $0x70] sm:$0xff] %v6394
      %6427 = vst [vmem:[#allocation2 + $0x88] sm:$0xff] %v6395
      %6428 = vst [vmem:[#allocation2 + $0xa0] sm:$0xff] %v6396
      %6429 = vst [vmem:[#allocation2 + $0xb8] sm:$0xff] %v6397
      %6430 = vst [vmem:[#allocation2 + $0xd0] sm:$0xff] %v6398
      %6431 = vst [vmem:[#allocation2 + $0xe8] sm:$0xff] %v6399
      %6432 = vst [vmem:[#allocation2 + $0x100] sm:$0xff] %v6400
      %6433 = vst [vmem:[#allocation2 + $0x118] sm:$0xff] %v6401
      %6434 = vst [vmem:[#allocation2 + $0x130] sm:$0xff] %v6402
      %6435 = vst [vmem:[#allocation2 + $0x148] sm:$0xff] %v6403
      %6436 = vst [vmem:[#allocation2 + $0x160] sm:$0xff] %v6404
      %6437 = vst [vmem:[#allocation2 + $0x178] sm:$0xff] %v6405
      %v6438 = vld [vmem:[#allocation2] sm:$0xff]
      %v6439 = vld [vmem:[#allocation2 + $0x8] sm:$0xff]
      %v6440 = vld [vmem:[#allocation2 + $0x10] sm:$0xff]
      %v6441 = vld [vmem:[#allocation2 + $0x18] sm:$0xff]
      %v6442 = vld [vmem:[#allocation2 + $0x20] sm:$0xff]
      %v6443 = vld [vmem:[#allocation2 + $0x28] sm:$0xff]
      %v6444 = vld [vmem:[#allocation2 + $0x30] sm:$0xff]
      %v6445 = vld [vmem:[#allocation2 + $0x38] sm:$0xff]
      %v6446 = vld [vmem:[#allocation2 + $0x40] sm:$0xff]
      %v6447 = vld [vmem:[#allocation2 + $0x48] sm:$0xff]
      %v6448 = vld [vmem:[#allocation2 + $0x50] sm:$0xff]
      %v6449 = vld [vmem:[#allocation2 + $0x58] sm:$0xff]
      %v6450 = vld [vmem:[#allocation2 + $0x60] sm:$0xff]
      %v6451 = vld [vmem:[#allocation2 + $0x68] sm:$0xff]
      %v6452 = vld [vmem:[#allocation2 + $0x70] sm:$0xff]
      %v6453 = vld [vmem:[#allocation2 + $0x78] sm:$0xff]
      %v6454 = vld [vmem:[#allocation2 + $0x80] sm:$0xff]
      %v6455 = vld [vmem:[#allocation2 + $0x88] sm:$0xff]
      %v6456 = vld [vmem:[#allocation2 + $0x90] sm:$0xff]
      %v6457 = vld [vmem:[#allocation2 + $0x98] sm:$0xff]
      %v6458 = vld [vmem:[#allocation2 + $0xa0] sm:$0xff]
      %v6459 = vld [vmem:[#allocation2 + $0xa8] sm:$0xff]
      %v6460 = vld [vmem:[#allocation2 + $0xb0] sm:$0xff]
      %v6461 = vld [vmem:[#allocation2 + $0xb8] sm:$0xff]
      %v6462 = vld [vmem:[#allocation2 + $0xc0] sm:$0xff]
      %v6463 = vld [vmem:[#allocation2 + $0xc8] sm:$0xff]
      %v6464 = vld [vmem:[#allocation2 + $0xd0] sm:$0xff]
      %v6465 = vld [vmem:[#allocation2 + $0xd8] sm:$0xff]
      %v6466 = vld [vmem:[#allocation2 + $0xe0] sm:$0xff]
      %v6467 = vld [vmem:[#allocation2 + $0xe8] sm:$0xff]
      %v6468 = vld [vmem:[#allocation2 + $0xf0] sm:$0xff]
      %v6469 = vld [vmem:[#allocation2 + $0xf8] sm:$0xff]
      %v6470 = vld [vmem:[#allocation2 + $0x100] sm:$0xff]
      %v6471 = vld [vmem:[#allocation2 + $0x108] sm:$0xff]
      %v6472 = vld [vmem:[#allocation2 + $0x110] sm:$0xff]
      %v6473 = vld [vmem:[#allocation2 + $0x118] sm:$0xff]
      %v6474 = vld [vmem:[#allocation2 + $0x120] sm:$0xff]
      %v6475 = vld [vmem:[#allocation2 + $0x128] sm:$0xff]
      %v6476 = vld [vmem:[#allocation2 + $0x130] sm:$0xff]
      %v6477 = vld [vmem:[#allocation2 + $0x138] sm:$0xff]
      %v6478 = vld [vmem:[#allocation2 + $0x140] sm:$0xff]
      %v6479 = vld [vmem:[#allocation2 + $0x148] sm:$0xff]
      %v6480 = vld [vmem:[#allocation2 + $0x150] sm:$0xff]
      %v6481 = vld [vmem:[#allocation2 + $0x158] sm:$0xff]
      %v6482 = vld [vmem:[#allocation2 + $0x160] sm:$0xff]
      %v6483 = vld [vmem:[#allocation2 + $0x168] sm:$0xff]
      %v6484 = vld [vmem:[#allocation2 + $0x170] sm:$0xff]
      %v6485 = vld [vmem:[#allocation2 + $0x178] sm:$0xff]
      %s6486 = scalar_lea.vmem %s3, 384
      %v6487 = vld [vmem:[%s6486] sm:$0xf]
      %v6488 = vld [vmem:[%s6486 + $0x4] sm:$0xf]
      %v6489 = vld [vmem:[%s6486 + $0x8] sm:$0xf]
      %v6490 = vld [vmem:[%s6486 + $0xc] sm:$0xf]
      %v6491 = vld [vmem:[%s6486 + $0x10] sm:$0xf]
      %v6492 = vld [vmem:[%s6486 + $0x14] sm:$0xf]
      %v6493 = vld [vmem:[%s6486 + $0x18] sm:$0xf]
      %v6494 = vld [vmem:[%s6486 + $0x1c] sm:$0xf]
      %v6495 = vld [vmem:[%s6486 + $0x20] sm:$0xf]
      %v6496 = vld [vmem:[%s6486 + $0x24] sm:$0xf]
      %v6497 = vld [vmem:[%s6486 + $0x28] sm:$0xf]
      %v6498 = vld [vmem:[%s6486 + $0x2c] sm:$0xf]
      %v6499 = vld [vmem:[%s6486 + $0x30] sm:$0xf]
      %v6500 = vld [vmem:[%s6486 + $0x34] sm:$0xf]
      %v6501 = vld [vmem:[%s6486 + $0x38] sm:$0xf]
      %v6502 = vld [vmem:[%s6486 + $0x3c] sm:$0xf]
      %v6503 = vld [vmem:[%s6486 + $0x40] sm:$0xf]
      %v6504 = vld [vmem:[%s6486 + $0x44] sm:$0xf]
      %v6505 = vld [vmem:[%s6486 + $0x48] sm:$0xf]
      %v6506 = vld [vmem:[%s6486 + $0x4c] sm:$0xf]
      %v6507 = vld [vmem:[%s6486 + $0x50] sm:$0xf]
      %v6508 = vld [vmem:[%s6486 + $0x54] sm:$0xf]
      %v6509 = vld [vmem:[%s6486 + $0x58] sm:$0xf]
      %v6510 = vld [vmem:[%s6486 + $0x5c] sm:$0xf]
      %v6511 = vld [vmem:[%s6486 + $0x60] sm:$0xf]
      %v6512 = vld [vmem:[%s6486 + $0x64] sm:$0xf]
      %v6513 = vld [vmem:[%s6486 + $0x68] sm:$0xf]
      %v6514 = vld [vmem:[%s6486 + $0x6c] sm:$0xf]
      %v6515 = vld [vmem:[%s6486 + $0x70] sm:$0xf]
      %v6516 = vld [vmem:[%s6486 + $0x74] sm:$0xf]
      %v6517 = vld [vmem:[%s6486 + $0x78] sm:$0xf]
      %v6518 = vld [vmem:[%s6486 + $0x7c] sm:$0xf]
      %v6519 = vld [vmem:[%s6486 + $0x80] sm:$0xf]
      %v6520 = vld [vmem:[%s6486 + $0x84] sm:$0xf]
      %v6521 = vld [vmem:[%s6486 + $0x88] sm:$0xf]
      %v6522 = vld [vmem:[%s6486 + $0x8c] sm:$0xf]
      %v6523 = vld [vmem:[%s6486 + $0x90] sm:$0xf]
      %v6524 = vld [vmem:[%s6486 + $0x94] sm:$0xf]
      %v6525 = vld [vmem:[%s6486 + $0x98] sm:$0xf]
      %v6526 = vld [vmem:[%s6486 + $0x9c] sm:$0xf]
      %v6527 = vld [vmem:[%s6486 + $0xa0] sm:$0xf]
      %v6528 = vld [vmem:[%s6486 + $0xa4] sm:$0xf]
      %v6529 = vld [vmem:[%s6486 + $0xa8] sm:$0xf]
      %v6530 = vld [vmem:[%s6486 + $0xac] sm:$0xf]
      %v6531 = vld [vmem:[%s6486 + $0xb0] sm:$0xf]
      %v6532 = vld [vmem:[%s6486 + $0xb4] sm:$0xf]
      %v6533 = vld [vmem:[%s6486 + $0xb8] sm:$0xf]
      %v6534 = vld [vmem:[%s6486 + $0xbc] sm:$0xf]
      %v6583 = vunpack.c.l.b16 %v6487
      %v6584 = vunpack.c.l.b16 %v6488
      %v6585 = vunpack.c.l.b16 %v6489
      %v6586 = vunpack.c.l.b16 %v6490
      %v6587 = vunpack.c.l.b16 %v6491
      %v6588 = vunpack.c.l.b16 %v6492
      %v6589 = vunpack.c.l.b16 %v6493
      %v6590 = vunpack.c.l.b16 %v6494
      %v6591 = vunpack.c.l.b16 %v6495
      %v6592 = vunpack.c.l.b16 %v6496
      %v6593 = vunpack.c.l.b16 %v6497
      %v6594 = vunpack.c.l.b16 %v6498
      %v6595 = vunpack.c.l.b16 %v6499
      %v6596 = vunpack.c.l.b16 %v6500
      %v6597 = vunpack.c.l.b16 %v6501
      %v6598 = vunpack.c.l.b16 %v6502
      %v6599 = vunpack.c.l.b16 %v6503
      %v6600 = vunpack.c.l.b16 %v6504
      %v6601 = vunpack.c.l.b16 %v6505
      %v6602 = vunpack.c.l.b16 %v6506
      %v6603 = vunpack.c.l.b16 %v6507
      %v6604 = vunpack.c.l.b16 %v6508
      %v6605 = vunpack.c.l.b16 %v6509
      %v6606 = vunpack.c.l.b16 %v6510
      %v6607 = vunpack.c.l.b16 %v6511
      %v6608 = vunpack.c.l.b16 %v6512
      %v6609 = vunpack.c.l.b16 %v6513
      %v6610 = vunpack.c.l.b16 %v6514
      %v6611 = vunpack.c.l.b16 %v6515
      %v6612 = vunpack.c.l.b16 %v6516
      %v6613 = vunpack.c.l.b16 %v6517
      %v6614 = vunpack.c.l.b16 %v6518
      %v6615 = vunpack.c.l.b16 %v6519
      %v6616 = vunpack.c.l.b16 %v6520
      %v6617 = vunpack.c.l.b16 %v6521
      %v6618 = vunpack.c.l.b16 %v6522
      %v6619 = vunpack.c.l.b16 %v6523
      %v6620 = vunpack.c.l.b16 %v6524
      %v6621 = vunpack.c.l.b16 %v6525
      %v6622 = vunpack.c.l.b16 %v6526
      %v6623 = vunpack.c.l.b16 %v6527
      %v6624 = vunpack.c.l.b16 %v6528
      %v6625 = vunpack.c.l.b16 %v6529
      %v6626 = vunpack.c.l.b16 %v6530
      %v6627 = vunpack.c.l.b16 %v6531
      %v6628 = vunpack.c.l.b16 %v6532
      %v6629 = vunpack.c.l.b16 %v6533
      %v6630 = vunpack.c.l.b16 %v6534
      %v6631 = vpack.c.b16 %v6584, %v6583
      %v6632 = vpack.c.b16 %v6586, %v6585
      %v6633 = vpack.c.b16 %v6588, %v6587
      %v6634 = vpack.c.b16 %v6590, %v6589
      %v6635 = vpack.c.b16 %v6592, %v6591
      %v6636 = vpack.c.b16 %v6594, %v6593
      %v6637 = vpack.c.b16 %v6596, %v6595
      %v6638 = vpack.c.b16 %v6598, %v6597
      %v6639 = vpack.c.b16 %v6600, %v6599
      %v6640 = vpack.c.b16 %v6602, %v6601
      %v6641 = vpack.c.b16 %v6604, %v6603
      %v6642 = vpack.c.b16 %v6606, %v6605
      %v6643 = vpack.c.b16 %v6608, %v6607
      %v6644 = vpack.c.b16 %v6610, %v6609
      %v6645 = vpack.c.b16 %v6612, %v6611
      %v6646 = vpack.c.b16 %v6614, %v6613
      %v6647 = vpack.c.b16 %v6616, %v6615
      %v6648 = vpack.c.b16 %v6618, %v6617
      %v6649 = vpack.c.b16 %v6620, %v6619
      %v6650 = vpack.c.b16 %v6622, %v6621
      %v6651 = vpack.c.b16 %v6624, %v6623
      %v6652 = vpack.c.b16 %v6626, %v6625
      %v6653 = vpack.c.b16 %v6628, %v6627
      %v6654 = vpack.c.b16 %v6630, %v6629
      %6679 = vmatprep.subr.bf16.mxu0 0
      %6680 = vmatpush1.bf16.msra.mxu0 %v6631
      %6681 = vmatprep.subr.bf16.mxu0 0
      %6682 = vmatpush1.bf16.msra.mxu0 %v6632
      %6683 = vmatprep.subr.bf16.mxu0 0
      %6684 = vmatpush1.bf16.msra.mxu0 %v6633
      %6685 = vmatprep.subr.bf16.mxu0 0
      %6686 = vmatpush1.bf16.msra.mxu0 %v6634
      %6687 = vmatprep.subr.bf16.mxu0 0
      %6688 = vmatpush1.bf16.msra.mxu0 %v6635
      %6689 = vmatprep.subr.bf16.mxu0 0
      %6690 = vmatpush1.bf16.msra.mxu0 %v6636
      %6691 = vmatprep.subr.bf16.mxu0 0
      %6692 = vmatpush1.bf16.msra.mxu0 %v6637
      %6693 = vmatprep.subr.bf16.mxu0 0
      %6694 = vmatpush1.bf16.msra.mxu0 %v6638
      %6695 = vmatprep.subr.bf16.mxu0 0
      %6696 = vmatpush1.bf16.msra.mxu0 %v6639
      %6697 = vmatprep.subr.bf16.mxu0 0
      %6698 = vmatpush1.bf16.msra.mxu0 %v6640
      %6699 = vmatprep.subr.bf16.mxu0 0
      %6700 = vmatpush1.bf16.msra.mxu0 %v6641
      %6701 = vmatprep.subr.bf16.mxu0 0
      %6702 = vmatpush1.bf16.msra.mxu0 %v6642
      %6703 = vmatprep.subr.bf16.mxu0 0
      %6704 = vmatpush1.bf16.msra.mxu0 %v6643
      %6705 = vmatprep.subr.bf16.mxu0 0
      %6706 = vmatpush1.bf16.msra.mxu0 %v6644
      %6707 = vmatprep.subr.bf16.mxu0 0
      %6708 = vmatpush1.bf16.msra.mxu0 %v6645
      %6709 = vmatprep.subr.bf16.mxu0 0
      %6710 = vmatpush1.bf16.msra.mxu0 %v6646
      %6711 = vmatprep.mubr.bf16.mxu0 %v6439
      %6712 = vmatmul.mubr.bf16.gmra.mrb[0].mxu0 %v6438
      %v6713 = vpop.f32.mrb[0].mxu0
      %v6714 = vadd.f32 0.0, %v6713
      %v6715 = vpop.f32.mrb[0].mxu0
      %v6716 = vpop.f32.mrb[0].mxu0
      %v6717 = vadd.f32 0.0, %v6716
      %v6718 = vpop.f32.mrb[0].mxu0
      %6719 = vmatprep.mubr.bf16.mxu0 %v6442
      %6720 = vmatmul.mubr.bf16.gmra.mrb[0].mxu0 %v6441
      %v6721 = vpop.f32.mrb[0].mxu0
      %v6722 = vadd.f32 0.0, %v6721
      %v6723 = vpop.f32.mrb[0].mxu0
      %v6724 = vpop.f32.mrb[0].mxu0
      %v6725 = vadd.f32 0.0, %v6724
      %v6726 = vpop.f32.mrb[0].mxu0
      %6727 = vmatprep.mubr.bf16.mxu0 %v6445
      %6728 = vmatmul.mubr.bf16.gmra.mrb[0].mxu0 %v6444
      %v6729 = vpop.f32.mrb[0].mxu0
      %v6730 = vadd.f32 0.0, %v6729
      %v6731 = vpop.f32.mrb[0].mxu0
      %v6732 = vpop.f32.mrb[0].mxu0
      %v6733 = vadd.f32 0.0, %v6732
      %v6734 = vpop.f32.mrb[0].mxu0
      %6735 = vmatprep.mubr.bf16.mxu0 %v6448
      %6736 = vmatmul.mubr.bf16.gmra.mrb[0].mxu0 %v6447
      %v6737 = vpop.f32.mrb[0].mxu0
      %v6738 = vadd.f32 0.0, %v6737
      %v6739 = vpop.f32.mrb[0].mxu0
      %v6740 = vpop.f32.mrb[0].mxu0
      %v6741 = vadd.f32 0.0, %v6740
      %v6742 = vpop.f32.mrb[0].mxu0
      %6743 = vmatprep.mubr.bf16.mxu0 %v6451
      %6744 = vmatmul.mubr.bf16.gmra.mrb[0].mxu0 %v6450
      %v6745 = vpop.f32.mrb[0].mxu0
      %v6746 = vadd.f32 0.0, %v6745
      %v6747 = vpop.f32.mrb[0].mxu0
      %v6748 = vpop.f32.mrb[0].mxu0
      %v6749 = vadd.f32 0.0, %v6748
      %v6750 = vpop.f32.mrb[0].mxu0
      %6751 = vmatprep.mubr.bf16.mxu0 %v6454
      %6752 = vmatmul.mubr.bf16.gmra.mrb[0].mxu0 %v6453
      %v6753 = vpop.f32.mrb[0].mxu0
      %v6754 = vadd.f32 0.0, %v6753
      %v6755 = vpop.f32.mrb[0].mxu0
      %v6756 = vpop.f32.mrb[0].mxu0
      %v6757 = vadd.f32 0.0, %v6756
      %v6758 = vpop.f32.mrb[0].mxu0
      %6759 = vmatprep.mubr.bf16.mxu0 %v6457
      %6760 = vmatmul.mubr.bf16.gmra.mrb[0].mxu0 %v6456
      %v6761 = vpop.f32.mrb[0].mxu0
      %v6762 = vadd.f32 0.0, %v6761
      %v6763 = vpop.f32.mrb[0].mxu0
      %v6764 = vpop.f32.mrb[0].mxu0
      %v6765 = vadd.f32 0.0, %v6764
      %v6766 = vpop.f32.mrb[0].mxu0
      %6767 = vmatprep.mubr.bf16.mxu0 %v6460
      %6768 = vmatmul.mubr.bf16.gmra.mrb[0].mxu0 %v6459
      %v6769 = vpop.f32.mrb[0].mxu0
      %v6770 = vadd.f32 0.0, %v6769
      %v6771 = vpop.f32.mrb[0].mxu0
      %v6772 = vpop.f32.mrb[0].mxu0
      %v6773 = vadd.f32 0.0, %v6772
      %v6774 = vpop.f32.mrb[0].mxu0
      %6775 = vmatprep.mubr.bf16.mxu0 %v6463
      %6776 = vmatmul.mubr.bf16.gmra.mrb[0].mxu0 %v6462
      %v6777 = vpop.f32.mrb[0].mxu0
      %v6778 = vadd.f32 0.0, %v6777
      %v6779 = vpop.f32.mrb[0].mxu0
      %v6780 = vpop.f32.mrb[0].mxu0
      %v6781 = vadd.f32 0.0, %v6780
      %v6782 = vpop.f32.mrb[0].mxu0
      %6783 = vmatprep.mubr.bf16.mxu0 %v6466
      %6784 = vmatmul.mubr.bf16.gmra.mrb[0].mxu0 %v6465
      %v6785 = vpop.f32.mrb[0].mxu0
      %v6786 = vadd.f32 0.0, %v6785
      %v6787 = vpop.f32.mrb[0].mxu0
      %v6788 = vpop.f32.mrb[0].mxu0
      %v6789 = vadd.f32 0.0, %v6788
      %v6790 = vpop.f32.mrb[0].mxu0
      %6791 = vmatprep.mubr.bf16.mxu0 %v6469
      %6792 = vmatmul.mubr.bf16.gmra.mrb[0].mxu0 %v6468
      %v6793 = vpop.f32.mrb[0].mxu0
      %v6794 = vadd.f32 0.0, %v6793
      %v6795 = vpop.f32.mrb[0].mxu0
      %v6796 = vpop.f32.mrb[0].mxu0
      %v6797 = vadd.f32 0.0, %v6796
      %v6798 = vpop.f32.mrb[0].mxu0
      %6799 = vmatprep.mubr.bf16.mxu0 %v6472
      %6800 = vmatmul.mubr.bf16.gmra.mrb[0].mxu0 %v6471
      %v6801 = vpop.f32.mrb[0].mxu0
      %v6802 = vadd.f32 0.0, %v6801
      %v6803 = vpop.f32.mrb[0].mxu0
      %v6804 = vpop.f32.mrb[0].mxu0
      %v6805 = vadd.f32 0.0, %v6804
      %v6806 = vpop.f32.mrb[0].mxu0
      %6807 = vmatprep.mubr.bf16.mxu0 %v6475
      %6808 = vmatmul.mubr.bf16.gmra.mrb[0].mxu0 %v6474
      %v6809 = vpop.f32.mrb[0].mxu0
      %v6810 = vadd.f32 0.0, %v6809
      %v6811 = vpop.f32.mrb[0].mxu0
      %v6812 = vpop.f32.mrb[0].mxu0
      %v6813 = vadd.f32 0.0, %v6812
      %v6814 = vpop.f32.mrb[0].mxu0
      %6815 = vmatprep.mubr.bf16.mxu0 %v6478
      %6816 = vmatmul.mubr.bf16.gmra.mrb[0].mxu0 %v6477
      %v6817 = vpop.f32.mrb[0].mxu0
      %v6818 = vadd.f32 0.0, %v6817
      %v6819 = vpop.f32.mrb[0].mxu0
      %v6820 = vpop.f32.mrb[0].mxu0
      %v6821 = vadd.f32 0.0, %v6820
      %v6822 = vpop.f32.mrb[0].mxu0
      %6823 = vmatprep.mubr.bf16.mxu0 %v6481
      %6824 = vmatmul.mubr.bf16.gmra.mrb[0].mxu0 %v6480
      %v6825 = vpop.f32.mrb[0].mxu0
      %v6826 = vadd.f32 0.0, %v6825
      %v6827 = vpop.f32.mrb[0].mxu0
      %v6828 = vpop.f32.mrb[0].mxu0
      %v6829 = vadd.f32 0.0, %v6828
      %v6830 = vpop.f32.mrb[0].mxu0
      %6831 = vmatprep.mubr.bf16.mxu0 %v6484
      %6832 = vmatmul.mubr.bf16.gmra.mrb[0].mxu0 %v6483
      %v6833 = vpop.f32.mrb[0].mxu0
      %v6834 = vadd.f32 0.0, %v6833
      %v6835 = vpop.f32.mrb[0].mxu0
      %v6836 = vpop.f32.mrb[0].mxu0
      %v6837 = vadd.f32 0.0, %v6836
      %v6838 = vpop.f32.mrb[0].mxu0
      %6839 = vdwg.mxu0
      %6840 = vmatprep.subr.bf16.mxu0 0
      %6841 = vmatpush1.bf16.msra.mxu0 %v6647
      %6842 = vmatprep.subr.bf16.mxu0 0
      %6843 = vmatpush1.bf16.msra.mxu0 %v6648
      %6844 = vmatprep.subr.bf16.mxu0 0
      %6845 = vmatpush1.bf16.msra.mxu0 %v6649
      %6846 = vmatprep.subr.bf16.mxu0 0
      %6847 = vmatpush1.bf16.msra.mxu0 %v6650
      %6848 = vmatprep.subr.bf16.mxu0 0
      %6849 = vmatpush1.bf16.msra.mxu0 %v6651
      %6850 = vmatprep.subr.bf16.mxu0 0
      %6851 = vmatpush1.bf16.msra.mxu0 %v6652
      %6852 = vmatprep.subr.bf16.mxu0 0
      %6853 = vmatpush1.bf16.msra.mxu0 %v6653
      %6854 = vmatprep.subr.bf16.mxu0 0
      %6855 = vmatpush1.bf16.msra.mxu0 %v6654
      %6856 = vmatprep.subr.bf16.mxu0 0
      %6857 = vmatpush1.bf16.msra.mxu0 0
      %6858 = vmatprep.subr.bf16.mxu0 0
      %6859 = vmatpush1.bf16.msra.mxu0 0
      %6860 = vmatprep.subr.bf16.mxu0 0
      %6861 = vmatpush1.bf16.msra.mxu0 0
      %6862 = vmatprep.subr.bf16.mxu0 0
      %6863 = vmatpush1.bf16.msra.mxu0 0
      %6864 = vmatprep.subr.bf16.mxu0 0
      %6865 = vmatpush1.bf16.msra.mxu0 0
      %6866 = vmatprep.subr.bf16.mxu0 0
      %6867 = vmatpush1.bf16.msra.mxu0 0
      %6868 = vmatprep.subr.bf16.mxu0 0
      %6869 = vmatpush1.bf16.msra.mxu0 0
      %6870 = vmatprep.subr.bf16.mxu0 0
      %6871 = vmatpush1.bf16.msra.mxu0 0
      %6872 = vmatprep.mubr.bf16.mxu0 0
      %6873 = vmatmul.mubr.bf16.gmra.mrb[0].mxu0 %v6440
      %v6874 = vpop.f32.mrb[0].mxu0
      %v6875 = vadd.f32 %v6714, %v6874
      %v6876 = vpop.f32.mrb[0].mxu0
      %v6877 = vpop.f32.mrb[0].mxu0
      %v6878 = vadd.f32 %v6717, %v6877
      %v6879 = vpop.f32.mrb[0].mxu0
      %6880 = vmatprep.mubr.bf16.mxu0 0
      %6881 = vmatmul.mubr.bf16.gmra.mrb[0].mxu0 %v6443
      %v6882 = vpop.f32.mrb[0].mxu0
      %v6883 = vadd.f32 %v6722, %v6882
      %v6884 = vpop.f32.mrb[0].mxu0
      %v6885 = vpop.f32.mrb[0].mxu0
      %v6886 = vadd.f32 %v6725, %v6885
      %v6887 = vpop.f32.mrb[0].mxu0
      %6888 = vmatprep.mubr.bf16.mxu0 0
      %6889 = vmatmul.mubr.bf16.gmra.mrb[0].mxu0 %v6446
      %v6890 = vpop.f32.mrb[0].mxu0
      %v6891 = vadd.f32 %v6730, %v6890
      %v6892 = vpop.f32.mrb[0].mxu0
      %v6893 = vpop.f32.mrb[0].mxu0
      %v6894 = vadd.f32 %v6733, %v6893
      %v6895 = vpop.f32.mrb[0].mxu0
      %6896 = vmatprep.mubr.bf16.mxu0 0
      %6897 = vmatmul.mubr.bf16.gmra.mrb[0].mxu0 %v6449
      %v6898 = vpop.f32.mrb[0].mxu0
      %v6899 = vadd.f32 %v6738, %v6898
      %v6900 = vpop.f32.mrb[0].mxu0
      %v6901 = vpop.f32.mrb[0].mxu0
      %v6902 = vadd.f32 %v6741, %v6901
      %v6903 = vpop.f32.mrb[0].mxu0
      %6904 = vmatprep.mubr.bf16.mxu0 0
      %6905 = vmatmul.mubr.bf16.gmra.mrb[0].mxu0 %v6452
      %v6906 = vpop.f32.mrb[0].mxu0
      %v6907 = vadd.f32 %v6746, %v6906
      %v6908 = vpop.f32.mrb[0].mxu0
      %v6909 = vpop.f32.mrb[0].mxu0
      %v6910 = vadd.f32 %v6749, %v6909
      %v6911 = vpop.f32.mrb[0].mxu0
      %6912 = vmatprep.mubr.bf16.mxu0 0
      %6913 = vmatmul.mubr.bf16.gmra.mrb[0].mxu0 %v6455
      %v6914 = vpop.f32.mrb[0].mxu0
      %v6915 = vadd.f32 %v6754, %v6914
      %v6916 = vpop.f32.mrb[0].mxu0
      %v6917 = vpop.f32.mrb[0].mxu0
      %v6918 = vadd.f32 %v6757, %v6917
      %v6919 = vpop.f32.mrb[0].mxu0
      %6920 = vmatprep.mubr.bf16.mxu0 0
      %6921 = vmatmul.mubr.bf16.gmra.mrb[0].mxu0 %v6458
      %v6922 = vpop.f32.mrb[0].mxu0
      %v6923 = vadd.f32 %v6762, %v6922
      %v6924 = vpop.f32.mrb[0].mxu0
      %v6925 = vpop.f32.mrb[0].mxu0
      %v6926 = vadd.f32 %v6765, %v6925
      %v6927 = vpop.f32.mrb[0].mxu0
      %6928 = vmatprep.mubr.bf16.mxu0 0
      %6929 = vmatmul.mubr.bf16.gmra.mrb[0].mxu0 %v6461
      %v6930 = vpop.f32.mrb[0].mxu0
      %v6931 = vadd.f32 %v6770, %v6930
      %v6932 = vpop.f32.mrb[0].mxu0
      %v6933 = vpop.f32.mrb[0].mxu0
      %v6934 = vadd.f32 %v6773, %v6933
      %v6935 = vpop.f32.mrb[0].mxu0
      %6936 = vmatprep.mubr.bf16.mxu0 0
      %6937 = vmatmul.mubr.bf16.gmra.mrb[0].mxu0 %v6464
      %v6938 = vpop.f32.mrb[0].mxu0
      %v6939 = vadd.f32 %v6778, %v6938
      %v6940 = vpop.f32.mrb[0].mxu0
      %v6941 = vpop.f32.mrb[0].mxu0
      %v6942 = vadd.f32 %v6781, %v6941
      %v6943 = vpop.f32.mrb[0].mxu0
      %6944 = vmatprep.mubr.bf16.mxu0 0
      %6945 = vmatmul.mubr.bf16.gmra.mrb[0].mxu0 %v6467
      %v6946 = vpop.f32.mrb[0].mxu0
      %v6947 = vadd.f32 %v6786, %v6946
      %v6948 = vpop.f32.mrb[0].mxu0
      %v6949 = vpop.f32.mrb[0].mxu0
      %v6950 = vadd.f32 %v6789, %v6949
      %v6951 = vpop.f32.mrb[0].mxu0
      %6952 = vmatprep.mubr.bf16.mxu0 0
      %6953 = vmatmul.mubr.bf16.gmra.mrb[0].mxu0 %v6470
      %v6954 = vpop.f32.mrb[0].mxu0
      %v6955 = vadd.f32 %v6794, %v6954
      %v6956 = vpop.f32.mrb[0].mxu0
      %v6957 = vpop.f32.mrb[0].mxu0
      %v6958 = vadd.f32 %v6797, %v6957
      %v6959 = vpop.f32.mrb[0].mxu0
      %6960 = vmatprep.mubr.bf16.mxu0 0
      %6961 = vmatmul.mubr.bf16.gmra.mrb[0].mxu0 %v6473
      %v6962 = vpop.f32.mrb[0].mxu0
      %v6963 = vadd.f32 %v6802, %v6962
      %v6964 = vpop.f32.mrb[0].mxu0
      %v6965 = vpop.f32.mrb[0].mxu0
      %v6966 = vadd.f32 %v6805, %v6965
      %v6967 = vpop.f32.mrb[0].mxu0
      %6968 = vmatprep.mubr.bf16.mxu0 0
      %6969 = vmatmul.mubr.bf16.gmra.mrb[0].mxu0 %v6476
      %v6970 = vpop.f32.mrb[0].mxu0
      %v6971 = vadd.f32 %v6810, %v6970
      %v6972 = vpop.f32.mrb[0].mxu0
      %v6973 = vpop.f32.mrb[0].mxu0
      %v6974 = vadd.f32 %v6813, %v6973
      %v6975 = vpop.f32.mrb[0].mxu0
      %6976 = vmatprep.mubr.bf16.mxu0 0
      %6977 = vmatmul.mubr.bf16.gmra.mrb[0].mxu0 %v6479
      %v6978 = vpop.f32.mrb[0].mxu0
      %v6979 = vadd.f32 %v6818, %v6978
      %v6980 = vpop.f32.mrb[0].mxu0
      %v6981 = vpop.f32.mrb[0].mxu0
      %v6982 = vadd.f32 %v6821, %v6981
      %v6983 = vpop.f32.mrb[0].mxu0
      %6984 = vmatprep.mubr.bf16.mxu0 0
      %6985 = vmatmul.mubr.bf16.gmra.mrb[0].mxu0 %v6482
      %v6986 = vpop.f32.mrb[0].mxu0
      %v6987 = vadd.f32 %v6826, %v6986
      %v6988 = vpop.f32.mrb[0].mxu0
      %v6989 = vpop.f32.mrb[0].mxu0
      %v6990 = vadd.f32 %v6829, %v6989
      %v6991 = vpop.f32.mrb[0].mxu0
      %6992 = vmatprep.mubr.bf16.mxu0 0
      %6993 = vmatmul.mubr.bf16.gmra.mrb[0].mxu0 %v6485
      %v6994 = vpop.f32.mrb[0].mxu0
      %v6995 = vadd.f32 %v6834, %v6994
      %v6996 = vpop.f32.mrb[0].mxu0
      %v6997 = vpop.f32.mrb[0].mxu0
      %v6998 = vadd.f32 %v6837, %v6997
      %v6999 = vpop.f32.mrb[0].mxu0
      %7000 = vdwg.mxu0
      %v7001 = vld [vmem:[#allocation3] sm:$0xff]
      %v7002 = vld [vmem:[#allocation3 + $0x8] sm:$0xff]
      %v7003 = vld [vmem:[#allocation3 + $0x10] sm:$0xff]
      %v7004 = vld [vmem:[#allocation3 + $0x18] sm:$0xff]
      %v7005 = vld [vmem:[#allocation3 + $0x20] sm:$0xff]
      %v7006 = vld [vmem:[#allocation3 + $0x28] sm:$0xff]
      %v7007 = vld [vmem:[#allocation3 + $0x30] sm:$0xff]
      %v7008 = vld [vmem:[#allocation3 + $0x38] sm:$0xff]
      %v7009 = vld [vmem:[#allocation3 + $0x40] sm:$0xff]
      %v7010 = vld [vmem:[#allocation3 + $0x48] sm:$0xff]
      %v7011 = vld [vmem:[#allocation3 + $0x50] sm:$0xff]
      %v7012 = vld [vmem:[#allocation3 + $0x58] sm:$0xff]
      %v7013 = vld [vmem:[#allocation3 + $0x60] sm:$0xff]
      %v7014 = vld [vmem:[#allocation3 + $0x68] sm:$0xff]
      %v7015 = vld [vmem:[#allocation3 + $0x70] sm:$0xff]
      %v7016 = vld [vmem:[#allocation3 + $0x78] sm:$0xff]
      %v7017 = vld [vmem:[#allocation3 + $0x80] sm:$0xff]
      %v7018 = vld [vmem:[#allocation3 + $0x88] sm:$0xff]
      %v7019 = vld [vmem:[#allocation3 + $0x90] sm:$0xff]
      %v7020 = vld [vmem:[#allocation3 + $0x98] sm:$0xff]
      %v7021 = vld [vmem:[#allocation3 + $0xa0] sm:$0xff]
      %v7022 = vld [vmem:[#allocation3 + $0xa8] sm:$0xff]
      %v7023 = vld [vmem:[#allocation3 + $0xb0] sm:$0xff]
      %v7024 = vld [vmem:[#allocation3 + $0xb8] sm:$0xff]
      %v7025 = vld [vmem:[#allocation3 + $0xc0] sm:$0xff]
      %v7026 = vld [vmem:[#allocation3 + $0xc8] sm:$0xff]
      %v7027 = vld [vmem:[#allocation3 + $0xd0] sm:$0xff]
      %v7028 = vld [vmem:[#allocation3 + $0xd8] sm:$0xff]
      %v7029 = vld [vmem:[#allocation3 + $0xe0] sm:$0xff]
      %v7030 = vld [vmem:[#allocation3 + $0xe8] sm:$0xff]
      %v7031 = vld [vmem:[#allocation3 + $0xf0] sm:$0xff]
      %v7032 = vld [vmem:[#allocation3 + $0xf8] sm:$0xff]
      %v7033 = vadd.f32 %v7001, %v6875
      %v7034 = vadd.f32 %v7002, %v6878
      %v7035 = vadd.f32 %v7003, %v6883
      %v7036 = vadd.f32 %v7004, %v6886
      %v7037 = vadd.f32 %v7005, %v6891
      %v7038 = vadd.f32 %v7006, %v6894
      %v7039 = vadd.f32 %v7007, %v6899
      %v7040 = vadd.f32 %v7008, %v6902
      %v7041 = vadd.f32 %v7009, %v6907
      %v7042 = vadd.f32 %v7010, %v6910
      %v7043 = vadd.f32 %v7011, %v6915
      %v7044 = vadd.f32 %v7012, %v6918
      %v7045 = vadd.f32 %v7013, %v6923
      %v7046 = vadd.f32 %v7014, %v6926
      %v7047 = vadd.f32 %v7015, %v6931
      %v7048 = vadd.f32 %v7016, %v6934
      %v7049 = vadd.f32 %v7017, %v6939
      %v7050 = vadd.f32 %v7018, %v6942
      %v7051 = vadd.f32 %v7019, %v6947
      %v7052 = vadd.f32 %v7020, %v6950
      %v7053 = vadd.f32 %v7021, %v6955
      %v7054 = vadd.f32 %v7022, %v6958
      %v7055 = vadd.f32 %v7023, %v6963
      %v7056 = vadd.f32 %v7024, %v6966
      %v7057 = vadd.f32 %v7025, %v6971
      %v7058 = vadd.f32 %v7026, %v6974
      %v7059 = vadd.f32 %v7027, %v6979
      %v7060 = vadd.f32 %v7028, %v6982
      %v7061 = vadd.f32 %v7029, %v6987
      %v7062 = vadd.f32 %v7030, %v6990
      %v7063 = vadd.f32 %v7031, %v6995
      %v7064 = vadd.f32 %v7032, %v6998
      %7065 = vst [vmem:[#allocation3] sm:$0xff] %v7033
      %7066 = vst [vmem:[#allocation3 + $0x8] sm:$0xff] %v7034
      %7067 = vst [vmem:[#allocation3 + $0x10] sm:$0xff] %v7035
      %7068 = vst [vmem:[#allocation3 + $0x18] sm:$0xff] %v7036
      %7069 = vst [vmem:[#allocation3 + $0x20] sm:$0xff] %v7037
      %7070 = vst [vmem:[#allocation3 + $0x28] sm:$0xff] %v7038
      %7071 = vst [vmem:[#allocation3 + $0x30] sm:$0xff] %v7039
      %7072 = vst [vmem:[#allocation3 + $0x38] sm:$0xff] %v7040
      %7073 = vst [vmem:[#allocation3 + $0x40] sm:$0xff] %v7041
      %7074 = vst [vmem:[#allocation3 + $0x48] sm:$0xff] %v7042
      %7075 = vst [vmem:[#allocation3 + $0x50] sm:$0xff] %v7043
      %7076 = vst [vmem:[#allocation3 + $0x58] sm:$0xff] %v7044
      %7077 = vst [vmem:[#allocation3 + $0x60] sm:$0xff] %v7045
      %7078 = vst [vmem:[#allocation3 + $0x68] sm:$0xff] %v7046
      %7079 = vst [vmem:[#allocation3 + $0x70] sm:$0xff] %v7047
      %7080 = vst [vmem:[#allocation3 + $0x78] sm:$0xff] %v7048
      %7081 = vst [vmem:[#allocation3 + $0x80] sm:$0xff] %v7049
      %7082 = vst [vmem:[#allocation3 + $0x88] sm:$0xff] %v7050
      %7083 = vst [vmem:[#allocation3 + $0x90] sm:$0xff] %v7051
      %7084 = vst [vmem:[#allocation3 + $0x98] sm:$0xff] %v7052
      %7085 = vst [vmem:[#allocation3 + $0xa0] sm:$0xff] %v7053
      %7086 = vst [vmem:[#allocation3 + $0xa8] sm:$0xff] %v7054
      %7087 = vst [vmem:[#allocation3 + $0xb0] sm:$0xff] %v7055
      %7088 = vst [vmem:[#allocation3 + $0xb8] sm:$0xff] %v7056
      %7089 = vst [vmem:[#allocation3 + $0xc0] sm:$0xff] %v7057
      %7090 = vst [vmem:[#allocation3 + $0xc8] sm:$0xff] %v7058
      %7091 = vst [vmem:[#allocation3 + $0xd0] sm:$0xff] %v7059
      %7092 = vst [vmem:[#allocation3 + $0xd8] sm:$0xff] %v7060
      %7093 = vst [vmem:[#allocation3 + $0xe0] sm:$0xff] %v7061
      %7094 = vst [vmem:[#allocation3 + $0xe8] sm:$0xff] %v7062
      %7095 = vst [vmem:[#allocation3 + $0xf0] sm:$0xff] %v7063
      %7096 = vst [vmem:[#allocation3 + $0xf8] sm:$0xff] %v7064
      %v7097 = vld [vmem:[#allocation3] sm:$0xff]
      %v7098 = vld [vmem:[#allocation3 + $0x8] sm:$0xff]
      %v7099 = vld [vmem:[#allocation3 + $0x10] sm:$0xff]
      %v7100 = vld [vmem:[#allocation3 + $0x18] sm:$0xff]
      %v7101 = vld [vmem:[#allocation3 + $0x20] sm:$0xff]
      %v7102 = vld [vmem:[#allocation3 + $0x28] sm:$0xff]
      %v7103 = vld [vmem:[#allocation3 + $0x30] sm:$0xff]
      %v7104 = vld [vmem:[#allocation3 + $0x38] sm:$0xff]
      %v7105 = vld [vmem:[#allocation3 + $0x40] sm:$0xff]
      %v7106 = vld [vmem:[#allocation3 + $0x48] sm:$0xff]
      %v7107 = vld [vmem:[#allocation3 + $0x50] sm:$0xff]
      %v7108 = vld [vmem:[#allocation3 + $0x58] sm:$0xff]
      %v7109 = vld [vmem:[#allocation3 + $0x60] sm:$0xff]
      %v7110 = vld [vmem:[#allocation3 + $0x68] sm:$0xff]
      %v7111 = vld [vmem:[#allocation3 + $0x70] sm:$0xff]
      %v7112 = vld [vmem:[#allocation3 + $0x78] sm:$0xff]
      %v7113 = vld [vmem:[#allocation3 + $0x80] sm:$0xff]
      %v7114 = vld [vmem:[#allocation3 + $0x88] sm:$0xff]
      %v7115 = vld [vmem:[#allocation3 + $0x90] sm:$0xff]
      %v7116 = vld [vmem:[#allocation3 + $0x98] sm:$0xff]
      %v7117 = vld [vmem:[#allocation3 + $0xa0] sm:$0xff]
      %v7118 = vld [vmem:[#allocation3 + $0xa8] sm:$0xff]
      %v7119 = vld [vmem:[#allocation3 + $0xb0] sm:$0xff]
      %v7120 = vld [vmem:[#allocation3 + $0xb8] sm:$0xff]
      %v7121 = vld [vmem:[#allocation3 + $0xc0] sm:$0xff]
      %v7122 = vld [vmem:[#allocation3 + $0xc8] sm:$0xff]
      %v7123 = vld [vmem:[#allocation3 + $0xd0] sm:$0xff]
      %v7124 = vld [vmem:[#allocation3 + $0xd8] sm:$0xff]
      %v7125 = vld [vmem:[#allocation3 + $0xe0] sm:$0xff]
      %v7126 = vld [vmem:[#allocation3 + $0xe8] sm:$0xff]
      %v7127 = vld [vmem:[#allocation3 + $0xf0] sm:$0xff]
      %v7128 = vld [vmem:[#allocation3 + $0xf8] sm:$0xff]
      %v7129 = vld [vmem:[%s4] sm:$0x1]
      %v7131 = vlaneseq
      %v7132 = vshrl.u32 %v7131, 7
      %v7133 = vsub.s32 0, %v7132
      %v7134 = vrot.slane %v7129, %v7133
      %v7136 = vadd.f32 %v7097, %v7134
      %v7137 = vadd.f32 %v7098, %v7134
      %v7138 = vadd.f32 %v7099, %v7134
      %v7139 = vadd.f32 %v7100, %v7134
      %v7140 = vadd.f32 %v7101, %v7134
      %v7141 = vadd.f32 %v7102, %v7134
      %v7142 = vadd.f32 %v7103, %v7134
      %v7143 = vadd.f32 %v7104, %v7134
      %v7144 = vadd.f32 %v7105, %v7134
      %v7145 = vadd.f32 %v7106, %v7134
      %v7146 = vadd.f32 %v7107, %v7134
      %v7147 = vadd.f32 %v7108, %v7134
      %v7148 = vadd.f32 %v7109, %v7134
      %v7149 = vadd.f32 %v7110, %v7134
      %v7150 = vadd.f32 %v7111, %v7134
      %v7151 = vadd.f32 %v7112, %v7134
      %v7152 = vadd.f32 %v7113, %v7134
      %v7153 = vadd.f32 %v7114, %v7134
      %v7154 = vadd.f32 %v7115, %v7134
      %v7155 = vadd.f32 %v7116, %v7134
      %v7156 = vadd.f32 %v7117, %v7134
      %v7157 = vadd.f32 %v7118, %v7134
      %v7158 = vadd.f32 %v7119, %v7134
      %v7159 = vadd.f32 %v7120, %v7134
      %v7160 = vadd.f32 %v7121, %v7134
      %v7161 = vadd.f32 %v7122, %v7134
      %v7162 = vadd.f32 %v7123, %v7134
      %v7163 = vadd.f32 %v7124, %v7134
      %v7164 = vadd.f32 %v7125, %v7134
      %v7165 = vadd.f32 %v7126, %v7134
      %v7166 = vadd.f32 %v7127, %v7134
      %v7167 = vadd.f32 %v7128, %v7134
      %v7168 = vmax.f32 %v7136, 0.0
      %v7169 = vmax.f32 %v7137, 0.0
      %v7170 = vmax.f32 %v7138, 0.0
      %v7171 = vmax.f32 %v7139, 0.0
      %v7172 = vmax.f32 %v7140, 0.0
      %v7173 = vmax.f32 %v7141, 0.0
      %v7174 = vmax.f32 %v7142, 0.0
      %v7175 = vmax.f32 %v7143, 0.0
      %v7176 = vmax.f32 %v7144, 0.0
      %v7177 = vmax.f32 %v7145, 0.0
      %v7178 = vmax.f32 %v7146, 0.0
      %v7179 = vmax.f32 %v7147, 0.0
      %v7180 = vmax.f32 %v7148, 0.0
      %v7181 = vmax.f32 %v7149, 0.0
      %v7182 = vmax.f32 %v7150, 0.0
      %v7183 = vmax.f32 %v7151, 0.0
      %v7184 = vmax.f32 %v7152, 0.0
      %v7185 = vmax.f32 %v7153, 0.0
      %v7186 = vmax.f32 %v7154, 0.0
      %v7187 = vmax.f32 %v7155, 0.0
      %v7188 = vmax.f32 %v7156, 0.0
      %v7189 = vmax.f32 %v7157, 0.0
      %v7190 = vmax.f32 %v7158, 0.0
      %v7191 = vmax.f32 %v7159, 0.0
      %v7192 = vmax.f32 %v7160, 0.0
      %v7193 = vmax.f32 %v7161, 0.0
      %v7194 = vmax.f32 %v7162, 0.0
      %v7195 = vmax.f32 %v7163, 0.0
      %v7196 = vmax.f32 %v7164, 0.0
      %v7197 = vmax.f32 %v7165, 0.0
      %v7198 = vmax.f32 %v7166, 0.0
      %v7199 = vmax.f32 %v7167, 0.0
      %v7200 = vpack.c.bf16 %v7169, %v7168
      %v7201 = vpack.c.bf16 %v7171, %v7170
      %v7202 = vpack.c.bf16 %v7173, %v7172
      %v7203 = vpack.c.bf16 %v7175, %v7174
      %v7204 = vpack.c.bf16 %v7177, %v7176
      %v7205 = vpack.c.bf16 %v7179, %v7178
      %v7206 = vpack.c.bf16 %v7181, %v7180
      %v7207 = vpack.c.bf16 %v7183, %v7182
      %v7208 = vpack.c.bf16 %v7185, %v7184
      %v7209 = vpack.c.bf16 %v7187, %v7186
      %v7210 = vpack.c.bf16 %v7189, %v7188
      %v7211 = vpack.c.bf16 %v7191, %v7190
      %v7212 = vpack.c.bf16 %v7193, %v7192
      %v7213 = vpack.c.bf16 %v7195, %v7194
      %v7214 = vpack.c.bf16 %v7197, %v7196
      %v7215 = vpack.c.bf16 %v7199, %v7198
      %v7216 = vld [vmem:[%s5] sm:$0xf]
      %v7217 = vld [vmem:[%s5 + $0x4] sm:$0xf]
      %v7218 = vld [vmem:[%s5 + $0x8] sm:$0xf]
      %v7219 = vld [vmem:[%s5 + $0xc] sm:$0xf]
      %v7220 = vld [vmem:[%s5 + $0x10] sm:$0xf]
      %v7221 = vld [vmem:[%s5 + $0x14] sm:$0xf]
      %v7222 = vld [vmem:[%s5 + $0x18] sm:$0xf]
      %v7223 = vld [vmem:[%s5 + $0x1c] sm:$0xf]
      %v7224 = vld [vmem:[%s5 + $0x20] sm:$0xf]
      %v7225 = vld [vmem:[%s5 + $0x24] sm:$0xf]
      %v7226 = vld [vmem:[%s5 + $0x28] sm:$0xf]
      %v7227 = vld [vmem:[%s5 + $0x2c] sm:$0xf]
      %v7228 = vld [vmem:[%s5 + $0x30] sm:$0xf]
      %v7229 = vld [vmem:[%s5 + $0x34] sm:$0xf]
      %v7230 = vld [vmem:[%s5 + $0x38] sm:$0xf]
      %v7231 = vld [vmem:[%s5 + $0x3c] sm:$0xf]
      %v7232 = vld [vmem:[%s6] sm:$0x1]
      %v7234 = vlaneseq
      %v7235 = vshrl.u32 %v7234, 7
      %v7236 = vsub.s32 0, %v7235
      %v7237 = vrot.slane %v7232, %v7236
      %v7255 = vunpack.c.l.b16 %v7216
      %v7256 = vunpack.c.l.b16 %v7217
      %v7257 = vunpack.c.l.b16 %v7218
      %v7258 = vunpack.c.l.b16 %v7219
      %v7259 = vunpack.c.l.b16 %v7220
      %v7260 = vunpack.c.l.b16 %v7221
      %v7261 = vunpack.c.l.b16 %v7222
      %v7262 = vunpack.c.l.b16 %v7223
      %v7263 = vunpack.c.l.b16 %v7224
      %v7264 = vunpack.c.l.b16 %v7225
      %v7265 = vunpack.c.l.b16 %v7226
      %v7266 = vunpack.c.l.b16 %v7227
      %v7267 = vunpack.c.l.b16 %v7228
      %v7268 = vunpack.c.l.b16 %v7229
      %v7269 = vunpack.c.l.b16 %v7230
      %v7270 = vunpack.c.l.b16 %v7231
      %v7271 = vpack.c.b16 %v7256, %v7255
      %v7272 = vpack.c.b16 %v7258, %v7257
      %v7273 = vpack.c.b16 %v7260, %v7259
      %v7274 = vpack.c.b16 %v7262, %v7261
      %v7275 = vpack.c.b16 %v7264, %v7263
      %v7276 = vpack.c.b16 %v7266, %v7265
      %v7277 = vpack.c.b16 %v7268, %v7267
      %v7278 = vpack.c.b16 %v7270, %v7269
      %7287 = vmatprep.subr.bf16.mxu0 0
      %7288 = vmatpush1.bf16.msra.mxu0 %v7271
      %7289 = vmatprep.subr.bf16.mxu0 0
      %7290 = vmatpush1.bf16.msra.mxu0 %v7272
      %7291 = vmatprep.subr.bf16.mxu0 0
      %7292 = vmatpush1.bf16.msra.mxu0 %v7273
      %7293 = vmatprep.subr.bf16.mxu0 0
      %7294 = vmatpush1.bf16.msra.mxu0 %v7274
      %7295 = vmatprep.subr.bf16.mxu0 0
      %7296 = vmatpush1.bf16.msra.mxu0 %v7275
      %7297 = vmatprep.subr.bf16.mxu0 0
      %7298 = vmatpush1.bf16.msra.mxu0 %v7276
      %7299 = vmatprep.subr.bf16.mxu0 0
      %7300 = vmatpush1.bf16.msra.mxu0 %v7277
      %7301 = vmatprep.subr.bf16.mxu0 0
      %7302 = vmatpush1.bf16.msra.mxu0 %v7278
      %7303 = vmatprep.subr.bf16.mxu0 0
      %7304 = vmatpush1.bf16.msra.mxu0 0
      %7305 = vmatprep.subr.bf16.mxu0 0
      %7306 = vmatpush1.bf16.msra.mxu0 0
      %7307 = vmatprep.subr.bf16.mxu0 0
      %7308 = vmatpush1.bf16.msra.mxu0 0
      %7309 = vmatprep.subr.bf16.mxu0 0
      %7310 = vmatpush1.bf16.msra.mxu0 0
      %7311 = vmatprep.subr.bf16.mxu0 0
      %7312 = vmatpush1.bf16.msra.mxu0 0
      %7313 = vmatprep.subr.bf16.mxu0 0
      %7314 = vmatpush1.bf16.msra.mxu0 0
      %7315 = vmatprep.subr.bf16.mxu0 0
      %7316 = vmatpush1.bf16.msra.mxu0 0
      %7317 = vmatprep.subr.bf16.mxu0 0
      %7318 = vmatpush1.bf16.msra.mxu0 0
      %7319 = vmatprep.mubr.bf16.mxu0 0
      %7320 = vmatmul.mubr.bf16.gmra.mrb[0].mxu0 %v7200
      %v7321 = vpop.f32.mrb[0].mxu0
      %v7322 = vadd.f32 %v7237, %v7321
      %v7323 = vpop.f32.mrb[0].mxu0
      %v7324 = vpop.f32.mrb[0].mxu0
      %v7325 = vadd.f32 %v7237, %v7324
      %v7326 = vpop.f32.mrb[0].mxu0
      %7327 = vmatprep.mubr.bf16.mxu0 0
      %7328 = vmatmul.mubr.bf16.gmra.mrb[0].mxu0 %v7201
      %v7329 = vpop.f32.mrb[0].mxu0
      %v7330 = vadd.f32 %v7237, %v7329
      %v7331 = vpop.f32.mrb[0].mxu0
      %v7332 = vpop.f32.mrb[0].mxu0
      %v7333 = vadd.f32 %v7237, %v7332
      %v7334 = vpop.f32.mrb[0].mxu0
      %7335 = vmatprep.mubr.bf16.mxu0 0
      %7336 = vmatmul.mubr.bf16.gmra.mrb[0].mxu0 %v7202
      %v7337 = vpop.f32.mrb[0].mxu0
      %v7338 = vadd.f32 %v7237, %v7337
      %v7339 = vpop.f32.mrb[0].mxu0
      %v7340 = vpop.f32.mrb[0].mxu0
      %v7341 = vadd.f32 %v7237, %v7340
      %v7342 = vpop.f32.mrb[0].mxu0
      %7343 = vmatprep.mubr.bf16.mxu0 0
      %7344 = vmatmul.mubr.bf16.gmra.mrb[0].mxu0 %v7203
      %v7345 = vpop.f32.mrb[0].mxu0
      %v7346 = vadd.f32 %v7237, %v7345
      %v7347 = vpop.f32.mrb[0].mxu0
      %v7348 = vpop.f32.mrb[0].mxu0
      %v7349 = vadd.f32 %v7237, %v7348
      %v7350 = vpop.f32.mrb[0].mxu0
      %7351 = vmatprep.mubr.bf16.mxu0 0
      %7352 = vmatmul.mubr.bf16.gmra.mrb[0].mxu0 %v7204
      %v7353 = vpop.f32.mrb[0].mxu0
      %v7354 = vadd.f32 %v7237, %v7353
      %v7355 = vpop.f32.mrb[0].mxu0
      %v7356 = vpop.f32.mrb[0].mxu0
      %v7357 = vadd.f32 %v7237, %v7356
      %v7358 = vpop.f32.mrb[0].mxu0
      %7359 = vmatprep.mubr.bf16.mxu0 0
      %7360 = vmatmul.mubr.bf16.gmra.mrb[0].mxu0 %v7205
      %v7361 = vpop.f32.mrb[0].mxu0
      %v7362 = vadd.f32 %v7237, %v7361
      %v7363 = vpop.f32.mrb[0].mxu0
      %v7364 = vpop.f32.mrb[0].mxu0
      %v7365 = vadd.f32 %v7237, %v7364
      %v7366 = vpop.f32.mrb[0].mxu0
      %7367 = vmatprep.mubr.bf16.mxu0 0
      %7368 = vmatmul.mubr.bf16.gmra.mrb[0].mxu0 %v7206
      %v7369 = vpop.f32.mrb[0].mxu0
      %v7370 = vadd.f32 %v7237, %v7369
      %v7371 = vpop.f32.mrb[0].mxu0
      %v7372 = vpop.f32.mrb[0].mxu0
      %v7373 = vadd.f32 %v7237, %v7372
      %v7374 = vpop.f32.mrb[0].mxu0
      %7375 = vmatprep.mubr.bf16.mxu0 0
      %7376 = vmatmul.mubr.bf16.gmra.mrb[0].mxu0 %v7207
      %v7377 = vpop.f32.mrb[0].mxu0
      %v7378 = vadd.f32 %v7237, %v7377
      %v7379 = vpop.f32.mrb[0].mxu0
      %v7380 = vpop.f32.mrb[0].mxu0
      %v7381 = vadd.f32 %v7237, %v7380
      %v7382 = vpop.f32.mrb[0].mxu0
      %7383 = vmatprep.mubr.bf16.mxu0 0
      %7384 = vmatmul.mubr.bf16.gmra.mrb[0].mxu0 %v7208
      %v7385 = vpop.f32.mrb[0].mxu0
      %v7386 = vadd.f32 %v7237, %v7385
      %v7387 = vpop.f32.mrb[0].mxu0
      %v7388 = vpop.f32.mrb[0].mxu0
      %v7389 = vadd.f32 %v7237, %v7388
      %v7390 = vpop.f32.mrb[0].mxu0
      %7391 = vmatprep.mubr.bf16.mxu0 0
      %7392 = vmatmul.mubr.bf16.gmra.mrb[0].mxu0 %v7209
      %v7393 = vpop.f32.mrb[0].mxu0
      %v7394 = vadd.f32 %v7237, %v7393
      %v7395 = vpop.f32.mrb[0].mxu0
      %v7396 = vpop.f32.mrb[0].mxu0
      %v7397 = vadd.f32 %v7237, %v7396
      %v7398 = vpop.f32.mrb[0].mxu0
      %7399 = vmatprep.mubr.bf16.mxu0 0
      %7400 = vmatmul.mubr.bf16.gmra.mrb[0].mxu0 %v7210
      %v7401 = vpop.f32.mrb[0].mxu0
      %v7402 = vadd.f32 %v7237, %v7401
      %v7403 = vpop.f32.mrb[0].mxu0
      %v7404 = vpop.f32.mrb[0].mxu0
      %v7405 = vadd.f32 %v7237, %v7404
      %v7406 = vpop.f32.mrb[0].mxu0
      %7407 = vmatprep.mubr.bf16.mxu0 0
      %7408 = vmatmul.mubr.bf16.gmra.mrb[0].mxu0 %v7211
      %v7409 = vpop.f32.mrb[0].mxu0
      %v7410 = vadd.f32 %v7237, %v7409
      %v7411 = vpop.f32.mrb[0].mxu0
      %v7412 = vpop.f32.mrb[0].mxu0
      %v7413 = vadd.f32 %v7237, %v7412
      %v7414 = vpop.f32.mrb[0].mxu0
      %7415 = vmatprep.mubr.bf16.mxu0 0
      %7416 = vmatmul.mubr.bf16.gmra.mrb[0].mxu0 %v7212
      %v7417 = vpop.f32.mrb[0].mxu0
      %v7418 = vadd.f32 %v7237, %v7417
      %v7419 = vpop.f32.mrb[0].mxu0
      %v7420 = vpop.f32.mrb[0].mxu0
      %v7421 = vadd.f32 %v7237, %v7420
      %v7422 = vpop.f32.mrb[0].mxu0
      %7423 = vmatprep.mubr.bf16.mxu0 0
      %7424 = vmatmul.mubr.bf16.gmra.mrb[0].mxu0 %v7213
      %v7425 = vpop.f32.mrb[0].mxu0
      %v7426 = vadd.f32 %v7237, %v7425
      %v7427 = vpop.f32.mrb[0].mxu0
      %v7428 = vpop.f32.mrb[0].mxu0
      %v7429 = vadd.f32 %v7237, %v7428
      %v7430 = vpop.f32.mrb[0].mxu0
      %7431 = vmatprep.mubr.bf16.mxu0 0
      %7432 = vmatmul.mubr.bf16.gmra.mrb[0].mxu0 %v7214
      %v7433 = vpop.f32.mrb[0].mxu0
      %v7434 = vadd.f32 %v7237, %v7433
      %v7435 = vpop.f32.mrb[0].mxu0
      %v7436 = vpop.f32.mrb[0].mxu0
      %v7437 = vadd.f32 %v7237, %v7436
      %v7438 = vpop.f32.mrb[0].mxu0
      %7439 = vmatprep.mubr.bf16.mxu0 0
      %7440 = vmatmul.mubr.bf16.gmra.mrb[0].mxu0 %v7215
      %v7441 = vpop.f32.mrb[0].mxu0
      %v7442 = vadd.f32 %v7237, %v7441
      %v7443 = vpop.f32.mrb[0].mxu0
      %v7444 = vpop.f32.mrb[0].mxu0
      %v7445 = vadd.f32 %v7237, %v7444
      %v7446 = vpop.f32.mrb[0].mxu0
      %7447 = vdwg.mxu0
      %v7448 = vpack.c.bf16 %v7325, %v7322
      %v7449 = vpack.c.bf16 %v7333, %v7330
      %v7450 = vpack.c.bf16 %v7341, %v7338
      %v7451 = vpack.c.bf16 %v7349, %v7346
      %v7452 = vpack.c.bf16 %v7357, %v7354
      %v7453 = vpack.c.bf16 %v7365, %v7362
      %v7454 = vpack.c.bf16 %v7373, %v7370
      %v7455 = vpack.c.bf16 %v7381, %v7378
      %v7456 = vpack.c.bf16 %v7389, %v7386
      %v7457 = vpack.c.bf16 %v7397, %v7394
      %v7458 = vpack.c.bf16 %v7405, %v7402
      %v7459 = vpack.c.bf16 %v7413, %v7410
      %v7460 = vpack.c.bf16 %v7421, %v7418
      %v7461 = vpack.c.bf16 %v7429, %v7426
      %v7462 = vpack.c.bf16 %v7437, %v7434
      %v7463 = vpack.c.bf16 %v7445, %v7442
      %v7480 = vunpack.c.l.b16 %v7448
      %v7481 = vunpack.c.h.b16 %v7448
      %v7482 = vunpack.c.l.b16 %v7449
      %v7483 = vunpack.c.h.b16 %v7449
      %v7484 = vunpack.c.l.b16 %v7450
      %v7485 = vunpack.c.h.b16 %v7450
      %v7486 = vunpack.c.l.b16 %v7451
      %v7487 = vunpack.c.h.b16 %v7451
      %v7488 = vunpack.c.l.b16 %v7452
      %v7489 = vunpack.c.h.b16 %v7452
      %v7490 = vunpack.c.l.b16 %v7453
      %v7491 = vunpack.c.h.b16 %v7453
      %v7492 = vunpack.c.l.b16 %v7454
      %v7493 = vunpack.c.h.b16 %v7454
      %v7494 = vunpack.c.l.b16 %v7455
      %v7495 = vunpack.c.h.b16 %v7455
      %v7496 = vunpack.c.l.b16 %v7456
      %v7497 = vunpack.c.h.b16 %v7456
      %v7498 = vunpack.c.l.b16 %v7457
      %v7499 = vunpack.c.h.b16 %v7457
      %v7500 = vunpack.c.l.b16 %v7458
      %v7501 = vunpack.c.h.b16 %v7458
      %v7502 = vunpack.c.l.b16 %v7459
      %v7503 = vunpack.c.h.b16 %v7459
      %v7504 = vunpack.c.l.b16 %v7460
      %v7505 = vunpack.c.h.b16 %v7460
      %v7506 = vunpack.c.l.b16 %v7461
      %v7507 = vunpack.c.h.b16 %v7461
      %v7508 = vunpack.c.l.b16 %v7462
      %v7509 = vunpack.c.h.b16 %v7462
      %v7510 = vunpack.c.l.b16 %v7463
      %v7511 = vunpack.c.h.b16 %v7463
      %v7512 = vpack.c.b16 %v7480, %v7480
      %v7513 = vpack.c.b16 %v7481, %v7481
      %v7514 = vpack.c.b16 %v7482, %v7482
      %v7515 = vpack.c.b16 %v7483, %v7483
      %v7516 = vpack.c.b16 %v7484, %v7484
      %v7517 = vpack.c.b16 %v7485, %v7485
      %v7518 = vpack.c.b16 %v7486, %v7486
      %v7519 = vpack.c.b16 %v7487, %v7487
      %v7520 = vpack.c.b16 %v7488, %v7488
      %v7521 = vpack.c.b16 %v7489, %v7489
      %v7522 = vpack.c.b16 %v7490, %v7490
      %v7523 = vpack.c.b16 %v7491, %v7491
      %v7524 = vpack.c.b16 %v7492, %v7492
      %v7525 = vpack.c.b16 %v7493, %v7493
      %v7526 = vpack.c.b16 %v7494, %v7494
      %v7527 = vpack.c.b16 %v7495, %v7495
      %v7528 = vpack.c.b16 %v7496, %v7496
      %v7529 = vpack.c.b16 %v7497, %v7497
      %v7530 = vpack.c.b16 %v7498, %v7498
      %v7531 = vpack.c.b16 %v7499, %v7499
      %v7532 = vpack.c.b16 %v7500, %v7500
      %v7533 = vpack.c.b16 %v7501, %v7501
      %v7534 = vpack.c.b16 %v7502, %v7502
      %v7535 = vpack.c.b16 %v7503, %v7503
      %v7536 = vpack.c.b16 %v7504, %v7504
      %v7537 = vpack.c.b16 %v7505, %v7505
      %v7538 = vpack.c.b16 %v7506, %v7506
      %v7539 = vpack.c.b16 %v7507, %v7507
      %v7540 = vpack.c.b16 %v7508, %v7508
      %v7541 = vpack.c.b16 %v7509, %v7509
      %v7542 = vpack.c.b16 %v7510, %v7510
      %v7543 = vpack.c.b16 %v7511, %v7511
      %7576 = vst [vmem:[%s318] sm:$0xf] %v7512
      %7577 = vst [vmem:[%s318 + $0x4] sm:$0xf] %v7513
      %7578 = vst [vmem:[%s318 + $0x8] sm:$0xf] %v7514
      %7579 = vst [vmem:[%s318 + $0xc] sm:$0xf] %v7515
      %7580 = vst [vmem:[%s318 + $0x10] sm:$0xf] %v7516
      %7581 = vst [vmem:[%s318 + $0x14] sm:$0xf] %v7517
      %7582 = vst [vmem:[%s318 + $0x18] sm:$0xf] %v7518
      %7583 = vst [vmem:[%s318 + $0x1c] sm:$0xf] %v7519
      %7584 = vst [vmem:[%s318 + $0x20] sm:$0xf] %v7520
      %7585 = vst [vmem:[%s318 + $0x24] sm:$0xf] %v7521
      %7586 = vst [vmem:[%s318 + $0x28] sm:$0xf] %v7522
      %7587 = vst [vmem:[%s318 + $0x2c] sm:$0xf] %v7523
      %7588 = vst [vmem:[%s318 + $0x30] sm:$0xf] %v7524
      %7589 = vst [vmem:[%s318 + $0x34] sm:$0xf] %v7525
      %7590 = vst [vmem:[%s318 + $0x38] sm:$0xf] %v7526
      %7591 = vst [vmem:[%s318 + $0x3c] sm:$0xf] %v7527
      %7592 = vst [vmem:[%s318 + $0x40] sm:$0xf] %v7528
      %7593 = vst [vmem:[%s318 + $0x44] sm:$0xf] %v7529
      %7594 = vst [vmem:[%s318 + $0x48] sm:$0xf] %v7530
      %7595 = vst [vmem:[%s318 + $0x4c] sm:$0xf] %v7531
      %7596 = vst [vmem:[%s318 + $0x50] sm:$0xf] %v7532
      %7597 = vst [vmem:[%s318 + $0x54] sm:$0xf] %v7533
      %7598 = vst [vmem:[%s318 + $0x58] sm:$0xf] %v7534
      %7599 = vst [vmem:[%s318 + $0x5c] sm:$0xf] %v7535
      %7600 = vst [vmem:[%s318 + $0x60] sm:$0xf] %v7536
      %7601 = vst [vmem:[%s318 + $0x64] sm:$0xf] %v7537
      %7602 = vst [vmem:[%s318 + $0x68] sm:$0xf] %v7538
      %7603 = vst [vmem:[%s318 + $0x6c] sm:$0xf] %v7539
      %7604 = vst [vmem:[%s318 + $0x70] sm:$0xf] %v7540
      %7605 = vst [vmem:[%s318 + $0x74] sm:$0xf] %v7541
      %7606 = vst [vmem:[%s318 + $0x78] sm:$0xf] %v7542
      %7607 = vst [vmem:[%s318 + $0x7c] sm:$0xf] %v7543
      %p7608 = scmp.lt.s32.totalorder %s20, 1
      %s7609 = scalar_select %p7608, %s20, 1
      %s7610 = smul.addr %s7609, 54
      %s7611 = smul.addr %s7610, 4
      %s7612 = scalar_lea.vmem %s7, %s7611
      %p7613 = scmp.lt.s32.totalorder %s20, 1
      %s7614 = scalar_select %p7613, %s20, 1
      %s7615 = smul.addr %s7614, 32
      %s7616 = smul.addr %s7615, 4
      %s7617 = scalar_lea.vmem %s8, %s7616
      // Predicated region
      $region49: #{generalized_rcnn_inference.2} parent=47 // pred_check
        %p7618 = pneg %p190
      $region50: #{generalized_rcnn_inference.2} parent=47 // pred_check_branch
        %7620 = sbr.rel (%p7618) target = $region52
      $region51: #{generalized_rcnn_inference.2} parent=47 // pred_region
        _
      $region52: #{generalized_rcnn_inference.2} parent=47 // pred_fallthru
        _
      // Predicated region
      $region53: #{generalized_rcnn_inference.2} parent=47 // pred_check
        %p7621 = pneg %p216
      $region54: #{generalized_rcnn_inference.2} parent=47 // pred_check_branch
        %7623 = sbr.rel (%p7621) target = $region56
      $region55: #{generalized_rcnn_inference.2} parent=47 // pred_region
        _
      $region56: #{generalized_rcnn_inference.2} parent=47 // pred_fallthru
        _
    $region48: #{generalized_rcnn_inference.2} parent=5 // pred_fallthru
      _
    %p7624 = scmp.le.s32.totalorder 2, %s15
    // Predicated region
    $region57: #{generalized_rcnn_inference.2} parent=5 // pred_check
      %p7625 = pneg %p7624
    $region58: #{generalized_rcnn_inference.2} parent=5 // pred_check_branch
      %7627 = sbr.rel (%p7625) target = $region60
    $region59: #{generalized_rcnn_inference.2} parent=5 // pred_region
      %s7628 = ssub.s32 %s15, 2
      // Predicated region
      $region61: #{generalized_rcnn_inference.2} parent=59 // pred_check
        %p7629 = pneg %p196
      $region62: #{generalized_rcnn_inference.2} parent=59 // pred_check_branch
        %7631 = sbr.rel (%p7629) target = $region64
      $region63: #{generalized_rcnn_inference.2} parent=59 // pred_region
        %p7632 = scmp.lt.s32.totalorder %s21, 1
        %s7633 = scalar_select %p7632, %s21, 1
        %s7634 = smul.addr %s7633, 54
        %s7635 = smul.addr %s7634, 4
        %s7636 = scalar_lea.vmem %s7, %s7635
      $region64: #{generalized_rcnn_inference.2} parent=59 // pred_fallthru
        _
      // Predicated region
      $region65: #{generalized_rcnn_inference.2} parent=59 // pred_check
        %p7637 = pneg %p222
      $region66: #{generalized_rcnn_inference.2} parent=59 // pred_check_branch
        %7639 = sbr.rel (%p7637) target = $region68
      $region67: #{generalized_rcnn_inference.2} parent=59 // pred_region
        %p7640 = scmp.lt.s32.totalorder %s21, 1
        %s7641 = scalar_select %p7640, %s21, 1
        %s7642 = smul.addr %s7641, 32
        %s7643 = smul.addr %s7642, 4
        %s7644 = scalar_lea.vmem %s8, %s7643
      $region68: #{generalized_rcnn_inference.2} parent=59 // pred_fallthru
        _
    $region60: #{generalized_rcnn_inference.2} parent=5 // pred_fallthru
      _
  $region6: #{generalized_rcnn_inference.2} parent=0 // loop_footer
    %s19 = sadd.s32 1, %s15
  $region7: #{generalized_rcnn_inference.2} parent=0 // loop_footer_branch
    %14 = sbr.rel target = $region3
  $region8: #{generalized_rcnn_inference.2} parent=0 // loop_exit
    _

// kernel: generalized_rcnn_inference.3
$region0: #{generalized_rcnn_inference.3}
  #allocation0 [shape = 'u32[]', space=smem, size = 0x4, offset = 0x4, fixed_abs, tag = 'smem constant byte address 0x4 - core index']
  #allocation1 [shape = 'u32[144,128]{1,0:T(1,128)}', space=vmem, size = 0x12000, scoped, tag = 'internal scratch']
  %s0 = inlined_call_operand.vmem [shape: bf16[16,512], index: 0, kind: input, shape index: {}]
  %s1 = inlined_call_operand.vmem [shape: bf16[512,128], index: 1, kind: input, shape index: {}]
  %s2 = inlined_call_operand.vmem [shape: f32[1,128], index: 2, kind: input, shape index: {}]
  %s3 = inlined_call_operand.vmem [shape: bf16[128,128], index: 3, kind: input, shape index: {}]
  %s4 = inlined_call_operand.vmem [shape: f32[1,128], index: 4, kind: input, shape index: {}]
  %s5 = inlined_call_operand.vmem [shape: bf16[128,128], index: 5, kind: input, shape index: {}]
  %s6 = inlined_call_operand.vmem [shape: f32[1,128], index: 6, kind: input, shape index: {}]
  %s7 = inlined_call_operand.vmem [shape: f32[16,128], index: 7, kind: output, shape index: {}]
  %s8 = sld [smem:[#allocation0]]
  $region61: #{generalized_rcnn_inference.3} parent=0
    _
  %s10 = ssub.s32 1, %s8
  %s11 = scalar_select 0, %s10, %s8
  loop: start=0, step=1, limit=4
  $region2: #{generalized_rcnn_inference.3} parent=0 // loop_pre_header
    _
  $region3: #{generalized_rcnn_inference.3} parent=0 // loop_header
    %s13 = sphi 0, %s17
    %p14 = scmp.ge.s32.totalorder %s13, 4
    %s23 = sphi 0, %s25
    %s26 = sphi 0, %s23
    %s27 = sphi 0, %s26
    %s43 = sphi 0, %s27
    %s47 = sphi 0, %s47
    %s49 = sphi 0, %s47
    %s50 = sphi 0, %s49
    %s64 = sphi 0, %s50
    %s68 = sphi 0, %s68
    %s70 = sphi 0, %s68
    %s71 = sphi 0, %s70
    %s85 = sphi 0, %s71
    %s89 = sphi 0, %s89
    %s91 = sphi 0, %s89
    %s92 = sphi 0, %s91
    %s106 = sphi 0, %s92
    %s110 = sphi 0, %s110
    %s112 = sphi 0, %s110
    %s113 = sphi 0, %s112
    %s127 = sphi 0, %s113
    %s131 = sphi 0, %s131
    %s133 = sphi 0, %s131
    %s134 = sphi 0, %s133
    %s148 = sphi 0, %s134
    %s152 = sphi 0, %s152
    %s154 = sphi 0, %s152
    %s155 = sphi 0, %s154
    %s169 = sphi 0, %s155
    %s175 = sphi 0, %s177
    %s178 = sphi 0, %s175
    %s179 = sphi 0, %s178
    %s195 = sphi 0, %s179
  $region4: #{generalized_rcnn_inference.3} parent=0 // loop_header_branch
    %16 = sbr.rel (%p14) target = $region8
  $region5: #{generalized_rcnn_inference.3} parent=0 // loop_body
    %s18 = ssub.s32 %s13, 1
    %s19 = ssub.s32 %s13, 2
    %s20 = sadd.s32 %s13, 1
    %s21 = ssub.s32 %s13, %s20
    %p22 = scmp.eq.s32.totalorder %s21, 0
    %s24 = sadd.s32 %s23, 1
    %s25 = scalar_select %p22, %s23, %s24
    %p28 = pneg %p22
    %p29 = scmp.eq.s32.totalorder %s13, 1
    %p30 = por %p28, %p29
    %p31 = scmp.ne.s32.totalorder %s23, %s26
    %p32 = scmp.eq.s32.totalorder %s13, 0
    %p33 = por %p31, %p32
    %p34 = scmp.ne.s32.totalorder %s23, %s26
    %p35 = scmp.eq.s32.totalorder %s18, 1
    %p36 = por %p34, %p35
    %p37 = scmp.ne.s32.totalorder %s26, %s27
    %p38 = scmp.eq.s32.totalorder %s18, 0
    %p39 = por %p37, %p38
    %p40 = scmp.ne.s32.totalorder %s26, %s27
    %p41 = scmp.eq.s32.totalorder %s19, 1
    %p42 = por %p40, %p41
    %p44 = scmp.ne.s32.totalorder %s27, %s43
    %p45 = scmp.eq.s32.totalorder %s19, 0
    %p46 = por %p44, %p45
    %s48 = sadd.s32 %s47, 1
    %p51 = scmp.eq.s32.totalorder %s13, 1
    %p52 = scmp.ne.s32.totalorder %s47, %s49
    %p53 = scmp.eq.s32.totalorder %s13, 0
    %p54 = por %p52, %p53
    %p55 = scmp.ne.s32.totalorder %s47, %s49
    %p56 = scmp.eq.s32.totalorder %s18, 1
    %p57 = por %p55, %p56
    %p58 = scmp.ne.s32.totalorder %s49, %s50
    %p59 = scmp.eq.s32.totalorder %s18, 0
    %p60 = por %p58, %p59
    %p61 = scmp.ne.s32.totalorder %s49, %s50
    %p62 = scmp.eq.s32.totalorder %s19, 1
    %p63 = por %p61, %p62
    %p65 = scmp.ne.s32.totalorder %s50, %s64
    %p66 = scmp.eq.s32.totalorder %s19, 0
    %p67 = por %p65, %p66
    %s69 = sadd.s32 %s68, 1
    %p72 = scmp.eq.s32.totalorder %s13, 1
    %p73 = scmp.ne.s32.totalorder %s68, %s70
    %p74 = scmp.eq.s32.totalorder %s13, 0
    %p75 = por %p73, %p74
    %p76 = scmp.ne.s32.totalorder %s68, %s70
    %p77 = scmp.eq.s32.totalorder %s18, 1
    %p78 = por %p76, %p77
    %p79 = scmp.ne.s32.totalorder %s70, %s71
    %p80 = scmp.eq.s32.totalorder %s18, 0
    %p81 = por %p79, %p80
    %p82 = scmp.ne.s32.totalorder %s70, %s71
    %p83 = scmp.eq.s32.totalorder %s19, 1
    %p84 = por %p82, %p83
    %p86 = scmp.ne.s32.totalorder %s71, %s85
    %p87 = scmp.eq.s32.totalorder %s19, 0
    %p88 = por %p86, %p87
    %s90 = sadd.s32 %s89, 1
    %p93 = scmp.eq.s32.totalorder %s13, 1
    %p94 = scmp.ne.s32.totalorder %s89, %s91
    %p95 = scmp.eq.s32.totalorder %s13, 0
    %p96 = por %p94, %p95
    %p97 = scmp.ne.s32.totalorder %s89, %s91
    %p98 = scmp.eq.s32.totalorder %s18, 1
    %p99 = por %p97, %p98
    %p100 = scmp.ne.s32.totalorder %s91, %s92
    %p101 = scmp.eq.s32.totalorder %s18, 0
    %p102 = por %p100, %p101
    %p103 = scmp.ne.s32.totalorder %s91, %s92
    %p104 = scmp.eq.s32.totalorder %s19, 1
    %p105 = por %p103, %p104
    %p107 = scmp.ne.s32.totalorder %s92, %s106
    %p108 = scmp.eq.s32.totalorder %s19, 0
    %p109 = por %p107, %p108
    %s111 = sadd.s32 %s110, 1
    %p114 = scmp.eq.s32.totalorder %s13, 1
    %p115 = scmp.ne.s32.totalorder %s110, %s112
    %p116 = scmp.eq.s32.totalorder %s13, 0
    %p117 = por %p115, %p116
    %p118 = scmp.ne.s32.totalorder %s110, %s112
    %p119 = scmp.eq.s32.totalorder %s18, 1
    %p120 = por %p118, %p119
    %p121 = scmp.ne.s32.totalorder %s112, %s113
    %p122 = scmp.eq.s32.totalorder %s18, 0
    %p123 = por %p121, %p122
    %p124 = scmp.ne.s32.totalorder %s112, %s113
    %p125 = scmp.eq.s32.totalorder %s19, 1
    %p126 = por %p124, %p125
    %p128 = scmp.ne.s32.totalorder %s113, %s127
    %p129 = scmp.eq.s32.totalorder %s19, 0
    %p130 = por %p128, %p129
    %s132 = sadd.s32 %s131, 1
    %p135 = scmp.eq.s32.totalorder %s13, 1
    %p136 = scmp.ne.s32.totalorder %s131, %s133
    %p137 = scmp.eq.s32.totalorder %s13, 0
    %p138 = por %p136, %p137
    %p139 = scmp.ne.s32.totalorder %s131, %s133
    %p140 = scmp.eq.s32.totalorder %s18, 1
    %p141 = por %p139, %p140
    %p142 = scmp.ne.s32.totalorder %s133, %s134
    %p143 = scmp.eq.s32.totalorder %s18, 0
    %p144 = por %p142, %p143
    %p145 = scmp.ne.s32.totalorder %s133, %s134
    %p146 = scmp.eq.s32.totalorder %s19, 1
    %p147 = por %p145, %p146
    %p149 = scmp.ne.s32.totalorder %s134, %s148
    %p150 = scmp.eq.s32.totalorder %s19, 0
    %p151 = por %p149, %p150
    %s153 = sadd.s32 %s152, 1
    %p156 = scmp.eq.s32.totalorder %s13, 1
    %p157 = scmp.ne.s32.totalorder %s152, %s154
    %p158 = scmp.eq.s32.totalorder %s13, 0
    %p159 = por %p157, %p158
    %p160 = scmp.ne.s32.totalorder %s152, %s154
    %p161 = scmp.eq.s32.totalorder %s18, 1
    %p162 = por %p160, %p161
    %p163 = scmp.ne.s32.totalorder %s154, %s155
    %p164 = scmp.eq.s32.totalorder %s18, 0
    %p165 = por %p163, %p164
    %p166 = scmp.ne.s32.totalorder %s154, %s155
    %p167 = scmp.eq.s32.totalorder %s19, 1
    %p168 = por %p166, %p167
    %p170 = scmp.ne.s32.totalorder %s155, %s169
    %p171 = scmp.eq.s32.totalorder %s19, 0
    %p172 = por %p170, %p171
    %s173 = ssub.s32 %s13, %s20
    %p174 = scmp.eq.s32.totalorder %s173, 0
    %s176 = sadd.s32 %s175, 1
    %s177 = scalar_select %p174, %s175, %s176
    %p180 = pneg %p174
    %p181 = scmp.eq.s32.totalorder %s13, 1
    %p182 = por %p180, %p181
    %p183 = scmp.ne.s32.totalorder %s175, %s178
    %p184 = scmp.eq.s32.totalorder %s13, 0
    %p185 = por %p183, %p184
    %p186 = scmp.ne.s32.totalorder %s175, %s178
    %p187 = scmp.eq.s32.totalorder %s18, 1
    %p188 = por %p186, %p187
    %p189 = scmp.ne.s32.totalorder %s178, %s179
    %p190 = scmp.eq.s32.totalorder %s18, 0
    %p191 = por %p189, %p190
    %p192 = scmp.ne.s32.totalorder %s178, %s179
    %p193 = scmp.eq.s32.totalorder %s19, 1
    %p194 = por %p192, %p193
    %p196 = scmp.ne.s32.totalorder %s179, %s195
    %p197 = scmp.eq.s32.totalorder %s19, 0
    %p198 = por %p196, %p197
    %p199 = scmp.le.s32.totalorder 1, %s13
    %p200 = scmp.lt.s32.totalorder %s13, 3
    %p201 = pnand %p199, %p200
    %p202 = pneg %p201
    // Predicated region
    $region9: #{generalized_rcnn_inference.3} parent=5 // pred_check
      _
    $region10: #{generalized_rcnn_inference.3} parent=5 // pred_check_branch
      %204 = sbr.rel (%p201) target = $region12
    $region11: #{generalized_rcnn_inference.3} parent=5 // pred_region
      %s205 = ssub.s32 %s13, 1
      // Predicated region
      $region13: #{generalized_rcnn_inference.3} parent=11 // pred_check
        %p206 = pneg %p60
      $region14: #{generalized_rcnn_inference.3} parent=11 // pred_check_branch
        %208 = sbr.rel (%p206) target = $region16
      $region15: #{generalized_rcnn_inference.3} parent=11 // pred_region
        _
      $region16: #{generalized_rcnn_inference.3} parent=11 // pred_fallthru
        _
      // Predicated region
      $region17: #{generalized_rcnn_inference.3} parent=11 // pred_check
        %p209 = pneg %p81
      $region18: #{generalized_rcnn_inference.3} parent=11 // pred_check_branch
        %211 = sbr.rel (%p209) target = $region20
      $region19: #{generalized_rcnn_inference.3} parent=11 // pred_region
        _
      $region20: #{generalized_rcnn_inference.3} parent=11 // pred_fallthru
        _
      // Predicated region
      $region21: #{generalized_rcnn_inference.3} parent=11 // pred_check
        %p212 = pneg %p102
      $region22: #{generalized_rcnn_inference.3} parent=11 // pred_check_branch
        %214 = sbr.rel (%p212) target = $region24
      $region23: #{generalized_rcnn_inference.3} parent=11 // pred_region
        _
      $region24: #{generalized_rcnn_inference.3} parent=11 // pred_fallthru
        _
      // Predicated region
      $region25: #{generalized_rcnn_inference.3} parent=11 // pred_check
        %p215 = pneg %p123
      $region26: #{generalized_rcnn_inference.3} parent=11 // pred_check_branch
        %217 = sbr.rel (%p215) target = $region28
      $region27: #{generalized_rcnn_inference.3} parent=11 // pred_region
        _
      $region28: #{generalized_rcnn_inference.3} parent=11 // pred_fallthru
        _
      // Predicated region
      $region29: #{generalized_rcnn_inference.3} parent=11 // pred_check
        %p218 = pneg %p144
      $region30: #{generalized_rcnn_inference.3} parent=11 // pred_check_branch
        %220 = sbr.rel (%p218) target = $region32
      $region31: #{generalized_rcnn_inference.3} parent=11 // pred_region
        _
      $region32: #{generalized_rcnn_inference.3} parent=11 // pred_fallthru
        _
      // Predicated region
      $region33: #{generalized_rcnn_inference.3} parent=11 // pred_check
        %p221 = pneg %p165
      $region34: #{generalized_rcnn_inference.3} parent=11 // pred_check_branch
        %223 = sbr.rel (%p221) target = $region36
      $region35: #{generalized_rcnn_inference.3} parent=11 // pred_region
        _
      $region36: #{generalized_rcnn_inference.3} parent=11 // pred_fallthru
        _
    $region12: #{generalized_rcnn_inference.3} parent=5 // pred_fallthru
      _
    %p224 = scmp.lt.s32.totalorder %s13, 2
    // Predicated region
    $region37: #{generalized_rcnn_inference.3} parent=5 // pred_check
      %p225 = pneg %p224
    $region38: #{generalized_rcnn_inference.3} parent=5 // pred_check_branch
      %227 = sbr.rel (%p225) target = $region40
    $region39: #{generalized_rcnn_inference.3} parent=5 // pred_region
      // Predicated region
      $region41: #{generalized_rcnn_inference.3} parent=39 // pred_check
        %p228 = pneg %p33
      $region42: #{generalized_rcnn_inference.3} parent=39 // pred_check_branch
        %230 = sbr.rel (%p228) target = $region44
      $region43: #{generalized_rcnn_inference.3} parent=39 // pred_region
        %p231 = scmp.lt.s32.totalorder %s13, 1
        %s232 = scalar_select %p231, %s13, 1
        %s233 = smul.addr %s232, 4
        %s234 = smul.addr %s233, 4
        %s235 = scalar_lea.vmem %s0, %s234
      $region44: #{generalized_rcnn_inference.3} parent=39 // pred_fallthru
        _
    $region40: #{generalized_rcnn_inference.3} parent=5 // pred_fallthru
      _
    %p236 = scmp.le.s32.totalorder 1, %s13
    %p237 = scmp.lt.s32.totalorder %s13, 3
    %p238 = pnand %p236, %p237
    %p239 = pneg %p238
    // Predicated region
    $region45: #{generalized_rcnn_inference.3} parent=5 // pred_check
      _
    $region46: #{generalized_rcnn_inference.3} parent=5 // pred_check_branch
      %241 = sbr.rel (%p238) target = $region48
    $region47: #{generalized_rcnn_inference.3} parent=5 // pred_region
      %s242 = ssub.s32 %s13, 1
      %p243 = scmp.lt.s32.totalorder %s18, 1
      %s244 = scalar_select %p243, %s18, 1
      %s245 = smul.addr %s244, 4
      %s246 = smul.addr %s245, 4
      %s247 = scalar_lea.vmem %s0, %s246
      %p248 = pneg %p39
      %p249 = pneg %p36
      %p250 = pneg %p60
      %p251 = pneg %p57
      %p252 = pneg %p81
      %p253 = pneg %p78
      %p254 = pneg %p102
      %p255 = pneg %p99
      %p256 = pneg %p123
      %p257 = pneg %p120
      %p258 = pneg %p144
      %p259 = pneg %p141
      %p260 = pneg %p165
      %p261 = pneg %p162
      %p262 = pneg %p191
      %p263 = pneg %p188
      %p264 = scmp.lt.s32.totalorder %s18, 1
      %s265 = scalar_select %p264, %s18, 1
      %s266 = smul.addr %s265, 8
      %s267 = scalar_lea.vmem %s7, %s266
      %p268 = scmp.lt.s32.totalorder %s18, 1
      %s269 = scalar_select %p268, %s18, 1
      %s270 = smul.addr %s269, 4
      %s271 = smul.addr %s270, 4
      %s272 = scalar_lea.vmem %s0, %s271
      %p273 = scmp.lt.s32.totalorder %s18, 1
      %s274 = scalar_select %p273, %s18, 1
      %s275 = smul.addr %s274, 8
      %s276 = scalar_lea.vmem %s7, %s275
      %v278 = vld [vmem:[%s272] sm:$0xff]
      %v279 = vld [vmem:[%s272 + $0x8] sm:$0xff]
      %v280 = vld [vmem:[%s1] sm:$0xf]
      %v281 = vld [vmem:[%s1 + $0x4] sm:$0xf]
      %v282 = vld [vmem:[%s1 + $0x8] sm:$0xf]
      %v283 = vld [vmem:[%s1 + $0xc] sm:$0xf]
      %v284 = vld [vmem:[%s1 + $0x10] sm:$0xf]
      %v285 = vld [vmem:[%s1 + $0x14] sm:$0xf]
      %v286 = vld [vmem:[%s1 + $0x18] sm:$0xf]
      %v287 = vld [vmem:[%s1 + $0x1c] sm:$0xf]
      %v288 = vld [vmem:[%s1 + $0x20] sm:$0xf]
      %v289 = vld [vmem:[%s1 + $0x24] sm:$0xf]
      %v290 = vld [vmem:[%s1 + $0x28] sm:$0xf]
      %v291 = vld [vmem:[%s1 + $0x2c] sm:$0xf]
      %v292 = vld [vmem:[%s1 + $0x30] sm:$0xf]
      %v293 = vld [vmem:[%s1 + $0x34] sm:$0xf]
      %v294 = vld [vmem:[%s1 + $0x38] sm:$0xf]
      %v295 = vld [vmem:[%s1 + $0x3c] sm:$0xf]
      %v296 = vld [vmem:[%s1 + $0x40] sm:$0xf]
      %v297 = vld [vmem:[%s1 + $0x44] sm:$0xf]
      %v298 = vld [vmem:[%s1 + $0x48] sm:$0xf]
      %v299 = vld [vmem:[%s1 + $0x4c] sm:$0xf]
      %v300 = vld [vmem:[%s1 + $0x50] sm:$0xf]
      %v301 = vld [vmem:[%s1 + $0x54] sm:$0xf]
      %v302 = vld [vmem:[%s1 + $0x58] sm:$0xf]
      %v303 = vld [vmem:[%s1 + $0x5c] sm:$0xf]
      %v304 = vld [vmem:[%s1 + $0x60] sm:$0xf]
      %v305 = vld [vmem:[%s1 + $0x64] sm:$0xf]
      %v306 = vld [vmem:[%s1 + $0x68] sm:$0xf]
      %v307 = vld [vmem:[%s1 + $0x6c] sm:$0xf]
      %v308 = vld [vmem:[%s1 + $0x70] sm:$0xf]
      %v309 = vld [vmem:[%s1 + $0x74] sm:$0xf]
      %v310 = vld [vmem:[%s1 + $0x78] sm:$0xf]
      %v311 = vld [vmem:[%s1 + $0x7c] sm:$0xf]
      %v312 = vld [vmem:[%s1 + $0x80] sm:$0xf]
      %v313 = vld [vmem:[%s1 + $0x84] sm:$0xf]
      %v314 = vld [vmem:[%s1 + $0x88] sm:$0xf]
      %v315 = vld [vmem:[%s1 + $0x8c] sm:$0xf]
      %v316 = vld [vmem:[%s1 + $0x90] sm:$0xf]
      %v317 = vld [vmem:[%s1 + $0x94] sm:$0xf]
      %v318 = vld [vmem:[%s1 + $0x98] sm:$0xf]
      %v319 = vld [vmem:[%s1 + $0x9c] sm:$0xf]
      %v320 = vld [vmem:[%s1 + $0xa0] sm:$0xf]
      %v321 = vld [vmem:[%s1 + $0xa4] sm:$0xf]
      %v322 = vld [vmem:[%s1 + $0xa8] sm:$0xf]
      %v323 = vld [vmem:[%s1 + $0xac] sm:$0xf]
      %v324 = vld [vmem:[%s1 + $0xb0] sm:$0xf]
      %v325 = vld [vmem:[%s1 + $0xb4] sm:$0xf]
      %v326 = vld [vmem:[%s1 + $0xb8] sm:$0xf]
      %v327 = vld [vmem:[%s1 + $0xbc] sm:$0xf]
      %v328 = vld [vmem:[%s1 + $0xc0] sm:$0xf]
      %v329 = vld [vmem:[%s1 + $0xc4] sm:$0xf]
      %v330 = vld [vmem:[%s1 + $0xc8] sm:$0xf]
      %v331 = vld [vmem:[%s1 + $0xcc] sm:$0xf]
      %v332 = vld [vmem:[%s1 + $0xd0] sm:$0xf]
      %v333 = vld [vmem:[%s1 + $0xd4] sm:$0xf]
      %v334 = vld [vmem:[%s1 + $0xd8] sm:$0xf]
      %v335 = vld [vmem:[%s1 + $0xdc] sm:$0xf]
      %v336 = vld [vmem:[%s1 + $0xe0] sm:$0xf]
      %v337 = vld [vmem:[%s1 + $0xe4] sm:$0xf]
      %v338 = vld [vmem:[%s1 + $0xe8] sm:$0xf]
      %v339 = vld [vmem:[%s1 + $0xec] sm:$0xf]
      %v340 = vld [vmem:[%s1 + $0xf0] sm:$0xf]
      %v341 = vld [vmem:[%s1 + $0xf4] sm:$0xf]
      %v342 = vld [vmem:[%s1 + $0xf8] sm:$0xf]
      %v343 = vld [vmem:[%s1 + $0xfc] sm:$0xf]
      %v344 = vld [vmem:[%s2] sm:$0x1]
      %v346 = vlaneseq
      %v347 = vshrl.u32 %v346, 7
      %v348 = vsub.s32 0, %v347
      %v349 = vrot.slane %v344, %v348
      %v353 = vunpack.c.l.b16 %v278
      %v354 = vunpack.c.h.b16 %v278
      %v355 = vunpack.c.l.b16 %v279
      %v356 = vunpack.c.h.b16 %v279
      %v357 = vpack.c.b16 %v353, %v353
      %v358 = vpack.c.b16 %v354, %v354
      %v359 = vpack.c.b16 %v355, %v355
      %v360 = vpack.c.b16 %v356, %v356
      %v429 = vunpack.c.l.b16 %v280
      %v430 = vunpack.c.l.b16 %v281
      %v431 = vunpack.c.l.b16 %v282
      %v432 = vunpack.c.l.b16 %v283
      %v433 = vunpack.c.l.b16 %v284
      %v434 = vunpack.c.l.b16 %v285
      %v435 = vunpack.c.l.b16 %v286
      %v436 = vunpack.c.l.b16 %v287
      %v437 = vunpack.c.l.b16 %v288
      %v438 = vunpack.c.l.b16 %v289
      %v439 = vunpack.c.l.b16 %v290
      %v440 = vunpack.c.l.b16 %v291
      %v441 = vunpack.c.l.b16 %v292
      %v442 = vunpack.c.l.b16 %v293
      %v443 = vunpack.c.l.b16 %v294
      %v444 = vunpack.c.l.b16 %v295
      %v445 = vunpack.c.l.b16 %v296
      %v446 = vunpack.c.l.b16 %v297
      %v447 = vunpack.c.l.b16 %v298
      %v448 = vunpack.c.l.b16 %v299
      %v449 = vunpack.c.l.b16 %v300
      %v450 = vunpack.c.l.b16 %v301
      %v451 = vunpack.c.l.b16 %v302
      %v452 = vunpack.c.l.b16 %v303
      %v453 = vunpack.c.l.b16 %v304
      %v454 = vunpack.c.l.b16 %v305
      %v455 = vunpack.c.l.b16 %v306
      %v456 = vunpack.c.l.b16 %v307
      %v457 = vunpack.c.l.b16 %v308
      %v458 = vunpack.c.l.b16 %v309
      %v459 = vunpack.c.l.b16 %v310
      %v460 = vunpack.c.l.b16 %v311
      %v461 = vunpack.c.l.b16 %v312
      %v462 = vunpack.c.l.b16 %v313
      %v463 = vunpack.c.l.b16 %v314
      %v464 = vunpack.c.l.b16 %v315
      %v465 = vunpack.c.l.b16 %v316
      %v466 = vunpack.c.l.b16 %v317
      %v467 = vunpack.c.l.b16 %v318
      %v468 = vunpack.c.l.b16 %v319
      %v469 = vunpack.c.l.b16 %v320
      %v470 = vunpack.c.l.b16 %v321
      %v471 = vunpack.c.l.b16 %v322
      %v472 = vunpack.c.l.b16 %v323
      %v473 = vunpack.c.l.b16 %v324
      %v474 = vunpack.c.l.b16 %v325
      %v475 = vunpack.c.l.b16 %v326
      %v476 = vunpack.c.l.b16 %v327
      %v477 = vunpack.c.l.b16 %v328
      %v478 = vunpack.c.l.b16 %v329
      %v479 = vunpack.c.l.b16 %v330
      %v480 = vunpack.c.l.b16 %v331
      %v481 = vunpack.c.l.b16 %v332
      %v482 = vunpack.c.l.b16 %v333
      %v483 = vunpack.c.l.b16 %v334
      %v484 = vunpack.c.l.b16 %v335
      %v485 = vunpack.c.l.b16 %v336
      %v486 = vunpack.c.l.b16 %v337
      %v487 = vunpack.c.l.b16 %v338
      %v488 = vunpack.c.l.b16 %v339
      %v489 = vunpack.c.l.b16 %v340
      %v490 = vunpack.c.l.b16 %v341
      %v491 = vunpack.c.l.b16 %v342
      %v492 = vunpack.c.l.b16 %v343
      %v493 = vpack.c.b16 %v430, %v429
      %v494 = vpack.c.b16 %v432, %v431
      %v495 = vpack.c.b16 %v434, %v433
      %v496 = vpack.c.b16 %v436, %v435
      %v497 = vpack.c.b16 %v438, %v437
      %v498 = vpack.c.b16 %v440, %v439
      %v499 = vpack.c.b16 %v442, %v441
      %v500 = vpack.c.b16 %v444, %v443
      %v501 = vpack.c.b16 %v446, %v445
      %v502 = vpack.c.b16 %v448, %v447
      %v503 = vpack.c.b16 %v450, %v449
      %v504 = vpack.c.b16 %v452, %v451
      %v505 = vpack.c.b16 %v454, %v453
      %v506 = vpack.c.b16 %v456, %v455
      %v507 = vpack.c.b16 %v458, %v457
      %v508 = vpack.c.b16 %v460, %v459
      %v509 = vpack.c.b16 %v462, %v461
      %v510 = vpack.c.b16 %v464, %v463
      %v511 = vpack.c.b16 %v466, %v465
      %v512 = vpack.c.b16 %v468, %v467
      %v513 = vpack.c.b16 %v470, %v469
      %v514 = vpack.c.b16 %v472, %v471
      %v515 = vpack.c.b16 %v474, %v473
      %v516 = vpack.c.b16 %v476, %v475
      %v517 = vpack.c.b16 %v478, %v477
      %v518 = vpack.c.b16 %v480, %v479
      %v519 = vpack.c.b16 %v482, %v481
      %v520 = vpack.c.b16 %v484, %v483
      %v521 = vpack.c.b16 %v486, %v485
      %v522 = vpack.c.b16 %v488, %v487
      %v523 = vpack.c.b16 %v490, %v489
      %v524 = vpack.c.b16 %v492, %v491
      %557 = vmatprep.subr.bf16.mxu0 0
      %558 = vmatpush1.bf16.msra.mxu0 %v493
      %559 = vmatprep.subr.bf16.mxu0 0
      %560 = vmatpush1.bf16.msra.mxu0 %v494
      %561 = vmatprep.subr.bf16.mxu0 0
      %562 = vmatpush1.bf16.msra.mxu0 %v495
      %563 = vmatprep.subr.bf16.mxu0 0
      %564 = vmatpush1.bf16.msra.mxu0 %v496
      %565 = vmatprep.subr.bf16.mxu0 0
      %566 = vmatpush1.bf16.msra.mxu0 %v497
      %567 = vmatprep.subr.bf16.mxu0 0
      %568 = vmatpush1.bf16.msra.mxu0 %v498
      %569 = vmatprep.subr.bf16.mxu0 0
      %570 = vmatpush1.bf16.msra.mxu0 %v499
      %571 = vmatprep.subr.bf16.mxu0 0
      %572 = vmatpush1.bf16.msra.mxu0 %v500
      %573 = vmatprep.subr.bf16.mxu0 0
      %574 = vmatpush1.bf16.msra.mxu0 %v501
      %575 = vmatprep.subr.bf16.mxu0 0
      %576 = vmatpush1.bf16.msra.mxu0 %v502
      %577 = vmatprep.subr.bf16.mxu0 0
      %578 = vmatpush1.bf16.msra.mxu0 %v503
      %579 = vmatprep.subr.bf16.mxu0 0
      %580 = vmatpush1.bf16.msra.mxu0 %v504
      %581 = vmatprep.subr.bf16.mxu0 0
      %582 = vmatpush1.bf16.msra.mxu0 %v505
      %583 = vmatprep.subr.bf16.mxu0 0
      %584 = vmatpush1.bf16.msra.mxu0 %v506
      %585 = vmatprep.subr.bf16.mxu0 0
      %586 = vmatpush1.bf16.msra.mxu0 %v507
      %587 = vmatprep.subr.bf16.mxu0 0
      %588 = vmatpush1.bf16.msra.mxu0 %v508
      %589 = vmatprep.mubr.bf16.mxu0 %v358
      %590 = vmatmul.mubr.bf16.gmra.mrb[0].mxu0 %v357
      %v591 = vpop.f32.mrb[0].mxu0
      %v592 = vadd.f32 %v349, %v591
      %v593 = vpop.f32.mrb[0].mxu0
      %v594 = vpop.f32.mrb[0].mxu0
      %v595 = vpop.f32.mrb[0].mxu0
      %596 = vdwg.mxu0
      %597 = vmatprep.subr.bf16.mxu0 0
      %598 = vmatpush1.bf16.msra.mxu0 %v509
      %599 = vmatprep.subr.bf16.mxu0 0
      %600 = vmatpush1.bf16.msra.mxu0 %v510
      %601 = vmatprep.subr.bf16.mxu0 0
      %602 = vmatpush1.bf16.msra.mxu0 %v511
      %603 = vmatprep.subr.bf16.mxu0 0
      %604 = vmatpush1.bf16.msra.mxu0 %v512
      %605 = vmatprep.subr.bf16.mxu0 0
      %606 = vmatpush1.bf16.msra.mxu0 %v513
      %607 = vmatprep.subr.bf16.mxu0 0
      %608 = vmatpush1.bf16.msra.mxu0 %v514
      %609 = vmatprep.subr.bf16.mxu0 0
      %610 = vmatpush1.bf16.msra.mxu0 %v515
      %611 = vmatprep.subr.bf16.mxu0 0
      %612 = vmatpush1.bf16.msra.mxu0 %v516
      %613 = vmatprep.subr.bf16.mxu0 0
      %614 = vmatpush1.bf16.msra.mxu0 %v517
      %615 = vmatprep.subr.bf16.mxu0 0
      %616 = vmatpush1.bf16.msra.mxu0 %v518
      %617 = vmatprep.subr.bf16.mxu0 0
      %618 = vmatpush1.bf16.msra.mxu0 %v519
      %619 = vmatprep.subr.bf16.mxu0 0
      %620 = vmatpush1.bf16.msra.mxu0 %v520
      %621 = vmatprep.subr.bf16.mxu0 0
      %622 = vmatpush1.bf16.msra.mxu0 %v521
      %623 = vmatprep.subr.bf16.mxu0 0
      %624 = vmatpush1.bf16.msra.mxu0 %v522
      %625 = vmatprep.subr.bf16.mxu0 0
      %626 = vmatpush1.bf16.msra.mxu0 %v523
      %627 = vmatprep.subr.bf16.mxu0 0
      %628 = vmatpush1.bf16.msra.mxu0 %v524
      %629 = vmatprep.mubr.bf16.mxu0 %v360
      %630 = vmatmul.mubr.bf16.gmra.mrb[0].mxu0 %v359
      %v631 = vpop.f32.mrb[0].mxu0
      %v632 = vadd.f32 %v592, %v631
      %v633 = vpop.f32.mrb[0].mxu0
      %v634 = vpop.f32.mrb[0].mxu0
      %v635 = vpop.f32.mrb[0].mxu0
      %636 = vdwg.mxu0
      %v637 = vmax.f32 %v632, 0.0
      %v638 = vpack.c.bf16 %v637, %v637
      %v639 = vld [vmem:[%s3] sm:$0xf]
      %v640 = vld [vmem:[%s3 + $0x4] sm:$0xf]
      %v641 = vld [vmem:[%s3 + $0x8] sm:$0xf]
      %v642 = vld [vmem:[%s3 + $0xc] sm:$0xf]
      %v643 = vld [vmem:[%s3 + $0x10] sm:$0xf]
      %v644 = vld [vmem:[%s3 + $0x14] sm:$0xf]
      %v645 = vld [vmem:[%s3 + $0x18] sm:$0xf]
      %v646 = vld [vmem:[%s3 + $0x1c] sm:$0xf]
      %v647 = vld [vmem:[%s3 + $0x20] sm:$0xf]
      %v648 = vld [vmem:[%s3 + $0x24] sm:$0xf]
      %v649 = vld [vmem:[%s3 + $0x28] sm:$0xf]
      %v650 = vld [vmem:[%s3 + $0x2c] sm:$0xf]
      %v651 = vld [vmem:[%s3 + $0x30] sm:$0xf]
      %v652 = vld [vmem:[%s3 + $0x34] sm:$0xf]
      %v653 = vld [vmem:[%s3 + $0x38] sm:$0xf]
      %v654 = vld [vmem:[%s3 + $0x3c] sm:$0xf]
      %v655 = vld [vmem:[%s4] sm:$0x1]
      %v657 = vlaneseq
      %v658 = vshrl.u32 %v657, 7
      %v659 = vsub.s32 0, %v658
      %v660 = vrot.slane %v655, %v659
      %v678 = vunpack.c.l.b16 %v639
      %v679 = vunpack.c.l.b16 %v640
      %v680 = vunpack.c.l.b16 %v641
      %v681 = vunpack.c.l.b16 %v642
      %v682 = vunpack.c.l.b16 %v643
      %v683 = vunpack.c.l.b16 %v644
      %v684 = vunpack.c.l.b16 %v645
      %v685 = vunpack.c.l.b16 %v646
      %v686 = vunpack.c.l.b16 %v647
      %v687 = vunpack.c.l.b16 %v648
      %v688 = vunpack.c.l.b16 %v649
      %v689 = vunpack.c.l.b16 %v650
      %v690 = vunpack.c.l.b16 %v651
      %v691 = vunpack.c.l.b16 %v652
      %v692 = vunpack.c.l.b16 %v653
      %v693 = vunpack.c.l.b16 %v654
      %v694 = vpack.c.b16 %v679, %v678
      %v695 = vpack.c.b16 %v681, %v680
      %v696 = vpack.c.b16 %v683, %v682
      %v697 = vpack.c.b16 %v685, %v684
      %v698 = vpack.c.b16 %v687, %v686
      %v699 = vpack.c.b16 %v689, %v688
      %v700 = vpack.c.b16 %v691, %v690
      %v701 = vpack.c.b16 %v693, %v692
      %710 = vmatprep.subr.bf16.mxu0 0
      %711 = vmatpush1.bf16.msra.mxu0 %v694
      %712 = vmatprep.subr.bf16.mxu0 0
      %713 = vmatpush1.bf16.msra.mxu0 %v695
      %714 = vmatprep.subr.bf16.mxu0 0
      %715 = vmatpush1.bf16.msra.mxu0 %v696
      %716 = vmatprep.subr.bf16.mxu0 0
      %717 = vmatpush1.bf16.msra.mxu0 %v697
      %718 = vmatprep.subr.bf16.mxu0 0
      %719 = vmatpush1.bf16.msra.mxu0 %v698
      %720 = vmatprep.subr.bf16.mxu0 0
      %721 = vmatpush1.bf16.msra.mxu0 %v699
      %722 = vmatprep.subr.bf16.mxu0 0
      %723 = vmatpush1.bf16.msra.mxu0 %v700
      %724 = vmatprep.subr.bf16.mxu0 0
      %725 = vmatpush1.bf16.msra.mxu0 %v701
      %726 = vmatprep.subr.bf16.mxu0 0
      %727 = vmatpush1.bf16.msra.mxu0 0
      %728 = vmatprep.subr.bf16.mxu0 0
      %729 = vmatpush1.bf16.msra.mxu0 0
      %730 = vmatprep.subr.bf16.mxu0 0
      %731 = vmatpush1.bf16.msra.mxu0 0
      %732 = vmatprep.subr.bf16.mxu0 0
      %733 = vmatpush1.bf16.msra.mxu0 0
      %734 = vmatprep.subr.bf16.mxu0 0
      %735 = vmatpush1.bf16.msra.mxu0 0
      %736 = vmatprep.subr.bf16.mxu0 0
      %737 = vmatpush1.bf16.msra.mxu0 0
      %738 = vmatprep.subr.bf16.mxu0 0
      %739 = vmatpush1.bf16.msra.mxu0 0
      %740 = vmatprep.subr.bf16.mxu0 0
      %741 = vmatpush1.bf16.msra.mxu0 0
      %742 = vmatprep.mubr.bf16.mxu0 0
      %743 = vmatmul.mubr.bf16.gmra.mrb[0].mxu0 %v638
      %v744 = vpop.f32.mrb[0].mxu0
      %v745 = vadd.f32 %v660, %v744
      %v746 = vpop.f32.mrb[0].mxu0
      %v747 = vpop.f32.mrb[0].mxu0
      %v748 = vpop.f32.mrb[0].mxu0
      %749 = vdwg.mxu0
      %v750 = vmax.f32 %v745, 0.0
      %v751 = vpack.c.bf16 %v750, %v750
      %v752 = vld [vmem:[%s5] sm:$0xf]
      %v753 = vld [vmem:[%s5 + $0x4] sm:$0xf]
      %v754 = vld [vmem:[%s5 + $0x8] sm:$0xf]
      %v755 = vld [vmem:[%s5 + $0xc] sm:$0xf]
      %v756 = vld [vmem:[%s5 + $0x10] sm:$0xf]
      %v757 = vld [vmem:[%s5 + $0x14] sm:$0xf]
      %v758 = vld [vmem:[%s5 + $0x18] sm:$0xf]
      %v759 = vld [vmem:[%s5 + $0x1c] sm:$0xf]
      %v760 = vld [vmem:[%s5 + $0x20] sm:$0xf]
      %v761 = vld [vmem:[%s5 + $0x24] sm:$0xf]
      %v762 = vld [vmem:[%s5 + $0x28] sm:$0xf]
      %v763 = vld [vmem:[%s5 + $0x2c] sm:$0xf]
      %v764 = vld [vmem:[%s5 + $0x30] sm:$0xf]
      %v765 = vld [vmem:[%s5 + $0x34] sm:$0xf]
      %v766 = vld [vmem:[%s5 + $0x38] sm:$0xf]
      %v767 = vld [vmem:[%s5 + $0x3c] sm:$0xf]
      %v768 = vld [vmem:[%s6] sm:$0x1]
      %v770 = vlaneseq
      %v771 = vshrl.u32 %v770, 7
      %v772 = vsub.s32 0, %v771
      %v773 = vrot.slane %v768, %v772
      %v791 = vunpack.c.l.b16 %v752
      %v792 = vunpack.c.l.b16 %v753
      %v793 = vunpack.c.l.b16 %v754
      %v794 = vunpack.c.l.b16 %v755
      %v795 = vunpack.c.l.b16 %v756
      %v796 = vunpack.c.l.b16 %v757
      %v797 = vunpack.c.l.b16 %v758
      %v798 = vunpack.c.l.b16 %v759
      %v799 = vunpack.c.l.b16 %v760
      %v800 = vunpack.c.l.b16 %v761
      %v801 = vunpack.c.l.b16 %v762
      %v802 = vunpack.c.l.b16 %v763
      %v803 = vunpack.c.l.b16 %v764
      %v804 = vunpack.c.l.b16 %v765
      %v805 = vunpack.c.l.b16 %v766
      %v806 = vunpack.c.l.b16 %v767
      %v807 = vpack.c.b16 %v792, %v791
      %v808 = vpack.c.b16 %v794, %v793
      %v809 = vpack.c.b16 %v796, %v795
      %v810 = vpack.c.b16 %v798, %v797
      %v811 = vpack.c.b16 %v800, %v799
      %v812 = vpack.c.b16 %v802, %v801
      %v813 = vpack.c.b16 %v804, %v803
      %v814 = vpack.c.b16 %v806, %v805
      %823 = vmatprep.subr.bf16.mxu0 0
      %824 = vmatpush1.bf16.msra.mxu0 %v807
      %825 = vmatprep.subr.bf16.mxu0 0
      %826 = vmatpush1.bf16.msra.mxu0 %v808
      %827 = vmatprep.subr.bf16.mxu0 0
      %828 = vmatpush1.bf16.msra.mxu0 %v809
      %829 = vmatprep.subr.bf16.mxu0 0
      %830 = vmatpush1.bf16.msra.mxu0 %v810
      %831 = vmatprep.subr.bf16.mxu0 0
      %832 = vmatpush1.bf16.msra.mxu0 %v811
      %833 = vmatprep.subr.bf16.mxu0 0
      %834 = vmatpush1.bf16.msra.mxu0 %v812
      %835 = vmatprep.subr.bf16.mxu0 0
      %836 = vmatpush1.bf16.msra.mxu0 %v813
      %837 = vmatprep.subr.bf16.mxu0 0
      %838 = vmatpush1.bf16.msra.mxu0 %v814
      %839 = vmatprep.subr.bf16.mxu0 0
      %840 = vmatpush1.bf16.msra.mxu0 0
      %841 = vmatprep.subr.bf16.mxu0 0
      %842 = vmatpush1.bf16.msra.mxu0 0
      %843 = vmatprep.subr.bf16.mxu0 0
      %844 = vmatpush1.bf16.msra.mxu0 0
      %845 = vmatprep.subr.bf16.mxu0 0
      %846 = vmatpush1.bf16.msra.mxu0 0
      %847 = vmatprep.subr.bf16.mxu0 0
      %848 = vmatpush1.bf16.msra.mxu0 0
      %849 = vmatprep.subr.bf16.mxu0 0
      %850 = vmatpush1.bf16.msra.mxu0 0
      %851 = vmatprep.subr.bf16.mxu0 0
      %852 = vmatpush1.bf16.msra.mxu0 0
      %853 = vmatprep.subr.bf16.mxu0 0
      %854 = vmatpush1.bf16.msra.mxu0 0
      %855 = vmatprep.mubr.bf16.mxu0 0
      %856 = vmatmul.mubr.bf16.gmra.mrb[0].mxu0 %v751
      %v857 = vpop.f32.mrb[0].mxu0
      %v858 = vadd.f32 %v773, %v857
      %v859 = vpop.f32.mrb[0].mxu0
      %v860 = vpop.f32.mrb[0].mxu0
      %v861 = vpop.f32.mrb[0].mxu0
      %862 = vdwg.mxu0
      %863 = vst [vmem:[%s276] sm:$0xff] %v858
      %p864 = scmp.lt.s32.totalorder %s18, 1
      %s865 = scalar_select %p864, %s18, 1
      %s866 = smul.addr %s865, 8
      %s867 = scalar_lea.vmem %s7, %s866
      // Predicated region
      $region49: #{generalized_rcnn_inference.3} parent=47 // pred_check
        %p868 = pneg %p188
      $region50: #{generalized_rcnn_inference.3} parent=47 // pred_check_branch
        %870 = sbr.rel (%p868) target = $region52
      $region51: #{generalized_rcnn_inference.3} parent=47 // pred_region
        _
      $region52: #{generalized_rcnn_inference.3} parent=47 // pred_fallthru
        _
    $region48: #{generalized_rcnn_inference.3} parent=5 // pred_fallthru
      _
    %p871 = scmp.le.s32.totalorder 2, %s13
    // Predicated region
    $region53: #{generalized_rcnn_inference.3} parent=5 // pred_check
      %p872 = pneg %p871
    $region54: #{generalized_rcnn_inference.3} parent=5 // pred_check_branch
      %874 = sbr.rel (%p872) target = $region56
    $region55: #{generalized_rcnn_inference.3} parent=5 // pred_region
      %s875 = ssub.s32 %s13, 2
      // Predicated region
      $region57: #{generalized_rcnn_inference.3} parent=55 // pred_check
        %p876 = pneg %p194
      $region58: #{generalized_rcnn_inference.3} parent=55 // pred_check_branch
        %878 = sbr.rel (%p876) target = $region60
      $region59: #{generalized_rcnn_inference.3} parent=55 // pred_region
        %p879 = scmp.lt.s32.totalorder %s19, 1
        %s880 = scalar_select %p879, %s19, 1
        %s881 = smul.addr %s880, 8
        %s882 = scalar_lea.vmem %s7, %s881
      $region60: #{generalized_rcnn_inference.3} parent=55 // pred_fallthru
        _
    $region56: #{generalized_rcnn_inference.3} parent=5 // pred_fallthru
      _
  $region6: #{generalized_rcnn_inference.3} parent=0 // loop_footer
    %s17 = sadd.s32 1, %s13
  $region7: #{generalized_rcnn_inference.3} parent=0 // loop_footer_branch
    %12 = sbr.rel target = $region3
  $region8: #{generalized_rcnn_inference.3} parent=0 // loop_exit
    _

</llo_original>
